<compile_context>
chip_gen: v5e
topology: v5e:2x2
jax: 0.10.0
libtpu: 0.0.40
codegen_flags: <defaults>
</compile_context>

<pallas_src>
import functools

import jax
import jax.numpy as jnp
from jax.experimental import pallas as pl
from jax.experimental.pallas import tpu as pltpu

SLOPE = 0.2                      # LeakyReLU negative slope
BN_EPS = 1e-5                    # nn.BatchNorm2d default eps
LANE = 128


def _pick_vmem_limit():
    try:
        cap = pltpu.get_tpu_info().vmem_capacity_bytes
    except Exception:
        cap = 64 * 1024 * 1024
    # half of physical VMEM: 64 MiB on v5e/v6e (128 MiB phys), 32 MiB on v7x.
    return max(32 * 1024 * 1024, min(64 * 1024 * 1024, cap // 2))


VMEM_LIMIT = _pick_vmem_limit()
MAX_TM = 1024 if VMEM_LIMIT >= 64 * 1024 * 1024 else 512
MAX_TK = 1024


def _round_up(x, m):
    return ((x + m - 1) // m) * m


# --------------------------------------------------------------------------
# XLA glue (all h-sized, no 4x im2col inflation on the big layers)
# --------------------------------------------------------------------------

def _s2d_pad(h):
    """Zero-pad spatially by 1 and space-to-depth by 2.
    (N,H,W,C) -> (N, H//2+1, W//2+1, 4C) with
    y[n,a,b,(p,q,c)] = h_pad[n, 2a+p, 2b+q, c]   (channel order p,q,c)."""
    N, H, W, C = h.shape
    hp = jnp.pad(h, ((0, 0), (1, 1), (1, 1), (0, 0)))
    A, B = (H + 2) // 2, (W + 2) // 2
    y = hp.reshape(N, A, 2, B, 2, C).transpose(0, 1, 3, 2, 4, 5)
    return y.reshape(N, A, B, 4 * C)


def _w_fused(w, ocp):
    """(OC,C,4,4) -> (4, 4C, OCp).  Slab t=2*dh+dw holds columns (p,q,c) for
    kernel taps (kh,kw) = (2dh+p, 2dw+q), matching _s2d_pad's channel order."""
    oc, c = w.shape[0], w.shape[1]
    wt = w.transpose(2, 3, 1, 0).reshape(2, 2, 2, 2, c, oc)    # (dh,p,dw,q,c,oc)
    wt = wt.transpose(0, 2, 1, 3, 4, 5).reshape(4, 4 * c, oc)  # (dh,dw|p,q,c|oc)
    if ocp > oc:
        wt = jnp.pad(wt, ((0, 0), (0, 0), (0, ocp - oc)))
    return wt.astype(jnp.bfloat16)


def _w_to_mat(w):
    """(OC, C, KH, KW) -> (KH*KW*C, OC), rows ordered (kh, kw, c)."""
    return w.transpose(2, 3, 1, 0).reshape(-1, w.shape[0])


def _im2col_nhwc(x, k, stride, pad):
    """Fallback im2col (only used for the tiny late layers)."""
    N, H, W, C = x.shape
    xp = jnp.pad(x, ((0, 0), (pad, pad), (pad, pad), (0, 0))) if pad else x
    OH = (H + 2 * pad - k) // stride + 1
    OW = (W + 2 * pad - k) // stride + 1
    cols = []
    for i in range(k):
        for j in range(k):
            patch = jax.lax.slice(
                xp, (0, i, j, 0),
                (N, i + stride * (OH - 1) + 1, j + stride * (OW - 1) + 1, C),
                (1, stride, stride, 1))
            cols.append(patch)
    p = jnp.stack(cols, axis=3)                    # (N, OH, OW, k*k, C)
    return p.reshape(N * OH * OW, k * k * C), OH, OW


def _finalize_stats(psum, pssq, count, oc):
    s = jnp.sum(psum, axis=0)[:oc]
    sq = jnp.sum(pssq, axis=0)[:oc]
    mean = s / float(count)
    var = jnp.maximum(sq / float(count) - mean * mean, 0.0)   # biased (train)
    return mean, var


# --------------------------------------------------------------------------
# Pallas kernels
# --------------------------------------------------------------------------

def _fused_conv_kernel(y_ref, w_ref, o_ref, psum_ref, pssq_ref,
                       *, oh, ow, apply_lrelu):
    """One sample per grid step.  y_ref: space-to-depth'd zero-padded activated
    input (1, OH+1, OW+1, 4C).  The k4/s2/p1 conv == 2x2/s1 conv on y: the four
    (dh,dw)-shifted views are built in VMEM (im2col never touches HBM) and each
    feeds one MXU matmul against its (4C, OCp) weight slab.  Also emits
    per-sample partial sums for this layer's BatchNorm batch statistics."""
    y = y_ref[0]                                         # (oh+1, ow+1, 4C) bf16
    acc = None
    for dh in range(2):
        for dw in range(2):
            a = y[dh:dh + oh, dw:dw + ow, :].reshape(oh * ow, -1)
            part = jnp.dot(a, w_ref[2 * dh + dw],
                           preferred_element_type=jnp.float32)
            acc = part if acc is None else acc + part    # (oh*ow, OCp) f32

    if apply_lrelu:                                      # layer 1 (no BN)
        out = jnp.where(acc >= 0.0, acc, SLOPE * acc)
    else:
        out = acc
    o_ref[0] = out.astype(o_ref.dtype)

    s = jnp.sum(acc, axis=0, keepdims=True)              # (1, OCp)
    sq = jnp.sum(acc * acc, axis=0, keepdims=True)
    row0 = jax.lax.broadcasted_iota(jnp.int32, (8, 1), 0) == 0
    psum_ref[...] = jnp.where(row0, s, 0.0)
    pssq_ref[...] = jnp.where(row0, sq, 0.0)


def _matmul_stats_kernel(a_ref, w_ref, o_ref, psum_ref, pssq_ref, acc_ref,
                         *, true_m, tm):
    """K-tiled bf16 matmul with f32 accumulator + per-M-tile BN partial sums.
    (Used only for the small layers where the fused-im2col path is skipped.)"""
    i, k = pl.program_id(0), pl.program_id(1)

    @pl.when(k == 0)
    def _():
        acc_ref[...] = jnp.zeros_like(acc_ref)

    acc_ref[...] += jnp.dot(a_ref[...], w_ref[...],
                            preferred_element_type=jnp.float32)

    @pl.when(k == pl.num_programs(1) - 1)
    def _():
        acc = acc_ref[...]
        o_ref[...] = acc.astype(o_ref.dtype)
        rows = jax.lax.broadcasted_iota(jnp.int32, (tm, 1), 0) + i * tm
        accm = jnp.where(rows < true_m, acc, 0.0)        # mask padded M rows
        s = jnp.sum(accm, axis=0, keepdims=True)
        sq = jnp.sum(accm * accm, axis=0, keepdims=True)
        row0 = jax.lax.broadcasted_iota(jnp.int32, (8, 1), 0) == 0
        psum_ref[...] = jnp.where(row0, s, 0.0)
        pssq_ref[...] = jnp.where(row0, sq, 0.0)


# --------------------------------------------------------------------------
# pallas_call wrappers
# --------------------------------------------------------------------------

def _fused_conv_call(h, w, ocp, *, apply_lrelu):
    """h: (N,H,W,C) activated bf16 NHWC.  Returns c:(N, OH*OW, OCp) bf16 plus
    per-sample BN partial sums and the output spatial size."""
    N, H, W, C = h.shape
    OH, OW = H // 2, W // 2
    c4 = 4 * C
    y = _s2d_pad(h)                                     # (N, OH+1, OW+1, 4C)
    wf = _w_fused(w, ocp)                               # (4, 4C, OCp)
    kernel = functools.partial(_fused_conv_kernel, oh=OH, ow=OW,
                               apply_lrelu=apply_lrelu)
    c, psum, pssq = pl.pallas_call(
        kernel,
        out_shape=(jax.ShapeDtypeStruct((N, OH * OW, ocp), jnp.bfloat16),
                   jax.ShapeDtypeStruct((N * 8, ocp), jnp.float32),
                   jax.ShapeDtypeStruct((N * 8, ocp), jnp.float32)),
        grid=(N,),
        in_specs=[pl.BlockSpec((1, OH + 1, OW + 1, c4), lambda n: (n, 0, 0, 0)),
                  pl.BlockSpec((4, c4, ocp), lambda n: (0, 0, 0))],
        out_specs=(pl.BlockSpec((1, OH * OW, ocp), lambda n: (n, 0, 0)),
                   pl.BlockSpec((8, ocp), lambda n: (n, 0)),
                   pl.BlockSpec((8, ocp), lambda n: (n, 0))),
        compiler_params=pltpu.CompilerParams(
            dimension_semantics=("parallel",),
            vmem_limit_bytes=VMEM_LIMIT),
    )(y, wf)
    return c, psum, pssq, OH, OW


def _matmul_stats_call(a, w_mat, ocp):
    """a:(M,K) bf16 @ w_mat:(K,OC) bf16 -> c:(M, OCp) bf16 + BN partial sums."""
    M, K = a.shape
    OC = w_mat.shape[1]
    TM = min(MAX_TM, _round_up(M, 8))
    Mp = _round_up(M, TM)
    if K % LANE == 0:
        TK = min(MAX_TK, K)
        while K % TK:
            TK -= LANE
    else:
        TK = K                      # full-K block (legal: equals the array dim)
    if Mp > M:
        a = jnp.pad(a, ((0, Mp - M), (0, 0)))
    if ocp > OC:
        w_mat = jnp.pad(w_mat, ((0, 0), (0, ocp - OC)))
    n_mt = Mp // TM
    c, psum, pssq = pl.pallas_call(
        functools.partial(_matmul_stats_kernel, true_m=M, tm=TM),
        out_shape=(jax.ShapeDtypeStruct((Mp, ocp), jnp.bfloat16),
                   jax.ShapeDtypeStruct((n_mt * 8, ocp), jnp.float32),
                   jax.ShapeDtypeStruct((n_mt * 8, ocp), jnp.float32)),
        grid=(n_mt, K // TK),
        in_specs=[pl.BlockSpec((TM, TK), lambda i, k: (i, k)),
                  pl.BlockSpec((TK, ocp), lambda i, k: (k, 0))],
        out_specs=(pl.BlockSpec((TM, ocp), lambda i, k: (i, 0)),
                   pl.BlockSpec((8, ocp), lambda i, k: (i, 0)),
                   pl.BlockSpec((8, ocp), lambda i, k: (i, 0))),
        scratch_shapes=[pltpu.VMEM((TM, ocp), jnp.float32)],
        compiler_params=pltpu.CompilerParams(
            dimension_semantics=("parallel", "arbitrary"),
            vmem_limit_bytes=VMEM_LIMIT),
    )(a, w_mat)
    return c[:M], psum, pssq


# --------------------------------------------------------------------------
# layers
# --------------------------------------------------------------------------

def _fusable(H, W):
    # fused path needs even spatial (stride-2 space-to-depth) and OW % 8 == 0
    # so the in-kernel (OH, OW, 4C) -> (OH*OW, 4C) reshape stays tile-aligned.
    return H % 2 == 0 and W % 2 == 0 and (W // 2) % 8 == 0


def _conv_lrelu_layer(h, w):
    """conv(k4,s2,p1) -> LeakyReLU (layer 1, no BN).  Returns NHWC bf16."""
    N, H, W, _ = h.shape
    OC = w.shape[0]
    ocp = _round_up(OC, LANE)
    if _fusable(H, W):
        c, _, _, OH, OW = _fused_conv_call(h, w, ocp, apply_lrelu=True)
        return c[:, :, :OC].reshape(N, OH, OW, OC)
    a, OH, OW = _im2col_nhwc(h, 4, 2, 1)
    c, _, _ = _matmul_stats_call(a, _w_to_mat(w).astype(jnp.bfloat16), ocp)
    cf = c[:, :OC].astype(jnp.float32)
    cf = jnp.where(cf >= 0.0, cf, SLOPE * cf)
    return cf.reshape(N, OH, OW, OC).astype(jnp.bfloat16)


def _conv_stats_layer(h, w):
    """conv(k4,s2,p1) + per-channel batch mean/var of the raw conv output."""
    N, H, W, _ = h.shape
    OC = w.shape[0]
    ocp = _round_up(OC, LANE)
    if _fusable(H, W):
        c, psum, pssq, OH, OW = _fused_conv_call(h, w, ocp, apply_lrelu=False)
        c = c[:, :, :OC]
    else:
        a, OH, OW = _im2col_nhwc(h, 4, 2, 1)
        cm, psum, pssq = _matmul_stats_call(
            a, _w_to_mat(w).astype(jnp.bfloat16), ocp)
        c = cm[:, :OC].reshape(N, OH * OW, OC)
    mean, var = _finalize_stats(psum, pssq, N * OH * OW, OC)
    return c, mean, var, OH, OW, OC


def critic_forward(x, params):
    """x: (N, n_channels, 64, 64) float32 -> (N,) float32 (== .view(-1))."""
    N = x.shape[0]
    h = jnp.transpose(x, (0, 2, 3, 1)).astype(jnp.bfloat16)   # NCHW->NHWC once

    # layer 1: conv -> LeakyReLU (fused into the kernel epilogue)
    h = _conv_lrelu_layer(h, params["w1"])

    # layers 2-4: conv -> BatchNorm2d(batch stats) -> LeakyReLU.  BN+LReLU is
    # applied exactly once per h element in fused XLA glue (not on im2col A).
    for i in (2, 3, 4):
        c, mean, var, OH, OW, OC = _conv_stats_layer(h, params[f"w{i}"])
        inv = params[f"g{i}"] / jnp.sqrt(var + BN_EPS)
        hf = (c.astype(jnp.float32) - mean) * inv + params[f"b{i}"]
        hf = jnp.where(hf >= 0.0, hf, SLOPE * hf)
        h = hf.reshape(N, OH, OW, OC).astype(jnp.bfloat16)

    # layer 5: conv(k4,s2,p0, OC=1) on a 4x4 map == one (N,16C)@(16C,1) dot --
    # far too small for a Pallas kernel to help.
    a5 = h.reshape(N, -1).astype(jnp.float32)                 # (kh,kw,c) order
    w5 = _w_to_mat(params["w5"]).astype(jnp.float32)
    return (a5 @ w5).reshape(-1)


# --------------------------------------------------------------------------
# pure-JAX reference (PyTorch semantics) + demo
# --------------------------------------------------------------------------

def critic_reference(x, params):
    def conv(x, w, stride, pad):
        return jax.lax.conv_general_dilated(
            x, w, window_strides=(stride, stride),
            padding=[(pad, pad), (pad, pad)],
            dimension_numbers=("NCHW", "OIHW", "NCHW"))

    def bn(x, gamma, beta):
        mean = jnp.mean(x, axis=(0, 2, 3), keepdims=True)
        var = jnp.mean((x - mean) ** 2, axis=(0, 2, 3), keepdims=True)
        xn = (x - mean) / jnp.sqrt(var + BN_EPS)
        return xn * gamma.reshape(1, -1, 1, 1) + beta.reshape(1, -1, 1, 1)

    def lrelu(v):
        return jnp.where(v >= 0.0, v, SLOPE * v)

    h = lrelu(conv(x, params["w1"], 2, 1))
    h = lrelu(bn(conv(h, params["w2"], 2, 1), params["g2"], params["b2"]))
    h = lrelu(bn(conv(h, params["w3"], 2, 1), params["g3"], params["b3"]))
    h = lrelu(bn(conv(h, params["w4"], 2, 1), params["g4"], params["b4"]))
    return conv(h, params["w5"], 2, 0).reshape(-1)


def init_params(key, n_channels, width):
    shapes = {
        "w1": (width, n_channels, 4, 4),
        "w2": (width * 2, width, 4, 4),
        "w3": (width * 4, width * 2, 4, 4),
        "w4": (width * 8, width * 4, 4, 4),
        "w5": (1, width * 8, 4, 4),
    }
    params = {}
    for name, shp in shapes.items():
        key, sub = jax.random.split(key)
        params[name] = 0.05 * jax.random.normal(sub, shp, jnp.float32)
    for i, c in zip((2, 3, 4), (width * 2, width * 4, width * 8)):
        params[f"g{i}"] = jnp.ones((c,), jnp.float32)   # BatchNorm2d init
        params[f"b{i}"] = jnp.zeros((c,), jnp.float32)
    return params


if __name__ == "__main__":
    n_channels, width, batch = 3, 8, 2
    key = jax.random.PRNGKey(0)
    pkey, xkey = jax.random.split(key)
    params = init_params(pkey, n_channels, width)
    # Five stride-2 convs (last one 4x4/s2/p0) need a 64x64 input so the final
    # feature map is 1x1 -- the smallest spatial size the module supports.
    x = jax.random.normal(xkey, (batch, n_channels, 64, 64), jnp.float32)

    fwd = jax.jit(critic_forward)
    out = jax.block_until_ready(fwd(x, params))
    assert out.shape == (batch,), out.shape
    assert bool(jnp.all(jnp.isfinite(out)))

    ref = jax.block_until_ready(jax.jit(critic_reference)(x, params))
    err = float(jnp.max(jnp.abs(out - ref)))
    tol = 0.1 + 0.1 * float(jnp.max(jnp.abs(ref)))      # loose: bf16 MXU path
    assert err < tol, (err, tol)

    print("KERNEL_OK")
</pallas_src>

<mosaic_0001>
module attributes {stable_mosaic.version = 11 : i64} {
  func.func @_fused_conv_kernel(%arg0: i32, %arg1: memref<1x33x33x12xbf16, #tpu.memory_space<vmem>>, %arg2: memref<4x12x128xbf16, #tpu.memory_space<vmem>>, %arg3: memref<1x1024x128xbf16, #tpu.memory_space<vmem>>, %arg4: memref<8x128xf32, #tpu.memory_space<vmem>>, %arg5: memref<8x128xf32, #tpu.memory_space<vmem>>) attributes {dimension_semantics = [#tpu.dimension_semantics<parallel>], iteration_bounds = array<i64: 2>, scalar_prefetch = 0 : i64, scratch_operands = 0 : i64, tpu.core_type = #tpu.core_type<tc>, window_params = [{transform_indices = @transform_0, window_bounds = array<i64: 1, 33, 33, 12>}, {pipeline_mode = #tpu.pipeline_mode<synchronous>, transform_indices = @transform_1, window_bounds = array<i64: 4, 12, 128>}, {transform_indices = @transform_2, window_bounds = array<i64: 1, 1024, 128>}, {transform_indices = @transform_3, window_bounds = array<i64: 8, 128>}, {transform_indices = @transform_4, window_bounds = array<i64: 8, 128>}]} {
    %c0 = arith.constant 0 : index
    %c0_0 = arith.constant 0 : index
    %c0_1 = arith.constant 0 : index
    %c0_2 = arith.constant 0 : index
    %0 = vector.load %arg1[%c0, %c0_0, %c0_1, %c0_2] : memref<1x33x33x12xbf16, #tpu.memory_space<vmem>>, vector<1x33x33x12xbf16>
    %1 = vector.shape_cast %0 : vector<1x33x33x12xbf16> to vector<33x33x12xbf16>
    %2 = vector.extract_strided_slice %1 {offsets = [0, 0, 0], sizes = [32, 32, 12], strides = [1, 1, 1]} : vector<33x33x12xbf16> to vector<32x32x12xbf16>
    %3 = vector.shape_cast %2 : vector<32x32x12xbf16> to vector<1024x12xbf16>
    %c0_3 = arith.constant 0 : index
    %c0_4 = arith.constant 0 : index
    %c0_5 = arith.constant 0 : index
    %4 = vector.load %arg2[%c0_3, %c0_4, %c0_5] : memref<4x12x128xbf16, #tpu.memory_space<vmem>>, vector<1x12x128xbf16>
    %5 = vector.shape_cast %4 : vector<1x12x128xbf16> to vector<12x128xbf16>
    %cst = arith.constant dense<0.000000e+00> : vector<1024x128xf32>
    %6 = tpu.matmul %3, %5, %cst {dimension_numbers = #tpu.dot_dimension_numbers<[1], [0], [0], [1], [0, 0, 1, 1], [], []>} : vector<1024x12xbf16>, vector<12x128xbf16>, vector<1024x128xf32> -> vector<1024x128xf32>
    %7 = vector.extract_strided_slice %1 {offsets = [0, 1, 0], sizes = [32, 32, 12], strides = [1, 1, 1]} : vector<33x33x12xbf16> to vector<32x32x12xbf16>
    %8 = vector.shape_cast %7 : vector<32x32x12xbf16> to vector<1024x12xbf16>
    %c1 = arith.constant 1 : index
    %c0_6 = arith.constant 0 : index
    %c0_7 = arith.constant 0 : index
    %9 = vector.load %arg2[%c1, %c0_6, %c0_7] : memref<4x12x128xbf16, #tpu.memory_space<vmem>>, vector<1x12x128xbf16>
    %10 = vector.shape_cast %9 : vector<1x12x128xbf16> to vector<12x128xbf16>
    %cst_8 = arith.constant dense<0.000000e+00> : vector<1024x128xf32>
    %11 = tpu.matmul %8, %10, %cst_8 {dimension_numbers = #tpu.dot_dimension_numbers<[1], [0], [0], [1], [0, 0, 1, 1], [], []>} : vector<1024x12xbf16>, vector<12x128xbf16>, vector<1024x128xf32> -> vector<1024x128xf32>
    %12 = arith.addf %6, %11 : vector<1024x128xf32>
    %13 = vector.extract_strided_slice %1 {offsets = [1, 0, 0], sizes = [32, 32, 12], strides = [1, 1, 1]} : vector<33x33x12xbf16> to vector<32x32x12xbf16>
    %14 = vector.shape_cast %13 : vector<32x32x12xbf16> to vector<1024x12xbf16>
    %c2 = arith.constant 2 : index
    %c0_9 = arith.constant 0 : index
    %c0_10 = arith.constant 0 : index
    %15 = vector.load %arg2[%c2, %c0_9, %c0_10] : memref<4x12x128xbf16, #tpu.memory_space<vmem>>, vector<1x12x128xbf16>
    %16 = vector.shape_cast %15 : vector<1x12x128xbf16> to vector<12x128xbf16>
    %cst_11 = arith.constant dense<0.000000e+00> : vector<1024x128xf32>
    %17 = tpu.matmul %14, %16, %cst_11 {dimension_numbers = #tpu.dot_dimension_numbers<[1], [0], [0], [1], [0, 0, 1, 1], [], []>} : vector<1024x12xbf16>, vector<12x128xbf16>, vector<1024x128xf32> -> vector<1024x128xf32>
    %18 = arith.addf %12, %17 : vector<1024x128xf32>
    %19 = vector.extract_strided_slice %1 {offsets = [1, 1, 0], sizes = [32, 32, 12], strides = [1, 1, 1]} : vector<33x33x12xbf16> to vector<32x32x12xbf16>
    %20 = vector.shape_cast %19 : vector<32x32x12xbf16> to vector<1024x12xbf16>
    %c3 = arith.constant 3 : index
    %c0_12 = arith.constant 0 : index
    %c0_13 = arith.constant 0 : index
    %21 = vector.load %arg2[%c3, %c0_12, %c0_13] : memref<4x12x128xbf16, #tpu.memory_space<vmem>>, vector<1x12x128xbf16>
    %22 = vector.shape_cast %21 : vector<1x12x128xbf16> to vector<12x128xbf16>
    %cst_14 = arith.constant dense<0.000000e+00> : vector<1024x128xf32>
    %23 = tpu.matmul %20, %22, %cst_14 {dimension_numbers = #tpu.dot_dimension_numbers<[1], [0], [0], [1], [0, 0, 1, 1], [], []>} : vector<1024x12xbf16>, vector<12x128xbf16>, vector<1024x128xf32> -> vector<1024x128xf32>
    %24 = arith.addf %18, %23 : vector<1024x128xf32>
    %cst_15 = arith.constant 0.000000e+00 : f32
    %25 = vector.broadcast %cst_15 : f32 to vector<1024x128xf32>
    %26 = arith.cmpf oge, %24, %25 : vector<1024x128xf32>
    %cst_16 = arith.constant 2.000000e-01 : f32
    %27 = vector.broadcast %cst_16 : f32 to vector<1024x128xf32>
    %28 = arith.mulf %27, %24 : vector<1024x128xf32>
    %29 = arith.select %26, %24, %28 : vector<1024x128xi1>, vector<1024x128xf32>
    %30 = arith.truncf %29 : vector<1024x128xf32> to vector<1024x128xbf16>
    %c0_17 = arith.constant 0 : index
    %c0_18 = arith.constant 0 : index
    %c0_19 = arith.constant 0 : index
    %31 = vector.load %arg3[%c0_17, %c0_18, %c0_19] : memref<1x1024x128xbf16, #tpu.memory_space<vmem>>, vector<1x1024x128xbf16>
    %32 = vector.shape_cast %31 : vector<1x1024x128xbf16> to vector<1024x128xbf16>
    %33 = vector.shape_cast %30 : vector<1024x128xbf16> to vector<1x1024x128xbf16>
    tpu.vector_store %arg3[%c0_17, %c0_18, %c0_19], %33 {strides = array<i32>} : memref<1x1024x128xbf16, #tpu.memory_space<vmem>>, vector<1x1024x128xbf16>,
    %cst_20 = arith.constant dense<0.000000e+00> : vector<128xf32>
    %34 = vector.multi_reduction <add>, %24, %cst_20 [0] : vector<1024x128xf32> to vector<128xf32>
    %35 = vector.shape_cast %34 : vector<128xf32> to vector<1x128xf32>
    %36 = arith.mulf %24, %24 : vector<1024x128xf32>
    %cst_21 = arith.constant dense<0.000000e+00> : vector<128xf32>
    %37 = vector.multi_reduction <add>, %36, %cst_21 [0] : vector<1024x128xf32> to vector<128xf32>
    %38 = vector.shape_cast %37 : vector<128xf32> to vector<1x128xf32>
    %39 = tpu.iota {dimensions = array<i32: 0>} : vector<8x1xi32>
    %c0_i32 = arith.constant 0 : i32
    %40 = vector.broadcast %c0_i32 : i32 to vector<8x1xi32>
    %41 = arith.cmpi eq, %39, %40 : vector<8x1xi32>
    %cst_22 = arith.constant 0.000000e+00 : f32
    %42 = vector.shape_cast %41 : vector<8x1xi1> to vector<8x1xi1>
    %43 = vector.broadcast %42 : vector<8x1xi1> to vector<8x128xi1>
    %44 = vector.shape_cast %35 : vector<1x128xf32> to vector<1x128xf32>
    %45 = vector.broadcast %44 : vector<1x128xf32> to vector<8x128xf32>
    %46 = vector.broadcast %cst_22 : f32 to vector<8x128xf32>
    %47 = arith.select %43, %45, %46 : vector<8x128xi1>, vector<8x128xf32>
    %c0_23 = arith.constant 0 : index
    %c0_24 = arith.constant 0 : index
    %48 = vector.load %arg4[%c0_23, %c0_24] : memref<8x128xf32, #tpu.memory_space<vmem>>, vector<8x128xf32>
    tpu.vector_store %arg4[%c0_23, %c0_24], %47 {strides = array<i32>} : memref<8x128xf32, #tpu.memory_space<vmem>>, vector<8x128xf32>,
    %cst_25 = arith.constant 0.000000e+00 : f32
    %49 = vector.shape_cast %41 : vector<8x1xi1> to vector<8x1xi1>
    %50 = vector.broadcast %49 : vector<8x1xi1> to vector<8x128xi1>
    %51 = vector.shape_cast %38 : vector<1x128xf32> to vector<1x128xf32>
    %52 = vector.broadcast %51 : vector<1x128xf32> to vector<8x128xf32>
    %53 = vector.broadcast %cst_25 : f32 to vector<8x128xf32>
    %54 = arith.select %50, %52, %53 : vector<8x128xi1>, vector<8x128xf32>
    %c0_26 = arith.constant 0 : index
    %c0_27 = arith.constant 0 : index
    %55 = vector.load %arg5[%c0_26, %c0_27] : memref<8x128xf32, #tpu.memory_space<vmem>>, vector<8x128xf32>
    tpu.vector_store %arg5[%c0_26, %c0_27], %54 {strides = array<i32>} : memref<8x128xf32, #tpu.memory_space<vmem>>, vector<8x128xf32>,
    return
  }
  func.func @transform_0(%arg0: i32) -> (i32, i32, i32, i32) {
    %c0_i32 = arith.constant 0 : i32
    %c0_i32_0 = arith.constant 0 : i32
    %c0_i32_1 = arith.constant 0 : i32
    %c0_i32_2 = arith.constant 0 : i32
    return %arg0, %c0_i32, %c0_i32_0, %c0_i32_1 : i32, i32, i32, i32
  }
  func.func @transform_1(%arg0: i32) -> (i32, i32, i32) {
    %c0_i32 = arith.constant 0 : i32
    %c0_i32_0 = arith.constant 0 : i32
    %c0_i32_1 = arith.constant 0 : i32
    %c0_i32_2 = arith.constant 0 : i32
    return %c0_i32, %c0_i32_0, %c0_i32_1 : i32, i32, i32
  }
  func.func @transform_2(%arg0: i32) -> (i32, i32, i32) {
    %c0_i32 = arith.constant 0 : i32
    %c0_i32_0 = arith.constant 0 : i32
    %c0_i32_1 = arith.constant 0 : i32
    return %arg0, %c0_i32, %c0_i32_0 : i32, i32, i32
  }
  func.func @transform_3(%arg0: i32) -> (i32, i32) {
    %c0_i32 = arith.constant 0 : i32
    %c0_i32_0 = arith.constant 0 : i32
    return %arg0, %c0_i32 : i32, i32
  }
  func.func @transform_4(%arg0: i32) -> (i32, i32) {
    %c0_i32 = arith.constant 0 : i32
    %c0_i32_0 = arith.constant 0 : i32
    return %arg0, %c0_i32 : i32, i32
  }
}

module attributes {stable_mosaic.version = 11 : i64} {
  func.func @_fused_conv_kernel(%arg0: i32, %arg1: memref<1x17x17x32xbf16, #tpu.memory_space<vmem>>, %arg2: memref<4x32x128xbf16, #tpu.memory_space<vmem>>, %arg3: memref<1x256x128xbf16, #tpu.memory_space<vmem>>, %arg4: memref<8x128xf32, #tpu.memory_space<vmem>>, %arg5: memref<8x128xf32, #tpu.memory_space<vmem>>) attributes {dimension_semantics = [#tpu.dimension_semantics<parallel>], iteration_bounds = array<i64: 2>, scalar_prefetch = 0 : i64, scratch_operands = 0 : i64, tpu.core_type = #tpu.core_type<tc>, window_params = [{transform_indices = @transform_0, window_bounds = array<i64: 1, 17, 17, 32>}, {pipeline_mode = #tpu.pipeline_mode<synchronous>, transform_indices = @transform_1, window_bounds = array<i64: 4, 32, 128>}, {transform_indices = @transform_2, window_bounds = array<i64: 1, 256, 128>}, {transform_indices = @transform_3, window_bounds = array<i64: 8, 128>}, {transform_indices = @transform_4, window_bounds = array<i64: 8, 128>}]} {
    %c0 = arith.constant 0 : index
    %c0_0 = arith.constant 0 : index
    %c0_1 = arith.constant 0 : index
    %c0_2 = arith.constant 0 : index
    %0 = vector.load %arg1[%c0, %c0_0, %c0_1, %c0_2] : memref<1x17x17x32xbf16, #tpu.memory_space<vmem>>, vector<1x17x17x32xbf16>
    %1 = vector.shape_cast %0 : vector<1x17x17x32xbf16> to vector<17x17x32xbf16>
    %2 = vector.extract_strided_slice %1 {offsets = [0, 0, 0], sizes = [16, 16, 32], strides = [1, 1, 1]} : vector<17x17x32xbf16> to vector<16x16x32xbf16>
    %3 = vector.shape_cast %2 : vector<16x16x32xbf16> to vector<256x32xbf16>
    %c0_3 = arith.constant 0 : index
    %c0_4 = arith.constant 0 : index
    %c0_5 = arith.constant 0 : index
    %4 = vector.load %arg2[%c0_3, %c0_4, %c0_5] : memref<4x32x128xbf16, #tpu.memory_space<vmem>>, vector<1x32x128xbf16>
    %5 = vector.shape_cast %4 : vector<1x32x128xbf16> to vector<32x128xbf16>
    %cst = arith.constant dense<0.000000e+00> : vector<256x128xf32>
    %6 = tpu.matmul %3, %5, %cst {dimension_numbers = #tpu.dot_dimension_numbers<[1], [0], [0], [1], [0, 0, 1, 1], [], []>} : vector<256x32xbf16>, vector<32x128xbf16>, vector<256x128xf32> -> vector<256x128xf32>
    %7 = vector.extract_strided_slice %1 {offsets = [0, 1, 0], sizes = [16, 16, 32], strides = [1, 1, 1]} : vector<17x17x32xbf16> to vector<16x16x32xbf16>
    %8 = vector.shape_cast %7 : vector<16x16x32xbf16> to vector<256x32xbf16>
    %c1 = arith.constant 1 : index
    %c0_6 = arith.constant 0 : index
    %c0_7 = arith.constant 0 : index
    %9 = vector.load %arg2[%c1, %c0_6, %c0_7] : memref<4x32x128xbf16, #tpu.memory_space<vmem>>, vector<1x32x128xbf16>
    %10 = vector.shape_cast %9 : vector<1x32x128xbf16> to vector<32x128xbf16>
    %cst_8 = arith.constant dense<0.000000e+00> : vector<256x128xf32>
    %11 = tpu.matmul %8, %10, %cst_8 {dimension_numbers = #tpu.dot_dimension_numbers<[1], [0], [0], [1], [0, 0, 1, 1], [], []>} : vector<256x32xbf16>, vector<32x128xbf16>, vector<256x128xf32> -> vector<256x128xf32>
    %12 = arith.addf %6, %11 : vector<256x128xf32>
    %13 = vector.extract_strided_slice %1 {offsets = [1, 0, 0], sizes = [16, 16, 32], strides = [1, 1, 1]} : vector<17x17x32xbf16> to vector<16x16x32xbf16>
    %14 = vector.shape_cast %13 : vector<16x16x32xbf16> to vector<256x32xbf16>
    %c2 = arith.constant 2 : index
    %c0_9 = arith.constant 0 : index
    %c0_10 = arith.constant 0 : index
    %15 = vector.load %arg2[%c2, %c0_9, %c0_10] : memref<4x32x128xbf16, #tpu.memory_space<vmem>>, vector<1x32x128xbf16>
    %16 = vector.shape_cast %15 : vector<1x32x128xbf16> to vector<32x128xbf16>
    %cst_11 = arith.constant dense<0.000000e+00> : vector<256x128xf32>
    %17 = tpu.matmul %14, %16, %cst_11 {dimension_numbers = #tpu.dot_dimension_numbers<[1], [0], [0], [1], [0, 0, 1, 1], [], []>} : vector<256x32xbf16>, vector<32x128xbf16>, vector<256x128xf32> -> vector<256x128xf32>
    %18 = arith.addf %12, %17 : vector<256x128xf32>
    %19 = vector.extract_strided_slice %1 {offsets = [1, 1, 0], sizes = [16, 16, 32], strides = [1, 1, 1]} : vector<17x17x32xbf16> to vector<16x16x32xbf16>
    %20 = vector.shape_cast %19 : vector<16x16x32xbf16> to vector<256x32xbf16>
    %c3 = arith.constant 3 : index
    %c0_12 = arith.constant 0 : index
    %c0_13 = arith.constant 0 : index
    %21 = vector.load %arg2[%c3, %c0_12, %c0_13] : memref<4x32x128xbf16, #tpu.memory_space<vmem>>, vector<1x32x128xbf16>
    %22 = vector.shape_cast %21 : vector<1x32x128xbf16> to vector<32x128xbf16>
    %cst_14 = arith.constant dense<0.000000e+00> : vector<256x128xf32>
    %23 = tpu.matmul %20, %22, %cst_14 {dimension_numbers = #tpu.dot_dimension_numbers<[1], [0], [0], [1], [0, 0, 1, 1], [], []>} : vector<256x32xbf16>, vector<32x128xbf16>, vector<256x128xf32> -> vector<256x128xf32>
    %24 = arith.addf %18, %23 : vector<256x128xf32>
    %25 = arith.truncf %24 : vector<256x128xf32> to vector<256x128xbf16>
    %c0_15 = arith.constant 0 : index
    %c0_16 = arith.constant 0 : index
    %c0_17 = arith.constant 0 : index
    %26 = vector.load %arg3[%c0_15, %c0_16, %c0_17] : memref<1x256x128xbf16, #tpu.memory_space<vmem>>, vector<1x256x128xbf16>
    %27 = vector.shape_cast %26 : vector<1x256x128xbf16> to vector<256x128xbf16>
    %28 = vector.shape_cast %25 : vector<256x128xbf16> to vector<1x256x128xbf16>
    tpu.vector_store %arg3[%c0_15, %c0_16, %c0_17], %28 {strides = array<i32>} : memref<1x256x128xbf16, #tpu.memory_space<vmem>>, vector<1x256x128xbf16>,
    %cst_18 = arith.constant dense<0.000000e+00> : vector<128xf32>
    %29 = vector.multi_reduction <add>, %24, %cst_18 [0] : vector<256x128xf32> to vector<128xf32>
    %30 = vector.shape_cast %29 : vector<128xf32> to vector<1x128xf32>
    %31 = arith.mulf %24, %24 : vector<256x128xf32>
    %cst_19 = arith.constant dense<0.000000e+00> : vector<128xf32>
    %32 = vector.multi_reduction <add>, %31, %cst_19 [0] : vector<256x128xf32> to vector<128xf32>
    %33 = vector.shape_cast %32 : vector<128xf32> to vector<1x128xf32>
    %34 = tpu.iota {dimensions = array<i32: 0>} : vector<8x1xi32>
    %c0_i32 = arith.constant 0 : i32
    %35 = vector.broadcast %c0_i32 : i32 to vector<8x1xi32>
    %36 = arith.cmpi eq, %34, %35 : vector<8x1xi32>
    %cst_20 = arith.constant 0.000000e+00 : f32
    %37 = vector.shape_cast %36 : vector<8x1xi1> to vector<8x1xi1>
    %38 = vector.broadcast %37 : vector<8x1xi1> to vector<8x128xi1>
    %39 = vector.shape_cast %30 : vector<1x128xf32> to vector<1x128xf32>
    %40 = vector.broadcast %39 : vector<1x128xf32> to vector<8x128xf32>
    %41 = vector.broadcast %cst_20 : f32 to vector<8x128xf32>
    %42 = arith.select %38, %40, %41 : vector<8x128xi1>, vector<8x128xf32>
    %c0_21 = arith.constant 0 : index
    %c0_22 = arith.constant 0 : index
    %43 = vector.load %arg4[%c0_21, %c0_22] : memref<8x128xf32, #tpu.memory_space<vmem>>, vector<8x128xf32>
    tpu.vector_store %arg4[%c0_21, %c0_22], %42 {strides = array<i32>} : memref<8x128xf32, #tpu.memory_space<vmem>>, vector<8x128xf32>,
    %cst_23 = arith.constant 0.000000e+00 : f32
    %44 = vector.shape_cast %36 : vector<8x1xi1> to vector<8x1xi1>
    %45 = vector.broadcast %44 : vector<8x1xi1> to vector<8x128xi1>
    %46 = vector.shape_cast %33 : vector<1x128xf32> to vector<1x128xf32>
    %47 = vector.broadcast %46 : vector<1x128xf32> to vector<8x128xf32>
    %48 = vector.broadcast %cst_23 : f32 to vector<8x128xf32>
    %49 = arith.select %45, %47, %48 : vector<8x128xi1>, vector<8x128xf32>
    %c0_24 = arith.constant 0 : index
    %c0_25 = arith.constant 0 : index
    %50 = vector.load %arg5[%c0_24, %c0_25] : memref<8x128xf32, #tpu.memory_space<vmem>>, vector<8x128xf32>
    tpu.vector_store %arg5[%c0_24, %c0_25], %49 {strides = array<i32>} : memref<8x128xf32, #tpu.memory_space<vmem>>, vector<8x128xf32>,
    return
  }
  func.func @transform_0(%arg0: i32) -> (i32, i32, i32, i32) {
    %c0_i32 = arith.constant 0 : i32
    %c0_i32_0 = arith.constant 0 : i32
    %c0_i32_1 = arith.constant 0 : i32
    %c0_i32_2 = arith.constant 0 : i32
    return %arg0, %c0_i32, %c0_i32_0, %c0_i32_1 : i32, i32, i32, i32
  }
  func.func @transform_1(%arg0: i32) -> (i32, i32, i32) {
    %c0_i32 = arith.constant 0 : i32
    %c0_i32_0 = arith.constant 0 : i32
    %c0_i32_1 = arith.constant 0 : i32
    %c0_i32_2 = arith.constant 0 : i32
    return %c0_i32, %c0_i32_0, %c0_i32_1 : i32, i32, i32
  }
  func.func @transform_2(%arg0: i32) -> (i32, i32, i32) {
    %c0_i32 = arith.constant 0 : i32
    %c0_i32_0 = arith.constant 0 : i32
    %c0_i32_1 = arith.constant 0 : i32
    return %arg0, %c0_i32, %c0_i32_0 : i32, i32, i32
  }
  func.func @transform_3(%arg0: i32) -> (i32, i32) {
    %c0_i32 = arith.constant 0 : i32
    %c0_i32_0 = arith.constant 0 : i32
    return %arg0, %c0_i32 : i32, i32
  }
  func.func @transform_4(%arg0: i32) -> (i32, i32) {
    %c0_i32 = arith.constant 0 : i32
    %c0_i32_0 = arith.constant 0 : i32
    return %arg0, %c0_i32 : i32, i32
  }
}

module attributes {stable_mosaic.version = 11 : i64} {
  func.func @_fused_conv_kernel(%arg0: i32, %arg1: memref<1x9x9x64xbf16, #tpu.memory_space<vmem>>, %arg2: memref<4x64x128xbf16, #tpu.memory_space<vmem>>, %arg3: memref<1x64x128xbf16, #tpu.memory_space<vmem>>, %arg4: memref<8x128xf32, #tpu.memory_space<vmem>>, %arg5: memref<8x128xf32, #tpu.memory_space<vmem>>) attributes {dimension_semantics = [#tpu.dimension_semantics<parallel>], iteration_bounds = array<i64: 2>, scalar_prefetch = 0 : i64, scratch_operands = 0 : i64, tpu.core_type = #tpu.core_type<tc>, window_params = [{transform_indices = @transform_0, window_bounds = array<i64: 1, 9, 9, 64>}, {pipeline_mode = #tpu.pipeline_mode<synchronous>, transform_indices = @transform_1, window_bounds = array<i64: 4, 64, 128>}, {transform_indices = @transform_2, window_bounds = array<i64: 1, 64, 128>}, {transform_indices = @transform_3, window_bounds = array<i64: 8, 128>}, {transform_indices = @transform_4, window_bounds = array<i64: 8, 128>}]} {
    %c0 = arith.constant 0 : index
    %c0_0 = arith.constant 0 : index
    %c0_1 = arith.constant 0 : index
    %c0_2 = arith.constant 0 : index
    %0 = vector.load %arg1[%c0, %c0_0, %c0_1, %c0_2] : memref<1x9x9x64xbf16, #tpu.memory_space<vmem>>, vector<1x9x9x64xbf16>
    %1 = vector.shape_cast %0 : vector<1x9x9x64xbf16> to vector<9x9x64xbf16>
    %2 = vector.extract_strided_slice %1 {offsets = [0, 0, 0], sizes = [8, 8, 64], strides = [1, 1, 1]} : vector<9x9x64xbf16> to vector<8x8x64xbf16>
    %3 = vector.shape_cast %2 : vector<8x8x64xbf16> to vector<64x64xbf16>
    %c0_3 = arith.constant 0 : index
    %c0_4 = arith.constant 0 : index
    %c0_5 = arith.constant 0 : index
    %4 = vector.load %arg2[%c0_3, %c0_4, %c0_5] : memref<4x64x128xbf16, #tpu.memory_space<vmem>>, vector<1x64x128xbf16>
    %5 = vector.shape_cast %4 : vector<1x64x128xbf16> to vector<64x128xbf16>
    %cst = arith.constant dense<0.000000e+00> : vector<64x128xf32>
    %6 = tpu.matmul %3, %5, %cst {dimension_numbers = #tpu.dot_dimension_numbers<[1], [0], [0], [1], [0, 0, 1, 1], [], []>} : vector<64x64xbf16>, vector<64x128xbf16>, vector<64x128xf32> -> vector<64x128xf32>
    %7 = vector.extract_strided_slice %1 {offsets = [0, 1, 0], sizes = [8, 8, 64], strides = [1, 1, 1]} : vector<9x9x64xbf16> to vector<8x8x64xbf16>
    %8 = vector.shape_cast %7 : vector<8x8x64xbf16> to vector<64x64xbf16>
    %c1 = arith.constant 1 : index
    %c0_6 = arith.constant 0 : index
    %c0_7 = arith.constant 0 : index
    %9 = vector.load %arg2[%c1, %c0_6, %c0_7] : memref<4x64x128xbf16, #tpu.memory_space<vmem>>, vector<1x64x128xbf16>
    %10 = vector.shape_cast %9 : vector<1x64x128xbf16> to vector<64x128xbf16>
    %cst_8 = arith.constant dense<0.000000e+00> : vector<64x128xf32>
    %11 = tpu.matmul %8, %10, %cst_8 {dimension_numbers = #tpu.dot_dimension_numbers<[1], [0], [0], [1], [0, 0, 1, 1], [], []>} : vector<64x64xbf16>, vector<64x128xbf16>, vector<64x128xf32> -> vector<64x128xf32>
    %12 = arith.addf %6, %11 : vector<64x128xf32>
    %13 = vector.extract_strided_slice %1 {offsets = [1, 0, 0], sizes = [8, 8, 64], strides = [1, 1, 1]} : vector<9x9x64xbf16> to vector<8x8x64xbf16>
    %14 = vector.shape_cast %13 : vector<8x8x64xbf16> to vector<64x64xbf16>
    %c2 = arith.constant 2 : index
    %c0_9 = arith.constant 0 : index
    %c0_10 = arith.constant 0 : index
    %15 = vector.load %arg2[%c2, %c0_9, %c0_10] : memref<4x64x128xbf16, #tpu.memory_space<vmem>>, vector<1x64x128xbf16>
    %16 = vector.shape_cast %15 : vector<1x64x128xbf16> to vector<64x128xbf16>
    %cst_11 = arith.constant dense<0.000000e+00> : vector<64x128xf32>
    %17 = tpu.matmul %14, %16, %cst_11 {dimension_numbers = #tpu.dot_dimension_numbers<[1], [0], [0], [1], [0, 0, 1, 1], [], []>} : vector<64x64xbf16>, vector<64x128xbf16>, vector<64x128xf32> -> vector<64x128xf32>
    %18 = arith.addf %12, %17 : vector<64x128xf32>
    %19 = vector.extract_strided_slice %1 {offsets = [1, 1, 0], sizes = [8, 8, 64], strides = [1, 1, 1]} : vector<9x9x64xbf16> to vector<8x8x64xbf16>
    %20 = vector.shape_cast %19 : vector<8x8x64xbf16> to vector<64x64xbf16>
    %c3 = arith.constant 3 : index
    %c0_12 = arith.constant 0 : index
    %c0_13 = arith.constant 0 : index
    %21 = vector.load %arg2[%c3, %c0_12, %c0_13] : memref<4x64x128xbf16, #tpu.memory_space<vmem>>, vector<1x64x128xbf16>
    %22 = vector.shape_cast %21 : vector<1x64x128xbf16> to vector<64x128xbf16>
    %cst_14 = arith.constant dense<0.000000e+00> : vector<64x128xf32>
    %23 = tpu.matmul %20, %22, %cst_14 {dimension_numbers = #tpu.dot_dimension_numbers<[1], [0], [0], [1], [0, 0, 1, 1], [], []>} : vector<64x64xbf16>, vector<64x128xbf16>, vector<64x128xf32> -> vector<64x128xf32>
    %24 = arith.addf %18, %23 : vector<64x128xf32>
    %25 = arith.truncf %24 : vector<64x128xf32> to vector<64x128xbf16>
    %c0_15 = arith.constant 0 : index
    %c0_16 = arith.constant 0 : index
    %c0_17 = arith.constant 0 : index
    %26 = vector.load %arg3[%c0_15, %c0_16, %c0_17] : memref<1x64x128xbf16, #tpu.memory_space<vmem>>, vector<1x64x128xbf16>
    %27 = vector.shape_cast %26 : vector<1x64x128xbf16> to vector<64x128xbf16>
    %28 = vector.shape_cast %25 : vector<64x128xbf16> to vector<1x64x128xbf16>
    tpu.vector_store %arg3[%c0_15, %c0_16, %c0_17], %28 {strides = array<i32>} : memref<1x64x128xbf16, #tpu.memory_space<vmem>>, vector<1x64x128xbf16>,
    %cst_18 = arith.constant dense<0.000000e+00> : vector<128xf32>
    %29 = vector.multi_reduction <add>, %24, %cst_18 [0] : vector<64x128xf32> to vector<128xf32>
    %30 = vector.shape_cast %29 : vector<128xf32> to vector<1x128xf32>
    %31 = arith.mulf %24, %24 : vector<64x128xf32>
    %cst_19 = arith.constant dense<0.000000e+00> : vector<128xf32>
    %32 = vector.multi_reduction <add>, %31, %cst_19 [0] : vector<64x128xf32> to vector<128xf32>
    %33 = vector.shape_cast %32 : vector<128xf32> to vector<1x128xf32>
    %34 = tpu.iota {dimensions = array<i32: 0>} : vector<8x1xi32>
    %c0_i32 = arith.constant 0 : i32
    %35 = vector.broadcast %c0_i32 : i32 to vector<8x1xi32>
    %36 = arith.cmpi eq, %34, %35 : vector<8x1xi32>
    %cst_20 = arith.constant 0.000000e+00 : f32
    %37 = vector.shape_cast %36 : vector<8x1xi1> to vector<8x1xi1>
    %38 = vector.broadcast %37 : vector<8x1xi1> to vector<8x128xi1>
    %39 = vector.shape_cast %30 : vector<1x128xf32> to vector<1x128xf32>
    %40 = vector.broadcast %39 : vector<1x128xf32> to vector<8x128xf32>
    %41 = vector.broadcast %cst_20 : f32 to vector<8x128xf32>
    %42 = arith.select %38, %40, %41 : vector<8x128xi1>, vector<8x128xf32>
    %c0_21 = arith.constant 0 : index
    %c0_22 = arith.constant 0 : index
    %43 = vector.load %arg4[%c0_21, %c0_22] : memref<8x128xf32, #tpu.memory_space<vmem>>, vector<8x128xf32>
    tpu.vector_store %arg4[%c0_21, %c0_22], %42 {strides = array<i32>} : memref<8x128xf32, #tpu.memory_space<vmem>>, vector<8x128xf32>,
    %cst_23 = arith.constant 0.000000e+00 : f32
    %44 = vector.shape_cast %36 : vector<8x1xi1> to vector<8x1xi1>
    %45 = vector.broadcast %44 : vector<8x1xi1> to vector<8x128xi1>
    %46 = vector.shape_cast %33 : vector<1x128xf32> to vector<1x128xf32>
    %47 = vector.broadcast %46 : vector<1x128xf32> to vector<8x128xf32>
    %48 = vector.broadcast %cst_23 : f32 to vector<8x128xf32>
    %49 = arith.select %45, %47, %48 : vector<8x128xi1>, vector<8x128xf32>
    %c0_24 = arith.constant 0 : index
    %c0_25 = arith.constant 0 : index
    %50 = vector.load %arg5[%c0_24, %c0_25] : memref<8x128xf32, #tpu.memory_space<vmem>>, vector<8x128xf32>
    tpu.vector_store %arg5[%c0_24, %c0_25], %49 {strides = array<i32>} : memref<8x128xf32, #tpu.memory_space<vmem>>, vector<8x128xf32>,
    return
  }
  func.func @transform_0(%arg0: i32) -> (i32, i32, i32, i32) {
    %c0_i32 = arith.constant 0 : i32
    %c0_i32_0 = arith.constant 0 : i32
    %c0_i32_1 = arith.constant 0 : i32
    %c0_i32_2 = arith.constant 0 : i32
    return %arg0, %c0_i32, %c0_i32_0, %c0_i32_1 : i32, i32, i32, i32
  }
  func.func @transform_1(%arg0: i32) -> (i32, i32, i32) {
    %c0_i32 = arith.constant 0 : i32
    %c0_i32_0 = arith.constant 0 : i32
    %c0_i32_1 = arith.constant 0 : i32
    %c0_i32_2 = arith.constant 0 : i32
    return %c0_i32, %c0_i32_0, %c0_i32_1 : i32, i32, i32
  }
  func.func @transform_2(%arg0: i32) -> (i32, i32, i32) {
    %c0_i32 = arith.constant 0 : i32
    %c0_i32_0 = arith.constant 0 : i32
    %c0_i32_1 = arith.constant 0 : i32
    return %arg0, %c0_i32, %c0_i32_0 : i32, i32, i32
  }
  func.func @transform_3(%arg0: i32) -> (i32, i32) {
    %c0_i32 = arith.constant 0 : i32
    %c0_i32_0 = arith.constant 0 : i32
    return %arg0, %c0_i32 : i32, i32
  }
  func.func @transform_4(%arg0: i32) -> (i32, i32) {
    %c0_i32 = arith.constant 0 : i32
    %c0_i32_0 = arith.constant 0 : i32
    return %arg0, %c0_i32 : i32, i32
  }
}

module attributes {stable_mosaic.version = 11 : i64} {
  func.func @_matmul_stats_kernel(%arg0: i32, %arg1: i32, %arg2: memref<32x512xbf16, #tpu.memory_space<vmem>>, %arg3: memref<512x128xbf16, #tpu.memory_space<vmem>>, %arg4: memref<32x128xbf16, #tpu.memory_space<vmem>>, %arg5: memref<8x128xf32, #tpu.memory_space<vmem>>, %arg6: memref<8x128xf32, #tpu.memory_space<vmem>>, %arg7: memref<32x128xf32, #tpu.memory_space<vmem>>) attributes {dimension_semantics = [#tpu.dimension_semantics<parallel>, #tpu.dimension_semantics<arbitrary>], iteration_bounds = array<i64: 1, 1>, scalar_prefetch = 0 : i64, scratch_operands = 1 : i64, tpu.core_type = #tpu.core_type<tc>, window_params = [{transform_indices = @transform_0, window_bounds = array<i64: 32, 512>}, {transform_indices = @transform_1, window_bounds = array<i64: 512, 128>}, {transform_indices = @transform_2, window_bounds = array<i64: 32, 128>}, {transform_indices = @transform_3, window_bounds = array<i64: 8, 128>}, {transform_indices = @transform_4, window_bounds = array<i64: 8, 128>}]} {
    %c0_i32 = arith.constant 0 : i32
    %0 = arith.cmpi eq, %arg1, %c0_i32 : i32
    %1 = arith.extui %0 : i1 to i32
    %c0_i32_0 = arith.constant 0 : i32
    %2 = arith.cmpi ne, %1, %c0_i32_0 : i32
    scf.if %2 {
      %cst_10 = arith.constant 0.000000e+00 : f32
      %12 = vector.broadcast %cst_10 : f32 to vector<32x128xf32>
      %c0_11 = arith.constant 0 : index
      %c0_12 = arith.constant 0 : index
      %13 = vector.load %arg7[%c0_11, %c0_12] : memref<32x128xf32, #tpu.memory_space<vmem>>, vector<32x128xf32>
      tpu.vector_store %arg7[%c0_11, %c0_12], %12 {strides = array<i32>} : memref<32x128xf32, #tpu.memory_space<vmem>>, vector<32x128xf32>,
    } else {
    }
    %c0 = arith.constant 0 : index
    %c0_1 = arith.constant 0 : index
    %3 = vector.load %arg7[%c0, %c0_1] : memref<32x128xf32, #tpu.memory_space<vmem>>, vector<32x128xf32>
    %c0_2 = arith.constant 0 : index
    %c0_3 = arith.constant 0 : index
    %4 = vector.load %arg2[%c0_2, %c0_3] : memref<32x512xbf16, #tpu.memory_space<vmem>>, vector<32x512xbf16>
    %c0_4 = arith.constant 0 : index
    %c0_5 = arith.constant 0 : index
    %5 = vector.load %arg3[%c0_4, %c0_5] : memref<512x128xbf16, #tpu.memory_space<vmem>>, vector<512x128xbf16>
    %cst = arith.constant dense<0.000000e+00> : vector<32x128xf32>
    %6 = tpu.matmul %4, %5, %cst {dimension_numbers = #tpu.dot_dimension_numbers<[1], [0], [0], [1], [0, 0, 1, 1], [], []>} : vector<32x512xbf16>, vector<512x128xbf16>, vector<32x128xf32> -> vector<32x128xf32>
    %7 = arith.addf %3, %6 : vector<32x128xf32>
    %c0_6 = arith.constant 0 : index
    %c0_7 = arith.constant 0 : index
    %8 = vector.load %arg7[%c0_6, %c0_7] : memref<32x128xf32, #tpu.memory_space<vmem>>, vector<32x128xf32>
    tpu.vector_store %arg7[%c0_6, %c0_7], %7 {strides = array<i32>} : memref<32x128xf32, #tpu.memory_space<vmem>>, vector<32x128xf32>,
    %c0_i32_8 = arith.constant 0 : i32
    %9 = arith.cmpi eq, %arg1, %c0_i32_8 : i32
    %10 = arith.extui %9 : i1 to i32
    %c0_i32_9 = arith.constant 0 : i32
    %11 = arith.cmpi ne, %10, %c0_i32_9 : i32
    scf.if %11 {
      %c0_10 = arith.constant 0 : index
      %c0_11 = arith.constant 0 : index
      %12 = vector.load %arg7[%c0_10, %c0_11] : memref<32x128xf32, #tpu.memory_space<vmem>>, vector<32x128xf32>
      %13 = arith.truncf %12 : vector<32x128xf32> to vector<32x128xbf16>
      %c0_12 = arith.constant 0 : index
      %c0_13 = arith.constant 0 : index
      %14 = vector.load %arg4[%c0_12, %c0_13] : memref<32x128xbf16, #tpu.memory_space<vmem>>, vector<32x128xbf16>
      tpu.vector_store %arg4[%c0_12, %c0_13], %13 {strides = array<i32>} : memref<32x128xbf16, #tpu.memory_space<vmem>>, vector<32x128xbf16>,
      %15 = tpu.iota {dimensions = array<i32: 0>} : vector<32x1xi32>
      %c32_i32 = arith.constant 32 : i32
      %16 = arith.muli %arg0, %c32_i32 : i32
      %17 = vector.broadcast %16 : i32 to vector<32x1xi32>
      %18 = arith.addi %15, %17 : vector<32x1xi32>
      %c32_i32_14 = arith.constant 32 : i32
      %19 = vector.broadcast %c32_i32_14 : i32 to vector<32x1xi32>
      %20 = arith.cmpi slt, %18, %19 : vector<32x1xi32>
      %cst_15 = arith.constant 0.000000e+00 : f32
      %21 = vector.shape_cast %20 : vector<32x1xi1> to vector<32x1xi1>
      %22 = vector.broadcast %21 : vector<32x1xi1> to vector<32x128xi1>
      %23 = vector.broadcast %cst_15 : f32 to vector<32x128xf32>
      %24 = arith.select %22, %12, %23 : vector<32x128xi1>, vector<32x128xf32>
      %cst_16 = arith.constant dense<0.000000e+00> : vector<128xf32>
      %25 = vector.multi_reduction <add>, %24, %cst_16 [0] : vector<32x128xf32> to vector<128xf32>
      %26 = vector.shape_cast %25 : vector<128xf32> to vector<1x128xf32>
      %27 = arith.mulf %24, %24 : vector<32x128xf32>
      %cst_17 = arith.constant dense<0.000000e+00> : vector<128xf32>
      %28 = vector.multi_reduction <add>, %27, %cst_17 [0] : vector<32x128xf32> to vector<128xf32>
      %29 = vector.shape_cast %28 : vector<128xf32> to vector<1x128xf32>
      %30 = tpu.iota {dimensions = array<i32: 0>} : vector<8x1xi32>
      %c0_i32_18 = arith.constant 0 : i32
      %31 = vector.broadcast %c0_i32_18 : i32 to vector<8x1xi32>
      %32 = arith.cmpi eq, %30, %31 : vector<8x1xi32>
      %cst_19 = arith.constant 0.000000e+00 : f32
      %33 = vector.shape_cast %32 : vector<8x1xi1> to vector<8x1xi1>
      %34 = vector.broadcast %33 : vector<8x1xi1> to vector<8x128xi1>
      %35 = vector.shape_cast %26 : vector<1x128xf32> to vector<1x128xf32>
      %36 = vector.broadcast %35 : vector<1x128xf32> to vector<8x128xf32>
      %37 = vector.broadcast %cst_19 : f32 to vector<8x128xf32>
      %38 = arith.select %34, %36, %37 : vector<8x128xi1>, vector<8x128xf32>
      %c0_20 = arith.constant 0 : index
      %c0_21 = arith.constant 0 : index
      %39 = vector.load %arg5[%c0_20, %c0_21] : memref<8x128xf32, #tpu.memory_space<vmem>>, vector<8x128xf32>
      tpu.vector_store %arg5[%c0_20, %c0_21], %38 {strides = array<i32>} : memref<8x128xf32, #tpu.memory_space<vmem>>, vector<8x128xf32>,
      %cst_22 = arith.constant 0.000000e+00 : f32
      %40 = vector.shape_cast %32 : vector<8x1xi1> to vector<8x1xi1>
      %41 = vector.broadcast %40 : vector<8x1xi1> to vector<8x128xi1>
      %42 = vector.shape_cast %29 : vector<1x128xf32> to vector<1x128xf32>
      %43 = vector.broadcast %42 : vector<1x128xf32> to vector<8x128xf32>
      %44 = vector.broadcast %cst_22 : f32 to vector<8x128xf32>
      %45 = arith.select %41, %43, %44 : vector<8x128xi1>, vector<8x128xf32>
      %c0_23 = arith.constant 0 : index
      %c0_24 = arith.constant 0 : index
      %46 = vector.load %arg6[%c0_23, %c0_24] : memref<8x128xf32, #tpu.memory_space<vmem>>, vector<8x128xf32>
      tpu.vector_store %arg6[%c0_23, %c0_24], %45 {strides = array<i32>} : memref<8x128xf32, #tpu.memory_space<vmem>>, vector<8x128xf32>,
    } else {
    }
    return
  }
  func.func @transform_0(%arg0: i32, %arg1: i32) -> (i32, i32) {
    %c0_i32 = arith.constant 0 : i32
    return %arg0, %arg1 : i32, i32
  }
  func.func @transform_1(%arg0: i32, %arg1: i32) -> (i32, i32) {
    %c0_i32 = arith.constant 0 : i32
    %c0_i32_0 = arith.constant 0 : i32
    return %arg1, %c0_i32 : i32, i32
  }
  func.func @transform_2(%arg0: i32, %arg1: i32) -> (i32, i32) {
    %c0_i32 = arith.constant 0 : i32
    %c0_i32_0 = arith.constant 0 : i32
    return %arg0, %c0_i32 : i32, i32
  }
  func.func @transform_3(%arg0: i32, %arg1: i32) -> (i32, i32) {
    %c0_i32 = arith.constant 0 : i32
    %c0_i32_0 = arith.constant 0 : i32
    return %arg0, %c0_i32 : i32, i32
  }
  func.func @transform_4(%arg0: i32, %arg1: i32) -> (i32, i32) {
    %c0_i32 = arith.constant 0 : i32
    %c0_i32_0 = arith.constant 0 : i32
    return %arg0, %c0_i32 : i32, i32
  }
}

</mosaic_0001>

<llo_original>
// kernel: critic_forward.4
$region0: #{critic_forward.4}
  #allocation0 [shape = 'u32[]', space=smem, size = 0x4, offset = 0x4, fixed_abs, tag = 'smem constant byte address 0x4 - core index']
  #allocation1 [shape = 'u32[72,128]{1,0:T(1,128)}', space=vmem, size = 0x9000, scoped, tag = 'internal scratch']
  %s0 = inlined_call_operand.vmem [shape: bf16[2,33,33,12], index: 0, kind: input, shape index: {}]
  %s1 = inlined_call_operand.vmem [shape: bf16[4,12,128], index: 1, kind: input, shape index: {}]
  %s2 = inlined_call_operand.vmem [shape: bf16[2,1024,128], index: 2, kind: output, shape index: {0}]
  %s3 = inlined_call_operand.hbm [shape: f32[16,128], index: 3, kind: output, shape index: {1}]
  %s4 = inlined_call_operand.hbm [shape: f32[16,128], index: 4, kind: output, shape index: {2}]
  %5 = xla_tuple %s2, %s3, %s4
  %s6 = sld [smem:[#allocation0]]
  $region57: #{critic_forward.4} parent=0
    _
  %s8 = ssub.s32 1, %s6
  %s9 = scalar_select 0, %s8, %s6
  $region1: #{critic_forward.4} parent=0
    #allocation2 [shape = 'u8[8192]{0}', space=vmem, size = 0x2000, scoped, tag = 'output window, operand 1']
    #allocation3 [shape = 's32[2]{0}', space=sflag, size = 0x8, scoped, tag = 'scoped memory for critic_forward.4']
    #allocation4 [shape = 'u8[8192]{0}', space=vmem, size = 0x2000, scoped, tag = 'output window, operand 2']
    #allocation5 [shape = 's32[2]{0}', space=sflag, size = 0x8, scoped, tag = 'scoped memory for critic_forward.4']
    %10 = vsyncpa [#allocation3], 0
    %s11 = scalar_lea.sflag [#allocation3], 1
    %12 = vsyncpa %s11, 0
    %13 = vsyncpa [#allocation5], 0
    %s14 = scalar_lea.sflag [#allocation5], 1
    %15 = vsyncpa %s14, 0
    loop: start=0, step=1, limit=4
    $region2: #{critic_forward.4} parent=1 // loop_pre_header
      _
    $region3: #{critic_forward.4} parent=1 // loop_header
      %s17 = sphi 0, %s21
      %p18 = scmp.ge.s32.totalorder %s17, 4
      %s27 = sphi 0, %s29
      %s30 = sphi 0, %s27
      %s31 = sphi 0, %s30
      %s47 = sphi 0, %s31
      %s51 = sphi 0, %s51
      %s53 = sphi 0, %s51
      %s54 = sphi 0, %s53
      %s68 = sphi 0, %s54
      %s74 = sphi 0, %s76
      %s77 = sphi 0, %s74
      %s78 = sphi 0, %s77
      %s94 = sphi 0, %s78
      %s100 = sphi 0, %s102
      %s103 = sphi 0, %s100
      %s104 = sphi 0, %s103
      %s120 = sphi 0, %s104
      %s126 = sphi 0, %s128
      %s129 = sphi 0, %s126
      %s130 = sphi 0, %s129
      %s146 = sphi 0, %s130
    $region4: #{critic_forward.4} parent=1 // loop_header_branch
      %20 = sbr.rel (%p18) target = $region8
    $region5: #{critic_forward.4} parent=1 // loop_body
      %s22 = ssub.s32 %s17, 1
      %s23 = ssub.s32 %s17, 2
      %s24 = sadd.s32 %s17, 1
      %s25 = ssub.s32 %s17, %s24
      %p26 = scmp.eq.s32.totalorder %s25, 0
      %s28 = sadd.s32 %s27, 1
      %s29 = scalar_select %p26, %s27, %s28
      %p32 = pneg %p26
      %p33 = scmp.eq.s32.totalorder %s17, 1
      %p34 = por %p32, %p33
      %p35 = scmp.ne.s32.totalorder %s27, %s30
      %p36 = scmp.eq.s32.totalorder %s17, 0
      %p37 = por %p35, %p36
      %p38 = scmp.ne.s32.totalorder %s27, %s30
      %p39 = scmp.eq.s32.totalorder %s22, 1
      %p40 = por %p38, %p39
      %p41 = scmp.ne.s32.totalorder %s30, %s31
      %p42 = scmp.eq.s32.totalorder %s22, 0
      %p43 = por %p41, %p42
      %p44 = scmp.ne.s32.totalorder %s30, %s31
      %p45 = scmp.eq.s32.totalorder %s23, 1
      %p46 = por %p44, %p45
      %p48 = scmp.ne.s32.totalorder %s31, %s47
      %p49 = scmp.eq.s32.totalorder %s23, 0
      %p50 = por %p48, %p49
      %s52 = sadd.s32 %s51, 1
      %p55 = scmp.eq.s32.totalorder %s17, 1
      %p56 = scmp.ne.s32.totalorder %s51, %s53
      %p57 = scmp.eq.s32.totalorder %s17, 0
      %p58 = por %p56, %p57
      %p59 = scmp.ne.s32.totalorder %s51, %s53
      %p60 = scmp.eq.s32.totalorder %s22, 1
      %p61 = por %p59, %p60
      %p62 = scmp.ne.s32.totalorder %s53, %s54
      %p63 = scmp.eq.s32.totalorder %s22, 0
      %p64 = por %p62, %p63
      %p65 = scmp.ne.s32.totalorder %s53, %s54
      %p66 = scmp.eq.s32.totalorder %s23, 1
      %p67 = por %p65, %p66
      %p69 = scmp.ne.s32.totalorder %s54, %s68
      %p70 = scmp.eq.s32.totalorder %s23, 0
      %p71 = por %p69, %p70
      %s72 = ssub.s32 %s17, %s24
      %p73 = scmp.eq.s32.totalorder %s72, 0
      %s75 = sadd.s32 %s74, 1
      %s76 = scalar_select %p73, %s74, %s75
      %p79 = pneg %p73
      %p80 = scmp.eq.s32.totalorder %s17, 1
      %p81 = por %p79, %p80
      %p82 = scmp.ne.s32.totalorder %s74, %s77
      %p83 = scmp.eq.s32.totalorder %s17, 0
      %p84 = por %p82, %p83
      %p85 = scmp.ne.s32.totalorder %s74, %s77
      %p86 = scmp.eq.s32.totalorder %s22, 1
      %p87 = por %p85, %p86
      %p88 = scmp.ne.s32.totalorder %s77, %s78
      %p89 = scmp.eq.s32.totalorder %s22, 0
      %p90 = por %p88, %p89
      %p91 = scmp.ne.s32.totalorder %s77, %s78
      %p92 = scmp.eq.s32.totalorder %s23, 1
      %p93 = por %p91, %p92
      %p95 = scmp.ne.s32.totalorder %s78, %s94
      %p96 = scmp.eq.s32.totalorder %s23, 0
      %p97 = por %p95, %p96
      %s98 = ssub.s32 %s17, %s24
      %p99 = scmp.eq.s32.totalorder %s98, 0
      %s101 = sadd.s32 %s100, 1
      %s102 = scalar_select %p99, %s100, %s101
      %p105 = pneg %p99
      %p106 = scmp.eq.s32.totalorder %s17, 1
      %p107 = por %p105, %p106
      %p108 = scmp.ne.s32.totalorder %s100, %s103
      %p109 = scmp.eq.s32.totalorder %s17, 0
      %p110 = por %p108, %p109
      %p111 = scmp.ne.s32.totalorder %s100, %s103
      %p112 = scmp.eq.s32.totalorder %s22, 1
      %p113 = por %p111, %p112
      %p114 = scmp.ne.s32.totalorder %s103, %s104
      %p115 = scmp.eq.s32.totalorder %s22, 0
      %p116 = por %p114, %p115
      %p117 = scmp.ne.s32.totalorder %s103, %s104
      %p118 = scmp.eq.s32.totalorder %s23, 1
      %p119 = por %p117, %p118
      %p121 = scmp.ne.s32.totalorder %s104, %s120
      %p122 = scmp.eq.s32.totalorder %s23, 0
      %p123 = por %p121, %p122
      %s124 = ssub.s32 %s17, %s24
      %p125 = scmp.eq.s32.totalorder %s124, 0
      %s127 = sadd.s32 %s126, 1
      %s128 = scalar_select %p125, %s126, %s127
      %p131 = pneg %p125
      %p132 = scmp.eq.s32.totalorder %s17, 1
      %p133 = por %p131, %p132
      %p134 = scmp.ne.s32.totalorder %s126, %s129
      %p135 = scmp.eq.s32.totalorder %s17, 0
      %p136 = por %p134, %p135
      %p137 = scmp.ne.s32.totalorder %s126, %s129
      %p138 = scmp.eq.s32.totalorder %s22, 1
      %p139 = por %p137, %p138
      %p140 = scmp.ne.s32.totalorder %s129, %s130
      %p141 = scmp.eq.s32.totalorder %s22, 0
      %p142 = por %p140, %p141
      %p143 = scmp.ne.s32.totalorder %s129, %s130
      %p144 = scmp.eq.s32.totalorder %s23, 1
      %p145 = por %p143, %p144
      %p147 = scmp.ne.s32.totalorder %s130, %s146
      %p148 = scmp.eq.s32.totalorder %s23, 0
      %p149 = por %p147, %p148
      %p150 = scmp.le.s32.totalorder 1, %s17
      %p151 = scmp.lt.s32.totalorder %s17, 3
      %p152 = pnand %p150, %p151
      %p153 = pneg %p152
      // Predicated region
      $region9: #{critic_forward.4} parent=5 // pred_check
        _
      $region10: #{critic_forward.4} parent=5 // pred_check_branch
        %155 = sbr.rel (%p152) target = $region12
      $region11: #{critic_forward.4} parent=5 // pred_region
        %s156 = ssub.s32 %s17, 1
        // Predicated region
        $region13: #{critic_forward.4} parent=11 // pred_check
          %p157 = pneg %p64
        $region14: #{critic_forward.4} parent=11 // pred_check_branch
          %159 = sbr.rel (%p157) target = $region16
        $region15: #{critic_forward.4} parent=11 // pred_region
          _
        $region16: #{critic_forward.4} parent=11 // pred_fallthru
          _
      $region12: #{critic_forward.4} parent=5 // pred_fallthru
        _
      %p160 = scmp.lt.s32.totalorder %s17, 2
      // Predicated region
      $region17: #{critic_forward.4} parent=5 // pred_check
        %p161 = pneg %p160
      $region18: #{critic_forward.4} parent=5 // pred_check_branch
        %163 = sbr.rel (%p161) target = $region20
      $region19: #{critic_forward.4} parent=5 // pred_region
        // Predicated region
        $region21: #{critic_forward.4} parent=19 // pred_check
          %p164 = pneg %p37
        $region22: #{critic_forward.4} parent=19 // pred_check_branch
          %166 = sbr.rel (%p164) target = $region24
        $region23: #{critic_forward.4} parent=19 // pred_region
          %p167 = scmp.lt.s32.totalorder %s17, 1
          %s168 = scalar_select %p167, %s17, 1
          %s169 = smul.addr %s168, 165
          %s170 = smul.addr %s169, 4
          %s171 = scalar_lea.vmem %s0, %s170
        $region24: #{critic_forward.4} parent=19 // pred_fallthru
          _
      $region20: #{critic_forward.4} parent=5 // pred_fallthru
        _
      %p172 = scmp.le.s32.totalorder 1, %s17
      %p173 = scmp.lt.s32.totalorder %s17, 3
      %p174 = pnand %p172, %p173
      %p175 = pneg %p174
      // Predicated region
      $region25: #{critic_forward.4} parent=5 // pred_check
        _
      $region26: #{critic_forward.4} parent=5 // pred_check_branch
        %177 = sbr.rel (%p174) target = $region28
      $region27: #{critic_forward.4} parent=5 // pred_region
        %s178 = ssub.s32 %s17, 1
        %p179 = scmp.lt.s32.totalorder %s22, 1
        %s180 = scalar_select %p179, %s22, 1
        %s181 = smul.addr %s180, 165
        %s182 = smul.addr %s181, 4
        %s183 = scalar_lea.vmem %s0, %s182
        %p184 = pneg %p43
        %p185 = pneg %p40
        %p186 = pneg %p64
        %p187 = pneg %p61
        %p188 = pneg %p90
        %p189 = pneg %p87
        %p190 = scmp.lt.s32.totalorder %s22, 1
        %s191 = scalar_select %p190, %s22, 1
        %s192 = smul.addr %s191, 128
        %s193 = smul.addr %s192, 4
        %s194 = scalar_lea.vmem %s2, %s193
        %p195 = pneg %p116
        %p196 = pneg %p113
        %s197 = sand.u32 %s103, 1
        %s198 = scalar_lea.sflag [#allocation3], %s197
        %s199 = sand.u32 %s103, 1
        %s200 = smul.addr %s199, 8
        %s201 = scalar_lea.vmem [#allocation2], %s200
        %p202 = pneg %p142
        %p203 = pneg %p139
        %s204 = sand.u32 %s129, 1
        %s205 = scalar_lea.sflag [#allocation5], %s204
        %s206 = sand.u32 %s129, 1
        %s207 = smul.addr %s206, 8
        %s208 = scalar_lea.vmem [#allocation4], %s207
        %p209 = scmp.lt.s32.totalorder %s22, 1
        %s210 = scalar_select %p209, %s22, 1
        %s211 = smul.addr %s210, 165
        %s212 = smul.addr %s211, 4
        %s213 = scalar_lea.vmem %s0, %s212
        %p214 = scmp.lt.s32.totalorder %s22, 1
        %s215 = scalar_select %p214, %s22, 1
        %s216 = smul.addr %s215, 128
        %s217 = smul.addr %s216, 4
        %s218 = scalar_lea.vmem %s2, %s217
        %v220 = vld [vmem:[%s213] sm:$0xf]
        %v221 = vld [vmem:[%s213 + $0x4] sm:$0xf]
        %v222 = vld [vmem:[%s213 + $0x8] sm:$0xf]
        %v223 = vld [vmem:[%s213 + $0xc] sm:$0xf]
        %v224 = vld [vmem:[%s213 + $0x10] sm:$0x1]
        %v225 = vld [vmem:[%s213 + $0x14] sm:$0xf]
        %v226 = vld [vmem:[%s213 + $0x18] sm:$0xf]
        %v227 = vld [vmem:[%s213 + $0x1c] sm:$0xf]
        %v228 = vld [vmem:[%s213 + $0x20] sm:$0xf]
        %v229 = vld [vmem:[%s213 + $0x24] sm:$0x1]
        %v230 = vld [vmem:[%s213 + $0x28] sm:$0xf]
        %v231 = vld [vmem:[%s213 + $0x2c] sm:$0xf]
        %v232 = vld [vmem:[%s213 + $0x30] sm:$0xf]
        %v233 = vld [vmem:[%s213 + $0x34] sm:$0xf]
        %v234 = vld [vmem:[%s213 + $0x38] sm:$0x1]
        %v235 = vld [vmem:[%s213 + $0x3c] sm:$0xf]
        %v236 = vld [vmem:[%s213 + $0x40] sm:$0xf]
        %v237 = vld [vmem:[%s213 + $0x44] sm:$0xf]
        %v238 = vld [vmem:[%s213 + $0x48] sm:$0xf]
        %v239 = vld [vmem:[%s213 + $0x4c] sm:$0x1]
        %v240 = vld [vmem:[%s213 + $0x50] sm:$0xf]
        %v241 = vld [vmem:[%s213 + $0x54] sm:$0xf]
        %v242 = vld [vmem:[%s213 + $0x58] sm:$0xf]
        %v243 = vld [vmem:[%s213 + $0x5c] sm:$0xf]
        %v244 = vld [vmem:[%s213 + $0x60] sm:$0x1]
        %v245 = vld [vmem:[%s213 + $0x64] sm:$0xf]
        %v246 = vld [vmem:[%s213 + $0x68] sm:$0xf]
        %v247 = vld [vmem:[%s213 + $0x6c] sm:$0xf]
        %v248 = vld [vmem:[%s213 + $0x70] sm:$0xf]
        %v249 = vld [vmem:[%s213 + $0x74] sm:$0x1]
        %v250 = vld [vmem:[%s213 + $0x78] sm:$0xf]
        %v251 = vld [vmem:[%s213 + $0x7c] sm:$0xf]
        %v252 = vld [vmem:[%s213 + $0x80] sm:$0xf]
        %v253 = vld [vmem:[%s213 + $0x84] sm:$0xf]
        %v254 = vld [vmem:[%s213 + $0x88] sm:$0x1]
        %v255 = vld [vmem:[%s213 + $0x8c] sm:$0xf]
        %v256 = vld [vmem:[%s213 + $0x90] sm:$0xf]
        %v257 = vld [vmem:[%s213 + $0x94] sm:$0xf]
        %v258 = vld [vmem:[%s213 + $0x98] sm:$0xf]
        %v259 = vld [vmem:[%s213 + $0x9c] sm:$0x1]
        %v260 = vld [vmem:[%s213 + $0xa0] sm:$0xf]
        %v261 = vld [vmem:[%s213 + $0xa4] sm:$0xf]
        %v262 = vld [vmem:[%s213 + $0xa8] sm:$0xf]
        %v263 = vld [vmem:[%s213 + $0xac] sm:$0xf]
        %v264 = vld [vmem:[%s213 + $0xb0] sm:$0x1]
        %v265 = vld [vmem:[%s213 + $0xb4] sm:$0xf]
        %v266 = vld [vmem:[%s213 + $0xb8] sm:$0xf]
        %v267 = vld [vmem:[%s213 + $0xbc] sm:$0xf]
        %v268 = vld [vmem:[%s213 + $0xc0] sm:$0xf]
        %v269 = vld [vmem:[%s213 + $0xc4] sm:$0x1]
        %v270 = vld [vmem:[%s213 + $0xc8] sm:$0xf]
        %v271 = vld [vmem:[%s213 + $0xcc] sm:$0xf]
        %v272 = vld [vmem:[%s213 + $0xd0] sm:$0xf]
        %v273 = vld [vmem:[%s213 + $0xd4] sm:$0xf]
        %v274 = vld [vmem:[%s213 + $0xd8] sm:$0x1]
        %v275 = vld [vmem:[%s213 + $0xdc] sm:$0xf]
        %v276 = vld [vmem:[%s213 + $0xe0] sm:$0xf]
        %v277 = vld [vmem:[%s213 + $0xe4] sm:$0xf]
        %v278 = vld [vmem:[%s213 + $0xe8] sm:$0xf]
        %v279 = vld [vmem:[%s213 + $0xec] sm:$0x1]
        %v280 = vld [vmem:[%s213 + $0xf0] sm:$0xf]
        %v281 = vld [vmem:[%s213 + $0xf4] sm:$0xf]
        %v282 = vld [vmem:[%s213 + $0xf8] sm:$0xf]
        %v283 = vld [vmem:[%s213 + $0xfc] sm:$0xf]
        %v284 = vld [vmem:[%s213 + $0x100] sm:$0x1]
        %v285 = vld [vmem:[%s213 + $0x104] sm:$0xf]
        %v286 = vld [vmem:[%s213 + $0x108] sm:$0xf]
        %v287 = vld [vmem:[%s213 + $0x10c] sm:$0xf]
        %v288 = vld [vmem:[%s213 + $0x110] sm:$0xf]
        %v289 = vld [vmem:[%s213 + $0x114] sm:$0x1]
        %v290 = vld [vmem:[%s213 + $0x118] sm:$0xf]
        %v291 = vld [vmem:[%s213 + $0x11c] sm:$0xf]
        %v292 = vld [vmem:[%s213 + $0x120] sm:$0xf]
        %v293 = vld [vmem:[%s213 + $0x124] sm:$0xf]
        %v294 = vld [vmem:[%s213 + $0x128] sm:$0x1]
        %v295 = vld [vmem:[%s213 + $0x12c] sm:$0xf]
        %v296 = vld [vmem:[%s213 + $0x130] sm:$0xf]
        %v297 = vld [vmem:[%s213 + $0x134] sm:$0xf]
        %v298 = vld [vmem:[%s213 + $0x138] sm:$0xf]
        %v299 = vld [vmem:[%s213 + $0x13c] sm:$0x1]
        %v300 = vld [vmem:[%s213 + $0x140] sm:$0xf]
        %v301 = vld [vmem:[%s213 + $0x144] sm:$0xf]
        %v302 = vld [vmem:[%s213 + $0x148] sm:$0xf]
        %v303 = vld [vmem:[%s213 + $0x14c] sm:$0xf]
        %v304 = vld [vmem:[%s213 + $0x150] sm:$0x1]
        %v305 = vld [vmem:[%s213 + $0x154] sm:$0xf]
        %v306 = vld [vmem:[%s213 + $0x158] sm:$0xf]
        %v307 = vld [vmem:[%s213 + $0x15c] sm:$0xf]
        %v308 = vld [vmem:[%s213 + $0x160] sm:$0xf]
        %v309 = vld [vmem:[%s213 + $0x164] sm:$0x1]
        %v310 = vld [vmem:[%s213 + $0x168] sm:$0xf]
        %v311 = vld [vmem:[%s213 + $0x16c] sm:$0xf]
        %v312 = vld [vmem:[%s213 + $0x170] sm:$0xf]
        %v313 = vld [vmem:[%s213 + $0x174] sm:$0xf]
        %v314 = vld [vmem:[%s213 + $0x178] sm:$0x1]
        %v315 = vld [vmem:[%s213 + $0x17c] sm:$0xf]
        %v316 = vld [vmem:[%s213 + $0x180] sm:$0xf]
        %v317 = vld [vmem:[%s213 + $0x184] sm:$0xf]
        %v318 = vld [vmem:[%s213 + $0x188] sm:$0xf]
        %v319 = vld [vmem:[%s213 + $0x18c] sm:$0x1]
        %v320 = vld [vmem:[%s213 + $0x190] sm:$0xf]
        %v321 = vld [vmem:[%s213 + $0x194] sm:$0xf]
        %v322 = vld [vmem:[%s213 + $0x198] sm:$0xf]
        %v323 = vld [vmem:[%s213 + $0x19c] sm:$0xf]
        %v324 = vld [vmem:[%s213 + $0x1a0] sm:$0x1]
        %v325 = vld [vmem:[%s213 + $0x1a4] sm:$0xf]
        %v326 = vld [vmem:[%s213 + $0x1a8] sm:$0xf]
        %v327 = vld [vmem:[%s213 + $0x1ac] sm:$0xf]
        %v328 = vld [vmem:[%s213 + $0x1b0] sm:$0xf]
        %v329 = vld [vmem:[%s213 + $0x1b4] sm:$0x1]
        %v330 = vld [vmem:[%s213 + $0x1b8] sm:$0xf]
        %v331 = vld [vmem:[%s213 + $0x1bc] sm:$0xf]
        %v332 = vld [vmem:[%s213 + $0x1c0] sm:$0xf]
        %v333 = vld [vmem:[%s213 + $0x1c4] sm:$0xf]
        %v334 = vld [vmem:[%s213 + $0x1c8] sm:$0x1]
        %v335 = vld [vmem:[%s213 + $0x1cc] sm:$0xf]
        %v336 = vld [vmem:[%s213 + $0x1d0] sm:$0xf]
        %v337 = vld [vmem:[%s213 + $0x1d4] sm:$0xf]
        %v338 = vld [vmem:[%s213 + $0x1d8] sm:$0xf]
        %v339 = vld [vmem:[%s213 + $0x1dc] sm:$0x1]
        %v340 = vld [vmem:[%s213 + $0x1e0] sm:$0xf]
        %v341 = vld [vmem:[%s213 + $0x1e4] sm:$0xf]
        %v342 = vld [vmem:[%s213 + $0x1e8] sm:$0xf]
        %v343 = vld [vmem:[%s213 + $0x1ec] sm:$0xf]
        %v344 = vld [vmem:[%s213 + $0x1f0] sm:$0x1]
        %v345 = vld [vmem:[%s213 + $0x1f4] sm:$0xf]
        %v346 = vld [vmem:[%s213 + $0x1f8] sm:$0xf]
        %v347 = vld [vmem:[%s213 + $0x1fc] sm:$0xf]
        %v348 = vld [vmem:[%s213 + $0x200] sm:$0xf]
        %v349 = vld [vmem:[%s213 + $0x204] sm:$0x1]
        %v350 = vld [vmem:[%s213 + $0x208] sm:$0xf]
        %v351 = vld [vmem:[%s213 + $0x20c] sm:$0xf]
        %v352 = vld [vmem:[%s213 + $0x210] sm:$0xf]
        %v353 = vld [vmem:[%s213 + $0x214] sm:$0xf]
        %v354 = vld [vmem:[%s213 + $0x218] sm:$0x1]
        %v355 = vld [vmem:[%s213 + $0x21c] sm:$0xf]
        %v356 = vld [vmem:[%s213 + $0x220] sm:$0xf]
        %v357 = vld [vmem:[%s213 + $0x224] sm:$0xf]
        %v358 = vld [vmem:[%s213 + $0x228] sm:$0xf]
        %v359 = vld [vmem:[%s213 + $0x22c] sm:$0x1]
        %v360 = vld [vmem:[%s213 + $0x230] sm:$0xf]
        %v361 = vld [vmem:[%s213 + $0x234] sm:$0xf]
        %v362 = vld [vmem:[%s213 + $0x238] sm:$0xf]
        %v363 = vld [vmem:[%s213 + $0x23c] sm:$0xf]
        %v364 = vld [vmem:[%s213 + $0x240] sm:$0x1]
        %v365 = vld [vmem:[%s213 + $0x244] sm:$0xf]
        %v366 = vld [vmem:[%s213 + $0x248] sm:$0xf]
        %v367 = vld [vmem:[%s213 + $0x24c] sm:$0xf]
        %v368 = vld [vmem:[%s213 + $0x250] sm:$0xf]
        %v369 = vld [vmem:[%s213 + $0x254] sm:$0x1]
        %v370 = vld [vmem:[%s213 + $0x258] sm:$0xf]
        %v371 = vld [vmem:[%s213 + $0x25c] sm:$0xf]
        %v372 = vld [vmem:[%s213 + $0x260] sm:$0xf]
        %v373 = vld [vmem:[%s213 + $0x264] sm:$0xf]
        %v374 = vld [vmem:[%s213 + $0x268] sm:$0x1]
        %v375 = vld [vmem:[%s213 + $0x26c] sm:$0xf]
        %v376 = vld [vmem:[%s213 + $0x270] sm:$0xf]
        %v377 = vld [vmem:[%s213 + $0x274] sm:$0xf]
        %v378 = vld [vmem:[%s213 + $0x278] sm:$0xf]
        %v379 = vld [vmem:[%s213 + $0x27c] sm:$0x1]
        %v380 = vld [vmem:[%s213 + $0x280] sm:$0xf]
        %v381 = vld [vmem:[%s213 + $0x284] sm:$0xf]
        %v382 = vld [vmem:[%s213 + $0x288] sm:$0xf]
        %v383 = vld [vmem:[%s213 + $0x28c] sm:$0xf]
        %v384 = vld [vmem:[%s213 + $0x290] sm:$0x1]
        %v385 = vld [vmem:[%s1] sm:$0xf]
        %v386 = vld [vmem:[%s1 + $0x4] sm:$0x3]
        %vm387 = vsmask.f32 3328
        %vm388 = vsmask.f32 7440
        %vm389 = vmor %vm387, %vm388
        %v391 = vshrl.u32 %v220, 16
        %v393 = vrot.slane %v391, 4
        %v394 = vshll.u32 %v220, 16
        %v396 = vrot.slane %v394, 5
        %v397 = vor.u32 %v393, %v396
        %v398 = vrot.slane %v397, 4
        %v400 = vshll.u32 %v221, 16
        %v402 = vrot.slane %v400, 5
        %v403 = vsel %vm389, %v398, %v402
        %v404 = vshrl.u32 %v221, 16
        %v406 = vrot.slane %v404, 4
        %v407 = vor.u32 %v406, %v402
        %v408 = vrot.slane %v407, 4
        %v410 = vshll.u32 %v222, 16
        %v412 = vrot.slane %v410, 5
        %v413 = vsel %vm389, %v408, %v412
        %v414 = vshrl.u32 %v222, 16
        %v416 = vrot.slane %v414, 4
        %v417 = vor.u32 %v416, %v412
        %v418 = vrot.slane %v417, 4
        %v420 = vshll.u32 %v223, 16
        %v422 = vrot.slane %v420, 5
        %v423 = vsel %vm389, %v418, %v422
        %v424 = vshrl.u32 %v223, 16
        %v426 = vrot.slane %v424, 4
        %v427 = vor.u32 %v426, %v422
        %v428 = vrot.slane %v427, 4
        %v430 = vshll.u32 %v224, 16
        %v432 = vrot.slane %v430, 5
        %v433 = vsel %vm389, %v428, %v432
        %v435 = vshrl.u32 %v225, 16
        %v437 = vrot.slane %v435, 4
        %v438 = vshll.u32 %v225, 16
        %v440 = vrot.slane %v438, 5
        %v441 = vor.u32 %v437, %v440
        %v442 = vrot.slane %v441, 4
        %v444 = vshll.u32 %v226, 16
        %v446 = vrot.slane %v444, 5
        %v447 = vsel %vm389, %v442, %v446
        %v448 = vshrl.u32 %v226, 16
        %v450 = vrot.slane %v448, 4
        %v451 = vor.u32 %v450, %v446
        %v452 = vrot.slane %v451, 4
        %v454 = vshll.u32 %v227, 16
        %v456 = vrot.slane %v454, 5
        %v457 = vsel %vm389, %v452, %v456
        %v458 = vshrl.u32 %v227, 16
        %v460 = vrot.slane %v458, 4
        %v461 = vor.u32 %v460, %v456
        %v462 = vrot.slane %v461, 4
        %v464 = vshll.u32 %v228, 16
        %v466 = vrot.slane %v464, 5
        %v467 = vsel %vm389, %v462, %v466
        %v468 = vshrl.u32 %v228, 16
        %v470 = vrot.slane %v468, 4
        %v471 = vor.u32 %v470, %v466
        %v472 = vrot.slane %v471, 4
        %v474 = vshll.u32 %v229, 16
        %v476 = vrot.slane %v474, 5
        %v477 = vsel %vm389, %v472, %v476
        %v479 = vshrl.u32 %v230, 16
        %v481 = vrot.slane %v479, 4
        %v482 = vshll.u32 %v230, 16
        %v484 = vrot.slane %v482, 5
        %v485 = vor.u32 %v481, %v484
        %v486 = vrot.slane %v485, 4
        %v488 = vshll.u32 %v231, 16
        %v490 = vrot.slane %v488, 5
        %v491 = vsel %vm389, %v486, %v490
        %v492 = vshrl.u32 %v231, 16
        %v494 = vrot.slane %v492, 4
        %v495 = vor.u32 %v494, %v490
        %v496 = vrot.slane %v495, 4
        %v498 = vshll.u32 %v232, 16
        %v500 = vrot.slane %v498, 5
        %v501 = vsel %vm389, %v496, %v500
        %v502 = vshrl.u32 %v232, 16
        %v504 = vrot.slane %v502, 4
        %v505 = vor.u32 %v504, %v500
        %v506 = vrot.slane %v505, 4
        %v508 = vshll.u32 %v233, 16
        %v510 = vrot.slane %v508, 5
        %v511 = vsel %vm389, %v506, %v510
        %v512 = vshrl.u32 %v233, 16
        %v514 = vrot.slane %v512, 4
        %v515 = vor.u32 %v514, %v510
        %v516 = vrot.slane %v515, 4
        %v518 = vshll.u32 %v234, 16
        %v520 = vrot.slane %v518, 5
        %v521 = vsel %vm389, %v516, %v520
        %v523 = vshrl.u32 %v235, 16
        %v525 = vrot.slane %v523, 4
        %v526 = vshll.u32 %v235, 16
        %v528 = vrot.slane %v526, 5
        %v529 = vor.u32 %v525, %v528
        %v530 = vrot.slane %v529, 4
        %v532 = vshll.u32 %v236, 16
        %v534 = vrot.slane %v532, 5
        %v535 = vsel %vm389, %v530, %v534
        %v536 = vshrl.u32 %v236, 16
        %v538 = vrot.slane %v536, 4
        %v539 = vor.u32 %v538, %v534
        %v540 = vrot.slane %v539, 4
        %v542 = vshll.u32 %v237, 16
        %v544 = vrot.slane %v542, 5
        %v545 = vsel %vm389, %v540, %v544
        %v546 = vshrl.u32 %v237, 16
        %v548 = vrot.slane %v546, 4
        %v549 = vor.u32 %v548, %v544
        %v550 = vrot.slane %v549, 4
        %v552 = vshll.u32 %v238, 16
        %v554 = vrot.slane %v552, 5
        %v555 = vsel %vm389, %v550, %v554
        %v556 = vshrl.u32 %v238, 16
        %v558 = vrot.slane %v556, 4
        %v559 = vor.u32 %v558, %v554
        %v560 = vrot.slane %v559, 4
        %v562 = vshll.u32 %v239, 16
        %v564 = vrot.slane %v562, 5
        %v565 = vsel %vm389, %v560, %v564
        %v567 = vshrl.u32 %v240, 16
        %v569 = vrot.slane %v567, 4
        %v570 = vshll.u32 %v240, 16
        %v572 = vrot.slane %v570, 5
        %v573 = vor.u32 %v569, %v572
        %v574 = vrot.slane %v573, 4
        %v576 = vshll.u32 %v241, 16
        %v578 = vrot.slane %v576, 5
        %v579 = vsel %vm389, %v574, %v578
        %v580 = vshrl.u32 %v241, 16
        %v582 = vrot.slane %v580, 4
        %v583 = vor.u32 %v582, %v578
        %v584 = vrot.slane %v583, 4
        %v586 = vshll.u32 %v242, 16
        %v588 = vrot.slane %v586, 5
        %v589 = vsel %vm389, %v584, %v588
        %v590 = vshrl.u32 %v242, 16
        %v592 = vrot.slane %v590, 4
        %v593 = vor.u32 %v592, %v588
        %v594 = vrot.slane %v593, 4
        %v596 = vshll.u32 %v243, 16
        %v598 = vrot.slane %v596, 5
        %v599 = vsel %vm389, %v594, %v598
        %v600 = vshrl.u32 %v243, 16
        %v602 = vrot.slane %v600, 4
        %v603 = vor.u32 %v602, %v598
        %v604 = vrot.slane %v603, 4
        %v606 = vshll.u32 %v244, 16
        %v608 = vrot.slane %v606, 5
        %v609 = vsel %vm389, %v604, %v608
        %v611 = vshrl.u32 %v245, 16
        %v613 = vrot.slane %v611, 4
        %v614 = vshll.u32 %v245, 16
        %v616 = vrot.slane %v614, 5
        %v617 = vor.u32 %v613, %v616
        %v618 = vrot.slane %v617, 4
        %v620 = vshll.u32 %v246, 16
        %v622 = vrot.slane %v620, 5
        %v623 = vsel %vm389, %v618, %v622
        %v624 = vshrl.u32 %v246, 16
        %v626 = vrot.slane %v624, 4
        %v627 = vor.u32 %v626, %v622
        %v628 = vrot.slane %v627, 4
        %v630 = vshll.u32 %v247, 16
        %v632 = vrot.slane %v630, 5
        %v633 = vsel %vm389, %v628, %v632
        %v634 = vshrl.u32 %v247, 16
        %v636 = vrot.slane %v634, 4
        %v637 = vor.u32 %v636, %v632
        %v638 = vrot.slane %v637, 4
        %v640 = vshll.u32 %v248, 16
        %v642 = vrot.slane %v640, 5
        %v643 = vsel %vm389, %v638, %v642
        %v644 = vshrl.u32 %v248, 16
        %v646 = vrot.slane %v644, 4
        %v647 = vor.u32 %v646, %v642
        %v648 = vrot.slane %v647, 4
        %v650 = vshll.u32 %v249, 16
        %v652 = vrot.slane %v650, 5
        %v653 = vsel %vm389, %v648, %v652
        %v655 = vshrl.u32 %v250, 16
        %v657 = vrot.slane %v655, 4
        %v658 = vshll.u32 %v250, 16
        %v660 = vrot.slane %v658, 5
        %v661 = vor.u32 %v657, %v660
        %v662 = vrot.slane %v661, 4
        %v664 = vshll.u32 %v251, 16
        %v666 = vrot.slane %v664, 5
        %v667 = vsel %vm389, %v662, %v666
        %v668 = vshrl.u32 %v251, 16
        %v670 = vrot.slane %v668, 4
        %v671 = vor.u32 %v670, %v666
        %v672 = vrot.slane %v671, 4
        %v674 = vshll.u32 %v252, 16
        %v676 = vrot.slane %v674, 5
        %v677 = vsel %vm389, %v672, %v676
        %v678 = vshrl.u32 %v252, 16
        %v680 = vrot.slane %v678, 4
        %v681 = vor.u32 %v680, %v676
        %v682 = vrot.slane %v681, 4
        %v684 = vshll.u32 %v253, 16
        %v686 = vrot.slane %v684, 5
        %v687 = vsel %vm389, %v682, %v686
        %v688 = vshrl.u32 %v253, 16
        %v690 = vrot.slane %v688, 4
        %v691 = vor.u32 %v690, %v686
        %v692 = vrot.slane %v691, 4
        %v694 = vshll.u32 %v254, 16
        %v696 = vrot.slane %v694, 5
        %v697 = vsel %vm389, %v692, %v696
        %v699 = vshrl.u32 %v255, 16
        %v701 = vrot.slane %v699, 4
        %v702 = vshll.u32 %v255, 16
        %v704 = vrot.slane %v702, 5
        %v705 = vor.u32 %v701, %v704
        %v706 = vrot.slane %v705, 4
        %v708 = vshll.u32 %v256, 16
        %v710 = vrot.slane %v708, 5
        %v711 = vsel %vm389, %v706, %v710
        %v712 = vshrl.u32 %v256, 16
        %v714 = vrot.slane %v712, 4
        %v715 = vor.u32 %v714, %v710
        %v716 = vrot.slane %v715, 4
        %v718 = vshll.u32 %v257, 16
        %v720 = vrot.slane %v718, 5
        %v721 = vsel %vm389, %v716, %v720
        %v722 = vshrl.u32 %v257, 16
        %v724 = vrot.slane %v722, 4
        %v725 = vor.u32 %v724, %v720
        %v726 = vrot.slane %v725, 4
        %v728 = vshll.u32 %v258, 16
        %v730 = vrot.slane %v728, 5
        %v731 = vsel %vm389, %v726, %v730
        %v732 = vshrl.u32 %v258, 16
        %v734 = vrot.slane %v732, 4
        %v735 = vor.u32 %v734, %v730
        %v736 = vrot.slane %v735, 4
        %v738 = vshll.u32 %v259, 16
        %v740 = vrot.slane %v738, 5
        %v741 = vsel %vm389, %v736, %v740
        %v743 = vshrl.u32 %v260, 16
        %v745 = vrot.slane %v743, 4
        %v746 = vshll.u32 %v260, 16
        %v748 = vrot.slane %v746, 5
        %v749 = vor.u32 %v745, %v748
        %v750 = vrot.slane %v749, 4
        %v752 = vshll.u32 %v261, 16
        %v754 = vrot.slane %v752, 5
        %v755 = vsel %vm389, %v750, %v754
        %v756 = vshrl.u32 %v261, 16
        %v758 = vrot.slane %v756, 4
        %v759 = vor.u32 %v758, %v754
        %v760 = vrot.slane %v759, 4
        %v762 = vshll.u32 %v262, 16
        %v764 = vrot.slane %v762, 5
        %v765 = vsel %vm389, %v760, %v764
        %v766 = vshrl.u32 %v262, 16
        %v768 = vrot.slane %v766, 4
        %v769 = vor.u32 %v768, %v764
        %v770 = vrot.slane %v769, 4
        %v772 = vshll.u32 %v263, 16
        %v774 = vrot.slane %v772, 5
        %v775 = vsel %vm389, %v770, %v774
        %v776 = vshrl.u32 %v263, 16
        %v778 = vrot.slane %v776, 4
        %v779 = vor.u32 %v778, %v774
        %v780 = vrot.slane %v779, 4
        %v782 = vshll.u32 %v264, 16
        %v784 = vrot.slane %v782, 5
        %v785 = vsel %vm389, %v780, %v784
        %v787 = vshrl.u32 %v265, 16
        %v789 = vrot.slane %v787, 4
        %v790 = vshll.u32 %v265, 16
        %v792 = vrot.slane %v790, 5
        %v793 = vor.u32 %v789, %v792
        %v794 = vrot.slane %v793, 4
        %v796 = vshll.u32 %v266, 16
        %v798 = vrot.slane %v796, 5
        %v799 = vsel %vm389, %v794, %v798
        %v800 = vshrl.u32 %v266, 16
        %v802 = vrot.slane %v800, 4
        %v803 = vor.u32 %v802, %v798
        %v804 = vrot.slane %v803, 4
        %v806 = vshll.u32 %v267, 16
        %v808 = vrot.slane %v806, 5
        %v809 = vsel %vm389, %v804, %v808
        %v810 = vshrl.u32 %v267, 16
        %v812 = vrot.slane %v810, 4
        %v813 = vor.u32 %v812, %v808
        %v814 = vrot.slane %v813, 4
        %v816 = vshll.u32 %v268, 16
        %v818 = vrot.slane %v816, 5
        %v819 = vsel %vm389, %v814, %v818
        %v820 = vshrl.u32 %v268, 16
        %v822 = vrot.slane %v820, 4
        %v823 = vor.u32 %v822, %v818
        %v824 = vrot.slane %v823, 4
        %v826 = vshll.u32 %v269, 16
        %v828 = vrot.slane %v826, 5
        %v829 = vsel %vm389, %v824, %v828
        %v831 = vshrl.u32 %v270, 16
        %v833 = vrot.slane %v831, 4
        %v834 = vshll.u32 %v270, 16
        %v836 = vrot.slane %v834, 5
        %v837 = vor.u32 %v833, %v836
        %v838 = vrot.slane %v837, 4
        %v840 = vshll.u32 %v271, 16
        %v842 = vrot.slane %v840, 5
        %v843 = vsel %vm389, %v838, %v842
        %v844 = vshrl.u32 %v271, 16
        %v846 = vrot.slane %v844, 4
        %v847 = vor.u32 %v846, %v842
        %v848 = vrot.slane %v847, 4
        %v850 = vshll.u32 %v272, 16
        %v852 = vrot.slane %v850, 5
        %v853 = vsel %vm389, %v848, %v852
        %v854 = vshrl.u32 %v272, 16
        %v856 = vrot.slane %v854, 4
        %v857 = vor.u32 %v856, %v852
        %v858 = vrot.slane %v857, 4
        %v860 = vshll.u32 %v273, 16
        %v862 = vrot.slane %v860, 5
        %v863 = vsel %vm389, %v858, %v862
        %v864 = vshrl.u32 %v273, 16
        %v866 = vrot.slane %v864, 4
        %v867 = vor.u32 %v866, %v862
        %v868 = vrot.slane %v867, 4
        %v870 = vshll.u32 %v274, 16
        %v872 = vrot.slane %v870, 5
        %v873 = vsel %vm389, %v868, %v872
        %v875 = vshrl.u32 %v275, 16
        %v877 = vrot.slane %v875, 4
        %v878 = vshll.u32 %v275, 16
        %v880 = vrot.slane %v878, 5
        %v881 = vor.u32 %v877, %v880
        %v882 = vrot.slane %v881, 4
        %v884 = vshll.u32 %v276, 16
        %v886 = vrot.slane %v884, 5
        %v887 = vsel %vm389, %v882, %v886
        %v888 = vshrl.u32 %v276, 16
        %v890 = vrot.slane %v888, 4
        %v891 = vor.u32 %v890, %v886
        %v892 = vrot.slane %v891, 4
        %v894 = vshll.u32 %v277, 16
        %v896 = vrot.slane %v894, 5
        %v897 = vsel %vm389, %v892, %v896
        %v898 = vshrl.u32 %v277, 16
        %v900 = vrot.slane %v898, 4
        %v901 = vor.u32 %v900, %v896
        %v902 = vrot.slane %v901, 4
        %v904 = vshll.u32 %v278, 16
        %v906 = vrot.slane %v904, 5
        %v907 = vsel %vm389, %v902, %v906
        %v908 = vshrl.u32 %v278, 16
        %v910 = vrot.slane %v908, 4
        %v911 = vor.u32 %v910, %v906
        %v912 = vrot.slane %v911, 4
        %v914 = vshll.u32 %v279, 16
        %v916 = vrot.slane %v914, 5
        %v917 = vsel %vm389, %v912, %v916
        %v919 = vshrl.u32 %v280, 16
        %v921 = vrot.slane %v919, 4
        %v922 = vshll.u32 %v280, 16
        %v924 = vrot.slane %v922, 5
        %v925 = vor.u32 %v921, %v924
        %v926 = vrot.slane %v925, 4
        %v928 = vshll.u32 %v281, 16
        %v930 = vrot.slane %v928, 5
        %v931 = vsel %vm389, %v926, %v930
        %v932 = vshrl.u32 %v281, 16
        %v934 = vrot.slane %v932, 4
        %v935 = vor.u32 %v934, %v930
        %v936 = vrot.slane %v935, 4
        %v938 = vshll.u32 %v282, 16
        %v940 = vrot.slane %v938, 5
        %v941 = vsel %vm389, %v936, %v940
        %v942 = vshrl.u32 %v282, 16
        %v944 = vrot.slane %v942, 4
        %v945 = vor.u32 %v944, %v940
        %v946 = vrot.slane %v945, 4
        %v948 = vshll.u32 %v283, 16
        %v950 = vrot.slane %v948, 5
        %v951 = vsel %vm389, %v946, %v950
        %v952 = vshrl.u32 %v283, 16
        %v954 = vrot.slane %v952, 4
        %v955 = vor.u32 %v954, %v950
        %v956 = vrot.slane %v955, 4
        %v958 = vshll.u32 %v284, 16
        %v960 = vrot.slane %v958, 5
        %v961 = vsel %vm389, %v956, %v960
        %v963 = vshrl.u32 %v285, 16
        %v965 = vrot.slane %v963, 4
        %v966 = vshll.u32 %v285, 16
        %v968 = vrot.slane %v966, 5
        %v969 = vor.u32 %v965, %v968
        %v970 = vrot.slane %v969, 4
        %v972 = vshll.u32 %v286, 16
        %v974 = vrot.slane %v972, 5
        %v975 = vsel %vm389, %v970, %v974
        %v976 = vshrl.u32 %v286, 16
        %v978 = vrot.slane %v976, 4
        %v979 = vor.u32 %v978, %v974
        %v980 = vrot.slane %v979, 4
        %v982 = vshll.u32 %v287, 16
        %v984 = vrot.slane %v982, 5
        %v985 = vsel %vm389, %v980, %v984
        %v986 = vshrl.u32 %v287, 16
        %v988 = vrot.slane %v986, 4
        %v989 = vor.u32 %v988, %v984
        %v990 = vrot.slane %v989, 4
        %v992 = vshll.u32 %v288, 16
        %v994 = vrot.slane %v992, 5
        %v995 = vsel %vm389, %v990, %v994
        %v996 = vshrl.u32 %v288, 16
        %v998 = vrot.slane %v996, 4
        %v999 = vor.u32 %v998, %v994
        %v1000 = vrot.slane %v999, 4
        %v1002 = vshll.u32 %v289, 16
        %v1004 = vrot.slane %v1002, 5
        %v1005 = vsel %vm389, %v1000, %v1004
        %v1007 = vshrl.u32 %v290, 16
        %v1009 = vrot.slane %v1007, 4
        %v1010 = vshll.u32 %v290, 16
        %v1012 = vrot.slane %v1010, 5
        %v1013 = vor.u32 %v1009, %v1012
        %v1014 = vrot.slane %v1013, 4
        %v1016 = vshll.u32 %v291, 16
        %v1018 = vrot.slane %v1016, 5
        %v1019 = vsel %vm389, %v1014, %v1018
        %v1020 = vshrl.u32 %v291, 16
        %v1022 = vrot.slane %v1020, 4
        %v1023 = vor.u32 %v1022, %v1018
        %v1024 = vrot.slane %v1023, 4
        %v1026 = vshll.u32 %v292, 16
        %v1028 = vrot.slane %v1026, 5
        %v1029 = vsel %vm389, %v1024, %v1028
        %v1030 = vshrl.u32 %v292, 16
        %v1032 = vrot.slane %v1030, 4
        %v1033 = vor.u32 %v1032, %v1028
        %v1034 = vrot.slane %v1033, 4
        %v1036 = vshll.u32 %v293, 16
        %v1038 = vrot.slane %v1036, 5
        %v1039 = vsel %vm389, %v1034, %v1038
        %v1040 = vshrl.u32 %v293, 16
        %v1042 = vrot.slane %v1040, 4
        %v1043 = vor.u32 %v1042, %v1038
        %v1044 = vrot.slane %v1043, 4
        %v1046 = vshll.u32 %v294, 16
        %v1048 = vrot.slane %v1046, 5
        %v1049 = vsel %vm389, %v1044, %v1048
        %v1051 = vshrl.u32 %v295, 16
        %v1053 = vrot.slane %v1051, 4
        %v1054 = vshll.u32 %v295, 16
        %v1056 = vrot.slane %v1054, 5
        %v1057 = vor.u32 %v1053, %v1056
        %v1058 = vrot.slane %v1057, 4
        %v1060 = vshll.u32 %v296, 16
        %v1062 = vrot.slane %v1060, 5
        %v1063 = vsel %vm389, %v1058, %v1062
        %v1064 = vshrl.u32 %v296, 16
        %v1066 = vrot.slane %v1064, 4
        %v1067 = vor.u32 %v1066, %v1062
        %v1068 = vrot.slane %v1067, 4
        %v1070 = vshll.u32 %v297, 16
        %v1072 = vrot.slane %v1070, 5
        %v1073 = vsel %vm389, %v1068, %v1072
        %v1074 = vshrl.u32 %v297, 16
        %v1076 = vrot.slane %v1074, 4
        %v1077 = vor.u32 %v1076, %v1072
        %v1078 = vrot.slane %v1077, 4
        %v1080 = vshll.u32 %v298, 16
        %v1082 = vrot.slane %v1080, 5
        %v1083 = vsel %vm389, %v1078, %v1082
        %v1084 = vshrl.u32 %v298, 16
        %v1086 = vrot.slane %v1084, 4
        %v1087 = vor.u32 %v1086, %v1082
        %v1088 = vrot.slane %v1087, 4
        %v1090 = vshll.u32 %v299, 16
        %v1092 = vrot.slane %v1090, 5
        %v1093 = vsel %vm389, %v1088, %v1092
        %v1095 = vshrl.u32 %v300, 16
        %v1097 = vrot.slane %v1095, 4
        %v1098 = vshll.u32 %v300, 16
        %v1100 = vrot.slane %v1098, 5
        %v1101 = vor.u32 %v1097, %v1100
        %v1102 = vrot.slane %v1101, 4
        %v1104 = vshll.u32 %v301, 16
        %v1106 = vrot.slane %v1104, 5
        %v1107 = vsel %vm389, %v1102, %v1106
        %v1108 = vshrl.u32 %v301, 16
        %v1110 = vrot.slane %v1108, 4
        %v1111 = vor.u32 %v1110, %v1106
        %v1112 = vrot.slane %v1111, 4
        %v1114 = vshll.u32 %v302, 16
        %v1116 = vrot.slane %v1114, 5
        %v1117 = vsel %vm389, %v1112, %v1116
        %v1118 = vshrl.u32 %v302, 16
        %v1120 = vrot.slane %v1118, 4
        %v1121 = vor.u32 %v1120, %v1116
        %v1122 = vrot.slane %v1121, 4
        %v1124 = vshll.u32 %v303, 16
        %v1126 = vrot.slane %v1124, 5
        %v1127 = vsel %vm389, %v1122, %v1126
        %v1128 = vshrl.u32 %v303, 16
        %v1130 = vrot.slane %v1128, 4
        %v1131 = vor.u32 %v1130, %v1126
        %v1132 = vrot.slane %v1131, 4
        %v1134 = vshll.u32 %v304, 16
        %v1136 = vrot.slane %v1134, 5
        %v1137 = vsel %vm389, %v1132, %v1136
        %v1139 = vshrl.u32 %v305, 16
        %v1141 = vrot.slane %v1139, 4
        %v1142 = vshll.u32 %v305, 16
        %v1144 = vrot.slane %v1142, 5
        %v1145 = vor.u32 %v1141, %v1144
        %v1146 = vrot.slane %v1145, 4
        %v1148 = vshll.u32 %v306, 16
        %v1150 = vrot.slane %v1148, 5
        %v1151 = vsel %vm389, %v1146, %v1150
        %v1152 = vshrl.u32 %v306, 16
        %v1154 = vrot.slane %v1152, 4
        %v1155 = vor.u32 %v1154, %v1150
        %v1156 = vrot.slane %v1155, 4
        %v1158 = vshll.u32 %v307, 16
        %v1160 = vrot.slane %v1158, 5
        %v1161 = vsel %vm389, %v1156, %v1160
        %v1162 = vshrl.u32 %v307, 16
        %v1164 = vrot.slane %v1162, 4
        %v1165 = vor.u32 %v1164, %v1160
        %v1166 = vrot.slane %v1165, 4
        %v1168 = vshll.u32 %v308, 16
        %v1170 = vrot.slane %v1168, 5
        %v1171 = vsel %vm389, %v1166, %v1170
        %v1172 = vshrl.u32 %v308, 16
        %v1174 = vrot.slane %v1172, 4
        %v1175 = vor.u32 %v1174, %v1170
        %v1176 = vrot.slane %v1175, 4
        %v1178 = vshll.u32 %v309, 16
        %v1180 = vrot.slane %v1178, 5
        %v1181 = vsel %vm389, %v1176, %v1180
        %v1183 = vshrl.u32 %v310, 16
        %v1185 = vrot.slane %v1183, 4
        %v1186 = vshll.u32 %v310, 16
        %v1188 = vrot.slane %v1186, 5
        %v1189 = vor.u32 %v1185, %v1188
        %v1190 = vrot.slane %v1189, 4
        %v1192 = vshll.u32 %v311, 16
        %v1194 = vrot.slane %v1192, 5
        %v1195 = vsel %vm389, %v1190, %v1194
        %v1196 = vshrl.u32 %v311, 16
        %v1198 = vrot.slane %v1196, 4
        %v1199 = vor.u32 %v1198, %v1194
        %v1200 = vrot.slane %v1199, 4
        %v1202 = vshll.u32 %v312, 16
        %v1204 = vrot.slane %v1202, 5
        %v1205 = vsel %vm389, %v1200, %v1204
        %v1206 = vshrl.u32 %v312, 16
        %v1208 = vrot.slane %v1206, 4
        %v1209 = vor.u32 %v1208, %v1204
        %v1210 = vrot.slane %v1209, 4
        %v1212 = vshll.u32 %v313, 16
        %v1214 = vrot.slane %v1212, 5
        %v1215 = vsel %vm389, %v1210, %v1214
        %v1216 = vshrl.u32 %v313, 16
        %v1218 = vrot.slane %v1216, 4
        %v1219 = vor.u32 %v1218, %v1214
        %v1220 = vrot.slane %v1219, 4
        %v1222 = vshll.u32 %v314, 16
        %v1224 = vrot.slane %v1222, 5
        %v1225 = vsel %vm389, %v1220, %v1224
        %v1227 = vshrl.u32 %v315, 16
        %v1229 = vrot.slane %v1227, 4
        %v1230 = vshll.u32 %v315, 16
        %v1232 = vrot.slane %v1230, 5
        %v1233 = vor.u32 %v1229, %v1232
        %v1234 = vrot.slane %v1233, 4
        %v1236 = vshll.u32 %v316, 16
        %v1238 = vrot.slane %v1236, 5
        %v1239 = vsel %vm389, %v1234, %v1238
        %v1240 = vshrl.u32 %v316, 16
        %v1242 = vrot.slane %v1240, 4
        %v1243 = vor.u32 %v1242, %v1238
        %v1244 = vrot.slane %v1243, 4
        %v1246 = vshll.u32 %v317, 16
        %v1248 = vrot.slane %v1246, 5
        %v1249 = vsel %vm389, %v1244, %v1248
        %v1250 = vshrl.u32 %v317, 16
        %v1252 = vrot.slane %v1250, 4
        %v1253 = vor.u32 %v1252, %v1248
        %v1254 = vrot.slane %v1253, 4
        %v1256 = vshll.u32 %v318, 16
        %v1258 = vrot.slane %v1256, 5
        %v1259 = vsel %vm389, %v1254, %v1258
        %v1260 = vshrl.u32 %v318, 16
        %v1262 = vrot.slane %v1260, 4
        %v1263 = vor.u32 %v1262, %v1258
        %v1264 = vrot.slane %v1263, 4
        %v1266 = vshll.u32 %v319, 16
        %v1268 = vrot.slane %v1266, 5
        %v1269 = vsel %vm389, %v1264, %v1268
        %v1271 = vshrl.u32 %v320, 16
        %v1273 = vrot.slane %v1271, 4
        %v1274 = vshll.u32 %v320, 16
        %v1276 = vrot.slane %v1274, 5
        %v1277 = vor.u32 %v1273, %v1276
        %v1278 = vrot.slane %v1277, 4
        %v1280 = vshll.u32 %v321, 16
        %v1282 = vrot.slane %v1280, 5
        %v1283 = vsel %vm389, %v1278, %v1282
        %v1284 = vshrl.u32 %v321, 16
        %v1286 = vrot.slane %v1284, 4
        %v1287 = vor.u32 %v1286, %v1282
        %v1288 = vrot.slane %v1287, 4
        %v1290 = vshll.u32 %v322, 16
        %v1292 = vrot.slane %v1290, 5
        %v1293 = vsel %vm389, %v1288, %v1292
        %v1294 = vshrl.u32 %v322, 16
        %v1296 = vrot.slane %v1294, 4
        %v1297 = vor.u32 %v1296, %v1292
        %v1298 = vrot.slane %v1297, 4
        %v1300 = vshll.u32 %v323, 16
        %v1302 = vrot.slane %v1300, 5
        %v1303 = vsel %vm389, %v1298, %v1302
        %v1304 = vshrl.u32 %v323, 16
        %v1306 = vrot.slane %v1304, 4
        %v1307 = vor.u32 %v1306, %v1302
        %v1308 = vrot.slane %v1307, 4
        %v1310 = vshll.u32 %v324, 16
        %v1312 = vrot.slane %v1310, 5
        %v1313 = vsel %vm389, %v1308, %v1312
        %v1315 = vshrl.u32 %v325, 16
        %v1317 = vrot.slane %v1315, 4
        %v1318 = vshll.u32 %v325, 16
        %v1320 = vrot.slane %v1318, 5
        %v1321 = vor.u32 %v1317, %v1320
        %v1322 = vrot.slane %v1321, 4
        %v1324 = vshll.u32 %v326, 16
        %v1326 = vrot.slane %v1324, 5
        %v1327 = vsel %vm389, %v1322, %v1326
        %v1328 = vshrl.u32 %v326, 16
        %v1330 = vrot.slane %v1328, 4
        %v1331 = vor.u32 %v1330, %v1326
        %v1332 = vrot.slane %v1331, 4
        %v1334 = vshll.u32 %v327, 16
        %v1336 = vrot.slane %v1334, 5
        %v1337 = vsel %vm389, %v1332, %v1336
        %v1338 = vshrl.u32 %v327, 16
        %v1340 = vrot.slane %v1338, 4
        %v1341 = vor.u32 %v1340, %v1336
        %v1342 = vrot.slane %v1341, 4
        %v1344 = vshll.u32 %v328, 16
        %v1346 = vrot.slane %v1344, 5
        %v1347 = vsel %vm389, %v1342, %v1346
        %v1348 = vshrl.u32 %v328, 16
        %v1350 = vrot.slane %v1348, 4
        %v1351 = vor.u32 %v1350, %v1346
        %v1352 = vrot.slane %v1351, 4
        %v1354 = vshll.u32 %v329, 16
        %v1356 = vrot.slane %v1354, 5
        %v1357 = vsel %vm389, %v1352, %v1356
        %v1359 = vshrl.u32 %v330, 16
        %v1361 = vrot.slane %v1359, 4
        %v1362 = vshll.u32 %v330, 16
        %v1364 = vrot.slane %v1362, 5
        %v1365 = vor.u32 %v1361, %v1364
        %v1366 = vrot.slane %v1365, 4
        %v1368 = vshll.u32 %v331, 16
        %v1370 = vrot.slane %v1368, 5
        %v1371 = vsel %vm389, %v1366, %v1370
        %v1372 = vshrl.u32 %v331, 16
        %v1374 = vrot.slane %v1372, 4
        %v1375 = vor.u32 %v1374, %v1370
        %v1376 = vrot.slane %v1375, 4
        %v1378 = vshll.u32 %v332, 16
        %v1380 = vrot.slane %v1378, 5
        %v1381 = vsel %vm389, %v1376, %v1380
        %v1382 = vshrl.u32 %v332, 16
        %v1384 = vrot.slane %v1382, 4
        %v1385 = vor.u32 %v1384, %v1380
        %v1386 = vrot.slane %v1385, 4
        %v1388 = vshll.u32 %v333, 16
        %v1390 = vrot.slane %v1388, 5
        %v1391 = vsel %vm389, %v1386, %v1390
        %v1392 = vshrl.u32 %v333, 16
        %v1394 = vrot.slane %v1392, 4
        %v1395 = vor.u32 %v1394, %v1390
        %v1396 = vrot.slane %v1395, 4
        %v1398 = vshll.u32 %v334, 16
        %v1400 = vrot.slane %v1398, 5
        %v1401 = vsel %vm389, %v1396, %v1400
        %v1403 = vshrl.u32 %v335, 16
        %v1405 = vrot.slane %v1403, 4
        %v1406 = vshll.u32 %v335, 16
        %v1408 = vrot.slane %v1406, 5
        %v1409 = vor.u32 %v1405, %v1408
        %v1410 = vrot.slane %v1409, 4
        %v1412 = vshll.u32 %v336, 16
        %v1414 = vrot.slane %v1412, 5
        %v1415 = vsel %vm389, %v1410, %v1414
        %v1416 = vshrl.u32 %v336, 16
        %v1418 = vrot.slane %v1416, 4
        %v1419 = vor.u32 %v1418, %v1414
        %v1420 = vrot.slane %v1419, 4
        %v1422 = vshll.u32 %v337, 16
        %v1424 = vrot.slane %v1422, 5
        %v1425 = vsel %vm389, %v1420, %v1424
        %v1426 = vshrl.u32 %v337, 16
        %v1428 = vrot.slane %v1426, 4
        %v1429 = vor.u32 %v1428, %v1424
        %v1430 = vrot.slane %v1429, 4
        %v1432 = vshll.u32 %v338, 16
        %v1434 = vrot.slane %v1432, 5
        %v1435 = vsel %vm389, %v1430, %v1434
        %v1436 = vshrl.u32 %v338, 16
        %v1438 = vrot.slane %v1436, 4
        %v1439 = vor.u32 %v1438, %v1434
        %v1440 = vrot.slane %v1439, 4
        %v1442 = vshll.u32 %v339, 16
        %v1444 = vrot.slane %v1442, 5
        %v1445 = vsel %vm389, %v1440, %v1444
        %v1447 = vshrl.u32 %v340, 16
        %v1449 = vrot.slane %v1447, 4
        %v1450 = vshll.u32 %v340, 16
        %v1452 = vrot.slane %v1450, 5
        %v1453 = vor.u32 %v1449, %v1452
        %v1454 = vrot.slane %v1453, 4
        %v1456 = vshll.u32 %v341, 16
        %v1458 = vrot.slane %v1456, 5
        %v1459 = vsel %vm389, %v1454, %v1458
        %v1460 = vshrl.u32 %v341, 16
        %v1462 = vrot.slane %v1460, 4
        %v1463 = vor.u32 %v1462, %v1458
        %v1464 = vrot.slane %v1463, 4
        %v1466 = vshll.u32 %v342, 16
        %v1468 = vrot.slane %v1466, 5
        %v1469 = vsel %vm389, %v1464, %v1468
        %v1470 = vshrl.u32 %v342, 16
        %v1472 = vrot.slane %v1470, 4
        %v1473 = vor.u32 %v1472, %v1468
        %v1474 = vrot.slane %v1473, 4
        %v1476 = vshll.u32 %v343, 16
        %v1478 = vrot.slane %v1476, 5
        %v1479 = vsel %vm389, %v1474, %v1478
        %v1480 = vshrl.u32 %v343, 16
        %v1482 = vrot.slane %v1480, 4
        %v1483 = vor.u32 %v1482, %v1478
        %v1484 = vrot.slane %v1483, 4
        %v1486 = vshll.u32 %v344, 16
        %v1488 = vrot.slane %v1486, 5
        %v1489 = vsel %vm389, %v1484, %v1488
        %v1491 = vshrl.u32 %v345, 16
        %v1493 = vrot.slane %v1491, 4
        %v1494 = vshll.u32 %v345, 16
        %v1496 = vrot.slane %v1494, 5
        %v1497 = vor.u32 %v1493, %v1496
        %v1498 = vrot.slane %v1497, 4
        %v1500 = vshll.u32 %v346, 16
        %v1502 = vrot.slane %v1500, 5
        %v1503 = vsel %vm389, %v1498, %v1502
        %v1504 = vshrl.u32 %v346, 16
        %v1506 = vrot.slane %v1504, 4
        %v1507 = vor.u32 %v1506, %v1502
        %v1508 = vrot.slane %v1507, 4
        %v1510 = vshll.u32 %v347, 16
        %v1512 = vrot.slane %v1510, 5
        %v1513 = vsel %vm389, %v1508, %v1512
        %v1514 = vshrl.u32 %v347, 16
        %v1516 = vrot.slane %v1514, 4
        %v1517 = vor.u32 %v1516, %v1512
        %v1518 = vrot.slane %v1517, 4
        %v1520 = vshll.u32 %v348, 16
        %v1522 = vrot.slane %v1520, 5
        %v1523 = vsel %vm389, %v1518, %v1522
        %v1524 = vshrl.u32 %v348, 16
        %v1526 = vrot.slane %v1524, 4
        %v1527 = vor.u32 %v1526, %v1522
        %v1528 = vrot.slane %v1527, 4
        %v1530 = vshll.u32 %v349, 16
        %v1532 = vrot.slane %v1530, 5
        %v1533 = vsel %vm389, %v1528, %v1532
        %v1535 = vshrl.u32 %v350, 16
        %v1537 = vrot.slane %v1535, 4
        %v1538 = vshll.u32 %v350, 16
        %v1540 = vrot.slane %v1538, 5
        %v1541 = vor.u32 %v1537, %v1540
        %v1542 = vrot.slane %v1541, 4
        %v1544 = vshll.u32 %v351, 16
        %v1546 = vrot.slane %v1544, 5
        %v1547 = vsel %vm389, %v1542, %v1546
        %v1548 = vshrl.u32 %v351, 16
        %v1550 = vrot.slane %v1548, 4
        %v1551 = vor.u32 %v1550, %v1546
        %v1552 = vrot.slane %v1551, 4
        %v1554 = vshll.u32 %v352, 16
        %v1556 = vrot.slane %v1554, 5
        %v1557 = vsel %vm389, %v1552, %v1556
        %v1558 = vshrl.u32 %v352, 16
        %v1560 = vrot.slane %v1558, 4
        %v1561 = vor.u32 %v1560, %v1556
        %v1562 = vrot.slane %v1561, 4
        %v1564 = vshll.u32 %v353, 16
        %v1566 = vrot.slane %v1564, 5
        %v1567 = vsel %vm389, %v1562, %v1566
        %v1568 = vshrl.u32 %v353, 16
        %v1570 = vrot.slane %v1568, 4
        %v1571 = vor.u32 %v1570, %v1566
        %v1572 = vrot.slane %v1571, 4
        %v1574 = vshll.u32 %v354, 16
        %v1576 = vrot.slane %v1574, 5
        %v1577 = vsel %vm389, %v1572, %v1576
        %v1579 = vshrl.u32 %v355, 16
        %v1581 = vrot.slane %v1579, 4
        %v1582 = vshll.u32 %v355, 16
        %v1584 = vrot.slane %v1582, 5
        %v1585 = vor.u32 %v1581, %v1584
        %v1586 = vrot.slane %v1585, 4
        %v1588 = vshll.u32 %v356, 16
        %v1590 = vrot.slane %v1588, 5
        %v1591 = vsel %vm389, %v1586, %v1590
        %v1592 = vshrl.u32 %v356, 16
        %v1594 = vrot.slane %v1592, 4
        %v1595 = vor.u32 %v1594, %v1590
        %v1596 = vrot.slane %v1595, 4
        %v1598 = vshll.u32 %v357, 16
        %v1600 = vrot.slane %v1598, 5
        %v1601 = vsel %vm389, %v1596, %v1600
        %v1602 = vshrl.u32 %v357, 16
        %v1604 = vrot.slane %v1602, 4
        %v1605 = vor.u32 %v1604, %v1600
        %v1606 = vrot.slane %v1605, 4
        %v1608 = vshll.u32 %v358, 16
        %v1610 = vrot.slane %v1608, 5
        %v1611 = vsel %vm389, %v1606, %v1610
        %v1612 = vshrl.u32 %v358, 16
        %v1614 = vrot.slane %v1612, 4
        %v1615 = vor.u32 %v1614, %v1610
        %v1616 = vrot.slane %v1615, 4
        %v1618 = vshll.u32 %v359, 16
        %v1620 = vrot.slane %v1618, 5
        %v1621 = vsel %vm389, %v1616, %v1620
        %v1623 = vshrl.u32 %v360, 16
        %v1625 = vrot.slane %v1623, 4
        %v1626 = vshll.u32 %v360, 16
        %v1628 = vrot.slane %v1626, 5
        %v1629 = vor.u32 %v1625, %v1628
        %v1630 = vrot.slane %v1629, 4
        %v1632 = vshll.u32 %v361, 16
        %v1634 = vrot.slane %v1632, 5
        %v1635 = vsel %vm389, %v1630, %v1634
        %v1636 = vshrl.u32 %v361, 16
        %v1638 = vrot.slane %v1636, 4
        %v1639 = vor.u32 %v1638, %v1634
        %v1640 = vrot.slane %v1639, 4
        %v1642 = vshll.u32 %v362, 16
        %v1644 = vrot.slane %v1642, 5
        %v1645 = vsel %vm389, %v1640, %v1644
        %v1646 = vshrl.u32 %v362, 16
        %v1648 = vrot.slane %v1646, 4
        %v1649 = vor.u32 %v1648, %v1644
        %v1650 = vrot.slane %v1649, 4
        %v1652 = vshll.u32 %v363, 16
        %v1654 = vrot.slane %v1652, 5
        %v1655 = vsel %vm389, %v1650, %v1654
        %v1656 = vshrl.u32 %v363, 16
        %v1658 = vrot.slane %v1656, 4
        %v1659 = vor.u32 %v1658, %v1654
        %v1660 = vrot.slane %v1659, 4
        %v1662 = vshll.u32 %v364, 16
        %v1664 = vrot.slane %v1662, 5
        %v1665 = vsel %vm389, %v1660, %v1664
        %v1667 = vshrl.u32 %v365, 16
        %v1669 = vrot.slane %v1667, 4
        %v1670 = vshll.u32 %v365, 16
        %v1672 = vrot.slane %v1670, 5
        %v1673 = vor.u32 %v1669, %v1672
        %v1674 = vrot.slane %v1673, 4
        %v1676 = vshll.u32 %v366, 16
        %v1678 = vrot.slane %v1676, 5
        %v1679 = vsel %vm389, %v1674, %v1678
        %v1680 = vshrl.u32 %v366, 16
        %v1682 = vrot.slane %v1680, 4
        %v1683 = vor.u32 %v1682, %v1678
        %v1684 = vrot.slane %v1683, 4
        %v1686 = vshll.u32 %v367, 16
        %v1688 = vrot.slane %v1686, 5
        %v1689 = vsel %vm389, %v1684, %v1688
        %v1690 = vshrl.u32 %v367, 16
        %v1692 = vrot.slane %v1690, 4
        %v1693 = vor.u32 %v1692, %v1688
        %v1694 = vrot.slane %v1693, 4
        %v1696 = vshll.u32 %v368, 16
        %v1698 = vrot.slane %v1696, 5
        %v1699 = vsel %vm389, %v1694, %v1698
        %v1700 = vshrl.u32 %v368, 16
        %v1702 = vrot.slane %v1700, 4
        %v1703 = vor.u32 %v1702, %v1698
        %v1704 = vrot.slane %v1703, 4
        %v1706 = vshll.u32 %v369, 16
        %v1708 = vrot.slane %v1706, 5
        %v1709 = vsel %vm389, %v1704, %v1708
        %v1711 = vshrl.u32 %v370, 16
        %v1713 = vrot.slane %v1711, 4
        %v1714 = vshll.u32 %v370, 16
        %v1716 = vrot.slane %v1714, 5
        %v1717 = vor.u32 %v1713, %v1716
        %v1718 = vrot.slane %v1717, 4
        %v1720 = vshll.u32 %v371, 16
        %v1722 = vrot.slane %v1720, 5
        %v1723 = vsel %vm389, %v1718, %v1722
        %v1724 = vshrl.u32 %v371, 16
        %v1726 = vrot.slane %v1724, 4
        %v1727 = vor.u32 %v1726, %v1722
        %v1728 = vrot.slane %v1727, 4
        %v1730 = vshll.u32 %v372, 16
        %v1732 = vrot.slane %v1730, 5
        %v1733 = vsel %vm389, %v1728, %v1732
        %v1734 = vshrl.u32 %v372, 16
        %v1736 = vrot.slane %v1734, 4
        %v1737 = vor.u32 %v1736, %v1732
        %v1738 = vrot.slane %v1737, 4
        %v1740 = vshll.u32 %v373, 16
        %v1742 = vrot.slane %v1740, 5
        %v1743 = vsel %vm389, %v1738, %v1742
        %v1744 = vshrl.u32 %v373, 16
        %v1746 = vrot.slane %v1744, 4
        %v1747 = vor.u32 %v1746, %v1742
        %v1748 = vrot.slane %v1747, 4
        %v1750 = vshll.u32 %v374, 16
        %v1752 = vrot.slane %v1750, 5
        %v1753 = vsel %vm389, %v1748, %v1752
        %v1755 = vshrl.u32 %v375, 16
        %v1757 = vrot.slane %v1755, 4
        %v1758 = vshll.u32 %v375, 16
        %v1760 = vrot.slane %v1758, 5
        %v1761 = vor.u32 %v1757, %v1760
        %v1762 = vrot.slane %v1761, 4
        %v1764 = vshll.u32 %v376, 16
        %v1766 = vrot.slane %v1764, 5
        %v1767 = vsel %vm389, %v1762, %v1766
        %v1768 = vshrl.u32 %v376, 16
        %v1770 = vrot.slane %v1768, 4
        %v1771 = vor.u32 %v1770, %v1766
        %v1772 = vrot.slane %v1771, 4
        %v1774 = vshll.u32 %v377, 16
        %v1776 = vrot.slane %v1774, 5
        %v1777 = vsel %vm389, %v1772, %v1776
        %v1778 = vshrl.u32 %v377, 16
        %v1780 = vrot.slane %v1778, 4
        %v1781 = vor.u32 %v1780, %v1776
        %v1782 = vrot.slane %v1781, 4
        %v1784 = vshll.u32 %v378, 16
        %v1786 = vrot.slane %v1784, 5
        %v1787 = vsel %vm389, %v1782, %v1786
        %v1788 = vshrl.u32 %v378, 16
        %v1790 = vrot.slane %v1788, 4
        %v1791 = vor.u32 %v1790, %v1786
        %v1792 = vrot.slane %v1791, 4
        %v1794 = vshll.u32 %v379, 16
        %v1796 = vrot.slane %v1794, 5
        %v1797 = vsel %vm389, %v1792, %v1796
        %s1798 = scalar_lea.vmem %s1, 8
        %v1799 = vld [vmem:[%s1798] sm:$0xf]
        %v1800 = vld [vmem:[%s1798 + $0x4] sm:$0x3]
        %v1801 = vunpack.c.l.b16 %v403
        %v1802 = vunpack.c.l.b16 %v413
        %v1803 = vunpack.c.l.b16 %v423
        %v1804 = vunpack.c.l.b16 %v433
        %v1805 = vunpack.c.l.b16 %v447
        %v1806 = vunpack.c.l.b16 %v457
        %v1807 = vunpack.c.l.b16 %v467
        %v1808 = vunpack.c.l.b16 %v477
        %v1809 = vunpack.c.l.b16 %v491
        %v1810 = vunpack.c.l.b16 %v501
        %v1811 = vunpack.c.l.b16 %v511
        %v1812 = vunpack.c.l.b16 %v521
        %v1813 = vunpack.c.l.b16 %v535
        %v1814 = vunpack.c.l.b16 %v545
        %v1815 = vunpack.c.l.b16 %v555
        %v1816 = vunpack.c.l.b16 %v565
        %v1817 = vunpack.c.l.b16 %v579
        %v1818 = vunpack.c.l.b16 %v589
        %v1819 = vunpack.c.l.b16 %v599
        %v1820 = vunpack.c.l.b16 %v609
        %v1821 = vunpack.c.l.b16 %v623
        %v1822 = vunpack.c.l.b16 %v633
        %v1823 = vunpack.c.l.b16 %v643
        %v1824 = vunpack.c.l.b16 %v653
        %v1825 = vunpack.c.l.b16 %v667
        %v1826 = vunpack.c.l.b16 %v677
        %v1827 = vunpack.c.l.b16 %v687
        %v1828 = vunpack.c.l.b16 %v697
        %v1829 = vunpack.c.l.b16 %v711
        %v1830 = vunpack.c.l.b16 %v721
        %v1831 = vunpack.c.l.b16 %v731
        %v1832 = vunpack.c.l.b16 %v741
        %v1833 = vunpack.c.l.b16 %v755
        %v1834 = vunpack.c.l.b16 %v765
        %v1835 = vunpack.c.l.b16 %v775
        %v1836 = vunpack.c.l.b16 %v785
        %v1837 = vunpack.c.l.b16 %v799
        %v1838 = vunpack.c.l.b16 %v809
        %v1839 = vunpack.c.l.b16 %v819
        %v1840 = vunpack.c.l.b16 %v829
        %v1841 = vunpack.c.l.b16 %v843
        %v1842 = vunpack.c.l.b16 %v853
        %v1843 = vunpack.c.l.b16 %v863
        %v1844 = vunpack.c.l.b16 %v873
        %v1845 = vunpack.c.l.b16 %v887
        %v1846 = vunpack.c.l.b16 %v897
        %v1847 = vunpack.c.l.b16 %v907
        %v1848 = vunpack.c.l.b16 %v917
        %v1849 = vunpack.c.l.b16 %v931
        %v1850 = vunpack.c.l.b16 %v941
        %v1851 = vunpack.c.l.b16 %v951
        %v1852 = vunpack.c.l.b16 %v961
        %v1853 = vunpack.c.l.b16 %v975
        %v1854 = vunpack.c.l.b16 %v985
        %v1855 = vunpack.c.l.b16 %v995
        %v1856 = vunpack.c.l.b16 %v1005
        %v1857 = vunpack.c.l.b16 %v1019
        %v1858 = vunpack.c.l.b16 %v1029
        %v1859 = vunpack.c.l.b16 %v1039
        %v1860 = vunpack.c.l.b16 %v1049
        %v1861 = vunpack.c.l.b16 %v1063
        %v1862 = vunpack.c.l.b16 %v1073
        %v1863 = vunpack.c.l.b16 %v1083
        %v1864 = vunpack.c.l.b16 %v1093
        %v1865 = vunpack.c.l.b16 %v1107
        %v1866 = vunpack.c.l.b16 %v1117
        %v1867 = vunpack.c.l.b16 %v1127
        %v1868 = vunpack.c.l.b16 %v1137
        %v1869 = vunpack.c.l.b16 %v1151
        %v1870 = vunpack.c.l.b16 %v1161
        %v1871 = vunpack.c.l.b16 %v1171
        %v1872 = vunpack.c.l.b16 %v1181
        %v1873 = vunpack.c.l.b16 %v1195
        %v1874 = vunpack.c.l.b16 %v1205
        %v1875 = vunpack.c.l.b16 %v1215
        %v1876 = vunpack.c.l.b16 %v1225
        %v1877 = vunpack.c.l.b16 %v1239
        %v1878 = vunpack.c.l.b16 %v1249
        %v1879 = vunpack.c.l.b16 %v1259
        %v1880 = vunpack.c.l.b16 %v1269
        %v1881 = vunpack.c.l.b16 %v1283
        %v1882 = vunpack.c.l.b16 %v1293
        %v1883 = vunpack.c.l.b16 %v1303
        %v1884 = vunpack.c.l.b16 %v1313
        %v1885 = vunpack.c.l.b16 %v1327
        %v1886 = vunpack.c.l.b16 %v1337
        %v1887 = vunpack.c.l.b16 %v1347
        %v1888 = vunpack.c.l.b16 %v1357
        %v1889 = vunpack.c.l.b16 %v1371
        %v1890 = vunpack.c.l.b16 %v1381
        %v1891 = vunpack.c.l.b16 %v1391
        %v1892 = vunpack.c.l.b16 %v1401
        %v1893 = vunpack.c.l.b16 %v1415
        %v1894 = vunpack.c.l.b16 %v1425
        %v1895 = vunpack.c.l.b16 %v1435
        %v1896 = vunpack.c.l.b16 %v1445
        %v1897 = vunpack.c.l.b16 %v1459
        %v1898 = vunpack.c.l.b16 %v1469
        %v1899 = vunpack.c.l.b16 %v1479
        %v1900 = vunpack.c.l.b16 %v1489
        %v1901 = vunpack.c.l.b16 %v1503
        %v1902 = vunpack.c.l.b16 %v1513
        %v1903 = vunpack.c.l.b16 %v1523
        %v1904 = vunpack.c.l.b16 %v1533
        %v1905 = vunpack.c.l.b16 %v1547
        %v1906 = vunpack.c.l.b16 %v1557
        %v1907 = vunpack.c.l.b16 %v1567
        %v1908 = vunpack.c.l.b16 %v1577
        %v1909 = vunpack.c.l.b16 %v1591
        %v1910 = vunpack.c.l.b16 %v1601
        %v1911 = vunpack.c.l.b16 %v1611
        %v1912 = vunpack.c.l.b16 %v1621
        %v1913 = vunpack.c.l.b16 %v1635
        %v1914 = vunpack.c.l.b16 %v1645
        %v1915 = vunpack.c.l.b16 %v1655
        %v1916 = vunpack.c.l.b16 %v1665
        %v1917 = vunpack.c.l.b16 %v1679
        %v1918 = vunpack.c.l.b16 %v1689
        %v1919 = vunpack.c.l.b16 %v1699
        %v1920 = vunpack.c.l.b16 %v1709
        %v1921 = vunpack.c.l.b16 %v1723
        %v1922 = vunpack.c.l.b16 %v1733
        %v1923 = vunpack.c.l.b16 %v1743
        %v1924 = vunpack.c.l.b16 %v1753
        %v1925 = vunpack.c.l.b16 %v1767
        %v1926 = vunpack.c.l.b16 %v1777
        %v1927 = vunpack.c.l.b16 %v1787
        %v1928 = vunpack.c.l.b16 %v1797
        %v1929 = vpack.c.b16 %v1802, %v1801
        %v1930 = vpack.c.b16 %v1804, %v1803
        %v1931 = vpack.c.b16 %v1806, %v1805
        %v1932 = vpack.c.b16 %v1808, %v1807
        %v1933 = vpack.c.b16 %v1810, %v1809
        %v1934 = vpack.c.b16 %v1812, %v1811
        %v1935 = vpack.c.b16 %v1814, %v1813
        %v1936 = vpack.c.b16 %v1816, %v1815
        %v1937 = vpack.c.b16 %v1818, %v1817
        %v1938 = vpack.c.b16 %v1820, %v1819
        %v1939 = vpack.c.b16 %v1822, %v1821
        %v1940 = vpack.c.b16 %v1824, %v1823
        %v1941 = vpack.c.b16 %v1826, %v1825
        %v1942 = vpack.c.b16 %v1828, %v1827
        %v1943 = vpack.c.b16 %v1830, %v1829
        %v1944 = vpack.c.b16 %v1832, %v1831
        %v1945 = vpack.c.b16 %v1834, %v1833
        %v1946 = vpack.c.b16 %v1836, %v1835
        %v1947 = vpack.c.b16 %v1838, %v1837
        %v1948 = vpack.c.b16 %v1840, %v1839
        %v1949 = vpack.c.b16 %v1842, %v1841
        %v1950 = vpack.c.b16 %v1844, %v1843
        %v1951 = vpack.c.b16 %v1846, %v1845
        %v1952 = vpack.c.b16 %v1848, %v1847
        %v1953 = vpack.c.b16 %v1850, %v1849
        %v1954 = vpack.c.b16 %v1852, %v1851
        %v1955 = vpack.c.b16 %v1854, %v1853
        %v1956 = vpack.c.b16 %v1856, %v1855
        %v1957 = vpack.c.b16 %v1858, %v1857
        %v1958 = vpack.c.b16 %v1860, %v1859
        %v1959 = vpack.c.b16 %v1862, %v1861
        %v1960 = vpack.c.b16 %v1864, %v1863
        %v1961 = vpack.c.b16 %v1866, %v1865
        %v1962 = vpack.c.b16 %v1868, %v1867
        %v1963 = vpack.c.b16 %v1870, %v1869
        %v1964 = vpack.c.b16 %v1872, %v1871
        %v1965 = vpack.c.b16 %v1874, %v1873
        %v1966 = vpack.c.b16 %v1876, %v1875
        %v1967 = vpack.c.b16 %v1878, %v1877
        %v1968 = vpack.c.b16 %v1880, %v1879
        %v1969 = vpack.c.b16 %v1882, %v1881
        %v1970 = vpack.c.b16 %v1884, %v1883
        %v1971 = vpack.c.b16 %v1886, %v1885
        %v1972 = vpack.c.b16 %v1888, %v1887
        %v1973 = vpack.c.b16 %v1890, %v1889
        %v1974 = vpack.c.b16 %v1892, %v1891
        %v1975 = vpack.c.b16 %v1894, %v1893
        %v1976 = vpack.c.b16 %v1896, %v1895
        %v1977 = vpack.c.b16 %v1898, %v1897
        %v1978 = vpack.c.b16 %v1900, %v1899
        %v1979 = vpack.c.b16 %v1902, %v1901
        %v1980 = vpack.c.b16 %v1904, %v1903
        %v1981 = vpack.c.b16 %v1906, %v1905
        %v1982 = vpack.c.b16 %v1908, %v1907
        %v1983 = vpack.c.b16 %v1910, %v1909
        %v1984 = vpack.c.b16 %v1912, %v1911
        %v1985 = vpack.c.b16 %v1914, %v1913
        %v1986 = vpack.c.b16 %v1916, %v1915
        %v1987 = vpack.c.b16 %v1918, %v1917
        %v1988 = vpack.c.b16 %v1920, %v1919
        %v1989 = vpack.c.b16 %v1922, %v1921
        %v1990 = vpack.c.b16 %v1924, %v1923
        %v1991 = vpack.c.b16 %v1926, %v1925
        %v1992 = vpack.c.b16 %v1928, %v1927
        %v1995 = vunpack.c.l.b16 %v1799
        %v1996 = vunpack.c.l.b16 %v1800
        %v1997 = vpack.c.b16 %v1996, %v1995
        %vm1998 = vcmask 97280
        %v2000 = vsel %vm1998, %v1929, 0
        %v2003 = vsel %vm1998, %v1930, 0
        %v2006 = vsel %vm1998, %v1931, 0
        %v2009 = vsel %vm1998, %v1932, 0
        %v2012 = vsel %vm1998, %v1933, 0
        %v2015 = vsel %vm1998, %v1934, 0
        %v2018 = vsel %vm1998, %v1935, 0
        %v2021 = vsel %vm1998, %v1936, 0
        %v2024 = vsel %vm1998, %v1937, 0
        %v2027 = vsel %vm1998, %v1938, 0
        %v2030 = vsel %vm1998, %v1939, 0
        %v2033 = vsel %vm1998, %v1940, 0
        %v2036 = vsel %vm1998, %v1941, 0
        %v2039 = vsel %vm1998, %v1942, 0
        %v2042 = vsel %vm1998, %v1943, 0
        %v2045 = vsel %vm1998, %v1944, 0
        %v2048 = vsel %vm1998, %v1945, 0
        %v2051 = vsel %vm1998, %v1946, 0
        %v2054 = vsel %vm1998, %v1947, 0
        %v2057 = vsel %vm1998, %v1948, 0
        %v2060 = vsel %vm1998, %v1949, 0
        %v2063 = vsel %vm1998, %v1950, 0
        %v2066 = vsel %vm1998, %v1951, 0
        %v2069 = vsel %vm1998, %v1952, 0
        %v2072 = vsel %vm1998, %v1953, 0
        %v2075 = vsel %vm1998, %v1954, 0
        %v2078 = vsel %vm1998, %v1955, 0
        %v2081 = vsel %vm1998, %v1956, 0
        %v2084 = vsel %vm1998, %v1957, 0
        %v2087 = vsel %vm1998, %v1958, 0
        %v2090 = vsel %vm1998, %v1959, 0
        %v2093 = vsel %vm1998, %v1960, 0
        %v2096 = vsel %vm1998, %v1961, 0
        %v2099 = vsel %vm1998, %v1962, 0
        %v2102 = vsel %vm1998, %v1963, 0
        %v2105 = vsel %vm1998, %v1964, 0
        %v2108 = vsel %vm1998, %v1965, 0
        %v2111 = vsel %vm1998, %v1966, 0
        %v2114 = vsel %vm1998, %v1967, 0
        %v2117 = vsel %vm1998, %v1968, 0
        %v2120 = vsel %vm1998, %v1969, 0
        %v2123 = vsel %vm1998, %v1970, 0
        %v2126 = vsel %vm1998, %v1971, 0
        %v2129 = vsel %vm1998, %v1972, 0
        %v2132 = vsel %vm1998, %v1973, 0
        %v2135 = vsel %vm1998, %v1974, 0
        %v2138 = vsel %vm1998, %v1975, 0
        %v2141 = vsel %vm1998, %v1976, 0
        %v2144 = vsel %vm1998, %v1977, 0
        %v2147 = vsel %vm1998, %v1978, 0
        %v2150 = vsel %vm1998, %v1979, 0
        %v2153 = vsel %vm1998, %v1980, 0
        %v2156 = vsel %vm1998, %v1981, 0
        %v2159 = vsel %vm1998, %v1982, 0
        %v2162 = vsel %vm1998, %v1983, 0
        %v2165 = vsel %vm1998, %v1984, 0
        %v2168 = vsel %vm1998, %v1985, 0
        %v2171 = vsel %vm1998, %v1986, 0
        %v2174 = vsel %vm1998, %v1987, 0
        %v2177 = vsel %vm1998, %v1988, 0
        %v2180 = vsel %vm1998, %v1989, 0
        %v2183 = vsel %vm1998, %v1990, 0
        %v2186 = vsel %vm1998, %v1991, 0
        %v2189 = vsel %vm1998, %v1992, 0
        %vm2191 = vcmask 1045504
        %v2193 = vsel %vm2191, %v1997, 0
        %2195 = vmatpush.bf16.msra.mxu0 0
        %2196 = vmatpush.bf16.msra.mxu0 0
        %2197 = vmatpush.bf16.msra.mxu0 0
        %2198 = vmatpush.bf16.msra.mxu0 0
        %2199 = vmatpush.bf16.msra.mxu0 0
        %2200 = vmatpush.bf16.msra.mxu0 0
        %2201 = vmatpush.bf16.msra.mxu0 0
        %2202 = vmatpush.bf16.msra.mxu0 %v2193
        %2203 = vmatmul.bf16.gmra.mxu0 %v2000
        %v2204 = vpop.f32.mrf.mxu0
        %v2205 = vadd.f32 0.0, %v2204
        %v2206 = vpop.f32.mrf.mxu0
        %v2207 = vadd.f32 0.0, %v2206
        %2208 = vmatmul.bf16.gmra.mxu0 %v2003
        %v2209 = vpop.f32.mrf.mxu0
        %v2210 = vadd.f32 0.0, %v2209
        %v2211 = vpop.f32.mrf.mxu0
        %v2212 = vadd.f32 0.0, %v2211
        %2213 = vmatmul.bf16.gmra.mxu0 %v2006
        %v2214 = vpop.f32.mrf.mxu0
        %v2215 = vadd.f32 0.0, %v2214
        %v2216 = vpop.f32.mrf.mxu0
        %v2217 = vadd.f32 0.0, %v2216
        %2218 = vmatmul.bf16.gmra.mxu0 %v2009
        %v2219 = vpop.f32.mrf.mxu0
        %v2220 = vadd.f32 0.0, %v2219
        %v2221 = vpop.f32.mrf.mxu0
        %v2222 = vadd.f32 0.0, %v2221
        %2223 = vmatmul.bf16.gmra.mxu0 %v2012
        %v2224 = vpop.f32.mrf.mxu0
        %v2225 = vadd.f32 0.0, %v2224
        %v2226 = vpop.f32.mrf.mxu0
        %v2227 = vadd.f32 0.0, %v2226
        %2228 = vmatmul.bf16.gmra.mxu0 %v2015
        %v2229 = vpop.f32.mrf.mxu0
        %v2230 = vadd.f32 0.0, %v2229
        %v2231 = vpop.f32.mrf.mxu0
        %v2232 = vadd.f32 0.0, %v2231
        %2233 = vmatmul.bf16.gmra.mxu0 %v2018
        %v2234 = vpop.f32.mrf.mxu0
        %v2235 = vadd.f32 0.0, %v2234
        %v2236 = vpop.f32.mrf.mxu0
        %v2237 = vadd.f32 0.0, %v2236
        %2238 = vmatmul.bf16.gmra.mxu0 %v2021
        %v2239 = vpop.f32.mrf.mxu0
        %v2240 = vadd.f32 0.0, %v2239
        %v2241 = vpop.f32.mrf.mxu0
        %v2242 = vadd.f32 0.0, %v2241
        %2243 = vmatmul.bf16.gmra.mxu0 %v2024
        %v2244 = vpop.f32.mrf.mxu0
        %v2245 = vadd.f32 0.0, %v2244
        %v2246 = vpop.f32.mrf.mxu0
        %v2247 = vadd.f32 0.0, %v2246
        %2248 = vmatmul.bf16.gmra.mxu0 %v2027
        %v2249 = vpop.f32.mrf.mxu0
        %v2250 = vadd.f32 0.0, %v2249
        %v2251 = vpop.f32.mrf.mxu0
        %v2252 = vadd.f32 0.0, %v2251
        %2253 = vmatmul.bf16.gmra.mxu0 %v2030
        %v2254 = vpop.f32.mrf.mxu0
        %v2255 = vadd.f32 0.0, %v2254
        %v2256 = vpop.f32.mrf.mxu0
        %v2257 = vadd.f32 0.0, %v2256
        %2258 = vmatmul.bf16.gmra.mxu0 %v2033
        %v2259 = vpop.f32.mrf.mxu0
        %v2260 = vadd.f32 0.0, %v2259
        %v2261 = vpop.f32.mrf.mxu0
        %v2262 = vadd.f32 0.0, %v2261
        %2263 = vmatmul.bf16.gmra.mxu0 %v2036
        %v2264 = vpop.f32.mrf.mxu0
        %v2265 = vadd.f32 0.0, %v2264
        %v2266 = vpop.f32.mrf.mxu0
        %v2267 = vadd.f32 0.0, %v2266
        %2268 = vmatmul.bf16.gmra.mxu0 %v2039
        %v2269 = vpop.f32.mrf.mxu0
        %v2270 = vadd.f32 0.0, %v2269
        %v2271 = vpop.f32.mrf.mxu0
        %v2272 = vadd.f32 0.0, %v2271
        %2273 = vmatmul.bf16.gmra.mxu0 %v2042
        %v2274 = vpop.f32.mrf.mxu0
        %v2275 = vadd.f32 0.0, %v2274
        %v2276 = vpop.f32.mrf.mxu0
        %v2277 = vadd.f32 0.0, %v2276
        %2278 = vmatmul.bf16.gmra.mxu0 %v2045
        %v2279 = vpop.f32.mrf.mxu0
        %v2280 = vadd.f32 0.0, %v2279
        %v2281 = vpop.f32.mrf.mxu0
        %v2282 = vadd.f32 0.0, %v2281
        %2283 = vmatmul.bf16.gmra.mxu0 %v2048
        %v2284 = vpop.f32.mrf.mxu0
        %v2285 = vadd.f32 0.0, %v2284
        %v2286 = vpop.f32.mrf.mxu0
        %v2287 = vadd.f32 0.0, %v2286
        %2288 = vmatmul.bf16.gmra.mxu0 %v2051
        %v2289 = vpop.f32.mrf.mxu0
        %v2290 = vadd.f32 0.0, %v2289
        %v2291 = vpop.f32.mrf.mxu0
        %v2292 = vadd.f32 0.0, %v2291
        %2293 = vmatmul.bf16.gmra.mxu0 %v2054
        %v2294 = vpop.f32.mrf.mxu0
        %v2295 = vadd.f32 0.0, %v2294
        %v2296 = vpop.f32.mrf.mxu0
        %v2297 = vadd.f32 0.0, %v2296
        %2298 = vmatmul.bf16.gmra.mxu0 %v2057
        %v2299 = vpop.f32.mrf.mxu0
        %v2300 = vadd.f32 0.0, %v2299
        %v2301 = vpop.f32.mrf.mxu0
        %v2302 = vadd.f32 0.0, %v2301
        %2303 = vmatmul.bf16.gmra.mxu0 %v2060
        %v2304 = vpop.f32.mrf.mxu0
        %v2305 = vadd.f32 0.0, %v2304
        %v2306 = vpop.f32.mrf.mxu0
        %v2307 = vadd.f32 0.0, %v2306
        %2308 = vmatmul.bf16.gmra.mxu0 %v2063
        %v2309 = vpop.f32.mrf.mxu0
        %v2310 = vadd.f32 0.0, %v2309
        %v2311 = vpop.f32.mrf.mxu0
        %v2312 = vadd.f32 0.0, %v2311
        %2313 = vmatmul.bf16.gmra.mxu0 %v2066
        %v2314 = vpop.f32.mrf.mxu0
        %v2315 = vadd.f32 0.0, %v2314
        %v2316 = vpop.f32.mrf.mxu0
        %v2317 = vadd.f32 0.0, %v2316
        %2318 = vmatmul.bf16.gmra.mxu0 %v2069
        %v2319 = vpop.f32.mrf.mxu0
        %v2320 = vadd.f32 0.0, %v2319
        %v2321 = vpop.f32.mrf.mxu0
        %v2322 = vadd.f32 0.0, %v2321
        %2323 = vmatmul.bf16.gmra.mxu0 %v2072
        %v2324 = vpop.f32.mrf.mxu0
        %v2325 = vadd.f32 0.0, %v2324
        %v2326 = vpop.f32.mrf.mxu0
        %v2327 = vadd.f32 0.0, %v2326
        %2328 = vmatmul.bf16.gmra.mxu0 %v2075
        %v2329 = vpop.f32.mrf.mxu0
        %v2330 = vadd.f32 0.0, %v2329
        %v2331 = vpop.f32.mrf.mxu0
        %v2332 = vadd.f32 0.0, %v2331
        %2333 = vmatmul.bf16.gmra.mxu0 %v2078
        %v2334 = vpop.f32.mrf.mxu0
        %v2335 = vadd.f32 0.0, %v2334
        %v2336 = vpop.f32.mrf.mxu0
        %v2337 = vadd.f32 0.0, %v2336
        %2338 = vmatmul.bf16.gmra.mxu0 %v2081
        %v2339 = vpop.f32.mrf.mxu0
        %v2340 = vadd.f32 0.0, %v2339
        %v2341 = vpop.f32.mrf.mxu0
        %v2342 = vadd.f32 0.0, %v2341
        %2343 = vmatmul.bf16.gmra.mxu0 %v2084
        %v2344 = vpop.f32.mrf.mxu0
        %v2345 = vadd.f32 0.0, %v2344
        %v2346 = vpop.f32.mrf.mxu0
        %v2347 = vadd.f32 0.0, %v2346
        %2348 = vmatmul.bf16.gmra.mxu0 %v2087
        %v2349 = vpop.f32.mrf.mxu0
        %v2350 = vadd.f32 0.0, %v2349
        %v2351 = vpop.f32.mrf.mxu0
        %v2352 = vadd.f32 0.0, %v2351
        %2353 = vmatmul.bf16.gmra.mxu0 %v2090
        %v2354 = vpop.f32.mrf.mxu0
        %v2355 = vadd.f32 0.0, %v2354
        %v2356 = vpop.f32.mrf.mxu0
        %v2357 = vadd.f32 0.0, %v2356
        %2358 = vmatmul.bf16.gmra.mxu0 %v2093
        %v2359 = vpop.f32.mrf.mxu0
        %v2360 = vadd.f32 0.0, %v2359
        %v2361 = vpop.f32.mrf.mxu0
        %v2362 = vadd.f32 0.0, %v2361
        %2363 = vmatmul.bf16.gmra.mxu0 %v2096
        %v2364 = vpop.f32.mrf.mxu0
        %v2365 = vadd.f32 0.0, %v2364
        %v2366 = vpop.f32.mrf.mxu0
        %v2367 = vadd.f32 0.0, %v2366
        %2368 = vmatmul.bf16.gmra.mxu0 %v2099
        %v2369 = vpop.f32.mrf.mxu0
        %v2370 = vadd.f32 0.0, %v2369
        %v2371 = vpop.f32.mrf.mxu0
        %v2372 = vadd.f32 0.0, %v2371
        %2373 = vmatmul.bf16.gmra.mxu0 %v2102
        %v2374 = vpop.f32.mrf.mxu0
        %v2375 = vadd.f32 0.0, %v2374
        %v2376 = vpop.f32.mrf.mxu0
        %v2377 = vadd.f32 0.0, %v2376
        %2378 = vmatmul.bf16.gmra.mxu0 %v2105
        %v2379 = vpop.f32.mrf.mxu0
        %v2380 = vadd.f32 0.0, %v2379
        %v2381 = vpop.f32.mrf.mxu0
        %v2382 = vadd.f32 0.0, %v2381
        %2383 = vmatmul.bf16.gmra.mxu0 %v2108
        %v2384 = vpop.f32.mrf.mxu0
        %v2385 = vadd.f32 0.0, %v2384
        %v2386 = vpop.f32.mrf.mxu0
        %v2387 = vadd.f32 0.0, %v2386
        %2388 = vmatmul.bf16.gmra.mxu0 %v2111
        %v2389 = vpop.f32.mrf.mxu0
        %v2390 = vadd.f32 0.0, %v2389
        %v2391 = vpop.f32.mrf.mxu0
        %v2392 = vadd.f32 0.0, %v2391
        %2393 = vmatmul.bf16.gmra.mxu0 %v2114
        %v2394 = vpop.f32.mrf.mxu0
        %v2395 = vadd.f32 0.0, %v2394
        %v2396 = vpop.f32.mrf.mxu0
        %v2397 = vadd.f32 0.0, %v2396
        %2398 = vmatmul.bf16.gmra.mxu0 %v2117
        %v2399 = vpop.f32.mrf.mxu0
        %v2400 = vadd.f32 0.0, %v2399
        %v2401 = vpop.f32.mrf.mxu0
        %v2402 = vadd.f32 0.0, %v2401
        %2403 = vmatmul.bf16.gmra.mxu0 %v2120
        %v2404 = vpop.f32.mrf.mxu0
        %v2405 = vadd.f32 0.0, %v2404
        %v2406 = vpop.f32.mrf.mxu0
        %v2407 = vadd.f32 0.0, %v2406
        %2408 = vmatmul.bf16.gmra.mxu0 %v2123
        %v2409 = vpop.f32.mrf.mxu0
        %v2410 = vadd.f32 0.0, %v2409
        %v2411 = vpop.f32.mrf.mxu0
        %v2412 = vadd.f32 0.0, %v2411
        %2413 = vmatmul.bf16.gmra.mxu0 %v2126
        %v2414 = vpop.f32.mrf.mxu0
        %v2415 = vadd.f32 0.0, %v2414
        %v2416 = vpop.f32.mrf.mxu0
        %v2417 = vadd.f32 0.0, %v2416
        %2418 = vmatmul.bf16.gmra.mxu0 %v2129
        %v2419 = vpop.f32.mrf.mxu0
        %v2420 = vadd.f32 0.0, %v2419
        %v2421 = vpop.f32.mrf.mxu0
        %v2422 = vadd.f32 0.0, %v2421
        %2423 = vmatmul.bf16.gmra.mxu0 %v2132
        %v2424 = vpop.f32.mrf.mxu0
        %v2425 = vadd.f32 0.0, %v2424
        %v2426 = vpop.f32.mrf.mxu0
        %v2427 = vadd.f32 0.0, %v2426
        %2428 = vmatmul.bf16.gmra.mxu0 %v2135
        %v2429 = vpop.f32.mrf.mxu0
        %v2430 = vadd.f32 0.0, %v2429
        %v2431 = vpop.f32.mrf.mxu0
        %v2432 = vadd.f32 0.0, %v2431
        %2433 = vmatmul.bf16.gmra.mxu0 %v2138
        %v2434 = vpop.f32.mrf.mxu0
        %v2435 = vadd.f32 0.0, %v2434
        %v2436 = vpop.f32.mrf.mxu0
        %v2437 = vadd.f32 0.0, %v2436
        %2438 = vmatmul.bf16.gmra.mxu0 %v2141
        %v2439 = vpop.f32.mrf.mxu0
        %v2440 = vadd.f32 0.0, %v2439
        %v2441 = vpop.f32.mrf.mxu0
        %v2442 = vadd.f32 0.0, %v2441
        %2443 = vmatmul.bf16.gmra.mxu0 %v2144
        %v2444 = vpop.f32.mrf.mxu0
        %v2445 = vadd.f32 0.0, %v2444
        %v2446 = vpop.f32.mrf.mxu0
        %v2447 = vadd.f32 0.0, %v2446
        %2448 = vmatmul.bf16.gmra.mxu0 %v2147
        %v2449 = vpop.f32.mrf.mxu0
        %v2450 = vadd.f32 0.0, %v2449
        %v2451 = vpop.f32.mrf.mxu0
        %v2452 = vadd.f32 0.0, %v2451
        %2453 = vmatmul.bf16.gmra.mxu0 %v2150
        %v2454 = vpop.f32.mrf.mxu0
        %v2455 = vadd.f32 0.0, %v2454
        %v2456 = vpop.f32.mrf.mxu0
        %v2457 = vadd.f32 0.0, %v2456
        %2458 = vmatmul.bf16.gmra.mxu0 %v2153
        %v2459 = vpop.f32.mrf.mxu0
        %v2460 = vadd.f32 0.0, %v2459
        %v2461 = vpop.f32.mrf.mxu0
        %v2462 = vadd.f32 0.0, %v2461
        %2463 = vmatmul.bf16.gmra.mxu0 %v2156
        %v2464 = vpop.f32.mrf.mxu0
        %v2465 = vadd.f32 0.0, %v2464
        %v2466 = vpop.f32.mrf.mxu0
        %v2467 = vadd.f32 0.0, %v2466
        %2468 = vmatmul.bf16.gmra.mxu0 %v2159
        %v2469 = vpop.f32.mrf.mxu0
        %v2470 = vadd.f32 0.0, %v2469
        %v2471 = vpop.f32.mrf.mxu0
        %v2472 = vadd.f32 0.0, %v2471
        %2473 = vmatmul.bf16.gmra.mxu0 %v2162
        %v2474 = vpop.f32.mrf.mxu0
        %v2475 = vadd.f32 0.0, %v2474
        %v2476 = vpop.f32.mrf.mxu0
        %v2477 = vadd.f32 0.0, %v2476
        %2478 = vmatmul.bf16.gmra.mxu0 %v2165
        %v2479 = vpop.f32.mrf.mxu0
        %v2480 = vadd.f32 0.0, %v2479
        %v2481 = vpop.f32.mrf.mxu0
        %v2482 = vadd.f32 0.0, %v2481
        %2483 = vmatmul.bf16.gmra.mxu0 %v2168
        %v2484 = vpop.f32.mrf.mxu0
        %v2485 = vadd.f32 0.0, %v2484
        %v2486 = vpop.f32.mrf.mxu0
        %v2487 = vadd.f32 0.0, %v2486
        %2488 = vmatmul.bf16.gmra.mxu0 %v2171
        %v2489 = vpop.f32.mrf.mxu0
        %v2490 = vadd.f32 0.0, %v2489
        %v2491 = vpop.f32.mrf.mxu0
        %v2492 = vadd.f32 0.0, %v2491
        %2493 = vmatmul.bf16.gmra.mxu0 %v2174
        %v2494 = vpop.f32.mrf.mxu0
        %v2495 = vadd.f32 0.0, %v2494
        %v2496 = vpop.f32.mrf.mxu0
        %v2497 = vadd.f32 0.0, %v2496
        %2498 = vmatmul.bf16.gmra.mxu0 %v2177
        %v2499 = vpop.f32.mrf.mxu0
        %v2500 = vadd.f32 0.0, %v2499
        %v2501 = vpop.f32.mrf.mxu0
        %v2502 = vadd.f32 0.0, %v2501
        %2503 = vmatmul.bf16.gmra.mxu0 %v2180
        %v2504 = vpop.f32.mrf.mxu0
        %v2505 = vadd.f32 0.0, %v2504
        %v2506 = vpop.f32.mrf.mxu0
        %v2507 = vadd.f32 0.0, %v2506
        %2508 = vmatmul.bf16.gmra.mxu0 %v2183
        %v2509 = vpop.f32.mrf.mxu0
        %v2510 = vadd.f32 0.0, %v2509
        %v2511 = vpop.f32.mrf.mxu0
        %v2512 = vadd.f32 0.0, %v2511
        %2513 = vmatmul.bf16.gmra.mxu0 %v2186
        %v2514 = vpop.f32.mrf.mxu0
        %v2515 = vadd.f32 0.0, %v2514
        %v2516 = vpop.f32.mrf.mxu0
        %v2517 = vadd.f32 0.0, %v2516
        %2518 = vmatmul.bf16.gmra.mxu0 %v2189
        %v2519 = vpop.f32.mrf.mxu0
        %v2520 = vadd.f32 0.0, %v2519
        %v2521 = vpop.f32.mrf.mxu0
        %v2522 = vadd.f32 0.0, %v2521
        %2523 = vdwg.mxu0
        %v2652 = vunpack.c.l.b16 %v220
        %v2653 = vunpack.c.l.b16 %v221
        %v2654 = vunpack.c.l.b16 %v222
        %v2655 = vunpack.c.l.b16 %v223
        %v2656 = vunpack.c.l.b16 %v225
        %v2657 = vunpack.c.l.b16 %v226
        %v2658 = vunpack.c.l.b16 %v227
        %v2659 = vunpack.c.l.b16 %v228
        %v2660 = vunpack.c.l.b16 %v230
        %v2661 = vunpack.c.l.b16 %v231
        %v2662 = vunpack.c.l.b16 %v232
        %v2663 = vunpack.c.l.b16 %v233
        %v2664 = vunpack.c.l.b16 %v235
        %v2665 = vunpack.c.l.b16 %v236
        %v2666 = vunpack.c.l.b16 %v237
        %v2667 = vunpack.c.l.b16 %v238
        %v2668 = vunpack.c.l.b16 %v240
        %v2669 = vunpack.c.l.b16 %v241
        %v2670 = vunpack.c.l.b16 %v242
        %v2671 = vunpack.c.l.b16 %v243
        %v2672 = vunpack.c.l.b16 %v245
        %v2673 = vunpack.c.l.b16 %v246
        %v2674 = vunpack.c.l.b16 %v247
        %v2675 = vunpack.c.l.b16 %v248
        %v2676 = vunpack.c.l.b16 %v250
        %v2677 = vunpack.c.l.b16 %v251
        %v2678 = vunpack.c.l.b16 %v252
        %v2679 = vunpack.c.l.b16 %v253
        %v2680 = vunpack.c.l.b16 %v255
        %v2681 = vunpack.c.l.b16 %v256
        %v2682 = vunpack.c.l.b16 %v257
        %v2683 = vunpack.c.l.b16 %v258
        %v2684 = vunpack.c.l.b16 %v260
        %v2685 = vunpack.c.l.b16 %v261
        %v2686 = vunpack.c.l.b16 %v262
        %v2687 = vunpack.c.l.b16 %v263
        %v2688 = vunpack.c.l.b16 %v265
        %v2689 = vunpack.c.l.b16 %v266
        %v2690 = vunpack.c.l.b16 %v267
        %v2691 = vunpack.c.l.b16 %v268
        %v2692 = vunpack.c.l.b16 %v270
        %v2693 = vunpack.c.l.b16 %v271
        %v2694 = vunpack.c.l.b16 %v272
        %v2695 = vunpack.c.l.b16 %v273
        %v2696 = vunpack.c.l.b16 %v275
        %v2697 = vunpack.c.l.b16 %v276
        %v2698 = vunpack.c.l.b16 %v277
        %v2699 = vunpack.c.l.b16 %v278
        %v2700 = vunpack.c.l.b16 %v280
        %v2701 = vunpack.c.l.b16 %v281
        %v2702 = vunpack.c.l.b16 %v282
        %v2703 = vunpack.c.l.b16 %v283
        %v2704 = vunpack.c.l.b16 %v285
        %v2705 = vunpack.c.l.b16 %v286
        %v2706 = vunpack.c.l.b16 %v287
        %v2707 = vunpack.c.l.b16 %v288
        %v2708 = vunpack.c.l.b16 %v290
        %v2709 = vunpack.c.l.b16 %v291
        %v2710 = vunpack.c.l.b16 %v292
        %v2711 = vunpack.c.l.b16 %v293
        %v2712 = vunpack.c.l.b16 %v295
        %v2713 = vunpack.c.l.b16 %v296
        %v2714 = vunpack.c.l.b16 %v297
        %v2715 = vunpack.c.l.b16 %v298
        %v2716 = vunpack.c.l.b16 %v300
        %v2717 = vunpack.c.l.b16 %v301
        %v2718 = vunpack.c.l.b16 %v302
        %v2719 = vunpack.c.l.b16 %v303
        %v2720 = vunpack.c.l.b16 %v305
        %v2721 = vunpack.c.l.b16 %v306
        %v2722 = vunpack.c.l.b16 %v307
        %v2723 = vunpack.c.l.b16 %v308
        %v2724 = vunpack.c.l.b16 %v310
        %v2725 = vunpack.c.l.b16 %v311
        %v2726 = vunpack.c.l.b16 %v312
        %v2727 = vunpack.c.l.b16 %v313
        %v2728 = vunpack.c.l.b16 %v315
        %v2729 = vunpack.c.l.b16 %v316
        %v2730 = vunpack.c.l.b16 %v317
        %v2731 = vunpack.c.l.b16 %v318
        %v2732 = vunpack.c.l.b16 %v320
        %v2733 = vunpack.c.l.b16 %v321
        %v2734 = vunpack.c.l.b16 %v322
        %v2735 = vunpack.c.l.b16 %v323
        %v2736 = vunpack.c.l.b16 %v325
        %v2737 = vunpack.c.l.b16 %v326
        %v2738 = vunpack.c.l.b16 %v327
        %v2739 = vunpack.c.l.b16 %v328
        %v2740 = vunpack.c.l.b16 %v330
        %v2741 = vunpack.c.l.b16 %v331
        %v2742 = vunpack.c.l.b16 %v332
        %v2743 = vunpack.c.l.b16 %v333
        %v2744 = vunpack.c.l.b16 %v335
        %v2745 = vunpack.c.l.b16 %v336
        %v2746 = vunpack.c.l.b16 %v337
        %v2747 = vunpack.c.l.b16 %v338
        %v2748 = vunpack.c.l.b16 %v340
        %v2749 = vunpack.c.l.b16 %v341
        %v2750 = vunpack.c.l.b16 %v342
        %v2751 = vunpack.c.l.b16 %v343
        %v2752 = vunpack.c.l.b16 %v345
        %v2753 = vunpack.c.l.b16 %v346
        %v2754 = vunpack.c.l.b16 %v347
        %v2755 = vunpack.c.l.b16 %v348
        %v2756 = vunpack.c.l.b16 %v350
        %v2757 = vunpack.c.l.b16 %v351
        %v2758 = vunpack.c.l.b16 %v352
        %v2759 = vunpack.c.l.b16 %v353
        %v2760 = vunpack.c.l.b16 %v355
        %v2761 = vunpack.c.l.b16 %v356
        %v2762 = vunpack.c.l.b16 %v357
        %v2763 = vunpack.c.l.b16 %v358
        %v2764 = vunpack.c.l.b16 %v360
        %v2765 = vunpack.c.l.b16 %v361
        %v2766 = vunpack.c.l.b16 %v362
        %v2767 = vunpack.c.l.b16 %v363
        %v2768 = vunpack.c.l.b16 %v365
        %v2769 = vunpack.c.l.b16 %v366
        %v2770 = vunpack.c.l.b16 %v367
        %v2771 = vunpack.c.l.b16 %v368
        %v2772 = vunpack.c.l.b16 %v370
        %v2773 = vunpack.c.l.b16 %v371
        %v2774 = vunpack.c.l.b16 %v372
        %v2775 = vunpack.c.l.b16 %v373
        %v2776 = vunpack.c.l.b16 %v375
        %v2777 = vunpack.c.l.b16 %v376
        %v2778 = vunpack.c.l.b16 %v377
        %v2779 = vunpack.c.l.b16 %v378
        %v2780 = vpack.c.b16 %v2653, %v2652
        %v2781 = vpack.c.b16 %v2655, %v2654
        %v2782 = vpack.c.b16 %v2657, %v2656
        %v2783 = vpack.c.b16 %v2659, %v2658
        %v2784 = vpack.c.b16 %v2661, %v2660
        %v2785 = vpack.c.b16 %v2663, %v2662
        %v2786 = vpack.c.b16 %v2665, %v2664
        %v2787 = vpack.c.b16 %v2667, %v2666
        %v2788 = vpack.c.b16 %v2669, %v2668
        %v2789 = vpack.c.b16 %v2671, %v2670
        %v2790 = vpack.c.b16 %v2673, %v2672
        %v2791 = vpack.c.b16 %v2675, %v2674
        %v2792 = vpack.c.b16 %v2677, %v2676
        %v2793 = vpack.c.b16 %v2679, %v2678
        %v2794 = vpack.c.b16 %v2681, %v2680
        %v2795 = vpack.c.b16 %v2683, %v2682
        %v2796 = vpack.c.b16 %v2685, %v2684
        %v2797 = vpack.c.b16 %v2687, %v2686
        %v2798 = vpack.c.b16 %v2689, %v2688
        %v2799 = vpack.c.b16 %v2691, %v2690
        %v2800 = vpack.c.b16 %v2693, %v2692
        %v2801 = vpack.c.b16 %v2695, %v2694
        %v2802 = vpack.c.b16 %v2697, %v2696
        %v2803 = vpack.c.b16 %v2699, %v2698
        %v2804 = vpack.c.b16 %v2701, %v2700
        %v2805 = vpack.c.b16 %v2703, %v2702
        %v2806 = vpack.c.b16 %v2705, %v2704
        %v2807 = vpack.c.b16 %v2707, %v2706
        %v2808 = vpack.c.b16 %v2709, %v2708
        %v2809 = vpack.c.b16 %v2711, %v2710
        %v2810 = vpack.c.b16 %v2713, %v2712
        %v2811 = vpack.c.b16 %v2715, %v2714
        %v2812 = vpack.c.b16 %v2717, %v2716
        %v2813 = vpack.c.b16 %v2719, %v2718
        %v2814 = vpack.c.b16 %v2721, %v2720
        %v2815 = vpack.c.b16 %v2723, %v2722
        %v2816 = vpack.c.b16 %v2725, %v2724
        %v2817 = vpack.c.b16 %v2727, %v2726
        %v2818 = vpack.c.b16 %v2729, %v2728
        %v2819 = vpack.c.b16 %v2731, %v2730
        %v2820 = vpack.c.b16 %v2733, %v2732
        %v2821 = vpack.c.b16 %v2735, %v2734
        %v2822 = vpack.c.b16 %v2737, %v2736
        %v2823 = vpack.c.b16 %v2739, %v2738
        %v2824 = vpack.c.b16 %v2741, %v2740
        %v2825 = vpack.c.b16 %v2743, %v2742
        %v2826 = vpack.c.b16 %v2745, %v2744
        %v2827 = vpack.c.b16 %v2747, %v2746
        %v2828 = vpack.c.b16 %v2749, %v2748
        %v2829 = vpack.c.b16 %v2751, %v2750
        %v2830 = vpack.c.b16 %v2753, %v2752
        %v2831 = vpack.c.b16 %v2755, %v2754
        %v2832 = vpack.c.b16 %v2757, %v2756
        %v2833 = vpack.c.b16 %v2759, %v2758
        %v2834 = vpack.c.b16 %v2761, %v2760
        %v2835 = vpack.c.b16 %v2763, %v2762
        %v2836 = vpack.c.b16 %v2765, %v2764
        %v2837 = vpack.c.b16 %v2767, %v2766
        %v2838 = vpack.c.b16 %v2769, %v2768
        %v2839 = vpack.c.b16 %v2771, %v2770
        %v2840 = vpack.c.b16 %v2773, %v2772
        %v2841 = vpack.c.b16 %v2775, %v2774
        %v2842 = vpack.c.b16 %v2777, %v2776
        %v2843 = vpack.c.b16 %v2779, %v2778
        %v2846 = vunpack.c.l.b16 %v385
        %v2847 = vunpack.c.l.b16 %v386
        %v2848 = vpack.c.b16 %v2847, %v2846
        %v2850 = vsel %vm1998, %v2780, 0
        %v2853 = vsel %vm1998, %v2781, 0
        %v2856 = vsel %vm1998, %v2782, 0
        %v2859 = vsel %vm1998, %v2783, 0
        %v2862 = vsel %vm1998, %v2784, 0
        %v2865 = vsel %vm1998, %v2785, 0
        %v2868 = vsel %vm1998, %v2786, 0
        %v2871 = vsel %vm1998, %v2787, 0
        %v2874 = vsel %vm1998, %v2788, 0
        %v2877 = vsel %vm1998, %v2789, 0
        %v2880 = vsel %vm1998, %v2790, 0
        %v2883 = vsel %vm1998, %v2791, 0
        %v2886 = vsel %vm1998, %v2792, 0
        %v2889 = vsel %vm1998, %v2793, 0
        %v2892 = vsel %vm1998, %v2794, 0
        %v2895 = vsel %vm1998, %v2795, 0
        %v2898 = vsel %vm1998, %v2796, 0
        %v2901 = vsel %vm1998, %v2797, 0
        %v2904 = vsel %vm1998, %v2798, 0
        %v2907 = vsel %vm1998, %v2799, 0
        %v2910 = vsel %vm1998, %v2800, 0
        %v2913 = vsel %vm1998, %v2801, 0
        %v2916 = vsel %vm1998, %v2802, 0
        %v2919 = vsel %vm1998, %v2803, 0
        %v2922 = vsel %vm1998, %v2804, 0
        %v2925 = vsel %vm1998, %v2805, 0
        %v2928 = vsel %vm1998, %v2806, 0
        %v2931 = vsel %vm1998, %v2807, 0
        %v2934 = vsel %vm1998, %v2808, 0
        %v2937 = vsel %vm1998, %v2809, 0
        %v2940 = vsel %vm1998, %v2810, 0
        %v2943 = vsel %vm1998, %v2811, 0
        %v2946 = vsel %vm1998, %v2812, 0
        %v2949 = vsel %vm1998, %v2813, 0
        %v2952 = vsel %vm1998, %v2814, 0
        %v2955 = vsel %vm1998, %v2815, 0
        %v2958 = vsel %vm1998, %v2816, 0
        %v2961 = vsel %vm1998, %v2817, 0
        %v2964 = vsel %vm1998, %v2818, 0
        %v2967 = vsel %vm1998, %v2819, 0
        %v2970 = vsel %vm1998, %v2820, 0
        %v2973 = vsel %vm1998, %v2821, 0
        %v2976 = vsel %vm1998, %v2822, 0
        %v2979 = vsel %vm1998, %v2823, 0
        %v2982 = vsel %vm1998, %v2824, 0
        %v2985 = vsel %vm1998, %v2825, 0
        %v2988 = vsel %vm1998, %v2826, 0
        %v2991 = vsel %vm1998, %v2827, 0
        %v2994 = vsel %vm1998, %v2828, 0
        %v2997 = vsel %vm1998, %v2829, 0
        %v3000 = vsel %vm1998, %v2830, 0
        %v3003 = vsel %vm1998, %v2831, 0
        %v3006 = vsel %vm1998, %v2832, 0
        %v3009 = vsel %vm1998, %v2833, 0
        %v3012 = vsel %vm1998, %v2834, 0
        %v3015 = vsel %vm1998, %v2835, 0
        %v3018 = vsel %vm1998, %v2836, 0
        %v3021 = vsel %vm1998, %v2837, 0
        %v3024 = vsel %vm1998, %v2838, 0
        %v3027 = vsel %vm1998, %v2839, 0
        %v3030 = vsel %vm1998, %v2840, 0
        %v3033 = vsel %vm1998, %v2841, 0
        %v3036 = vsel %vm1998, %v2842, 0
        %v3039 = vsel %vm1998, %v2843, 0
        %v3042 = vsel %vm2191, %v2848, 0
        %3044 = vmatpush.bf16.msra.mxu0 0
        %3045 = vmatpush.bf16.msra.mxu0 0
        %3046 = vmatpush.bf16.msra.mxu0 0
        %3047 = vmatpush.bf16.msra.mxu0 0
        %3048 = vmatpush.bf16.msra.mxu0 0
        %3049 = vmatpush.bf16.msra.mxu0 0
        %3050 = vmatpush.bf16.msra.mxu0 0
        %3051 = vmatpush.bf16.msra.mxu0 %v3042
        %3052 = vmatmul.bf16.gmra.mxu0 %v2850
        %v3053 = vpop.f32.mrf.mxu0
        %v3054 = vadd.f32 %v2205, %v3053
        %v3055 = vpop.f32.mrf.mxu0
        %v3056 = vadd.f32 %v2207, %v3055
        %3057 = vmatmul.bf16.gmra.mxu0 %v2853
        %v3058 = vpop.f32.mrf.mxu0
        %v3059 = vadd.f32 %v2210, %v3058
        %v3060 = vpop.f32.mrf.mxu0
        %v3061 = vadd.f32 %v2212, %v3060
        %3062 = vmatmul.bf16.gmra.mxu0 %v2856
        %v3063 = vpop.f32.mrf.mxu0
        %v3064 = vadd.f32 %v2215, %v3063
        %v3065 = vpop.f32.mrf.mxu0
        %v3066 = vadd.f32 %v2217, %v3065
        %3067 = vmatmul.bf16.gmra.mxu0 %v2859
        %v3068 = vpop.f32.mrf.mxu0
        %v3069 = vadd.f32 %v2220, %v3068
        %v3070 = vpop.f32.mrf.mxu0
        %v3071 = vadd.f32 %v2222, %v3070
        %3072 = vmatmul.bf16.gmra.mxu0 %v2862
        %v3073 = vpop.f32.mrf.mxu0
        %v3074 = vadd.f32 %v2225, %v3073
        %v3075 = vpop.f32.mrf.mxu0
        %v3076 = vadd.f32 %v2227, %v3075
        %3077 = vmatmul.bf16.gmra.mxu0 %v2865
        %v3078 = vpop.f32.mrf.mxu0
        %v3079 = vadd.f32 %v2230, %v3078
        %v3080 = vpop.f32.mrf.mxu0
        %v3081 = vadd.f32 %v2232, %v3080
        %3082 = vmatmul.bf16.gmra.mxu0 %v2868
        %v3083 = vpop.f32.mrf.mxu0
        %v3084 = vadd.f32 %v2235, %v3083
        %v3085 = vpop.f32.mrf.mxu0
        %v3086 = vadd.f32 %v2237, %v3085
        %3087 = vmatmul.bf16.gmra.mxu0 %v2871
        %v3088 = vpop.f32.mrf.mxu0
        %v3089 = vadd.f32 %v2240, %v3088
        %v3090 = vpop.f32.mrf.mxu0
        %v3091 = vadd.f32 %v2242, %v3090
        %3092 = vmatmul.bf16.gmra.mxu0 %v2874
        %v3093 = vpop.f32.mrf.mxu0
        %v3094 = vadd.f32 %v2245, %v3093
        %v3095 = vpop.f32.mrf.mxu0
        %v3096 = vadd.f32 %v2247, %v3095
        %3097 = vmatmul.bf16.gmra.mxu0 %v2877
        %v3098 = vpop.f32.mrf.mxu0
        %v3099 = vadd.f32 %v2250, %v3098
        %v3100 = vpop.f32.mrf.mxu0
        %v3101 = vadd.f32 %v2252, %v3100
        %3102 = vmatmul.bf16.gmra.mxu0 %v2880
        %v3103 = vpop.f32.mrf.mxu0
        %v3104 = vadd.f32 %v2255, %v3103
        %v3105 = vpop.f32.mrf.mxu0
        %v3106 = vadd.f32 %v2257, %v3105
        %3107 = vmatmul.bf16.gmra.mxu0 %v2883
        %v3108 = vpop.f32.mrf.mxu0
        %v3109 = vadd.f32 %v2260, %v3108
        %v3110 = vpop.f32.mrf.mxu0
        %v3111 = vadd.f32 %v2262, %v3110
        %3112 = vmatmul.bf16.gmra.mxu0 %v2886
        %v3113 = vpop.f32.mrf.mxu0
        %v3114 = vadd.f32 %v2265, %v3113
        %v3115 = vpop.f32.mrf.mxu0
        %v3116 = vadd.f32 %v2267, %v3115
        %3117 = vmatmul.bf16.gmra.mxu0 %v2889
        %v3118 = vpop.f32.mrf.mxu0
        %v3119 = vadd.f32 %v2270, %v3118
        %v3120 = vpop.f32.mrf.mxu0
        %v3121 = vadd.f32 %v2272, %v3120
        %3122 = vmatmul.bf16.gmra.mxu0 %v2892
        %v3123 = vpop.f32.mrf.mxu0
        %v3124 = vadd.f32 %v2275, %v3123
        %v3125 = vpop.f32.mrf.mxu0
        %v3126 = vadd.f32 %v2277, %v3125
        %3127 = vmatmul.bf16.gmra.mxu0 %v2895
        %v3128 = vpop.f32.mrf.mxu0
        %v3129 = vadd.f32 %v2280, %v3128
        %v3130 = vpop.f32.mrf.mxu0
        %v3131 = vadd.f32 %v2282, %v3130
        %3132 = vmatmul.bf16.gmra.mxu0 %v2898
        %v3133 = vpop.f32.mrf.mxu0
        %v3134 = vadd.f32 %v2285, %v3133
        %v3135 = vpop.f32.mrf.mxu0
        %v3136 = vadd.f32 %v2287, %v3135
        %3137 = vmatmul.bf16.gmra.mxu0 %v2901
        %v3138 = vpop.f32.mrf.mxu0
        %v3139 = vadd.f32 %v2290, %v3138
        %v3140 = vpop.f32.mrf.mxu0
        %v3141 = vadd.f32 %v2292, %v3140
        %3142 = vmatmul.bf16.gmra.mxu0 %v2904
        %v3143 = vpop.f32.mrf.mxu0
        %v3144 = vadd.f32 %v2295, %v3143
        %v3145 = vpop.f32.mrf.mxu0
        %v3146 = vadd.f32 %v2297, %v3145
        %3147 = vmatmul.bf16.gmra.mxu0 %v2907
        %v3148 = vpop.f32.mrf.mxu0
        %v3149 = vadd.f32 %v2300, %v3148
        %v3150 = vpop.f32.mrf.mxu0
        %v3151 = vadd.f32 %v2302, %v3150
        %3152 = vmatmul.bf16.gmra.mxu0 %v2910
        %v3153 = vpop.f32.mrf.mxu0
        %v3154 = vadd.f32 %v2305, %v3153
        %v3155 = vpop.f32.mrf.mxu0
        %v3156 = vadd.f32 %v2307, %v3155
        %3157 = vmatmul.bf16.gmra.mxu0 %v2913
        %v3158 = vpop.f32.mrf.mxu0
        %v3159 = vadd.f32 %v2310, %v3158
        %v3160 = vpop.f32.mrf.mxu0
        %v3161 = vadd.f32 %v2312, %v3160
        %3162 = vmatmul.bf16.gmra.mxu0 %v2916
        %v3163 = vpop.f32.mrf.mxu0
        %v3164 = vadd.f32 %v2315, %v3163
        %v3165 = vpop.f32.mrf.mxu0
        %v3166 = vadd.f32 %v2317, %v3165
        %3167 = vmatmul.bf16.gmra.mxu0 %v2919
        %v3168 = vpop.f32.mrf.mxu0
        %v3169 = vadd.f32 %v2320, %v3168
        %v3170 = vpop.f32.mrf.mxu0
        %v3171 = vadd.f32 %v2322, %v3170
        %3172 = vmatmul.bf16.gmra.mxu0 %v2922
        %v3173 = vpop.f32.mrf.mxu0
        %v3174 = vadd.f32 %v2325, %v3173
        %v3175 = vpop.f32.mrf.mxu0
        %v3176 = vadd.f32 %v2327, %v3175
        %3177 = vmatmul.bf16.gmra.mxu0 %v2925
        %v3178 = vpop.f32.mrf.mxu0
        %v3179 = vadd.f32 %v2330, %v3178
        %v3180 = vpop.f32.mrf.mxu0
        %v3181 = vadd.f32 %v2332, %v3180
        %3182 = vmatmul.bf16.gmra.mxu0 %v2928
        %v3183 = vpop.f32.mrf.mxu0
        %v3184 = vadd.f32 %v2335, %v3183
        %v3185 = vpop.f32.mrf.mxu0
        %v3186 = vadd.f32 %v2337, %v3185
        %3187 = vmatmul.bf16.gmra.mxu0 %v2931
        %v3188 = vpop.f32.mrf.mxu0
        %v3189 = vadd.f32 %v2340, %v3188
        %v3190 = vpop.f32.mrf.mxu0
        %v3191 = vadd.f32 %v2342, %v3190
        %3192 = vmatmul.bf16.gmra.mxu0 %v2934
        %v3193 = vpop.f32.mrf.mxu0
        %v3194 = vadd.f32 %v2345, %v3193
        %v3195 = vpop.f32.mrf.mxu0
        %v3196 = vadd.f32 %v2347, %v3195
        %3197 = vmatmul.bf16.gmra.mxu0 %v2937
        %v3198 = vpop.f32.mrf.mxu0
        %v3199 = vadd.f32 %v2350, %v3198
        %v3200 = vpop.f32.mrf.mxu0
        %v3201 = vadd.f32 %v2352, %v3200
        %3202 = vmatmul.bf16.gmra.mxu0 %v2940
        %v3203 = vpop.f32.mrf.mxu0
        %v3204 = vadd.f32 %v2355, %v3203
        %v3205 = vpop.f32.mrf.mxu0
        %v3206 = vadd.f32 %v2357, %v3205
        %3207 = vmatmul.bf16.gmra.mxu0 %v2943
        %v3208 = vpop.f32.mrf.mxu0
        %v3209 = vadd.f32 %v2360, %v3208
        %v3210 = vpop.f32.mrf.mxu0
        %v3211 = vadd.f32 %v2362, %v3210
        %3212 = vmatmul.bf16.gmra.mxu0 %v2946
        %v3213 = vpop.f32.mrf.mxu0
        %v3214 = vadd.f32 %v2365, %v3213
        %v3215 = vpop.f32.mrf.mxu0
        %v3216 = vadd.f32 %v2367, %v3215
        %3217 = vmatmul.bf16.gmra.mxu0 %v2949
        %v3218 = vpop.f32.mrf.mxu0
        %v3219 = vadd.f32 %v2370, %v3218
        %v3220 = vpop.f32.mrf.mxu0
        %v3221 = vadd.f32 %v2372, %v3220
        %3222 = vmatmul.bf16.gmra.mxu0 %v2952
        %v3223 = vpop.f32.mrf.mxu0
        %v3224 = vadd.f32 %v2375, %v3223
        %v3225 = vpop.f32.mrf.mxu0
        %v3226 = vadd.f32 %v2377, %v3225
        %3227 = vmatmul.bf16.gmra.mxu0 %v2955
        %v3228 = vpop.f32.mrf.mxu0
        %v3229 = vadd.f32 %v2380, %v3228
        %v3230 = vpop.f32.mrf.mxu0
        %v3231 = vadd.f32 %v2382, %v3230
        %3232 = vmatmul.bf16.gmra.mxu0 %v2958
        %v3233 = vpop.f32.mrf.mxu0
        %v3234 = vadd.f32 %v2385, %v3233
        %v3235 = vpop.f32.mrf.mxu0
        %v3236 = vadd.f32 %v2387, %v3235
        %3237 = vmatmul.bf16.gmra.mxu0 %v2961
        %v3238 = vpop.f32.mrf.mxu0
        %v3239 = vadd.f32 %v2390, %v3238
        %v3240 = vpop.f32.mrf.mxu0
        %v3241 = vadd.f32 %v2392, %v3240
        %3242 = vmatmul.bf16.gmra.mxu0 %v2964
        %v3243 = vpop.f32.mrf.mxu0
        %v3244 = vadd.f32 %v2395, %v3243
        %v3245 = vpop.f32.mrf.mxu0
        %v3246 = vadd.f32 %v2397, %v3245
        %3247 = vmatmul.bf16.gmra.mxu0 %v2967
        %v3248 = vpop.f32.mrf.mxu0
        %v3249 = vadd.f32 %v2400, %v3248
        %v3250 = vpop.f32.mrf.mxu0
        %v3251 = vadd.f32 %v2402, %v3250
        %3252 = vmatmul.bf16.gmra.mxu0 %v2970
        %v3253 = vpop.f32.mrf.mxu0
        %v3254 = vadd.f32 %v2405, %v3253
        %v3255 = vpop.f32.mrf.mxu0
        %v3256 = vadd.f32 %v2407, %v3255
        %3257 = vmatmul.bf16.gmra.mxu0 %v2973
        %v3258 = vpop.f32.mrf.mxu0
        %v3259 = vadd.f32 %v2410, %v3258
        %v3260 = vpop.f32.mrf.mxu0
        %v3261 = vadd.f32 %v2412, %v3260
        %3262 = vmatmul.bf16.gmra.mxu0 %v2976
        %v3263 = vpop.f32.mrf.mxu0
        %v3264 = vadd.f32 %v2415, %v3263
        %v3265 = vpop.f32.mrf.mxu0
        %v3266 = vadd.f32 %v2417, %v3265
        %3267 = vmatmul.bf16.gmra.mxu0 %v2979
        %v3268 = vpop.f32.mrf.mxu0
        %v3269 = vadd.f32 %v2420, %v3268
        %v3270 = vpop.f32.mrf.mxu0
        %v3271 = vadd.f32 %v2422, %v3270
        %3272 = vmatmul.bf16.gmra.mxu0 %v2982
        %v3273 = vpop.f32.mrf.mxu0
        %v3274 = vadd.f32 %v2425, %v3273
        %v3275 = vpop.f32.mrf.mxu0
        %v3276 = vadd.f32 %v2427, %v3275
        %3277 = vmatmul.bf16.gmra.mxu0 %v2985
        %v3278 = vpop.f32.mrf.mxu0
        %v3279 = vadd.f32 %v2430, %v3278
        %v3280 = vpop.f32.mrf.mxu0
        %v3281 = vadd.f32 %v2432, %v3280
        %3282 = vmatmul.bf16.gmra.mxu0 %v2988
        %v3283 = vpop.f32.mrf.mxu0
        %v3284 = vadd.f32 %v2435, %v3283
        %v3285 = vpop.f32.mrf.mxu0
        %v3286 = vadd.f32 %v2437, %v3285
        %3287 = vmatmul.bf16.gmra.mxu0 %v2991
        %v3288 = vpop.f32.mrf.mxu0
        %v3289 = vadd.f32 %v2440, %v3288
        %v3290 = vpop.f32.mrf.mxu0
        %v3291 = vadd.f32 %v2442, %v3290
        %3292 = vmatmul.bf16.gmra.mxu0 %v2994
        %v3293 = vpop.f32.mrf.mxu0
        %v3294 = vadd.f32 %v2445, %v3293
        %v3295 = vpop.f32.mrf.mxu0
        %v3296 = vadd.f32 %v2447, %v3295
        %3297 = vmatmul.bf16.gmra.mxu0 %v2997
        %v3298 = vpop.f32.mrf.mxu0
        %v3299 = vadd.f32 %v2450, %v3298
        %v3300 = vpop.f32.mrf.mxu0
        %v3301 = vadd.f32 %v2452, %v3300
        %3302 = vmatmul.bf16.gmra.mxu0 %v3000
        %v3303 = vpop.f32.mrf.mxu0
        %v3304 = vadd.f32 %v2455, %v3303
        %v3305 = vpop.f32.mrf.mxu0
        %v3306 = vadd.f32 %v2457, %v3305
        %3307 = vmatmul.bf16.gmra.mxu0 %v3003
        %v3308 = vpop.f32.mrf.mxu0
        %v3309 = vadd.f32 %v2460, %v3308
        %v3310 = vpop.f32.mrf.mxu0
        %v3311 = vadd.f32 %v2462, %v3310
        %3312 = vmatmul.bf16.gmra.mxu0 %v3006
        %v3313 = vpop.f32.mrf.mxu0
        %v3314 = vadd.f32 %v2465, %v3313
        %v3315 = vpop.f32.mrf.mxu0
        %v3316 = vadd.f32 %v2467, %v3315
        %3317 = vmatmul.bf16.gmra.mxu0 %v3009
        %v3318 = vpop.f32.mrf.mxu0
        %v3319 = vadd.f32 %v2470, %v3318
        %v3320 = vpop.f32.mrf.mxu0
        %v3321 = vadd.f32 %v2472, %v3320
        %3322 = vmatmul.bf16.gmra.mxu0 %v3012
        %v3323 = vpop.f32.mrf.mxu0
        %v3324 = vadd.f32 %v2475, %v3323
        %v3325 = vpop.f32.mrf.mxu0
        %v3326 = vadd.f32 %v2477, %v3325
        %3327 = vmatmul.bf16.gmra.mxu0 %v3015
        %v3328 = vpop.f32.mrf.mxu0
        %v3329 = vadd.f32 %v2480, %v3328
        %v3330 = vpop.f32.mrf.mxu0
        %v3331 = vadd.f32 %v2482, %v3330
        %3332 = vmatmul.bf16.gmra.mxu0 %v3018
        %v3333 = vpop.f32.mrf.mxu0
        %v3334 = vadd.f32 %v2485, %v3333
        %v3335 = vpop.f32.mrf.mxu0
        %v3336 = vadd.f32 %v2487, %v3335
        %3337 = vmatmul.bf16.gmra.mxu0 %v3021
        %v3338 = vpop.f32.mrf.mxu0
        %v3339 = vadd.f32 %v2490, %v3338
        %v3340 = vpop.f32.mrf.mxu0
        %v3341 = vadd.f32 %v2492, %v3340
        %3342 = vmatmul.bf16.gmra.mxu0 %v3024
        %v3343 = vpop.f32.mrf.mxu0
        %v3344 = vadd.f32 %v2495, %v3343
        %v3345 = vpop.f32.mrf.mxu0
        %v3346 = vadd.f32 %v2497, %v3345
        %3347 = vmatmul.bf16.gmra.mxu0 %v3027
        %v3348 = vpop.f32.mrf.mxu0
        %v3349 = vadd.f32 %v2500, %v3348
        %v3350 = vpop.f32.mrf.mxu0
        %v3351 = vadd.f32 %v2502, %v3350
        %3352 = vmatmul.bf16.gmra.mxu0 %v3030
        %v3353 = vpop.f32.mrf.mxu0
        %v3354 = vadd.f32 %v2505, %v3353
        %v3355 = vpop.f32.mrf.mxu0
        %v3356 = vadd.f32 %v2507, %v3355
        %3357 = vmatmul.bf16.gmra.mxu0 %v3033
        %v3358 = vpop.f32.mrf.mxu0
        %v3359 = vadd.f32 %v2510, %v3358
        %v3360 = vpop.f32.mrf.mxu0
        %v3361 = vadd.f32 %v2512, %v3360
        %3362 = vmatmul.bf16.gmra.mxu0 %v3036
        %v3363 = vpop.f32.mrf.mxu0
        %v3364 = vadd.f32 %v2515, %v3363
        %v3365 = vpop.f32.mrf.mxu0
        %v3366 = vadd.f32 %v2517, %v3365
        %3367 = vmatmul.bf16.gmra.mxu0 %v3039
        %v3368 = vpop.f32.mrf.mxu0
        %v3369 = vadd.f32 %v2520, %v3368
        %v3370 = vpop.f32.mrf.mxu0
        %v3371 = vadd.f32 %v2522, %v3370
        %3372 = vdwg.mxu0
        %s3373 = scalar_lea.vmem %s1, 16
        %v3374 = vld [vmem:[%s3373] sm:$0xf]
        %v3375 = vld [vmem:[%s3373 + $0x4] sm:$0x3]
        %v3380 = vunpack.c.l.b16 %v380
        %v3381 = vunpack.c.l.b16 %v381
        %v3382 = vunpack.c.l.b16 %v382
        %v3383 = vunpack.c.l.b16 %v383
        %v3384 = vpack.c.b16 %v3381, %v3380
        %v3385 = vpack.c.b16 %v3383, %v3382
        %v3388 = vunpack.c.l.b16 %v3374
        %v3389 = vunpack.c.l.b16 %v3375
        %v3390 = vpack.c.b16 %v3389, %v3388
        %v3392 = vsel %vm1998, %v3384, 0
        %v3395 = vsel %vm1998, %v3385, 0
        %v3398 = vsel %vm2191, %v3390, 0
        %3400 = vmatpush.bf16.msra.mxu0 0
        %3401 = vmatpush.bf16.msra.mxu0 0
        %3402 = vmatpush.bf16.msra.mxu0 0
        %3403 = vmatpush.bf16.msra.mxu0 0
        %3404 = vmatpush.bf16.msra.mxu0 0
        %3405 = vmatpush.bf16.msra.mxu0 0
        %3406 = vmatpush.bf16.msra.mxu0 0
        %3407 = vmatpush.bf16.msra.mxu0 %v3398
        %3408 = vmatmul.bf16.gmra.mxu0 %v2856
        %v3409 = vpop.f32.mrf.mxu0
        %v3410 = vadd.f32 0.0, %v3409
        %v3411 = vpop.f32.mrf.mxu0
        %v3412 = vadd.f32 0.0, %v3411
        %3413 = vmatmul.bf16.gmra.mxu0 %v2859
        %v3414 = vpop.f32.mrf.mxu0
        %v3415 = vadd.f32 0.0, %v3414
        %v3416 = vpop.f32.mrf.mxu0
        %v3417 = vadd.f32 0.0, %v3416
        %3418 = vmatmul.bf16.gmra.mxu0 %v2862
        %v3419 = vpop.f32.mrf.mxu0
        %v3420 = vadd.f32 0.0, %v3419
        %v3421 = vpop.f32.mrf.mxu0
        %v3422 = vadd.f32 0.0, %v3421
        %3423 = vmatmul.bf16.gmra.mxu0 %v2865
        %v3424 = vpop.f32.mrf.mxu0
        %v3425 = vadd.f32 0.0, %v3424
        %v3426 = vpop.f32.mrf.mxu0
        %v3427 = vadd.f32 0.0, %v3426
        %3428 = vmatmul.bf16.gmra.mxu0 %v2868
        %v3429 = vpop.f32.mrf.mxu0
        %v3430 = vadd.f32 0.0, %v3429
        %v3431 = vpop.f32.mrf.mxu0
        %v3432 = vadd.f32 0.0, %v3431
        %3433 = vmatmul.bf16.gmra.mxu0 %v2871
        %v3434 = vpop.f32.mrf.mxu0
        %v3435 = vadd.f32 0.0, %v3434
        %v3436 = vpop.f32.mrf.mxu0
        %v3437 = vadd.f32 0.0, %v3436
        %3438 = vmatmul.bf16.gmra.mxu0 %v2874
        %v3439 = vpop.f32.mrf.mxu0
        %v3440 = vadd.f32 0.0, %v3439
        %v3441 = vpop.f32.mrf.mxu0
        %v3442 = vadd.f32 0.0, %v3441
        %3443 = vmatmul.bf16.gmra.mxu0 %v2877
        %v3444 = vpop.f32.mrf.mxu0
        %v3445 = vadd.f32 0.0, %v3444
        %v3446 = vpop.f32.mrf.mxu0
        %v3447 = vadd.f32 0.0, %v3446
        %3448 = vmatmul.bf16.gmra.mxu0 %v2880
        %v3449 = vpop.f32.mrf.mxu0
        %v3450 = vadd.f32 0.0, %v3449
        %v3451 = vpop.f32.mrf.mxu0
        %v3452 = vadd.f32 0.0, %v3451
        %3453 = vmatmul.bf16.gmra.mxu0 %v2883
        %v3454 = vpop.f32.mrf.mxu0
        %v3455 = vadd.f32 0.0, %v3454
        %v3456 = vpop.f32.mrf.mxu0
        %v3457 = vadd.f32 0.0, %v3456
        %3458 = vmatmul.bf16.gmra.mxu0 %v2886
        %v3459 = vpop.f32.mrf.mxu0
        %v3460 = vadd.f32 0.0, %v3459
        %v3461 = vpop.f32.mrf.mxu0
        %v3462 = vadd.f32 0.0, %v3461
        %3463 = vmatmul.bf16.gmra.mxu0 %v2889
        %v3464 = vpop.f32.mrf.mxu0
        %v3465 = vadd.f32 0.0, %v3464
        %v3466 = vpop.f32.mrf.mxu0
        %v3467 = vadd.f32 0.0, %v3466
        %3468 = vmatmul.bf16.gmra.mxu0 %v2892
        %v3469 = vpop.f32.mrf.mxu0
        %v3470 = vadd.f32 0.0, %v3469
        %v3471 = vpop.f32.mrf.mxu0
        %v3472 = vadd.f32 0.0, %v3471
        %3473 = vmatmul.bf16.gmra.mxu0 %v2895
        %v3474 = vpop.f32.mrf.mxu0
        %v3475 = vadd.f32 0.0, %v3474
        %v3476 = vpop.f32.mrf.mxu0
        %v3477 = vadd.f32 0.0, %v3476
        %3478 = vmatmul.bf16.gmra.mxu0 %v2898
        %v3479 = vpop.f32.mrf.mxu0
        %v3480 = vadd.f32 0.0, %v3479
        %v3481 = vpop.f32.mrf.mxu0
        %v3482 = vadd.f32 0.0, %v3481
        %3483 = vmatmul.bf16.gmra.mxu0 %v2901
        %v3484 = vpop.f32.mrf.mxu0
        %v3485 = vadd.f32 0.0, %v3484
        %v3486 = vpop.f32.mrf.mxu0
        %v3487 = vadd.f32 0.0, %v3486
        %3488 = vmatmul.bf16.gmra.mxu0 %v2904
        %v3489 = vpop.f32.mrf.mxu0
        %v3490 = vadd.f32 0.0, %v3489
        %v3491 = vpop.f32.mrf.mxu0
        %v3492 = vadd.f32 0.0, %v3491
        %3493 = vmatmul.bf16.gmra.mxu0 %v2907
        %v3494 = vpop.f32.mrf.mxu0
        %v3495 = vadd.f32 0.0, %v3494
        %v3496 = vpop.f32.mrf.mxu0
        %v3497 = vadd.f32 0.0, %v3496
        %3498 = vmatmul.bf16.gmra.mxu0 %v2910
        %v3499 = vpop.f32.mrf.mxu0
        %v3500 = vadd.f32 0.0, %v3499
        %v3501 = vpop.f32.mrf.mxu0
        %v3502 = vadd.f32 0.0, %v3501
        %3503 = vmatmul.bf16.gmra.mxu0 %v2913
        %v3504 = vpop.f32.mrf.mxu0
        %v3505 = vadd.f32 0.0, %v3504
        %v3506 = vpop.f32.mrf.mxu0
        %v3507 = vadd.f32 0.0, %v3506
        %3508 = vmatmul.bf16.gmra.mxu0 %v2916
        %v3509 = vpop.f32.mrf.mxu0
        %v3510 = vadd.f32 0.0, %v3509
        %v3511 = vpop.f32.mrf.mxu0
        %v3512 = vadd.f32 0.0, %v3511
        %3513 = vmatmul.bf16.gmra.mxu0 %v2919
        %v3514 = vpop.f32.mrf.mxu0
        %v3515 = vadd.f32 0.0, %v3514
        %v3516 = vpop.f32.mrf.mxu0
        %v3517 = vadd.f32 0.0, %v3516
        %3518 = vmatmul.bf16.gmra.mxu0 %v2922
        %v3519 = vpop.f32.mrf.mxu0
        %v3520 = vadd.f32 0.0, %v3519
        %v3521 = vpop.f32.mrf.mxu0
        %v3522 = vadd.f32 0.0, %v3521
        %3523 = vmatmul.bf16.gmra.mxu0 %v2925
        %v3524 = vpop.f32.mrf.mxu0
        %v3525 = vadd.f32 0.0, %v3524
        %v3526 = vpop.f32.mrf.mxu0
        %v3527 = vadd.f32 0.0, %v3526
        %3528 = vmatmul.bf16.gmra.mxu0 %v2928
        %v3529 = vpop.f32.mrf.mxu0
        %v3530 = vadd.f32 0.0, %v3529
        %v3531 = vpop.f32.mrf.mxu0
        %v3532 = vadd.f32 0.0, %v3531
        %3533 = vmatmul.bf16.gmra.mxu0 %v2931
        %v3534 = vpop.f32.mrf.mxu0
        %v3535 = vadd.f32 0.0, %v3534
        %v3536 = vpop.f32.mrf.mxu0
        %v3537 = vadd.f32 0.0, %v3536
        %3538 = vmatmul.bf16.gmra.mxu0 %v2934
        %v3539 = vpop.f32.mrf.mxu0
        %v3540 = vadd.f32 0.0, %v3539
        %v3541 = vpop.f32.mrf.mxu0
        %v3542 = vadd.f32 0.0, %v3541
        %3543 = vmatmul.bf16.gmra.mxu0 %v2937
        %v3544 = vpop.f32.mrf.mxu0
        %v3545 = vadd.f32 0.0, %v3544
        %v3546 = vpop.f32.mrf.mxu0
        %v3547 = vadd.f32 0.0, %v3546
        %3548 = vmatmul.bf16.gmra.mxu0 %v2940
        %v3549 = vpop.f32.mrf.mxu0
        %v3550 = vadd.f32 0.0, %v3549
        %v3551 = vpop.f32.mrf.mxu0
        %v3552 = vadd.f32 0.0, %v3551
        %3553 = vmatmul.bf16.gmra.mxu0 %v2943
        %v3554 = vpop.f32.mrf.mxu0
        %v3555 = vadd.f32 0.0, %v3554
        %v3556 = vpop.f32.mrf.mxu0
        %v3557 = vadd.f32 0.0, %v3556
        %3558 = vmatmul.bf16.gmra.mxu0 %v2946
        %v3559 = vpop.f32.mrf.mxu0
        %v3560 = vadd.f32 0.0, %v3559
        %v3561 = vpop.f32.mrf.mxu0
        %v3562 = vadd.f32 0.0, %v3561
        %3563 = vmatmul.bf16.gmra.mxu0 %v2949
        %v3564 = vpop.f32.mrf.mxu0
        %v3565 = vadd.f32 0.0, %v3564
        %v3566 = vpop.f32.mrf.mxu0
        %v3567 = vadd.f32 0.0, %v3566
        %3568 = vmatmul.bf16.gmra.mxu0 %v2952
        %v3569 = vpop.f32.mrf.mxu0
        %v3570 = vadd.f32 0.0, %v3569
        %v3571 = vpop.f32.mrf.mxu0
        %v3572 = vadd.f32 0.0, %v3571
        %3573 = vmatmul.bf16.gmra.mxu0 %v2955
        %v3574 = vpop.f32.mrf.mxu0
        %v3575 = vadd.f32 0.0, %v3574
        %v3576 = vpop.f32.mrf.mxu0
        %v3577 = vadd.f32 0.0, %v3576
        %3578 = vmatmul.bf16.gmra.mxu0 %v2958
        %v3579 = vpop.f32.mrf.mxu0
        %v3580 = vadd.f32 0.0, %v3579
        %v3581 = vpop.f32.mrf.mxu0
        %v3582 = vadd.f32 0.0, %v3581
        %3583 = vmatmul.bf16.gmra.mxu0 %v2961
        %v3584 = vpop.f32.mrf.mxu0
        %v3585 = vadd.f32 0.0, %v3584
        %v3586 = vpop.f32.mrf.mxu0
        %v3587 = vadd.f32 0.0, %v3586
        %3588 = vmatmul.bf16.gmra.mxu0 %v2964
        %v3589 = vpop.f32.mrf.mxu0
        %v3590 = vadd.f32 0.0, %v3589
        %v3591 = vpop.f32.mrf.mxu0
        %v3592 = vadd.f32 0.0, %v3591
        %3593 = vmatmul.bf16.gmra.mxu0 %v2967
        %v3594 = vpop.f32.mrf.mxu0
        %v3595 = vadd.f32 0.0, %v3594
        %v3596 = vpop.f32.mrf.mxu0
        %v3597 = vadd.f32 0.0, %v3596
        %3598 = vmatmul.bf16.gmra.mxu0 %v2970
        %v3599 = vpop.f32.mrf.mxu0
        %v3600 = vadd.f32 0.0, %v3599
        %v3601 = vpop.f32.mrf.mxu0
        %v3602 = vadd.f32 0.0, %v3601
        %3603 = vmatmul.bf16.gmra.mxu0 %v2973
        %v3604 = vpop.f32.mrf.mxu0
        %v3605 = vadd.f32 0.0, %v3604
        %v3606 = vpop.f32.mrf.mxu0
        %v3607 = vadd.f32 0.0, %v3606
        %3608 = vmatmul.bf16.gmra.mxu0 %v2976
        %v3609 = vpop.f32.mrf.mxu0
        %v3610 = vadd.f32 0.0, %v3609
        %v3611 = vpop.f32.mrf.mxu0
        %v3612 = vadd.f32 0.0, %v3611
        %3613 = vmatmul.bf16.gmra.mxu0 %v2979
        %v3614 = vpop.f32.mrf.mxu0
        %v3615 = vadd.f32 0.0, %v3614
        %v3616 = vpop.f32.mrf.mxu0
        %v3617 = vadd.f32 0.0, %v3616
        %3618 = vmatmul.bf16.gmra.mxu0 %v2982
        %v3619 = vpop.f32.mrf.mxu0
        %v3620 = vadd.f32 0.0, %v3619
        %v3621 = vpop.f32.mrf.mxu0
        %v3622 = vadd.f32 0.0, %v3621
        %3623 = vmatmul.bf16.gmra.mxu0 %v2985
        %v3624 = vpop.f32.mrf.mxu0
        %v3625 = vadd.f32 0.0, %v3624
        %v3626 = vpop.f32.mrf.mxu0
        %v3627 = vadd.f32 0.0, %v3626
        %3628 = vmatmul.bf16.gmra.mxu0 %v2988
        %v3629 = vpop.f32.mrf.mxu0
        %v3630 = vadd.f32 0.0, %v3629
        %v3631 = vpop.f32.mrf.mxu0
        %v3632 = vadd.f32 0.0, %v3631
        %3633 = vmatmul.bf16.gmra.mxu0 %v2991
        %v3634 = vpop.f32.mrf.mxu0
        %v3635 = vadd.f32 0.0, %v3634
        %v3636 = vpop.f32.mrf.mxu0
        %v3637 = vadd.f32 0.0, %v3636
        %3638 = vmatmul.bf16.gmra.mxu0 %v2994
        %v3639 = vpop.f32.mrf.mxu0
        %v3640 = vadd.f32 0.0, %v3639
        %v3641 = vpop.f32.mrf.mxu0
        %v3642 = vadd.f32 0.0, %v3641
        %3643 = vmatmul.bf16.gmra.mxu0 %v2997
        %v3644 = vpop.f32.mrf.mxu0
        %v3645 = vadd.f32 0.0, %v3644
        %v3646 = vpop.f32.mrf.mxu0
        %v3647 = vadd.f32 0.0, %v3646
        %3648 = vmatmul.bf16.gmra.mxu0 %v3000
        %v3649 = vpop.f32.mrf.mxu0
        %v3650 = vadd.f32 0.0, %v3649
        %v3651 = vpop.f32.mrf.mxu0
        %v3652 = vadd.f32 0.0, %v3651
        %3653 = vmatmul.bf16.gmra.mxu0 %v3003
        %v3654 = vpop.f32.mrf.mxu0
        %v3655 = vadd.f32 0.0, %v3654
        %v3656 = vpop.f32.mrf.mxu0
        %v3657 = vadd.f32 0.0, %v3656
        %3658 = vmatmul.bf16.gmra.mxu0 %v3006
        %v3659 = vpop.f32.mrf.mxu0
        %v3660 = vadd.f32 0.0, %v3659
        %v3661 = vpop.f32.mrf.mxu0
        %v3662 = vadd.f32 0.0, %v3661
        %3663 = vmatmul.bf16.gmra.mxu0 %v3009
        %v3664 = vpop.f32.mrf.mxu0
        %v3665 = vadd.f32 0.0, %v3664
        %v3666 = vpop.f32.mrf.mxu0
        %v3667 = vadd.f32 0.0, %v3666
        %3668 = vmatmul.bf16.gmra.mxu0 %v3012
        %v3669 = vpop.f32.mrf.mxu0
        %v3670 = vadd.f32 0.0, %v3669
        %v3671 = vpop.f32.mrf.mxu0
        %v3672 = vadd.f32 0.0, %v3671
        %3673 = vmatmul.bf16.gmra.mxu0 %v3015
        %v3674 = vpop.f32.mrf.mxu0
        %v3675 = vadd.f32 0.0, %v3674
        %v3676 = vpop.f32.mrf.mxu0
        %v3677 = vadd.f32 0.0, %v3676
        %3678 = vmatmul.bf16.gmra.mxu0 %v3018
        %v3679 = vpop.f32.mrf.mxu0
        %v3680 = vadd.f32 0.0, %v3679
        %v3681 = vpop.f32.mrf.mxu0
        %v3682 = vadd.f32 0.0, %v3681
        %3683 = vmatmul.bf16.gmra.mxu0 %v3021
        %v3684 = vpop.f32.mrf.mxu0
        %v3685 = vadd.f32 0.0, %v3684
        %v3686 = vpop.f32.mrf.mxu0
        %v3687 = vadd.f32 0.0, %v3686
        %3688 = vmatmul.bf16.gmra.mxu0 %v3024
        %v3689 = vpop.f32.mrf.mxu0
        %v3690 = vadd.f32 0.0, %v3689
        %v3691 = vpop.f32.mrf.mxu0
        %v3692 = vadd.f32 0.0, %v3691
        %3693 = vmatmul.bf16.gmra.mxu0 %v3027
        %v3694 = vpop.f32.mrf.mxu0
        %v3695 = vadd.f32 0.0, %v3694
        %v3696 = vpop.f32.mrf.mxu0
        %v3697 = vadd.f32 0.0, %v3696
        %3698 = vmatmul.bf16.gmra.mxu0 %v3030
        %v3699 = vpop.f32.mrf.mxu0
        %v3700 = vadd.f32 0.0, %v3699
        %v3701 = vpop.f32.mrf.mxu0
        %v3702 = vadd.f32 0.0, %v3701
        %3703 = vmatmul.bf16.gmra.mxu0 %v3033
        %v3704 = vpop.f32.mrf.mxu0
        %v3705 = vadd.f32 0.0, %v3704
        %v3706 = vpop.f32.mrf.mxu0
        %v3707 = vadd.f32 0.0, %v3706
        %3708 = vmatmul.bf16.gmra.mxu0 %v3036
        %v3709 = vpop.f32.mrf.mxu0
        %v3710 = vadd.f32 0.0, %v3709
        %v3711 = vpop.f32.mrf.mxu0
        %v3712 = vadd.f32 0.0, %v3711
        %3713 = vmatmul.bf16.gmra.mxu0 %v3039
        %v3714 = vpop.f32.mrf.mxu0
        %v3715 = vadd.f32 0.0, %v3714
        %v3716 = vpop.f32.mrf.mxu0
        %v3717 = vadd.f32 0.0, %v3716
        %3718 = vmatmul.bf16.gmra.mxu0 %v3392
        %v3719 = vpop.f32.mrf.mxu0
        %v3720 = vadd.f32 0.0, %v3719
        %v3721 = vpop.f32.mrf.mxu0
        %v3722 = vadd.f32 0.0, %v3721
        %3723 = vmatmul.bf16.gmra.mxu0 %v3395
        %v3724 = vpop.f32.mrf.mxu0
        %v3725 = vadd.f32 0.0, %v3724
        %v3726 = vpop.f32.mrf.mxu0
        %v3727 = vadd.f32 0.0, %v3726
        %3728 = vdwg.mxu0
        %v3729 = vadd.f32 %v3054, %v3410
        %v3730 = vadd.f32 %v3056, %v3412
        %v3731 = vadd.f32 %v3059, %v3415
        %v3732 = vadd.f32 %v3061, %v3417
        %v3733 = vadd.f32 %v3064, %v3420
        %v3734 = vadd.f32 %v3066, %v3422
        %v3735 = vadd.f32 %v3069, %v3425
        %v3736 = vadd.f32 %v3071, %v3427
        %v3737 = vadd.f32 %v3074, %v3430
        %v3738 = vadd.f32 %v3076, %v3432
        %v3739 = vadd.f32 %v3079, %v3435
        %v3740 = vadd.f32 %v3081, %v3437
        %v3741 = vadd.f32 %v3084, %v3440
        %v3742 = vadd.f32 %v3086, %v3442
        %v3743 = vadd.f32 %v3089, %v3445
        %v3744 = vadd.f32 %v3091, %v3447
        %v3745 = vadd.f32 %v3094, %v3450
        %v3746 = vadd.f32 %v3096, %v3452
        %v3747 = vadd.f32 %v3099, %v3455
        %v3748 = vadd.f32 %v3101, %v3457
        %v3749 = vadd.f32 %v3104, %v3460
        %v3750 = vadd.f32 %v3106, %v3462
        %v3751 = vadd.f32 %v3109, %v3465
        %v3752 = vadd.f32 %v3111, %v3467
        %v3753 = vadd.f32 %v3114, %v3470
        %v3754 = vadd.f32 %v3116, %v3472
        %v3755 = vadd.f32 %v3119, %v3475
        %v3756 = vadd.f32 %v3121, %v3477
        %v3757 = vadd.f32 %v3124, %v3480
        %v3758 = vadd.f32 %v3126, %v3482
        %v3759 = vadd.f32 %v3129, %v3485
        %v3760 = vadd.f32 %v3131, %v3487
        %v3761 = vadd.f32 %v3134, %v3490
        %v3762 = vadd.f32 %v3136, %v3492
        %v3763 = vadd.f32 %v3139, %v3495
        %v3764 = vadd.f32 %v3141, %v3497
        %v3765 = vadd.f32 %v3144, %v3500
        %v3766 = vadd.f32 %v3146, %v3502
        %v3767 = vadd.f32 %v3149, %v3505
        %v3768 = vadd.f32 %v3151, %v3507
        %v3769 = vadd.f32 %v3154, %v3510
        %v3770 = vadd.f32 %v3156, %v3512
        %v3771 = vadd.f32 %v3159, %v3515
        %v3772 = vadd.f32 %v3161, %v3517
        %v3773 = vadd.f32 %v3164, %v3520
        %v3774 = vadd.f32 %v3166, %v3522
        %v3775 = vadd.f32 %v3169, %v3525
        %v3776 = vadd.f32 %v3171, %v3527
        %v3777 = vadd.f32 %v3174, %v3530
        %v3778 = vadd.f32 %v3176, %v3532
        %v3779 = vadd.f32 %v3179, %v3535
        %v3780 = vadd.f32 %v3181, %v3537
        %v3781 = vadd.f32 %v3184, %v3540
        %v3782 = vadd.f32 %v3186, %v3542
        %v3783 = vadd.f32 %v3189, %v3545
        %v3784 = vadd.f32 %v3191, %v3547
        %v3785 = vadd.f32 %v3194, %v3550
        %v3786 = vadd.f32 %v3196, %v3552
        %v3787 = vadd.f32 %v3199, %v3555
        %v3788 = vadd.f32 %v3201, %v3557
        %v3789 = vadd.f32 %v3204, %v3560
        %v3790 = vadd.f32 %v3206, %v3562
        %v3791 = vadd.f32 %v3209, %v3565
        %v3792 = vadd.f32 %v3211, %v3567
        %v3793 = vadd.f32 %v3214, %v3570
        %v3794 = vadd.f32 %v3216, %v3572
        %v3795 = vadd.f32 %v3219, %v3575
        %v3796 = vadd.f32 %v3221, %v3577
        %v3797 = vadd.f32 %v3224, %v3580
        %v3798 = vadd.f32 %v3226, %v3582
        %v3799 = vadd.f32 %v3229, %v3585
        %v3800 = vadd.f32 %v3231, %v3587
        %v3801 = vadd.f32 %v3234, %v3590
        %v3802 = vadd.f32 %v3236, %v3592
        %v3803 = vadd.f32 %v3239, %v3595
        %v3804 = vadd.f32 %v3241, %v3597
        %v3805 = vadd.f32 %v3244, %v3600
        %v3806 = vadd.f32 %v3246, %v3602
        %v3807 = vadd.f32 %v3249, %v3605
        %v3808 = vadd.f32 %v3251, %v3607
        %v3809 = vadd.f32 %v3254, %v3610
        %v3810 = vadd.f32 %v3256, %v3612
        %v3811 = vadd.f32 %v3259, %v3615
        %v3812 = vadd.f32 %v3261, %v3617
        %v3813 = vadd.f32 %v3264, %v3620
        %v3814 = vadd.f32 %v3266, %v3622
        %v3815 = vadd.f32 %v3269, %v3625
        %v3816 = vadd.f32 %v3271, %v3627
        %v3817 = vadd.f32 %v3274, %v3630
        %v3818 = vadd.f32 %v3276, %v3632
        %v3819 = vadd.f32 %v3279, %v3635
        %v3820 = vadd.f32 %v3281, %v3637
        %v3821 = vadd.f32 %v3284, %v3640
        %v3822 = vadd.f32 %v3286, %v3642
        %v3823 = vadd.f32 %v3289, %v3645
        %v3824 = vadd.f32 %v3291, %v3647
        %v3825 = vadd.f32 %v3294, %v3650
        %v3826 = vadd.f32 %v3296, %v3652
        %v3827 = vadd.f32 %v3299, %v3655
        %v3828 = vadd.f32 %v3301, %v3657
        %v3829 = vadd.f32 %v3304, %v3660
        %v3830 = vadd.f32 %v3306, %v3662
        %v3831 = vadd.f32 %v3309, %v3665
        %v3832 = vadd.f32 %v3311, %v3667
        %v3833 = vadd.f32 %v3314, %v3670
        %v3834 = vadd.f32 %v3316, %v3672
        %v3835 = vadd.f32 %v3319, %v3675
        %v3836 = vadd.f32 %v3321, %v3677
        %v3837 = vadd.f32 %v3324, %v3680
        %v3838 = vadd.f32 %v3326, %v3682
        %v3839 = vadd.f32 %v3329, %v3685
        %v3840 = vadd.f32 %v3331, %v3687
        %v3841 = vadd.f32 %v3334, %v3690
        %v3842 = vadd.f32 %v3336, %v3692
        %v3843 = vadd.f32 %v3339, %v3695
        %v3844 = vadd.f32 %v3341, %v3697
        %v3845 = vadd.f32 %v3344, %v3700
        %v3846 = vadd.f32 %v3346, %v3702
        %v3847 = vadd.f32 %v3349, %v3705
        %v3848 = vadd.f32 %v3351, %v3707
        %v3849 = vadd.f32 %v3354, %v3710
        %v3850 = vadd.f32 %v3356, %v3712
        %v3851 = vadd.f32 %v3359, %v3715
        %v3852 = vadd.f32 %v3361, %v3717
        %v3853 = vadd.f32 %v3364, %v3720
        %v3854 = vadd.f32 %v3366, %v3722
        %v3855 = vadd.f32 %v3369, %v3725
        %v3856 = vadd.f32 %v3371, %v3727
        %v3858 = vshrl.u32 %v380, 16
        %v3860 = vrot.slane %v3858, 4
        %v3861 = vshll.u32 %v380, 16
        %v3863 = vrot.slane %v3861, 5
        %v3864 = vor.u32 %v3860, %v3863
        %v3865 = vrot.slane %v3864, 4
        %v3867 = vshll.u32 %v381, 16
        %v3869 = vrot.slane %v3867, 5
        %v3870 = vsel %vm389, %v3865, %v3869
        %v3871 = vshrl.u32 %v381, 16
        %v3873 = vrot.slane %v3871, 4
        %v3874 = vor.u32 %v3873, %v3869
        %v3875 = vrot.slane %v3874, 4
        %v3877 = vshll.u32 %v382, 16
        %v3879 = vrot.slane %v3877, 5
        %v3880 = vsel %vm389, %v3875, %v3879
        %v3881 = vshrl.u32 %v382, 16
        %v3883 = vrot.slane %v3881, 4
        %v3884 = vor.u32 %v3883, %v3879
        %v3885 = vrot.slane %v3884, 4
        %v3887 = vshll.u32 %v383, 16
        %v3889 = vrot.slane %v3887, 5
        %v3890 = vsel %vm389, %v3885, %v3889
        %v3891 = vshrl.u32 %v383, 16
        %v3893 = vrot.slane %v3891, 4
        %v3894 = vor.u32 %v3893, %v3889
        %v3895 = vrot.slane %v3894, 4
        %v3897 = vshll.u32 %v384, 16
        %v3899 = vrot.slane %v3897, 5
        %v3900 = vsel %vm389, %v3895, %v3899
        %s3901 = scalar_lea.vmem %s1, 24
        %v3902 = vld [vmem:[%s3901] sm:$0xf]
        %v3903 = vld [vmem:[%s3901 + $0x4] sm:$0x3]
        %v3904 = vunpack.c.l.b16 %v3870
        %v3905 = vunpack.c.l.b16 %v3880
        %v3906 = vunpack.c.l.b16 %v3890
        %v3907 = vunpack.c.l.b16 %v3900
        %v3908 = vpack.c.b16 %v3905, %v3904
        %v3909 = vpack.c.b16 %v3907, %v3906
        %v3912 = vunpack.c.l.b16 %v3902
        %v3913 = vunpack.c.l.b16 %v3903
        %v3914 = vpack.c.b16 %v3913, %v3912
        %v3916 = vsel %vm1998, %v3908, 0
        %v3919 = vsel %vm1998, %v3909, 0
        %v3922 = vsel %vm2191, %v3914, 0
        %3924 = vmatpush.bf16.msra.mxu0 0
        %3925 = vmatpush.bf16.msra.mxu0 0
        %3926 = vmatpush.bf16.msra.mxu0 0
        %3927 = vmatpush.bf16.msra.mxu0 0
        %3928 = vmatpush.bf16.msra.mxu0 0
        %3929 = vmatpush.bf16.msra.mxu0 0
        %3930 = vmatpush.bf16.msra.mxu0 0
        %3931 = vmatpush.bf16.msra.mxu0 %v3922
        %3932 = vmatmul.bf16.gmra.mxu0 %v2006
        %v3933 = vpop.f32.mrf.mxu0
        %v3934 = vadd.f32 0.0, %v3933
        %v3935 = vpop.f32.mrf.mxu0
        %v3936 = vadd.f32 0.0, %v3935
        %3937 = vmatmul.bf16.gmra.mxu0 %v2009
        %v3938 = vpop.f32.mrf.mxu0
        %v3939 = vadd.f32 0.0, %v3938
        %v3940 = vpop.f32.mrf.mxu0
        %v3941 = vadd.f32 0.0, %v3940
        %3942 = vmatmul.bf16.gmra.mxu0 %v2012
        %v3943 = vpop.f32.mrf.mxu0
        %v3944 = vadd.f32 0.0, %v3943
        %v3945 = vpop.f32.mrf.mxu0
        %v3946 = vadd.f32 0.0, %v3945
        %3947 = vmatmul.bf16.gmra.mxu0 %v2015
        %v3948 = vpop.f32.mrf.mxu0
        %v3949 = vadd.f32 0.0, %v3948
        %v3950 = vpop.f32.mrf.mxu0
        %v3951 = vadd.f32 0.0, %v3950
        %3952 = vmatmul.bf16.gmra.mxu0 %v2018
        %v3953 = vpop.f32.mrf.mxu0
        %v3954 = vadd.f32 0.0, %v3953
        %v3955 = vpop.f32.mrf.mxu0
        %v3956 = vadd.f32 0.0, %v3955
        %3957 = vmatmul.bf16.gmra.mxu0 %v2021
        %v3958 = vpop.f32.mrf.mxu0
        %v3959 = vadd.f32 0.0, %v3958
        %v3960 = vpop.f32.mrf.mxu0
        %v3961 = vadd.f32 0.0, %v3960
        %3962 = vmatmul.bf16.gmra.mxu0 %v2024
        %v3963 = vpop.f32.mrf.mxu0
        %v3964 = vadd.f32 0.0, %v3963
        %v3965 = vpop.f32.mrf.mxu0
        %v3966 = vadd.f32 0.0, %v3965
        %3967 = vmatmul.bf16.gmra.mxu0 %v2027
        %v3968 = vpop.f32.mrf.mxu0
        %v3969 = vadd.f32 0.0, %v3968
        %v3970 = vpop.f32.mrf.mxu0
        %v3971 = vadd.f32 0.0, %v3970
        %3972 = vmatmul.bf16.gmra.mxu0 %v2030
        %v3973 = vpop.f32.mrf.mxu0
        %v3974 = vadd.f32 0.0, %v3973
        %v3975 = vpop.f32.mrf.mxu0
        %v3976 = vadd.f32 0.0, %v3975
        %3977 = vmatmul.bf16.gmra.mxu0 %v2033
        %v3978 = vpop.f32.mrf.mxu0
        %v3979 = vadd.f32 0.0, %v3978
        %v3980 = vpop.f32.mrf.mxu0
        %v3981 = vadd.f32 0.0, %v3980
        %3982 = vmatmul.bf16.gmra.mxu0 %v2036
        %v3983 = vpop.f32.mrf.mxu0
        %v3984 = vadd.f32 0.0, %v3983
        %v3985 = vpop.f32.mrf.mxu0
        %v3986 = vadd.f32 0.0, %v3985
        %3987 = vmatmul.bf16.gmra.mxu0 %v2039
        %v3988 = vpop.f32.mrf.mxu0
        %v3989 = vadd.f32 0.0, %v3988
        %v3990 = vpop.f32.mrf.mxu0
        %v3991 = vadd.f32 0.0, %v3990
        %3992 = vmatmul.bf16.gmra.mxu0 %v2042
        %v3993 = vpop.f32.mrf.mxu0
        %v3994 = vadd.f32 0.0, %v3993
        %v3995 = vpop.f32.mrf.mxu0
        %v3996 = vadd.f32 0.0, %v3995
        %3997 = vmatmul.bf16.gmra.mxu0 %v2045
        %v3998 = vpop.f32.mrf.mxu0
        %v3999 = vadd.f32 0.0, %v3998
        %v4000 = vpop.f32.mrf.mxu0
        %v4001 = vadd.f32 0.0, %v4000
        %4002 = vmatmul.bf16.gmra.mxu0 %v2048
        %v4003 = vpop.f32.mrf.mxu0
        %v4004 = vadd.f32 0.0, %v4003
        %v4005 = vpop.f32.mrf.mxu0
        %v4006 = vadd.f32 0.0, %v4005
        %4007 = vmatmul.bf16.gmra.mxu0 %v2051
        %v4008 = vpop.f32.mrf.mxu0
        %v4009 = vadd.f32 0.0, %v4008
        %v4010 = vpop.f32.mrf.mxu0
        %v4011 = vadd.f32 0.0, %v4010
        %4012 = vmatmul.bf16.gmra.mxu0 %v2054
        %v4013 = vpop.f32.mrf.mxu0
        %v4014 = vadd.f32 0.0, %v4013
        %v4015 = vpop.f32.mrf.mxu0
        %v4016 = vadd.f32 0.0, %v4015
        %4017 = vmatmul.bf16.gmra.mxu0 %v2057
        %v4018 = vpop.f32.mrf.mxu0
        %v4019 = vadd.f32 0.0, %v4018
        %v4020 = vpop.f32.mrf.mxu0
        %v4021 = vadd.f32 0.0, %v4020
        %4022 = vmatmul.bf16.gmra.mxu0 %v2060
        %v4023 = vpop.f32.mrf.mxu0
        %v4024 = vadd.f32 0.0, %v4023
        %v4025 = vpop.f32.mrf.mxu0
        %v4026 = vadd.f32 0.0, %v4025
        %4027 = vmatmul.bf16.gmra.mxu0 %v2063
        %v4028 = vpop.f32.mrf.mxu0
        %v4029 = vadd.f32 0.0, %v4028
        %v4030 = vpop.f32.mrf.mxu0
        %v4031 = vadd.f32 0.0, %v4030
        %4032 = vmatmul.bf16.gmra.mxu0 %v2066
        %v4033 = vpop.f32.mrf.mxu0
        %v4034 = vadd.f32 0.0, %v4033
        %v4035 = vpop.f32.mrf.mxu0
        %v4036 = vadd.f32 0.0, %v4035
        %4037 = vmatmul.bf16.gmra.mxu0 %v2069
        %v4038 = vpop.f32.mrf.mxu0
        %v4039 = vadd.f32 0.0, %v4038
        %v4040 = vpop.f32.mrf.mxu0
        %v4041 = vadd.f32 0.0, %v4040
        %4042 = vmatmul.bf16.gmra.mxu0 %v2072
        %v4043 = vpop.f32.mrf.mxu0
        %v4044 = vadd.f32 0.0, %v4043
        %v4045 = vpop.f32.mrf.mxu0
        %v4046 = vadd.f32 0.0, %v4045
        %4047 = vmatmul.bf16.gmra.mxu0 %v2075
        %v4048 = vpop.f32.mrf.mxu0
        %v4049 = vadd.f32 0.0, %v4048
        %v4050 = vpop.f32.mrf.mxu0
        %v4051 = vadd.f32 0.0, %v4050
        %4052 = vmatmul.bf16.gmra.mxu0 %v2078
        %v4053 = vpop.f32.mrf.mxu0
        %v4054 = vadd.f32 0.0, %v4053
        %v4055 = vpop.f32.mrf.mxu0
        %v4056 = vadd.f32 0.0, %v4055
        %4057 = vmatmul.bf16.gmra.mxu0 %v2081
        %v4058 = vpop.f32.mrf.mxu0
        %v4059 = vadd.f32 0.0, %v4058
        %v4060 = vpop.f32.mrf.mxu0
        %v4061 = vadd.f32 0.0, %v4060
        %4062 = vmatmul.bf16.gmra.mxu0 %v2084
        %v4063 = vpop.f32.mrf.mxu0
        %v4064 = vadd.f32 0.0, %v4063
        %v4065 = vpop.f32.mrf.mxu0
        %v4066 = vadd.f32 0.0, %v4065
        %4067 = vmatmul.bf16.gmra.mxu0 %v2087
        %v4068 = vpop.f32.mrf.mxu0
        %v4069 = vadd.f32 0.0, %v4068
        %v4070 = vpop.f32.mrf.mxu0
        %v4071 = vadd.f32 0.0, %v4070
        %4072 = vmatmul.bf16.gmra.mxu0 %v2090
        %v4073 = vpop.f32.mrf.mxu0
        %v4074 = vadd.f32 0.0, %v4073
        %v4075 = vpop.f32.mrf.mxu0
        %v4076 = vadd.f32 0.0, %v4075
        %4077 = vmatmul.bf16.gmra.mxu0 %v2093
        %v4078 = vpop.f32.mrf.mxu0
        %v4079 = vadd.f32 0.0, %v4078
        %v4080 = vpop.f32.mrf.mxu0
        %v4081 = vadd.f32 0.0, %v4080
        %4082 = vmatmul.bf16.gmra.mxu0 %v2096
        %v4083 = vpop.f32.mrf.mxu0
        %v4084 = vadd.f32 0.0, %v4083
        %v4085 = vpop.f32.mrf.mxu0
        %v4086 = vadd.f32 0.0, %v4085
        %4087 = vmatmul.bf16.gmra.mxu0 %v2099
        %v4088 = vpop.f32.mrf.mxu0
        %v4089 = vadd.f32 0.0, %v4088
        %v4090 = vpop.f32.mrf.mxu0
        %v4091 = vadd.f32 0.0, %v4090
        %4092 = vmatmul.bf16.gmra.mxu0 %v2102
        %v4093 = vpop.f32.mrf.mxu0
        %v4094 = vadd.f32 0.0, %v4093
        %v4095 = vpop.f32.mrf.mxu0
        %v4096 = vadd.f32 0.0, %v4095
        %4097 = vmatmul.bf16.gmra.mxu0 %v2105
        %v4098 = vpop.f32.mrf.mxu0
        %v4099 = vadd.f32 0.0, %v4098
        %v4100 = vpop.f32.mrf.mxu0
        %v4101 = vadd.f32 0.0, %v4100
        %4102 = vmatmul.bf16.gmra.mxu0 %v2108
        %v4103 = vpop.f32.mrf.mxu0
        %v4104 = vadd.f32 0.0, %v4103
        %v4105 = vpop.f32.mrf.mxu0
        %v4106 = vadd.f32 0.0, %v4105
        %4107 = vmatmul.bf16.gmra.mxu0 %v2111
        %v4108 = vpop.f32.mrf.mxu0
        %v4109 = vadd.f32 0.0, %v4108
        %v4110 = vpop.f32.mrf.mxu0
        %v4111 = vadd.f32 0.0, %v4110
        %4112 = vmatmul.bf16.gmra.mxu0 %v2114
        %v4113 = vpop.f32.mrf.mxu0
        %v4114 = vadd.f32 0.0, %v4113
        %v4115 = vpop.f32.mrf.mxu0
        %v4116 = vadd.f32 0.0, %v4115
        %4117 = vmatmul.bf16.gmra.mxu0 %v2117
        %v4118 = vpop.f32.mrf.mxu0
        %v4119 = vadd.f32 0.0, %v4118
        %v4120 = vpop.f32.mrf.mxu0
        %v4121 = vadd.f32 0.0, %v4120
        %4122 = vmatmul.bf16.gmra.mxu0 %v2120
        %v4123 = vpop.f32.mrf.mxu0
        %v4124 = vadd.f32 0.0, %v4123
        %v4125 = vpop.f32.mrf.mxu0
        %v4126 = vadd.f32 0.0, %v4125
        %4127 = vmatmul.bf16.gmra.mxu0 %v2123
        %v4128 = vpop.f32.mrf.mxu0
        %v4129 = vadd.f32 0.0, %v4128
        %v4130 = vpop.f32.mrf.mxu0
        %v4131 = vadd.f32 0.0, %v4130
        %4132 = vmatmul.bf16.gmra.mxu0 %v2126
        %v4133 = vpop.f32.mrf.mxu0
        %v4134 = vadd.f32 0.0, %v4133
        %v4135 = vpop.f32.mrf.mxu0
        %v4136 = vadd.f32 0.0, %v4135
        %4137 = vmatmul.bf16.gmra.mxu0 %v2129
        %v4138 = vpop.f32.mrf.mxu0
        %v4139 = vadd.f32 0.0, %v4138
        %v4140 = vpop.f32.mrf.mxu0
        %v4141 = vadd.f32 0.0, %v4140
        %4142 = vmatmul.bf16.gmra.mxu0 %v2132
        %v4143 = vpop.f32.mrf.mxu0
        %v4144 = vadd.f32 0.0, %v4143
        %v4145 = vpop.f32.mrf.mxu0
        %v4146 = vadd.f32 0.0, %v4145
        %4147 = vmatmul.bf16.gmra.mxu0 %v2135
        %v4148 = vpop.f32.mrf.mxu0
        %v4149 = vadd.f32 0.0, %v4148
        %v4150 = vpop.f32.mrf.mxu0
        %v4151 = vadd.f32 0.0, %v4150
        %4152 = vmatmul.bf16.gmra.mxu0 %v2138
        %v4153 = vpop.f32.mrf.mxu0
        %v4154 = vadd.f32 0.0, %v4153
        %v4155 = vpop.f32.mrf.mxu0
        %v4156 = vadd.f32 0.0, %v4155
        %4157 = vmatmul.bf16.gmra.mxu0 %v2141
        %v4158 = vpop.f32.mrf.mxu0
        %v4159 = vadd.f32 0.0, %v4158
        %v4160 = vpop.f32.mrf.mxu0
        %v4161 = vadd.f32 0.0, %v4160
        %4162 = vmatmul.bf16.gmra.mxu0 %v2144
        %v4163 = vpop.f32.mrf.mxu0
        %v4164 = vadd.f32 0.0, %v4163
        %v4165 = vpop.f32.mrf.mxu0
        %v4166 = vadd.f32 0.0, %v4165
        %4167 = vmatmul.bf16.gmra.mxu0 %v2147
        %v4168 = vpop.f32.mrf.mxu0
        %v4169 = vadd.f32 0.0, %v4168
        %v4170 = vpop.f32.mrf.mxu0
        %v4171 = vadd.f32 0.0, %v4170
        %4172 = vmatmul.bf16.gmra.mxu0 %v2150
        %v4173 = vpop.f32.mrf.mxu0
        %v4174 = vadd.f32 0.0, %v4173
        %v4175 = vpop.f32.mrf.mxu0
        %v4176 = vadd.f32 0.0, %v4175
        %4177 = vmatmul.bf16.gmra.mxu0 %v2153
        %v4178 = vpop.f32.mrf.mxu0
        %v4179 = vadd.f32 0.0, %v4178
        %v4180 = vpop.f32.mrf.mxu0
        %v4181 = vadd.f32 0.0, %v4180
        %4182 = vmatmul.bf16.gmra.mxu0 %v2156
        %v4183 = vpop.f32.mrf.mxu0
        %v4184 = vadd.f32 0.0, %v4183
        %v4185 = vpop.f32.mrf.mxu0
        %v4186 = vadd.f32 0.0, %v4185
        %4187 = vmatmul.bf16.gmra.mxu0 %v2159
        %v4188 = vpop.f32.mrf.mxu0
        %v4189 = vadd.f32 0.0, %v4188
        %v4190 = vpop.f32.mrf.mxu0
        %v4191 = vadd.f32 0.0, %v4190
        %4192 = vmatmul.bf16.gmra.mxu0 %v2162
        %v4193 = vpop.f32.mrf.mxu0
        %v4194 = vadd.f32 0.0, %v4193
        %v4195 = vpop.f32.mrf.mxu0
        %v4196 = vadd.f32 0.0, %v4195
        %4197 = vmatmul.bf16.gmra.mxu0 %v2165
        %v4198 = vpop.f32.mrf.mxu0
        %v4199 = vadd.f32 0.0, %v4198
        %v4200 = vpop.f32.mrf.mxu0
        %v4201 = vadd.f32 0.0, %v4200
        %4202 = vmatmul.bf16.gmra.mxu0 %v2168
        %v4203 = vpop.f32.mrf.mxu0
        %v4204 = vadd.f32 0.0, %v4203
        %v4205 = vpop.f32.mrf.mxu0
        %v4206 = vadd.f32 0.0, %v4205
        %4207 = vmatmul.bf16.gmra.mxu0 %v2171
        %v4208 = vpop.f32.mrf.mxu0
        %v4209 = vadd.f32 0.0, %v4208
        %v4210 = vpop.f32.mrf.mxu0
        %v4211 = vadd.f32 0.0, %v4210
        %4212 = vmatmul.bf16.gmra.mxu0 %v2174
        %v4213 = vpop.f32.mrf.mxu0
        %v4214 = vadd.f32 0.0, %v4213
        %v4215 = vpop.f32.mrf.mxu0
        %v4216 = vadd.f32 0.0, %v4215
        %4217 = vmatmul.bf16.gmra.mxu0 %v2177
        %v4218 = vpop.f32.mrf.mxu0
        %v4219 = vadd.f32 0.0, %v4218
        %v4220 = vpop.f32.mrf.mxu0
        %v4221 = vadd.f32 0.0, %v4220
        %4222 = vmatmul.bf16.gmra.mxu0 %v2180
        %v4223 = vpop.f32.mrf.mxu0
        %v4224 = vadd.f32 0.0, %v4223
        %v4225 = vpop.f32.mrf.mxu0
        %v4226 = vadd.f32 0.0, %v4225
        %4227 = vmatmul.bf16.gmra.mxu0 %v2183
        %v4228 = vpop.f32.mrf.mxu0
        %v4229 = vadd.f32 0.0, %v4228
        %v4230 = vpop.f32.mrf.mxu0
        %v4231 = vadd.f32 0.0, %v4230
        %4232 = vmatmul.bf16.gmra.mxu0 %v2186
        %v4233 = vpop.f32.mrf.mxu0
        %v4234 = vadd.f32 0.0, %v4233
        %v4235 = vpop.f32.mrf.mxu0
        %v4236 = vadd.f32 0.0, %v4235
        %4237 = vmatmul.bf16.gmra.mxu0 %v2189
        %v4238 = vpop.f32.mrf.mxu0
        %v4239 = vadd.f32 0.0, %v4238
        %v4240 = vpop.f32.mrf.mxu0
        %v4241 = vadd.f32 0.0, %v4240
        %4242 = vmatmul.bf16.gmra.mxu0 %v3916
        %v4243 = vpop.f32.mrf.mxu0
        %v4244 = vadd.f32 0.0, %v4243
        %v4245 = vpop.f32.mrf.mxu0
        %v4246 = vadd.f32 0.0, %v4245
        %4247 = vmatmul.bf16.gmra.mxu0 %v3919
        %v4248 = vpop.f32.mrf.mxu0
        %v4249 = vadd.f32 0.0, %v4248
        %v4250 = vpop.f32.mrf.mxu0
        %v4251 = vadd.f32 0.0, %v4250
        %4252 = vdwg.mxu0
        %v4253 = vadd.f32 %v3729, %v3934
        %v4254 = vadd.f32 %v3730, %v3936
        %v4255 = vadd.f32 %v3731, %v3939
        %v4256 = vadd.f32 %v3732, %v3941
        %v4257 = vadd.f32 %v3733, %v3944
        %v4258 = vadd.f32 %v3734, %v3946
        %v4259 = vadd.f32 %v3735, %v3949
        %v4260 = vadd.f32 %v3736, %v3951
        %v4261 = vadd.f32 %v3737, %v3954
        %v4262 = vadd.f32 %v3738, %v3956
        %v4263 = vadd.f32 %v3739, %v3959
        %v4264 = vadd.f32 %v3740, %v3961
        %v4265 = vadd.f32 %v3741, %v3964
        %v4266 = vadd.f32 %v3742, %v3966
        %v4267 = vadd.f32 %v3743, %v3969
        %v4268 = vadd.f32 %v3744, %v3971
        %v4269 = vadd.f32 %v3745, %v3974
        %v4270 = vadd.f32 %v3746, %v3976
        %v4271 = vadd.f32 %v3747, %v3979
        %v4272 = vadd.f32 %v3748, %v3981
        %v4273 = vadd.f32 %v3749, %v3984
        %v4274 = vadd.f32 %v3750, %v3986
        %v4275 = vadd.f32 %v3751, %v3989
        %v4276 = vadd.f32 %v3752, %v3991
        %v4277 = vadd.f32 %v3753, %v3994
        %v4278 = vadd.f32 %v3754, %v3996
        %v4279 = vadd.f32 %v3755, %v3999
        %v4280 = vadd.f32 %v3756, %v4001
        %v4281 = vadd.f32 %v3757, %v4004
        %v4282 = vadd.f32 %v3758, %v4006
        %v4283 = vadd.f32 %v3759, %v4009
        %v4284 = vadd.f32 %v3760, %v4011
        %v4285 = vadd.f32 %v3761, %v4014
        %v4286 = vadd.f32 %v3762, %v4016
        %v4287 = vadd.f32 %v3763, %v4019
        %v4288 = vadd.f32 %v3764, %v4021
        %v4289 = vadd.f32 %v3765, %v4024
        %v4290 = vadd.f32 %v3766, %v4026
        %v4291 = vadd.f32 %v3767, %v4029
        %v4292 = vadd.f32 %v3768, %v4031
        %v4293 = vadd.f32 %v3769, %v4034
        %v4294 = vadd.f32 %v3770, %v4036
        %v4295 = vadd.f32 %v3771, %v4039
        %v4296 = vadd.f32 %v3772, %v4041
        %v4297 = vadd.f32 %v3773, %v4044
        %v4298 = vadd.f32 %v3774, %v4046
        %v4299 = vadd.f32 %v3775, %v4049
        %v4300 = vadd.f32 %v3776, %v4051
        %v4301 = vadd.f32 %v3777, %v4054
        %v4302 = vadd.f32 %v3778, %v4056
        %v4303 = vadd.f32 %v3779, %v4059
        %v4304 = vadd.f32 %v3780, %v4061
        %v4305 = vadd.f32 %v3781, %v4064
        %v4306 = vadd.f32 %v3782, %v4066
        %v4307 = vadd.f32 %v3783, %v4069
        %v4308 = vadd.f32 %v3784, %v4071
        %v4309 = vadd.f32 %v3785, %v4074
        %v4310 = vadd.f32 %v3786, %v4076
        %v4311 = vadd.f32 %v3787, %v4079
        %v4312 = vadd.f32 %v3788, %v4081
        %v4313 = vadd.f32 %v3789, %v4084
        %v4314 = vadd.f32 %v3790, %v4086
        %v4315 = vadd.f32 %v3791, %v4089
        %v4316 = vadd.f32 %v3792, %v4091
        %v4317 = vadd.f32 %v3793, %v4094
        %v4318 = vadd.f32 %v3794, %v4096
        %v4319 = vadd.f32 %v3795, %v4099
        %v4320 = vadd.f32 %v3796, %v4101
        %v4321 = vadd.f32 %v3797, %v4104
        %v4322 = vadd.f32 %v3798, %v4106
        %v4323 = vadd.f32 %v3799, %v4109
        %v4324 = vadd.f32 %v3800, %v4111
        %v4325 = vadd.f32 %v3801, %v4114
        %v4326 = vadd.f32 %v3802, %v4116
        %v4327 = vadd.f32 %v3803, %v4119
        %v4328 = vadd.f32 %v3804, %v4121
        %v4329 = vadd.f32 %v3805, %v4124
        %v4330 = vadd.f32 %v3806, %v4126
        %v4331 = vadd.f32 %v3807, %v4129
        %v4332 = vadd.f32 %v3808, %v4131
        %v4333 = vadd.f32 %v3809, %v4134
        %v4334 = vadd.f32 %v3810, %v4136
        %v4335 = vadd.f32 %v3811, %v4139
        %v4336 = vadd.f32 %v3812, %v4141
        %v4337 = vadd.f32 %v3813, %v4144
        %v4338 = vadd.f32 %v3814, %v4146
        %v4339 = vadd.f32 %v3815, %v4149
        %v4340 = vadd.f32 %v3816, %v4151
        %v4341 = vadd.f32 %v3817, %v4154
        %v4342 = vadd.f32 %v3818, %v4156
        %v4343 = vadd.f32 %v3819, %v4159
        %v4344 = vadd.f32 %v3820, %v4161
        %v4345 = vadd.f32 %v3821, %v4164
        %v4346 = vadd.f32 %v3822, %v4166
        %v4347 = vadd.f32 %v3823, %v4169
        %v4348 = vadd.f32 %v3824, %v4171
        %v4349 = vadd.f32 %v3825, %v4174
        %v4350 = vadd.f32 %v3826, %v4176
        %v4351 = vadd.f32 %v3827, %v4179
        %v4352 = vadd.f32 %v3828, %v4181
        %v4353 = vadd.f32 %v3829, %v4184
        %v4354 = vadd.f32 %v3830, %v4186
        %v4355 = vadd.f32 %v3831, %v4189
        %v4356 = vadd.f32 %v3832, %v4191
        %v4357 = vadd.f32 %v3833, %v4194
        %v4358 = vadd.f32 %v3834, %v4196
        %v4359 = vadd.f32 %v3835, %v4199
        %v4360 = vadd.f32 %v3836, %v4201
        %v4361 = vadd.f32 %v3837, %v4204
        %v4362 = vadd.f32 %v3838, %v4206
        %v4363 = vadd.f32 %v3839, %v4209
        %v4364 = vadd.f32 %v3840, %v4211
        %v4365 = vadd.f32 %v3841, %v4214
        %v4366 = vadd.f32 %v3842, %v4216
        %v4367 = vadd.f32 %v3843, %v4219
        %v4368 = vadd.f32 %v3844, %v4221
        %v4369 = vadd.f32 %v3845, %v4224
        %v4370 = vadd.f32 %v3846, %v4226
        %v4371 = vadd.f32 %v3847, %v4229
        %v4372 = vadd.f32 %v3848, %v4231
        %v4373 = vadd.f32 %v3849, %v4234
        %v4374 = vadd.f32 %v3850, %v4236
        %v4375 = vadd.f32 %v3851, %v4239
        %v4376 = vadd.f32 %v3852, %v4241
        %v4377 = vadd.f32 %v3853, %v4244
        %v4378 = vadd.f32 %v3854, %v4246
        %v4379 = vadd.f32 %v3855, %v4249
        %v4380 = vadd.f32 %v3856, %v4251
        %vm4381 = vcmp.ge.f32.partialorder %v4253, 0.0
        %vm4382 = vcmp.ge.f32.partialorder %v4254, 0.0
        %vm4383 = vcmp.ge.f32.partialorder %v4255, 0.0
        %vm4384 = vcmp.ge.f32.partialorder %v4256, 0.0
        %vm4385 = vcmp.ge.f32.partialorder %v4257, 0.0
        %vm4386 = vcmp.ge.f32.partialorder %v4258, 0.0
        %vm4387 = vcmp.ge.f32.partialorder %v4259, 0.0
        %vm4388 = vcmp.ge.f32.partialorder %v4260, 0.0
        %vm4389 = vcmp.ge.f32.partialorder %v4261, 0.0
        %vm4390 = vcmp.ge.f32.partialorder %v4262, 0.0
        %vm4391 = vcmp.ge.f32.partialorder %v4263, 0.0
        %vm4392 = vcmp.ge.f32.partialorder %v4264, 0.0
        %vm4393 = vcmp.ge.f32.partialorder %v4265, 0.0
        %vm4394 = vcmp.ge.f32.partialorder %v4266, 0.0
        %vm4395 = vcmp.ge.f32.partialorder %v4267, 0.0
        %vm4396 = vcmp.ge.f32.partialorder %v4268, 0.0
        %vm4397 = vcmp.ge.f32.partialorder %v4269, 0.0
        %vm4398 = vcmp.ge.f32.partialorder %v4270, 0.0
        %vm4399 = vcmp.ge.f32.partialorder %v4271, 0.0
        %vm4400 = vcmp.ge.f32.partialorder %v4272, 0.0
        %vm4401 = vcmp.ge.f32.partialorder %v4273, 0.0
        %vm4402 = vcmp.ge.f32.partialorder %v4274, 0.0
        %vm4403 = vcmp.ge.f32.partialorder %v4275, 0.0
        %vm4404 = vcmp.ge.f32.partialorder %v4276, 0.0
        %vm4405 = vcmp.ge.f32.partialorder %v4277, 0.0
        %vm4406 = vcmp.ge.f32.partialorder %v4278, 0.0
        %vm4407 = vcmp.ge.f32.partialorder %v4279, 0.0
        %vm4408 = vcmp.ge.f32.partialorder %v4280, 0.0
        %vm4409 = vcmp.ge.f32.partialorder %v4281, 0.0
        %vm4410 = vcmp.ge.f32.partialorder %v4282, 0.0
        %vm4411 = vcmp.ge.f32.partialorder %v4283, 0.0
        %vm4412 = vcmp.ge.f32.partialorder %v4284, 0.0
        %vm4413 = vcmp.ge.f32.partialorder %v4285, 0.0
        %vm4414 = vcmp.ge.f32.partialorder %v4286, 0.0
        %vm4415 = vcmp.ge.f32.partialorder %v4287, 0.0
        %vm4416 = vcmp.ge.f32.partialorder %v4288, 0.0
        %vm4417 = vcmp.ge.f32.partialorder %v4289, 0.0
        %vm4418 = vcmp.ge.f32.partialorder %v4290, 0.0
        %vm4419 = vcmp.ge.f32.partialorder %v4291, 0.0
        %vm4420 = vcmp.ge.f32.partialorder %v4292, 0.0
        %vm4421 = vcmp.ge.f32.partialorder %v4293, 0.0
        %vm4422 = vcmp.ge.f32.partialorder %v4294, 0.0
        %vm4423 = vcmp.ge.f32.partialorder %v4295, 0.0
        %vm4424 = vcmp.ge.f32.partialorder %v4296, 0.0
        %vm4425 = vcmp.ge.f32.partialorder %v4297, 0.0
        %vm4426 = vcmp.ge.f32.partialorder %v4298, 0.0
        %vm4427 = vcmp.ge.f32.partialorder %v4299, 0.0
        %vm4428 = vcmp.ge.f32.partialorder %v4300, 0.0
        %vm4429 = vcmp.ge.f32.partialorder %v4301, 0.0
        %vm4430 = vcmp.ge.f32.partialorder %v4302, 0.0
        %vm4431 = vcmp.ge.f32.partialorder %v4303, 0.0
        %vm4432 = vcmp.ge.f32.partialorder %v4304, 0.0
        %vm4433 = vcmp.ge.f32.partialorder %v4305, 0.0
        %vm4434 = vcmp.ge.f32.partialorder %v4306, 0.0
        %vm4435 = vcmp.ge.f32.partialorder %v4307, 0.0
        %vm4436 = vcmp.ge.f32.partialorder %v4308, 0.0
        %vm4437 = vcmp.ge.f32.partialorder %v4309, 0.0
        %vm4438 = vcmp.ge.f32.partialorder %v4310, 0.0
        %vm4439 = vcmp.ge.f32.partialorder %v4311, 0.0
        %vm4440 = vcmp.ge.f32.partialorder %v4312, 0.0
        %vm4441 = vcmp.ge.f32.partialorder %v4313, 0.0
        %vm4442 = vcmp.ge.f32.partialorder %v4314, 0.0
        %vm4443 = vcmp.ge.f32.partialorder %v4315, 0.0
        %vm4444 = vcmp.ge.f32.partialorder %v4316, 0.0
        %vm4445 = vcmp.ge.f32.partialorder %v4317, 0.0
        %vm4446 = vcmp.ge.f32.partialorder %v4318, 0.0
        %vm4447 = vcmp.ge.f32.partialorder %v4319, 0.0
        %vm4448 = vcmp.ge.f32.partialorder %v4320, 0.0
        %vm4449 = vcmp.ge.f32.partialorder %v4321, 0.0
        %vm4450 = vcmp.ge.f32.partialorder %v4322, 0.0
        %vm4451 = vcmp.ge.f32.partialorder %v4323, 0.0
        %vm4452 = vcmp.ge.f32.partialorder %v4324, 0.0
        %vm4453 = vcmp.ge.f32.partialorder %v4325, 0.0
        %vm4454 = vcmp.ge.f32.partialorder %v4326, 0.0
        %vm4455 = vcmp.ge.f32.partialorder %v4327, 0.0
        %vm4456 = vcmp.ge.f32.partialorder %v4328, 0.0
        %vm4457 = vcmp.ge.f32.partialorder %v4329, 0.0
        %vm4458 = vcmp.ge.f32.partialorder %v4330, 0.0
        %vm4459 = vcmp.ge.f32.partialorder %v4331, 0.0
        %vm4460 = vcmp.ge.f32.partialorder %v4332, 0.0
        %vm4461 = vcmp.ge.f32.partialorder %v4333, 0.0
        %vm4462 = vcmp.ge.f32.partialorder %v4334, 0.0
        %vm4463 = vcmp.ge.f32.partialorder %v4335, 0.0
        %vm4464 = vcmp.ge.f32.partialorder %v4336, 0.0
        %vm4465 = vcmp.ge.f32.partialorder %v4337, 0.0
        %vm4466 = vcmp.ge.f32.partialorder %v4338, 0.0
        %vm4467 = vcmp.ge.f32.partialorder %v4339, 0.0
        %vm4468 = vcmp.ge.f32.partialorder %v4340, 0.0
        %vm4469 = vcmp.ge.f32.partialorder %v4341, 0.0
        %vm4470 = vcmp.ge.f32.partialorder %v4342, 0.0
        %vm4471 = vcmp.ge.f32.partialorder %v4343, 0.0
        %vm4472 = vcmp.ge.f32.partialorder %v4344, 0.0
        %vm4473 = vcmp.ge.f32.partialorder %v4345, 0.0
        %vm4474 = vcmp.ge.f32.partialorder %v4346, 0.0
        %vm4475 = vcmp.ge.f32.partialorder %v4347, 0.0
        %vm4476 = vcmp.ge.f32.partialorder %v4348, 0.0
        %vm4477 = vcmp.ge.f32.partialorder %v4349, 0.0
        %vm4478 = vcmp.ge.f32.partialorder %v4350, 0.0
        %vm4479 = vcmp.ge.f32.partialorder %v4351, 0.0
        %vm4480 = vcmp.ge.f32.partialorder %v4352, 0.0
        %vm4481 = vcmp.ge.f32.partialorder %v4353, 0.0
        %vm4482 = vcmp.ge.f32.partialorder %v4354, 0.0
        %vm4483 = vcmp.ge.f32.partialorder %v4355, 0.0
        %vm4484 = vcmp.ge.f32.partialorder %v4356, 0.0
        %vm4485 = vcmp.ge.f32.partialorder %v4357, 0.0
        %vm4486 = vcmp.ge.f32.partialorder %v4358, 0.0
        %vm4487 = vcmp.ge.f32.partialorder %v4359, 0.0
        %vm4488 = vcmp.ge.f32.partialorder %v4360, 0.0
        %vm4489 = vcmp.ge.f32.partialorder %v4361, 0.0
        %vm4490 = vcmp.ge.f32.partialorder %v4362, 0.0
        %vm4491 = vcmp.ge.f32.partialorder %v4363, 0.0
        %vm4492 = vcmp.ge.f32.partialorder %v4364, 0.0
        %vm4493 = vcmp.ge.f32.partialorder %v4365, 0.0
        %vm4494 = vcmp.ge.f32.partialorder %v4366, 0.0
        %vm4495 = vcmp.ge.f32.partialorder %v4367, 0.0
        %vm4496 = vcmp.ge.f32.partialorder %v4368, 0.0
        %vm4497 = vcmp.ge.f32.partialorder %v4369, 0.0
        %vm4498 = vcmp.ge.f32.partialorder %v4370, 0.0
        %vm4499 = vcmp.ge.f32.partialorder %v4371, 0.0
        %vm4500 = vcmp.ge.f32.partialorder %v4372, 0.0
        %vm4501 = vcmp.ge.f32.partialorder %v4373, 0.0
        %vm4502 = vcmp.ge.f32.partialorder %v4374, 0.0
        %vm4503 = vcmp.ge.f32.partialorder %v4375, 0.0
        %vm4504 = vcmp.ge.f32.partialorder %v4376, 0.0
        %vm4505 = vcmp.ge.f32.partialorder %v4377, 0.0
        %vm4506 = vcmp.ge.f32.partialorder %v4378, 0.0
        %vm4507 = vcmp.ge.f32.partialorder %v4379, 0.0
        %vm4508 = vcmp.ge.f32.partialorder %v4380, 0.0
        %v4509 = vmul.f32 %v4253, 0.2
        %v4510 = vmul.f32 %v4254, 0.2
        %v4511 = vmul.f32 %v4255, 0.2
        %v4512 = vmul.f32 %v4256, 0.2
        %v4513 = vmul.f32 %v4257, 0.2
        %v4514 = vmul.f32 %v4258, 0.2
        %v4515 = vmul.f32 %v4259, 0.2
        %v4516 = vmul.f32 %v4260, 0.2
        %v4517 = vmul.f32 %v4261, 0.2
        %v4518 = vmul.f32 %v4262, 0.2
        %v4519 = vmul.f32 %v4263, 0.2
        %v4520 = vmul.f32 %v4264, 0.2
        %v4521 = vmul.f32 %v4265, 0.2
        %v4522 = vmul.f32 %v4266, 0.2
        %v4523 = vmul.f32 %v4267, 0.2
        %v4524 = vmul.f32 %v4268, 0.2
        %v4525 = vmul.f32 %v4269, 0.2
        %v4526 = vmul.f32 %v4270, 0.2
        %v4527 = vmul.f32 %v4271, 0.2
        %v4528 = vmul.f32 %v4272, 0.2
        %v4529 = vmul.f32 %v4273, 0.2
        %v4530 = vmul.f32 %v4274, 0.2
        %v4531 = vmul.f32 %v4275, 0.2
        %v4532 = vmul.f32 %v4276, 0.2
        %v4533 = vmul.f32 %v4277, 0.2
        %v4534 = vmul.f32 %v4278, 0.2
        %v4535 = vmul.f32 %v4279, 0.2
        %v4536 = vmul.f32 %v4280, 0.2
        %v4537 = vmul.f32 %v4281, 0.2
        %v4538 = vmul.f32 %v4282, 0.2
        %v4539 = vmul.f32 %v4283, 0.2
        %v4540 = vmul.f32 %v4284, 0.2
        %v4541 = vmul.f32 %v4285, 0.2
        %v4542 = vmul.f32 %v4286, 0.2
        %v4543 = vmul.f32 %v4287, 0.2
        %v4544 = vmul.f32 %v4288, 0.2
        %v4545 = vmul.f32 %v4289, 0.2
        %v4546 = vmul.f32 %v4290, 0.2
        %v4547 = vmul.f32 %v4291, 0.2
        %v4548 = vmul.f32 %v4292, 0.2
        %v4549 = vmul.f32 %v4293, 0.2
        %v4550 = vmul.f32 %v4294, 0.2
        %v4551 = vmul.f32 %v4295, 0.2
        %v4552 = vmul.f32 %v4296, 0.2
        %v4553 = vmul.f32 %v4297, 0.2
        %v4554 = vmul.f32 %v4298, 0.2
        %v4555 = vmul.f32 %v4299, 0.2
        %v4556 = vmul.f32 %v4300, 0.2
        %v4557 = vmul.f32 %v4301, 0.2
        %v4558 = vmul.f32 %v4302, 0.2
        %v4559 = vmul.f32 %v4303, 0.2
        %v4560 = vmul.f32 %v4304, 0.2
        %v4561 = vmul.f32 %v4305, 0.2
        %v4562 = vmul.f32 %v4306, 0.2
        %v4563 = vmul.f32 %v4307, 0.2
        %v4564 = vmul.f32 %v4308, 0.2
        %v4565 = vmul.f32 %v4309, 0.2
        %v4566 = vmul.f32 %v4310, 0.2
        %v4567 = vmul.f32 %v4311, 0.2
        %v4568 = vmul.f32 %v4312, 0.2
        %v4569 = vmul.f32 %v4313, 0.2
        %v4570 = vmul.f32 %v4314, 0.2
        %v4571 = vmul.f32 %v4315, 0.2
        %v4572 = vmul.f32 %v4316, 0.2
        %v4573 = vmul.f32 %v4317, 0.2
        %v4574 = vmul.f32 %v4318, 0.2
        %v4575 = vmul.f32 %v4319, 0.2
        %v4576 = vmul.f32 %v4320, 0.2
        %v4577 = vmul.f32 %v4321, 0.2
        %v4578 = vmul.f32 %v4322, 0.2
        %v4579 = vmul.f32 %v4323, 0.2
        %v4580 = vmul.f32 %v4324, 0.2
        %v4581 = vmul.f32 %v4325, 0.2
        %v4582 = vmul.f32 %v4326, 0.2
        %v4583 = vmul.f32 %v4327, 0.2
        %v4584 = vmul.f32 %v4328, 0.2
        %v4585 = vmul.f32 %v4329, 0.2
        %v4586 = vmul.f32 %v4330, 0.2
        %v4587 = vmul.f32 %v4331, 0.2
        %v4588 = vmul.f32 %v4332, 0.2
        %v4589 = vmul.f32 %v4333, 0.2
        %v4590 = vmul.f32 %v4334, 0.2
        %v4591 = vmul.f32 %v4335, 0.2
        %v4592 = vmul.f32 %v4336, 0.2
        %v4593 = vmul.f32 %v4337, 0.2
        %v4594 = vmul.f32 %v4338, 0.2
        %v4595 = vmul.f32 %v4339, 0.2
        %v4596 = vmul.f32 %v4340, 0.2
        %v4597 = vmul.f32 %v4341, 0.2
        %v4598 = vmul.f32 %v4342, 0.2
        %v4599 = vmul.f32 %v4343, 0.2
        %v4600 = vmul.f32 %v4344, 0.2
        %v4601 = vmul.f32 %v4345, 0.2
        %v4602 = vmul.f32 %v4346, 0.2
        %v4603 = vmul.f32 %v4347, 0.2
        %v4604 = vmul.f32 %v4348, 0.2
        %v4605 = vmul.f32 %v4349, 0.2
        %v4606 = vmul.f32 %v4350, 0.2
        %v4607 = vmul.f32 %v4351, 0.2
        %v4608 = vmul.f32 %v4352, 0.2
        %v4609 = vmul.f32 %v4353, 0.2
        %v4610 = vmul.f32 %v4354, 0.2
        %v4611 = vmul.f32 %v4355, 0.2
        %v4612 = vmul.f32 %v4356, 0.2
        %v4613 = vmul.f32 %v4357, 0.2
        %v4614 = vmul.f32 %v4358, 0.2
        %v4615 = vmul.f32 %v4359, 0.2
        %v4616 = vmul.f32 %v4360, 0.2
        %v4617 = vmul.f32 %v4361, 0.2
        %v4618 = vmul.f32 %v4362, 0.2
        %v4619 = vmul.f32 %v4363, 0.2
        %v4620 = vmul.f32 %v4364, 0.2
        %v4621 = vmul.f32 %v4365, 0.2
        %v4622 = vmul.f32 %v4366, 0.2
        %v4623 = vmul.f32 %v4367, 0.2
        %v4624 = vmul.f32 %v4368, 0.2
        %v4625 = vmul.f32 %v4369, 0.2
        %v4626 = vmul.f32 %v4370, 0.2
        %v4627 = vmul.f32 %v4371, 0.2
        %v4628 = vmul.f32 %v4372, 0.2
        %v4629 = vmul.f32 %v4373, 0.2
        %v4630 = vmul.f32 %v4374, 0.2
        %v4631 = vmul.f32 %v4375, 0.2
        %v4632 = vmul.f32 %v4376, 0.2
        %v4633 = vmul.f32 %v4377, 0.2
        %v4634 = vmul.f32 %v4378, 0.2
        %v4635 = vmul.f32 %v4379, 0.2
        %v4636 = vmul.f32 %v4380, 0.2
        %v4637 = vsel %vm4381, %v4253, %v4509
        %v4638 = vsel %vm4382, %v4254, %v4510
        %v4639 = vsel %vm4383, %v4255, %v4511
        %v4640 = vsel %vm4384, %v4256, %v4512
        %v4641 = vsel %vm4385, %v4257, %v4513
        %v4642 = vsel %vm4386, %v4258, %v4514
        %v4643 = vsel %vm4387, %v4259, %v4515
        %v4644 = vsel %vm4388, %v4260, %v4516
        %v4645 = vsel %vm4389, %v4261, %v4517
        %v4646 = vsel %vm4390, %v4262, %v4518
        %v4647 = vsel %vm4391, %v4263, %v4519
        %v4648 = vsel %vm4392, %v4264, %v4520
        %v4649 = vsel %vm4393, %v4265, %v4521
        %v4650 = vsel %vm4394, %v4266, %v4522
        %v4651 = vsel %vm4395, %v4267, %v4523
        %v4652 = vsel %vm4396, %v4268, %v4524
        %v4653 = vsel %vm4397, %v4269, %v4525
        %v4654 = vsel %vm4398, %v4270, %v4526
        %v4655 = vsel %vm4399, %v4271, %v4527
        %v4656 = vsel %vm4400, %v4272, %v4528
        %v4657 = vsel %vm4401, %v4273, %v4529
        %v4658 = vsel %vm4402, %v4274, %v4530
        %v4659 = vsel %vm4403, %v4275, %v4531
        %v4660 = vsel %vm4404, %v4276, %v4532
        %v4661 = vsel %vm4405, %v4277, %v4533
        %v4662 = vsel %vm4406, %v4278, %v4534
        %v4663 = vsel %vm4407, %v4279, %v4535
        %v4664 = vsel %vm4408, %v4280, %v4536
        %v4665 = vsel %vm4409, %v4281, %v4537
        %v4666 = vsel %vm4410, %v4282, %v4538
        %v4667 = vsel %vm4411, %v4283, %v4539
        %v4668 = vsel %vm4412, %v4284, %v4540
        %v4669 = vsel %vm4413, %v4285, %v4541
        %v4670 = vsel %vm4414, %v4286, %v4542
        %v4671 = vsel %vm4415, %v4287, %v4543
        %v4672 = vsel %vm4416, %v4288, %v4544
        %v4673 = vsel %vm4417, %v4289, %v4545
        %v4674 = vsel %vm4418, %v4290, %v4546
        %v4675 = vsel %vm4419, %v4291, %v4547
        %v4676 = vsel %vm4420, %v4292, %v4548
        %v4677 = vsel %vm4421, %v4293, %v4549
        %v4678 = vsel %vm4422, %v4294, %v4550
        %v4679 = vsel %vm4423, %v4295, %v4551
        %v4680 = vsel %vm4424, %v4296, %v4552
        %v4681 = vsel %vm4425, %v4297, %v4553
        %v4682 = vsel %vm4426, %v4298, %v4554
        %v4683 = vsel %vm4427, %v4299, %v4555
        %v4684 = vsel %vm4428, %v4300, %v4556
        %v4685 = vsel %vm4429, %v4301, %v4557
        %v4686 = vsel %vm4430, %v4302, %v4558
        %v4687 = vsel %vm4431, %v4303, %v4559
        %v4688 = vsel %vm4432, %v4304, %v4560
        %v4689 = vsel %vm4433, %v4305, %v4561
        %v4690 = vsel %vm4434, %v4306, %v4562
        %v4691 = vsel %vm4435, %v4307, %v4563
        %v4692 = vsel %vm4436, %v4308, %v4564
        %v4693 = vsel %vm4437, %v4309, %v4565
        %v4694 = vsel %vm4438, %v4310, %v4566
        %v4695 = vsel %vm4439, %v4311, %v4567
        %v4696 = vsel %vm4440, %v4312, %v4568
        %v4697 = vsel %vm4441, %v4313, %v4569
        %v4698 = vsel %vm4442, %v4314, %v4570
        %v4699 = vsel %vm4443, %v4315, %v4571
        %v4700 = vsel %vm4444, %v4316, %v4572
        %v4701 = vsel %vm4445, %v4317, %v4573
        %v4702 = vsel %vm4446, %v4318, %v4574
        %v4703 = vsel %vm4447, %v4319, %v4575
        %v4704 = vsel %vm4448, %v4320, %v4576
        %v4705 = vsel %vm4449, %v4321, %v4577
        %v4706 = vsel %vm4450, %v4322, %v4578
        %v4707 = vsel %vm4451, %v4323, %v4579
        %v4708 = vsel %vm4452, %v4324, %v4580
        %v4709 = vsel %vm4453, %v4325, %v4581
        %v4710 = vsel %vm4454, %v4326, %v4582
        %v4711 = vsel %vm4455, %v4327, %v4583
        %v4712 = vsel %vm4456, %v4328, %v4584
        %v4713 = vsel %vm4457, %v4329, %v4585
        %v4714 = vsel %vm4458, %v4330, %v4586
        %v4715 = vsel %vm4459, %v4331, %v4587
        %v4716 = vsel %vm4460, %v4332, %v4588
        %v4717 = vsel %vm4461, %v4333, %v4589
        %v4718 = vsel %vm4462, %v4334, %v4590
        %v4719 = vsel %vm4463, %v4335, %v4591
        %v4720 = vsel %vm4464, %v4336, %v4592
        %v4721 = vsel %vm4465, %v4337, %v4593
        %v4722 = vsel %vm4466, %v4338, %v4594
        %v4723 = vsel %vm4467, %v4339, %v4595
        %v4724 = vsel %vm4468, %v4340, %v4596
        %v4725 = vsel %vm4469, %v4341, %v4597
        %v4726 = vsel %vm4470, %v4342, %v4598
        %v4727 = vsel %vm4471, %v4343, %v4599
        %v4728 = vsel %vm4472, %v4344, %v4600
        %v4729 = vsel %vm4473, %v4345, %v4601
        %v4730 = vsel %vm4474, %v4346, %v4602
        %v4731 = vsel %vm4475, %v4347, %v4603
        %v4732 = vsel %vm4476, %v4348, %v4604
        %v4733 = vsel %vm4477, %v4349, %v4605
        %v4734 = vsel %vm4478, %v4350, %v4606
        %v4735 = vsel %vm4479, %v4351, %v4607
        %v4736 = vsel %vm4480, %v4352, %v4608
        %v4737 = vsel %vm4481, %v4353, %v4609
        %v4738 = vsel %vm4482, %v4354, %v4610
        %v4739 = vsel %vm4483, %v4355, %v4611
        %v4740 = vsel %vm4484, %v4356, %v4612
        %v4741 = vsel %vm4485, %v4357, %v4613
        %v4742 = vsel %vm4486, %v4358, %v4614
        %v4743 = vsel %vm4487, %v4359, %v4615
        %v4744 = vsel %vm4488, %v4360, %v4616
        %v4745 = vsel %vm4489, %v4361, %v4617
        %v4746 = vsel %vm4490, %v4362, %v4618
        %v4747 = vsel %vm4491, %v4363, %v4619
        %v4748 = vsel %vm4492, %v4364, %v4620
        %v4749 = vsel %vm4493, %v4365, %v4621
        %v4750 = vsel %vm4494, %v4366, %v4622
        %v4751 = vsel %vm4495, %v4367, %v4623
        %v4752 = vsel %vm4496, %v4368, %v4624
        %v4753 = vsel %vm4497, %v4369, %v4625
        %v4754 = vsel %vm4498, %v4370, %v4626
        %v4755 = vsel %vm4499, %v4371, %v4627
        %v4756 = vsel %vm4500, %v4372, %v4628
        %v4757 = vsel %vm4501, %v4373, %v4629
        %v4758 = vsel %vm4502, %v4374, %v4630
        %v4759 = vsel %vm4503, %v4375, %v4631
        %v4760 = vsel %vm4504, %v4376, %v4632
        %v4761 = vsel %vm4505, %v4377, %v4633
        %v4762 = vsel %vm4506, %v4378, %v4634
        %v4763 = vsel %vm4507, %v4379, %v4635
        %v4764 = vsel %vm4508, %v4380, %v4636
        %v4765 = vpack.c.bf16 %v4637, %v4637
        %v4766 = vpack.c.bf16 %v4638, %v4638
        %v4767 = vpack.c.bf16 %v4639, %v4639
        %v4768 = vpack.c.bf16 %v4640, %v4640
        %v4769 = vpack.c.bf16 %v4641, %v4641
        %v4770 = vpack.c.bf16 %v4642, %v4642
        %v4771 = vpack.c.bf16 %v4643, %v4643
        %v4772 = vpack.c.bf16 %v4644, %v4644
        %v4773 = vpack.c.bf16 %v4645, %v4645
        %v4774 = vpack.c.bf16 %v4646, %v4646
        %v4775 = vpack.c.bf16 %v4647, %v4647
        %v4776 = vpack.c.bf16 %v4648, %v4648
        %v4777 = vpack.c.bf16 %v4649, %v4649
        %v4778 = vpack.c.bf16 %v4650, %v4650
        %v4779 = vpack.c.bf16 %v4651, %v4651
        %v4780 = vpack.c.bf16 %v4652, %v4652
        %v4781 = vpack.c.bf16 %v4653, %v4653
        %v4782 = vpack.c.bf16 %v4654, %v4654
        %v4783 = vpack.c.bf16 %v4655, %v4655
        %v4784 = vpack.c.bf16 %v4656, %v4656
        %v4785 = vpack.c.bf16 %v4657, %v4657
        %v4786 = vpack.c.bf16 %v4658, %v4658
        %v4787 = vpack.c.bf16 %v4659, %v4659
        %v4788 = vpack.c.bf16 %v4660, %v4660
        %v4789 = vpack.c.bf16 %v4661, %v4661
        %v4790 = vpack.c.bf16 %v4662, %v4662
        %v4791 = vpack.c.bf16 %v4663, %v4663
        %v4792 = vpack.c.bf16 %v4664, %v4664
        %v4793 = vpack.c.bf16 %v4665, %v4665
        %v4794 = vpack.c.bf16 %v4666, %v4666
        %v4795 = vpack.c.bf16 %v4667, %v4667
        %v4796 = vpack.c.bf16 %v4668, %v4668
        %v4797 = vpack.c.bf16 %v4669, %v4669
        %v4798 = vpack.c.bf16 %v4670, %v4670
        %v4799 = vpack.c.bf16 %v4671, %v4671
        %v4800 = vpack.c.bf16 %v4672, %v4672
        %v4801 = vpack.c.bf16 %v4673, %v4673
        %v4802 = vpack.c.bf16 %v4674, %v4674
        %v4803 = vpack.c.bf16 %v4675, %v4675
        %v4804 = vpack.c.bf16 %v4676, %v4676
        %v4805 = vpack.c.bf16 %v4677, %v4677
        %v4806 = vpack.c.bf16 %v4678, %v4678
        %v4807 = vpack.c.bf16 %v4679, %v4679
        %v4808 = vpack.c.bf16 %v4680, %v4680
        %v4809 = vpack.c.bf16 %v4681, %v4681
        %v4810 = vpack.c.bf16 %v4682, %v4682
        %v4811 = vpack.c.bf16 %v4683, %v4683
        %v4812 = vpack.c.bf16 %v4684, %v4684
        %v4813 = vpack.c.bf16 %v4685, %v4685
        %v4814 = vpack.c.bf16 %v4686, %v4686
        %v4815 = vpack.c.bf16 %v4687, %v4687
        %v4816 = vpack.c.bf16 %v4688, %v4688
        %v4817 = vpack.c.bf16 %v4689, %v4689
        %v4818 = vpack.c.bf16 %v4690, %v4690
        %v4819 = vpack.c.bf16 %v4691, %v4691
        %v4820 = vpack.c.bf16 %v4692, %v4692
        %v4821 = vpack.c.bf16 %v4693, %v4693
        %v4822 = vpack.c.bf16 %v4694, %v4694
        %v4823 = vpack.c.bf16 %v4695, %v4695
        %v4824 = vpack.c.bf16 %v4696, %v4696
        %v4825 = vpack.c.bf16 %v4697, %v4697
        %v4826 = vpack.c.bf16 %v4698, %v4698
        %v4827 = vpack.c.bf16 %v4699, %v4699
        %v4828 = vpack.c.bf16 %v4700, %v4700
        %v4829 = vpack.c.bf16 %v4701, %v4701
        %v4830 = vpack.c.bf16 %v4702, %v4702
        %v4831 = vpack.c.bf16 %v4703, %v4703
        %v4832 = vpack.c.bf16 %v4704, %v4704
        %v4833 = vpack.c.bf16 %v4705, %v4705
        %v4834 = vpack.c.bf16 %v4706, %v4706
        %v4835 = vpack.c.bf16 %v4707, %v4707
        %v4836 = vpack.c.bf16 %v4708, %v4708
        %v4837 = vpack.c.bf16 %v4709, %v4709
        %v4838 = vpack.c.bf16 %v4710, %v4710
        %v4839 = vpack.c.bf16 %v4711, %v4711
        %v4840 = vpack.c.bf16 %v4712, %v4712
        %v4841 = vpack.c.bf16 %v4713, %v4713
        %v4842 = vpack.c.bf16 %v4714, %v4714
        %v4843 = vpack.c.bf16 %v4715, %v4715
        %v4844 = vpack.c.bf16 %v4716, %v4716
        %v4845 = vpack.c.bf16 %v4717, %v4717
        %v4846 = vpack.c.bf16 %v4718, %v4718
        %v4847 = vpack.c.bf16 %v4719, %v4719
        %v4848 = vpack.c.bf16 %v4720, %v4720
        %v4849 = vpack.c.bf16 %v4721, %v4721
        %v4850 = vpack.c.bf16 %v4722, %v4722
        %v4851 = vpack.c.bf16 %v4723, %v4723
        %v4852 = vpack.c.bf16 %v4724, %v4724
        %v4853 = vpack.c.bf16 %v4725, %v4725
        %v4854 = vpack.c.bf16 %v4726, %v4726
        %v4855 = vpack.c.bf16 %v4727, %v4727
        %v4856 = vpack.c.bf16 %v4728, %v4728
        %v4857 = vpack.c.bf16 %v4729, %v4729
        %v4858 = vpack.c.bf16 %v4730, %v4730
        %v4859 = vpack.c.bf16 %v4731, %v4731
        %v4860 = vpack.c.bf16 %v4732, %v4732
        %v4861 = vpack.c.bf16 %v4733, %v4733
        %v4862 = vpack.c.bf16 %v4734, %v4734
        %v4863 = vpack.c.bf16 %v4735, %v4735
        %v4864 = vpack.c.bf16 %v4736, %v4736
        %v4865 = vpack.c.bf16 %v4737, %v4737
        %v4866 = vpack.c.bf16 %v4738, %v4738
        %v4867 = vpack.c.bf16 %v4739, %v4739
        %v4868 = vpack.c.bf16 %v4740, %v4740
        %v4869 = vpack.c.bf16 %v4741, %v4741
        %v4870 = vpack.c.bf16 %v4742, %v4742
        %v4871 = vpack.c.bf16 %v4743, %v4743
        %v4872 = vpack.c.bf16 %v4744, %v4744
        %v4873 = vpack.c.bf16 %v4745, %v4745
        %v4874 = vpack.c.bf16 %v4746, %v4746
        %v4875 = vpack.c.bf16 %v4747, %v4747
        %v4876 = vpack.c.bf16 %v4748, %v4748
        %v4877 = vpack.c.bf16 %v4749, %v4749
        %v4878 = vpack.c.bf16 %v4750, %v4750
        %v4879 = vpack.c.bf16 %v4751, %v4751
        %v4880 = vpack.c.bf16 %v4752, %v4752
        %v4881 = vpack.c.bf16 %v4753, %v4753
        %v4882 = vpack.c.bf16 %v4754, %v4754
        %v4883 = vpack.c.bf16 %v4755, %v4755
        %v4884 = vpack.c.bf16 %v4756, %v4756
        %v4885 = vpack.c.bf16 %v4757, %v4757
        %v4886 = vpack.c.bf16 %v4758, %v4758
        %v4887 = vpack.c.bf16 %v4759, %v4759
        %v4888 = vpack.c.bf16 %v4760, %v4760
        %v4889 = vpack.c.bf16 %v4761, %v4761
        %v4890 = vpack.c.bf16 %v4762, %v4762
        %v4891 = vpack.c.bf16 %v4763, %v4763
        %v4892 = vpack.c.bf16 %v4764, %v4764
        %4893 = vst [vmem:[%s218] sm:$0xf] %v4765
        %4894 = vst [vmem:[%s218 + $0x4] sm:$0xf] %v4766
        %4895 = vst [vmem:[%s218 + $0x8] sm:$0xf] %v4767
        %4896 = vst [vmem:[%s218 + $0xc] sm:$0xf] %v4768
        %4897 = vst [vmem:[%s218 + $0x10] sm:$0xf] %v4769
        %4898 = vst [vmem:[%s218 + $0x14] sm:$0xf] %v4770
        %4899 = vst [vmem:[%s218 + $0x18] sm:$0xf] %v4771
        %4900 = vst [vmem:[%s218 + $0x1c] sm:$0xf] %v4772
        %4901 = vst [vmem:[%s218 + $0x20] sm:$0xf] %v4773
        %4902 = vst [vmem:[%s218 + $0x24] sm:$0xf] %v4774
        %4903 = vst [vmem:[%s218 + $0x28] sm:$0xf] %v4775
        %4904 = vst [vmem:[%s218 + $0x2c] sm:$0xf] %v4776
        %4905 = vst [vmem:[%s218 + $0x30] sm:$0xf] %v4777
        %4906 = vst [vmem:[%s218 + $0x34] sm:$0xf] %v4778
        %4907 = vst [vmem:[%s218 + $0x38] sm:$0xf] %v4779
        %4908 = vst [vmem:[%s218 + $0x3c] sm:$0xf] %v4780
        %4909 = vst [vmem:[%s218 + $0x40] sm:$0xf] %v4781
        %4910 = vst [vmem:[%s218 + $0x44] sm:$0xf] %v4782
        %4911 = vst [vmem:[%s218 + $0x48] sm:$0xf] %v4783
        %4912 = vst [vmem:[%s218 + $0x4c] sm:$0xf] %v4784
        %4913 = vst [vmem:[%s218 + $0x50] sm:$0xf] %v4785
        %4914 = vst [vmem:[%s218 + $0x54] sm:$0xf] %v4786
        %4915 = vst [vmem:[%s218 + $0x58] sm:$0xf] %v4787
        %4916 = vst [vmem:[%s218 + $0x5c] sm:$0xf] %v4788
        %4917 = vst [vmem:[%s218 + $0x60] sm:$0xf] %v4789
        %4918 = vst [vmem:[%s218 + $0x64] sm:$0xf] %v4790
        %4919 = vst [vmem:[%s218 + $0x68] sm:$0xf] %v4791
        %4920 = vst [vmem:[%s218 + $0x6c] sm:$0xf] %v4792
        %4921 = vst [vmem:[%s218 + $0x70] sm:$0xf] %v4793
        %4922 = vst [vmem:[%s218 + $0x74] sm:$0xf] %v4794
        %4923 = vst [vmem:[%s218 + $0x78] sm:$0xf] %v4795
        %4924 = vst [vmem:[%s218 + $0x7c] sm:$0xf] %v4796
        %4925 = vst [vmem:[%s218 + $0x80] sm:$0xf] %v4797
        %4926 = vst [vmem:[%s218 + $0x84] sm:$0xf] %v4798
        %4927 = vst [vmem:[%s218 + $0x88] sm:$0xf] %v4799
        %4928 = vst [vmem:[%s218 + $0x8c] sm:$0xf] %v4800
        %4929 = vst [vmem:[%s218 + $0x90] sm:$0xf] %v4801
        %4930 = vst [vmem:[%s218 + $0x94] sm:$0xf] %v4802
        %4931 = vst [vmem:[%s218 + $0x98] sm:$0xf] %v4803
        %4932 = vst [vmem:[%s218 + $0x9c] sm:$0xf] %v4804
        %4933 = vst [vmem:[%s218 + $0xa0] sm:$0xf] %v4805
        %4934 = vst [vmem:[%s218 + $0xa4] sm:$0xf] %v4806
        %4935 = vst [vmem:[%s218 + $0xa8] sm:$0xf] %v4807
        %4936 = vst [vmem:[%s218 + $0xac] sm:$0xf] %v4808
        %4937 = vst [vmem:[%s218 + $0xb0] sm:$0xf] %v4809
        %4938 = vst [vmem:[%s218 + $0xb4] sm:$0xf] %v4810
        %4939 = vst [vmem:[%s218 + $0xb8] sm:$0xf] %v4811
        %4940 = vst [vmem:[%s218 + $0xbc] sm:$0xf] %v4812
        %4941 = vst [vmem:[%s218 + $0xc0] sm:$0xf] %v4813
        %4942 = vst [vmem:[%s218 + $0xc4] sm:$0xf] %v4814
        %4943 = vst [vmem:[%s218 + $0xc8] sm:$0xf] %v4815
        %4944 = vst [vmem:[%s218 + $0xcc] sm:$0xf] %v4816
        %4945 = vst [vmem:[%s218 + $0xd0] sm:$0xf] %v4817
        %4946 = vst [vmem:[%s218 + $0xd4] sm:$0xf] %v4818
        %4947 = vst [vmem:[%s218 + $0xd8] sm:$0xf] %v4819
        %4948 = vst [vmem:[%s218 + $0xdc] sm:$0xf] %v4820
        %4949 = vst [vmem:[%s218 + $0xe0] sm:$0xf] %v4821
        %4950 = vst [vmem:[%s218 + $0xe4] sm:$0xf] %v4822
        %4951 = vst [vmem:[%s218 + $0xe8] sm:$0xf] %v4823
        %4952 = vst [vmem:[%s218 + $0xec] sm:$0xf] %v4824
        %4953 = vst [vmem:[%s218 + $0xf0] sm:$0xf] %v4825
        %4954 = vst [vmem:[%s218 + $0xf4] sm:$0xf] %v4826
        %4955 = vst [vmem:[%s218 + $0xf8] sm:$0xf] %v4827
        %4956 = vst [vmem:[%s218 + $0xfc] sm:$0xf] %v4828
        %4957 = vst [vmem:[%s218 + $0x100] sm:$0xf] %v4829
        %4958 = vst [vmem:[%s218 + $0x104] sm:$0xf] %v4830
        %4959 = vst [vmem:[%s218 + $0x108] sm:$0xf] %v4831
        %4960 = vst [vmem:[%s218 + $0x10c] sm:$0xf] %v4832
        %4961 = vst [vmem:[%s218 + $0x110] sm:$0xf] %v4833
        %4962 = vst [vmem:[%s218 + $0x114] sm:$0xf] %v4834
        %4963 = vst [vmem:[%s218 + $0x118] sm:$0xf] %v4835
        %4964 = vst [vmem:[%s218 + $0x11c] sm:$0xf] %v4836
        %4965 = vst [vmem:[%s218 + $0x120] sm:$0xf] %v4837
        %4966 = vst [vmem:[%s218 + $0x124] sm:$0xf] %v4838
        %4967 = vst [vmem:[%s218 + $0x128] sm:$0xf] %v4839
        %4968 = vst [vmem:[%s218 + $0x12c] sm:$0xf] %v4840
        %4969 = vst [vmem:[%s218 + $0x130] sm:$0xf] %v4841
        %4970 = vst [vmem:[%s218 + $0x134] sm:$0xf] %v4842
        %4971 = vst [vmem:[%s218 + $0x138] sm:$0xf] %v4843
        %4972 = vst [vmem:[%s218 + $0x13c] sm:$0xf] %v4844
        %4973 = vst [vmem:[%s218 + $0x140] sm:$0xf] %v4845
        %4974 = vst [vmem:[%s218 + $0x144] sm:$0xf] %v4846
        %4975 = vst [vmem:[%s218 + $0x148] sm:$0xf] %v4847
        %4976 = vst [vmem:[%s218 + $0x14c] sm:$0xf] %v4848
        %4977 = vst [vmem:[%s218 + $0x150] sm:$0xf] %v4849
        %4978 = vst [vmem:[%s218 + $0x154] sm:$0xf] %v4850
        %4979 = vst [vmem:[%s218 + $0x158] sm:$0xf] %v4851
        %4980 = vst [vmem:[%s218 + $0x15c] sm:$0xf] %v4852
        %4981 = vst [vmem:[%s218 + $0x160] sm:$0xf] %v4853
        %4982 = vst [vmem:[%s218 + $0x164] sm:$0xf] %v4854
        %4983 = vst [vmem:[%s218 + $0x168] sm:$0xf] %v4855
        %4984 = vst [vmem:[%s218 + $0x16c] sm:$0xf] %v4856
        %4985 = vst [vmem:[%s218 + $0x170] sm:$0xf] %v4857
        %4986 = vst [vmem:[%s218 + $0x174] sm:$0xf] %v4858
        %4987 = vst [vmem:[%s218 + $0x178] sm:$0xf] %v4859
        %4988 = vst [vmem:[%s218 + $0x17c] sm:$0xf] %v4860
        %4989 = vst [vmem:[%s218 + $0x180] sm:$0xf] %v4861
        %4990 = vst [vmem:[%s218 + $0x184] sm:$0xf] %v4862
        %4991 = vst [vmem:[%s218 + $0x188] sm:$0xf] %v4863
        %4992 = vst [vmem:[%s218 + $0x18c] sm:$0xf] %v4864
        %4993 = vst [vmem:[%s218 + $0x190] sm:$0xf] %v4865
        %4994 = vst [vmem:[%s218 + $0x194] sm:$0xf] %v4866
        %4995 = vst [vmem:[%s218 + $0x198] sm:$0xf] %v4867
        %4996 = vst [vmem:[%s218 + $0x19c] sm:$0xf] %v4868
        %4997 = vst [vmem:[%s218 + $0x1a0] sm:$0xf] %v4869
        %4998 = vst [vmem:[%s218 + $0x1a4] sm:$0xf] %v4870
        %4999 = vst [vmem:[%s218 + $0x1a8] sm:$0xf] %v4871
        %5000 = vst [vmem:[%s218 + $0x1ac] sm:$0xf] %v4872
        %5001 = vst [vmem:[%s218 + $0x1b0] sm:$0xf] %v4873
        %5002 = vst [vmem:[%s218 + $0x1b4] sm:$0xf] %v4874
        %5003 = vst [vmem:[%s218 + $0x1b8] sm:$0xf] %v4875
        %5004 = vst [vmem:[%s218 + $0x1bc] sm:$0xf] %v4876
        %5005 = vst [vmem:[%s218 + $0x1c0] sm:$0xf] %v4877
        %5006 = vst [vmem:[%s218 + $0x1c4] sm:$0xf] %v4878
        %5007 = vst [vmem:[%s218 + $0x1c8] sm:$0xf] %v4879
        %5008 = vst [vmem:[%s218 + $0x1cc] sm:$0xf] %v4880
        %5009 = vst [vmem:[%s218 + $0x1d0] sm:$0xf] %v4881
        %5010 = vst [vmem:[%s218 + $0x1d4] sm:$0xf] %v4882
        %5011 = vst [vmem:[%s218 + $0x1d8] sm:$0xf] %v4883
        %5012 = vst [vmem:[%s218 + $0x1dc] sm:$0xf] %v4884
        %5013 = vst [vmem:[%s218 + $0x1e0] sm:$0xf] %v4885
        %5014 = vst [vmem:[%s218 + $0x1e4] sm:$0xf] %v4886
        %5015 = vst [vmem:[%s218 + $0x1e8] sm:$0xf] %v4887
        %5016 = vst [vmem:[%s218 + $0x1ec] sm:$0xf] %v4888
        %5017 = vst [vmem:[%s218 + $0x1f0] sm:$0xf] %v4889
        %5018 = vst [vmem:[%s218 + $0x1f4] sm:$0xf] %v4890
        %5019 = vst [vmem:[%s218 + $0x1f8] sm:$0xf] %v4891
        %5020 = vst [vmem:[%s218 + $0x1fc] sm:$0xf] %v4892
        %v5021 = vadd.f32 %v4253, %v4254
        %v5022 = vadd.f32 %v5021, %v4255
        %v5023 = vadd.f32 %v5022, %v4256
        %v5024 = vadd.f32 %v5023, %v4257
        %v5025 = vadd.f32 %v5024, %v4258
        %v5026 = vadd.f32 %v5025, %v4259
        %v5027 = vadd.f32 %v5026, %v4260
        %v5028 = vadd.f32 %v5027, %v4261
        %v5029 = vadd.f32 %v5028, %v4262
        %v5030 = vadd.f32 %v5029, %v4263
        %v5031 = vadd.f32 %v5030, %v4264
        %v5032 = vadd.f32 %v5031, %v4265
        %v5033 = vadd.f32 %v5032, %v4266
        %v5034 = vadd.f32 %v5033, %v4267
        %v5035 = vadd.f32 %v5034, %v4268
        %v5036 = vadd.f32 %v5035, %v4269
        %v5037 = vadd.f32 %v5036, %v4270
        %v5038 = vadd.f32 %v5037, %v4271
        %v5039 = vadd.f32 %v5038, %v4272
        %v5040 = vadd.f32 %v5039, %v4273
        %v5041 = vadd.f32 %v5040, %v4274
        %v5042 = vadd.f32 %v5041, %v4275
        %v5043 = vadd.f32 %v5042, %v4276
        %v5044 = vadd.f32 %v5043, %v4277
        %v5045 = vadd.f32 %v5044, %v4278
        %v5046 = vadd.f32 %v5045, %v4279
        %v5047 = vadd.f32 %v5046, %v4280
        %v5048 = vadd.f32 %v5047, %v4281
        %v5049 = vadd.f32 %v5048, %v4282
        %v5050 = vadd.f32 %v5049, %v4283
        %v5051 = vadd.f32 %v5050, %v4284
        %v5052 = vadd.f32 %v5051, %v4285
        %v5053 = vadd.f32 %v5052, %v4286
        %v5054 = vadd.f32 %v5053, %v4287
        %v5055 = vadd.f32 %v5054, %v4288
        %v5056 = vadd.f32 %v5055, %v4289
        %v5057 = vadd.f32 %v5056, %v4290
        %v5058 = vadd.f32 %v5057, %v4291
        %v5059 = vadd.f32 %v5058, %v4292
        %v5060 = vadd.f32 %v5059, %v4293
        %v5061 = vadd.f32 %v5060, %v4294
        %v5062 = vadd.f32 %v5061, %v4295
        %v5063 = vadd.f32 %v5062, %v4296
        %v5064 = vadd.f32 %v5063, %v4297
        %v5065 = vadd.f32 %v5064, %v4298
        %v5066 = vadd.f32 %v5065, %v4299
        %v5067 = vadd.f32 %v5066, %v4300
        %v5068 = vadd.f32 %v5067, %v4301
        %v5069 = vadd.f32 %v5068, %v4302
        %v5070 = vadd.f32 %v5069, %v4303
        %v5071 = vadd.f32 %v5070, %v4304
        %v5072 = vadd.f32 %v5071, %v4305
        %v5073 = vadd.f32 %v5072, %v4306
        %v5074 = vadd.f32 %v5073, %v4307
        %v5075 = vadd.f32 %v5074, %v4308
        %v5076 = vadd.f32 %v5075, %v4309
        %v5077 = vadd.f32 %v5076, %v4310
        %v5078 = vadd.f32 %v5077, %v4311
        %v5079 = vadd.f32 %v5078, %v4312
        %v5080 = vadd.f32 %v5079, %v4313
        %v5081 = vadd.f32 %v5080, %v4314
        %v5082 = vadd.f32 %v5081, %v4315
        %v5083 = vadd.f32 %v5082, %v4316
        %v5084 = vadd.f32 %v5083, %v4317
        %v5085 = vadd.f32 %v5084, %v4318
        %v5086 = vadd.f32 %v5085, %v4319
        %v5087 = vadd.f32 %v5086, %v4320
        %v5088 = vadd.f32 %v5087, %v4321
        %v5089 = vadd.f32 %v5088, %v4322
        %v5090 = vadd.f32 %v5089, %v4323
        %v5091 = vadd.f32 %v5090, %v4324
        %v5092 = vadd.f32 %v5091, %v4325
        %v5093 = vadd.f32 %v5092, %v4326
        %v5094 = vadd.f32 %v5093, %v4327
        %v5095 = vadd.f32 %v5094, %v4328
        %v5096 = vadd.f32 %v5095, %v4329
        %v5097 = vadd.f32 %v5096, %v4330
        %v5098 = vadd.f32 %v5097, %v4331
        %v5099 = vadd.f32 %v5098, %v4332
        %v5100 = vadd.f32 %v5099, %v4333
        %v5101 = vadd.f32 %v5100, %v4334
        %v5102 = vadd.f32 %v5101, %v4335
        %v5103 = vadd.f32 %v5102, %v4336
        %v5104 = vadd.f32 %v5103, %v4337
        %v5105 = vadd.f32 %v5104, %v4338
        %v5106 = vadd.f32 %v5105, %v4339
        %v5107 = vadd.f32 %v5106, %v4340
        %v5108 = vadd.f32 %v5107, %v4341
        %v5109 = vadd.f32 %v5108, %v4342
        %v5110 = vadd.f32 %v5109, %v4343
        %v5111 = vadd.f32 %v5110, %v4344
        %v5112 = vadd.f32 %v5111, %v4345
        %v5113 = vadd.f32 %v5112, %v4346
        %v5114 = vadd.f32 %v5113, %v4347
        %v5115 = vadd.f32 %v5114, %v4348
        %v5116 = vadd.f32 %v5115, %v4349
        %v5117 = vadd.f32 %v5116, %v4350
        %v5118 = vadd.f32 %v5117, %v4351
        %v5119 = vadd.f32 %v5118, %v4352
        %v5120 = vadd.f32 %v5119, %v4353
        %v5121 = vadd.f32 %v5120, %v4354
        %v5122 = vadd.f32 %v5121, %v4355
        %v5123 = vadd.f32 %v5122, %v4356
        %v5124 = vadd.f32 %v5123, %v4357
        %v5125 = vadd.f32 %v5124, %v4358
        %v5126 = vadd.f32 %v5125, %v4359
        %v5127 = vadd.f32 %v5126, %v4360
        %v5128 = vadd.f32 %v5127, %v4361
        %v5129 = vadd.f32 %v5128, %v4362
        %v5130 = vadd.f32 %v5129, %v4363
        %v5131 = vadd.f32 %v5130, %v4364
        %v5132 = vadd.f32 %v5131, %v4365
        %v5133 = vadd.f32 %v5132, %v4366
        %v5134 = vadd.f32 %v5133, %v4367
        %v5135 = vadd.f32 %v5134, %v4368
        %v5136 = vadd.f32 %v5135, %v4369
        %v5137 = vadd.f32 %v5136, %v4370
        %v5138 = vadd.f32 %v5137, %v4371
        %v5139 = vadd.f32 %v5138, %v4372
        %v5140 = vadd.f32 %v5139, %v4373
        %v5141 = vadd.f32 %v5140, %v4374
        %v5142 = vadd.f32 %v5141, %v4375
        %v5143 = vadd.f32 %v5142, %v4376
        %v5144 = vadd.f32 %v5143, %v4377
        %v5145 = vadd.f32 %v5144, %v4378
        %v5146 = vadd.f32 %v5145, %v4379
        %v5147 = vadd.f32 %v5146, %v4380
        %v5148 = vrot.slane %v5147, 4
        %v5149 = vadd.f32 %v5147, %v5148
        %v5150 = vrot.slane %v5149, 2
        %v5151 = vadd.f32 %v5149, %v5150
        %v5152 = vrot.slane %v5151, 1
        %v5153 = vadd.f32 %v5151, %v5152
        %v5154 = vmul.f32 %v4253, %v4253
        %v5155 = vmul.f32 %v4254, %v4254
        %v5156 = vmul.f32 %v4255, %v4255
        %v5157 = vmul.f32 %v4256, %v4256
        %v5158 = vmul.f32 %v4257, %v4257
        %v5159 = vmul.f32 %v4258, %v4258
        %v5160 = vmul.f32 %v4259, %v4259
        %v5161 = vmul.f32 %v4260, %v4260
        %v5162 = vmul.f32 %v4261, %v4261
        %v5163 = vmul.f32 %v4262, %v4262
        %v5164 = vmul.f32 %v4263, %v4263
        %v5165 = vmul.f32 %v4264, %v4264
        %v5166 = vmul.f32 %v4265, %v4265
        %v5167 = vmul.f32 %v4266, %v4266
        %v5168 = vmul.f32 %v4267, %v4267
        %v5169 = vmul.f32 %v4268, %v4268
        %v5170 = vmul.f32 %v4269, %v4269
        %v5171 = vmul.f32 %v4270, %v4270
        %v5172 = vmul.f32 %v4271, %v4271
        %v5173 = vmul.f32 %v4272, %v4272
        %v5174 = vmul.f32 %v4273, %v4273
        %v5175 = vmul.f32 %v4274, %v4274
        %v5176 = vmul.f32 %v4275, %v4275
        %v5177 = vmul.f32 %v4276, %v4276
        %v5178 = vmul.f32 %v4277, %v4277
        %v5179 = vmul.f32 %v4278, %v4278
        %v5180 = vmul.f32 %v4279, %v4279
        %v5181 = vmul.f32 %v4280, %v4280
        %v5182 = vmul.f32 %v4281, %v4281
        %v5183 = vmul.f32 %v4282, %v4282
        %v5184 = vmul.f32 %v4283, %v4283
        %v5185 = vmul.f32 %v4284, %v4284
        %v5186 = vmul.f32 %v4285, %v4285
        %v5187 = vmul.f32 %v4286, %v4286
        %v5188 = vmul.f32 %v4287, %v4287
        %v5189 = vmul.f32 %v4288, %v4288
        %v5190 = vmul.f32 %v4289, %v4289
        %v5191 = vmul.f32 %v4290, %v4290
        %v5192 = vmul.f32 %v4291, %v4291
        %v5193 = vmul.f32 %v4292, %v4292
        %v5194 = vmul.f32 %v4293, %v4293
        %v5195 = vmul.f32 %v4294, %v4294
        %v5196 = vmul.f32 %v4295, %v4295
        %v5197 = vmul.f32 %v4296, %v4296
        %v5198 = vmul.f32 %v4297, %v4297
        %v5199 = vmul.f32 %v4298, %v4298
        %v5200 = vmul.f32 %v4299, %v4299
        %v5201 = vmul.f32 %v4300, %v4300
        %v5202 = vmul.f32 %v4301, %v4301
        %v5203 = vmul.f32 %v4302, %v4302
        %v5204 = vmul.f32 %v4303, %v4303
        %v5205 = vmul.f32 %v4304, %v4304
        %v5206 = vmul.f32 %v4305, %v4305
        %v5207 = vmul.f32 %v4306, %v4306
        %v5208 = vmul.f32 %v4307, %v4307
        %v5209 = vmul.f32 %v4308, %v4308
        %v5210 = vmul.f32 %v4309, %v4309
        %v5211 = vmul.f32 %v4310, %v4310
        %v5212 = vmul.f32 %v4311, %v4311
        %v5213 = vmul.f32 %v4312, %v4312
        %v5214 = vmul.f32 %v4313, %v4313
        %v5215 = vmul.f32 %v4314, %v4314
        %v5216 = vmul.f32 %v4315, %v4315
        %v5217 = vmul.f32 %v4316, %v4316
        %v5218 = vmul.f32 %v4317, %v4317
        %v5219 = vmul.f32 %v4318, %v4318
        %v5220 = vmul.f32 %v4319, %v4319
        %v5221 = vmul.f32 %v4320, %v4320
        %v5222 = vmul.f32 %v4321, %v4321
        %v5223 = vmul.f32 %v4322, %v4322
        %v5224 = vmul.f32 %v4323, %v4323
        %v5225 = vmul.f32 %v4324, %v4324
        %v5226 = vmul.f32 %v4325, %v4325
        %v5227 = vmul.f32 %v4326, %v4326
        %v5228 = vmul.f32 %v4327, %v4327
        %v5229 = vmul.f32 %v4328, %v4328
        %v5230 = vmul.f32 %v4329, %v4329
        %v5231 = vmul.f32 %v4330, %v4330
        %v5232 = vmul.f32 %v4331, %v4331
        %v5233 = vmul.f32 %v4332, %v4332
        %v5234 = vmul.f32 %v4333, %v4333
        %v5235 = vmul.f32 %v4334, %v4334
        %v5236 = vmul.f32 %v4335, %v4335
        %v5237 = vmul.f32 %v4336, %v4336
        %v5238 = vmul.f32 %v4337, %v4337
        %v5239 = vmul.f32 %v4338, %v4338
        %v5240 = vmul.f32 %v4339, %v4339
        %v5241 = vmul.f32 %v4340, %v4340
        %v5242 = vmul.f32 %v4341, %v4341
        %v5243 = vmul.f32 %v4342, %v4342
        %v5244 = vmul.f32 %v4343, %v4343
        %v5245 = vmul.f32 %v4344, %v4344
        %v5246 = vmul.f32 %v4345, %v4345
        %v5247 = vmul.f32 %v4346, %v4346
        %v5248 = vmul.f32 %v4347, %v4347
        %v5249 = vmul.f32 %v4348, %v4348
        %v5250 = vmul.f32 %v4349, %v4349
        %v5251 = vmul.f32 %v4350, %v4350
        %v5252 = vmul.f32 %v4351, %v4351
        %v5253 = vmul.f32 %v4352, %v4352
        %v5254 = vmul.f32 %v4353, %v4353
        %v5255 = vmul.f32 %v4354, %v4354
        %v5256 = vmul.f32 %v4355, %v4355
        %v5257 = vmul.f32 %v4356, %v4356
        %v5258 = vmul.f32 %v4357, %v4357
        %v5259 = vmul.f32 %v4358, %v4358
        %v5260 = vmul.f32 %v4359, %v4359
        %v5261 = vmul.f32 %v4360, %v4360
        %v5262 = vmul.f32 %v4361, %v4361
        %v5263 = vmul.f32 %v4362, %v4362
        %v5264 = vmul.f32 %v4363, %v4363
        %v5265 = vmul.f32 %v4364, %v4364
        %v5266 = vmul.f32 %v4365, %v4365
        %v5267 = vmul.f32 %v4366, %v4366
        %v5268 = vmul.f32 %v4367, %v4367
        %v5269 = vmul.f32 %v4368, %v4368
        %v5270 = vmul.f32 %v4369, %v4369
        %v5271 = vmul.f32 %v4370, %v4370
        %v5272 = vmul.f32 %v4371, %v4371
        %v5273 = vmul.f32 %v4372, %v4372
        %v5274 = vmul.f32 %v4373, %v4373
        %v5275 = vmul.f32 %v4374, %v4374
        %v5276 = vmul.f32 %v4375, %v4375
        %v5277 = vmul.f32 %v4376, %v4376
        %v5278 = vmul.f32 %v4377, %v4377
        %v5279 = vmul.f32 %v4378, %v4378
        %v5280 = vmul.f32 %v4379, %v4379
        %v5281 = vmul.f32 %v4380, %v4380
        %v5282 = vadd.f32 %v5154, %v5155
        %v5283 = vadd.f32 %v5282, %v5156
        %v5284 = vadd.f32 %v5283, %v5157
        %v5285 = vadd.f32 %v5284, %v5158
        %v5286 = vadd.f32 %v5285, %v5159
        %v5287 = vadd.f32 %v5286, %v5160
        %v5288 = vadd.f32 %v5287, %v5161
        %v5289 = vadd.f32 %v5288, %v5162
        %v5290 = vadd.f32 %v5289, %v5163
        %v5291 = vadd.f32 %v5290, %v5164
        %v5292 = vadd.f32 %v5291, %v5165
        %v5293 = vadd.f32 %v5292, %v5166
        %v5294 = vadd.f32 %v5293, %v5167
        %v5295 = vadd.f32 %v5294, %v5168
        %v5296 = vadd.f32 %v5295, %v5169
        %v5297 = vadd.f32 %v5296, %v5170
        %v5298 = vadd.f32 %v5297, %v5171
        %v5299 = vadd.f32 %v5298, %v5172
        %v5300 = vadd.f32 %v5299, %v5173
        %v5301 = vadd.f32 %v5300, %v5174
        %v5302 = vadd.f32 %v5301, %v5175
        %v5303 = vadd.f32 %v5302, %v5176
        %v5304 = vadd.f32 %v5303, %v5177
        %v5305 = vadd.f32 %v5304, %v5178
        %v5306 = vadd.f32 %v5305, %v5179
        %v5307 = vadd.f32 %v5306, %v5180
        %v5308 = vadd.f32 %v5307, %v5181
        %v5309 = vadd.f32 %v5308, %v5182
        %v5310 = vadd.f32 %v5309, %v5183
        %v5311 = vadd.f32 %v5310, %v5184
        %v5312 = vadd.f32 %v5311, %v5185
        %v5313 = vadd.f32 %v5312, %v5186
        %v5314 = vadd.f32 %v5313, %v5187
        %v5315 = vadd.f32 %v5314, %v5188
        %v5316 = vadd.f32 %v5315, %v5189
        %v5317 = vadd.f32 %v5316, %v5190
        %v5318 = vadd.f32 %v5317, %v5191
        %v5319 = vadd.f32 %v5318, %v5192
        %v5320 = vadd.f32 %v5319, %v5193
        %v5321 = vadd.f32 %v5320, %v5194
        %v5322 = vadd.f32 %v5321, %v5195
        %v5323 = vadd.f32 %v5322, %v5196
        %v5324 = vadd.f32 %v5323, %v5197
        %v5325 = vadd.f32 %v5324, %v5198
        %v5326 = vadd.f32 %v5325, %v5199
        %v5327 = vadd.f32 %v5326, %v5200
        %v5328 = vadd.f32 %v5327, %v5201
        %v5329 = vadd.f32 %v5328, %v5202
        %v5330 = vadd.f32 %v5329, %v5203
        %v5331 = vadd.f32 %v5330, %v5204
        %v5332 = vadd.f32 %v5331, %v5205
        %v5333 = vadd.f32 %v5332, %v5206
        %v5334 = vadd.f32 %v5333, %v5207
        %v5335 = vadd.f32 %v5334, %v5208
        %v5336 = vadd.f32 %v5335, %v5209
        %v5337 = vadd.f32 %v5336, %v5210
        %v5338 = vadd.f32 %v5337, %v5211
        %v5339 = vadd.f32 %v5338, %v5212
        %v5340 = vadd.f32 %v5339, %v5213
        %v5341 = vadd.f32 %v5340, %v5214
        %v5342 = vadd.f32 %v5341, %v5215
        %v5343 = vadd.f32 %v5342, %v5216
        %v5344 = vadd.f32 %v5343, %v5217
        %v5345 = vadd.f32 %v5344, %v5218
        %v5346 = vadd.f32 %v5345, %v5219
        %v5347 = vadd.f32 %v5346, %v5220
        %v5348 = vadd.f32 %v5347, %v5221
        %v5349 = vadd.f32 %v5348, %v5222
        %v5350 = vadd.f32 %v5349, %v5223
        %v5351 = vadd.f32 %v5350, %v5224
        %v5352 = vadd.f32 %v5351, %v5225
        %v5353 = vadd.f32 %v5352, %v5226
        %v5354 = vadd.f32 %v5353, %v5227
        %v5355 = vadd.f32 %v5354, %v5228
        %v5356 = vadd.f32 %v5355, %v5229
        %v5357 = vadd.f32 %v5356, %v5230
        %v5358 = vadd.f32 %v5357, %v5231
        %v5359 = vadd.f32 %v5358, %v5232
        %v5360 = vadd.f32 %v5359, %v5233
        %v5361 = vadd.f32 %v5360, %v5234
        %v5362 = vadd.f32 %v5361, %v5235
        %v5363 = vadd.f32 %v5362, %v5236
        %v5364 = vadd.f32 %v5363, %v5237
        %v5365 = vadd.f32 %v5364, %v5238
        %v5366 = vadd.f32 %v5365, %v5239
        %v5367 = vadd.f32 %v5366, %v5240
        %v5368 = vadd.f32 %v5367, %v5241
        %v5369 = vadd.f32 %v5368, %v5242
        %v5370 = vadd.f32 %v5369, %v5243
        %v5371 = vadd.f32 %v5370, %v5244
        %v5372 = vadd.f32 %v5371, %v5245
        %v5373 = vadd.f32 %v5372, %v5246
        %v5374 = vadd.f32 %v5373, %v5247
        %v5375 = vadd.f32 %v5374, %v5248
        %v5376 = vadd.f32 %v5375, %v5249
        %v5377 = vadd.f32 %v5376, %v5250
        %v5378 = vadd.f32 %v5377, %v5251
        %v5379 = vadd.f32 %v5378, %v5252
        %v5380 = vadd.f32 %v5379, %v5253
        %v5381 = vadd.f32 %v5380, %v5254
        %v5382 = vadd.f32 %v5381, %v5255
        %v5383 = vadd.f32 %v5382, %v5256
        %v5384 = vadd.f32 %v5383, %v5257
        %v5385 = vadd.f32 %v5384, %v5258
        %v5386 = vadd.f32 %v5385, %v5259
        %v5387 = vadd.f32 %v5386, %v5260
        %v5388 = vadd.f32 %v5387, %v5261
        %v5389 = vadd.f32 %v5388, %v5262
        %v5390 = vadd.f32 %v5389, %v5263
        %v5391 = vadd.f32 %v5390, %v5264
        %v5392 = vadd.f32 %v5391, %v5265
        %v5393 = vadd.f32 %v5392, %v5266
        %v5394 = vadd.f32 %v5393, %v5267
        %v5395 = vadd.f32 %v5394, %v5268
        %v5396 = vadd.f32 %v5395, %v5269
        %v5397 = vadd.f32 %v5396, %v5270
        %v5398 = vadd.f32 %v5397, %v5271
        %v5399 = vadd.f32 %v5398, %v5272
        %v5400 = vadd.f32 %v5399, %v5273
        %v5401 = vadd.f32 %v5400, %v5274
        %v5402 = vadd.f32 %v5401, %v5275
        %v5403 = vadd.f32 %v5402, %v5276
        %v5404 = vadd.f32 %v5403, %v5277
        %v5405 = vadd.f32 %v5404, %v5278
        %v5406 = vadd.f32 %v5405, %v5279
        %v5407 = vadd.f32 %v5406, %v5280
        %v5408 = vadd.f32 %v5407, %v5281
        %v5409 = vrot.slane %v5408, 4
        %v5410 = vadd.f32 %v5408, %v5409
        %v5411 = vrot.slane %v5410, 2
        %v5412 = vadd.f32 %v5410, %v5411
        %v5413 = vrot.slane %v5412, 1
        %v5414 = vadd.f32 %v5412, %v5413
        %v5415 = vlaneseq
        %v5416 = vshrl.u32 %v5415, 7
        %vm5417 = vcmp.eq.s32.totalorder %v5416, 0
        %v5418 = vsel %vm5417, 1, 0
        %vm5419 = vcmp.eq.s32.totalorder %v5418, 1
        %v5420 = vsel %vm5419, %v5153, 0.0
        %5421 = vst [vmem:[%s201] sm:$0xff] %v5420
        %v5422 = vsel %vm5419, %v5414, 0.0
        %5423 = vst [vmem:[%s208] sm:$0xff] %v5422
        %p5424 = scmp.lt.s32.totalorder %s22, 1
        %s5425 = scalar_select %p5424, %s22, 1
        %s5426 = smul.addr %s5425, 128
        %s5427 = smul.addr %s5426, 4
        %s5428 = scalar_lea.vmem %s2, %s5427
        %s5429 = sand.u32 %s103, 1
        %s5430 = scalar_lea.sflag [#allocation3], %s5429
        %s5431 = sand.u32 %s103, 1
        %s5432 = smul.addr %s5431, 8
        %s5433 = scalar_lea.vmem [#allocation2], %s5432
        %s5434 = sand.u32 %s129, 1
        %s5435 = scalar_lea.sflag [#allocation5], %s5434
        %s5436 = sand.u32 %s129, 1
        %s5437 = smul.addr %s5436, 8
        %s5438 = scalar_lea.vmem [#allocation4], %s5437
        // Predicated region
        $region29: #{critic_forward.4} parent=27 // pred_check
          %p5439 = pneg %p87
        $region30: #{critic_forward.4} parent=27 // pred_check_branch
          %5441 = sbr.rel (%p5439) target = $region32
        $region31: #{critic_forward.4} parent=27 // pred_region
          _
        $region32: #{critic_forward.4} parent=27 // pred_fallthru
          _
        // Predicated region
        $region33: #{critic_forward.4} parent=27 // pred_check
          %p5442 = pneg %p113
        $region34: #{critic_forward.4} parent=27 // pred_check_branch
          %5444 = sbr.rel (%p5442) target = $region36
        $region35: #{critic_forward.4} parent=27 // pred_region
          %5446 = vsyncadd %s5430, 0
          %s5447 = smul.addr %s22, 8
          %s5448 = scalar_lea.hbm %s3, %s5447
          %s5450 = sshll.u32 %s5433, 4
          %s5451 = int_to_ptr.vmem [resolvable:$true] %s5450
          %s5452 = sshll.u32 %s5448, 4
          %s5453 = int_to_ptr.hbm [resolvable:$true] %s5452
          %5455 = dma.vmem_to_hbm [thread:$0]  %s5451, 128, %s5453, %s5430
        $region36: #{critic_forward.4} parent=27 // pred_fallthru
          _
        // Predicated region
        $region37: #{critic_forward.4} parent=27 // pred_check
          %p5456 = pneg %p139
        $region38: #{critic_forward.4} parent=27 // pred_check_branch
          %5458 = sbr.rel (%p5456) target = $region40
        $region39: #{critic_forward.4} parent=27 // pred_region
          %5460 = vsyncadd %s5435, 0
          %s5461 = smul.addr %s22, 8
          %s5462 = scalar_lea.hbm %s4, %s5461
          %s5464 = sshll.u32 %s5438, 4
          %s5465 = int_to_ptr.vmem [resolvable:$true] %s5464
          %s5466 = sshll.u32 %s5462, 4
          %s5467 = int_to_ptr.hbm [resolvable:$true] %s5466
          %5469 = dma.vmem_to_hbm [thread:$0]  %s5465, 128, %s5467, %s5435
        $region40: #{critic_forward.4} parent=27 // pred_fallthru
          _
      $region28: #{critic_forward.4} parent=5 // pred_fallthru
        _
      %p5470 = scmp.le.s32.totalorder 2, %s17
      // Predicated region
      $region41: #{critic_forward.4} parent=5 // pred_check
        %p5471 = pneg %p5470
      $region42: #{critic_forward.4} parent=5 // pred_check_branch
        %5473 = sbr.rel (%p5471) target = $region44
      $region43: #{critic_forward.4} parent=5 // pred_region
        %s5474 = ssub.s32 %s17, 2
        // Predicated region
        $region45: #{critic_forward.4} parent=43 // pred_check
          %p5475 = pneg %p93
        $region46: #{critic_forward.4} parent=43 // pred_check_branch
          %5477 = sbr.rel (%p5475) target = $region48
        $region47: #{critic_forward.4} parent=43 // pred_region
          %p5478 = scmp.lt.s32.totalorder %s23, 1
          %s5479 = scalar_select %p5478, %s23, 1
          %s5480 = smul.addr %s5479, 128
          %s5481 = smul.addr %s5480, 4
          %s5482 = scalar_lea.vmem %s2, %s5481
        $region48: #{critic_forward.4} parent=43 // pred_fallthru
          _
        // Predicated region
        $region49: #{critic_forward.4} parent=43 // pred_check
          %p5483 = pneg %p119
        $region50: #{critic_forward.4} parent=43 // pred_check_branch
          %5485 = sbr.rel (%p5483) target = $region52
        $region51: #{critic_forward.4} parent=43 // pred_region
          %s5486 = sand.u32 %s104, 1
          %s5487 = scalar_lea.sflag [#allocation3], %s5486
          %s5488 = sand.u32 %s104, 1
          %s5489 = smul.addr %s5488, 8
          %s5490 = scalar_lea.vmem [#allocation2], %s5489
          %5492 = dma.done %s5487, 128
        $region52: #{critic_forward.4} parent=43 // pred_fallthru
          _
        // Predicated region
        $region53: #{critic_forward.4} parent=43 // pred_check
          %p5493 = pneg %p145
        $region54: #{critic_forward.4} parent=43 // pred_check_branch
          %5495 = sbr.rel (%p5493) target = $region56
        $region55: #{critic_forward.4} parent=43 // pred_region
          %s5496 = sand.u32 %s130, 1
          %s5497 = scalar_lea.sflag [#allocation5], %s5496
          %s5498 = sand.u32 %s130, 1
          %s5499 = smul.addr %s5498, 8
          %s5500 = scalar_lea.vmem [#allocation4], %s5499
          %5502 = dma.done %s5497, 128
        $region56: #{critic_forward.4} parent=43 // pred_fallthru
          _
      $region44: #{critic_forward.4} parent=5 // pred_fallthru
        _
    $region6: #{critic_forward.4} parent=1 // loop_footer
      %s21 = sadd.s32 1, %s17
    $region7: #{critic_forward.4} parent=1 // loop_footer_branch
      %16 = sbr.rel target = $region3
    $region8: #{critic_forward.4} parent=1 // loop_exit
      _
    %5503 = vsyncpa [#allocation3], 1
    %s5504 = scalar_lea.sflag [#allocation3], 1
    %5505 = vsyncpa %s5504, 1
    %5506 = vsyncpa [#allocation5], 1
    %s5507 = scalar_lea.sflag [#allocation5], 1
    %5508 = vsyncpa %s5507, 1

// kernel: critic_forward.5
$region0: #{critic_forward.5}
  #allocation0 [shape = 'u32[]', space=smem, size = 0x4, offset = 0x4, fixed_abs, tag = 'smem constant byte address 0x4 - core index']
  #allocation1 [shape = 'u32[72,128]{1,0:T(1,128)}', space=vmem, size = 0x9000, scoped, tag = 'internal scratch']
  %s0 = inlined_call_operand.vmem [shape: bf16[2,17,17,32], index: 0, kind: input, shape index: {}]
  %s1 = inlined_call_operand.vmem [shape: bf16[4,32,128], index: 1, kind: input, shape index: {}]
  %s2 = inlined_call_operand.vmem [shape: bf16[2,256,128], index: 2, kind: output, shape index: {0}]
  %s3 = inlined_call_operand.vmem [shape: f32[16,128], index: 3, kind: output, shape index: {1}]
  %s4 = inlined_call_operand.vmem [shape: f32[16,128], index: 4, kind: output, shape index: {2}]
  %5 = xla_tuple %s2, %s3, %s4
  %s6 = sld [smem:[#allocation0]]
  $region57: #{critic_forward.5} parent=0
    _
  %s8 = ssub.s32 1, %s6
  %s9 = scalar_select 0, %s8, %s6
  loop: start=0, step=1, limit=4
  $region2: #{critic_forward.5} parent=0 // loop_pre_header
    _
  $region3: #{critic_forward.5} parent=0 // loop_header
    %s11 = sphi 0, %s15
    %p12 = scmp.ge.s32.totalorder %s11, 4
    %s21 = sphi 0, %s23
    %s24 = sphi 0, %s21
    %s25 = sphi 0, %s24
    %s41 = sphi 0, %s25
    %s45 = sphi 0, %s45
    %s47 = sphi 0, %s45
    %s48 = sphi 0, %s47
    %s62 = sphi 0, %s48
    %s68 = sphi 0, %s70
    %s71 = sphi 0, %s68
    %s72 = sphi 0, %s71
    %s88 = sphi 0, %s72
    %s94 = sphi 0, %s96
    %s97 = sphi 0, %s94
    %s98 = sphi 0, %s97
    %s114 = sphi 0, %s98
    %s120 = sphi 0, %s122
    %s123 = sphi 0, %s120
    %s124 = sphi 0, %s123
    %s140 = sphi 0, %s124
  $region4: #{critic_forward.5} parent=0 // loop_header_branch
    %14 = sbr.rel (%p12) target = $region8
  $region5: #{critic_forward.5} parent=0 // loop_body
    %s16 = ssub.s32 %s11, 1
    %s17 = ssub.s32 %s11, 2
    %s18 = sadd.s32 %s11, 1
    %s19 = ssub.s32 %s11, %s18
    %p20 = scmp.eq.s32.totalorder %s19, 0
    %s22 = sadd.s32 %s21, 1
    %s23 = scalar_select %p20, %s21, %s22
    %p26 = pneg %p20
    %p27 = scmp.eq.s32.totalorder %s11, 1
    %p28 = por %p26, %p27
    %p29 = scmp.ne.s32.totalorder %s21, %s24
    %p30 = scmp.eq.s32.totalorder %s11, 0
    %p31 = por %p29, %p30
    %p32 = scmp.ne.s32.totalorder %s21, %s24
    %p33 = scmp.eq.s32.totalorder %s16, 1
    %p34 = por %p32, %p33
    %p35 = scmp.ne.s32.totalorder %s24, %s25
    %p36 = scmp.eq.s32.totalorder %s16, 0
    %p37 = por %p35, %p36
    %p38 = scmp.ne.s32.totalorder %s24, %s25
    %p39 = scmp.eq.s32.totalorder %s17, 1
    %p40 = por %p38, %p39
    %p42 = scmp.ne.s32.totalorder %s25, %s41
    %p43 = scmp.eq.s32.totalorder %s17, 0
    %p44 = por %p42, %p43
    %s46 = sadd.s32 %s45, 1
    %p49 = scmp.eq.s32.totalorder %s11, 1
    %p50 = scmp.ne.s32.totalorder %s45, %s47
    %p51 = scmp.eq.s32.totalorder %s11, 0
    %p52 = por %p50, %p51
    %p53 = scmp.ne.s32.totalorder %s45, %s47
    %p54 = scmp.eq.s32.totalorder %s16, 1
    %p55 = por %p53, %p54
    %p56 = scmp.ne.s32.totalorder %s47, %s48
    %p57 = scmp.eq.s32.totalorder %s16, 0
    %p58 = por %p56, %p57
    %p59 = scmp.ne.s32.totalorder %s47, %s48
    %p60 = scmp.eq.s32.totalorder %s17, 1
    %p61 = por %p59, %p60
    %p63 = scmp.ne.s32.totalorder %s48, %s62
    %p64 = scmp.eq.s32.totalorder %s17, 0
    %p65 = por %p63, %p64
    %s66 = ssub.s32 %s11, %s18
    %p67 = scmp.eq.s32.totalorder %s66, 0
    %s69 = sadd.s32 %s68, 1
    %s70 = scalar_select %p67, %s68, %s69
    %p73 = pneg %p67
    %p74 = scmp.eq.s32.totalorder %s11, 1
    %p75 = por %p73, %p74
    %p76 = scmp.ne.s32.totalorder %s68, %s71
    %p77 = scmp.eq.s32.totalorder %s11, 0
    %p78 = por %p76, %p77
    %p79 = scmp.ne.s32.totalorder %s68, %s71
    %p80 = scmp.eq.s32.totalorder %s16, 1
    %p81 = por %p79, %p80
    %p82 = scmp.ne.s32.totalorder %s71, %s72
    %p83 = scmp.eq.s32.totalorder %s16, 0
    %p84 = por %p82, %p83
    %p85 = scmp.ne.s32.totalorder %s71, %s72
    %p86 = scmp.eq.s32.totalorder %s17, 1
    %p87 = por %p85, %p86
    %p89 = scmp.ne.s32.totalorder %s72, %s88
    %p90 = scmp.eq.s32.totalorder %s17, 0
    %p91 = por %p89, %p90
    %s92 = ssub.s32 %s11, %s18
    %p93 = scmp.eq.s32.totalorder %s92, 0
    %s95 = sadd.s32 %s94, 1
    %s96 = scalar_select %p93, %s94, %s95
    %p99 = pneg %p93
    %p100 = scmp.eq.s32.totalorder %s11, 1
    %p101 = por %p99, %p100
    %p102 = scmp.ne.s32.totalorder %s94, %s97
    %p103 = scmp.eq.s32.totalorder %s11, 0
    %p104 = por %p102, %p103
    %p105 = scmp.ne.s32.totalorder %s94, %s97
    %p106 = scmp.eq.s32.totalorder %s16, 1
    %p107 = por %p105, %p106
    %p108 = scmp.ne.s32.totalorder %s97, %s98
    %p109 = scmp.eq.s32.totalorder %s16, 0
    %p110 = por %p108, %p109
    %p111 = scmp.ne.s32.totalorder %s97, %s98
    %p112 = scmp.eq.s32.totalorder %s17, 1
    %p113 = por %p111, %p112
    %p115 = scmp.ne.s32.totalorder %s98, %s114
    %p116 = scmp.eq.s32.totalorder %s17, 0
    %p117 = por %p115, %p116
    %s118 = ssub.s32 %s11, %s18
    %p119 = scmp.eq.s32.totalorder %s118, 0
    %s121 = sadd.s32 %s120, 1
    %s122 = scalar_select %p119, %s120, %s121
    %p125 = pneg %p119
    %p126 = scmp.eq.s32.totalorder %s11, 1
    %p127 = por %p125, %p126
    %p128 = scmp.ne.s32.totalorder %s120, %s123
    %p129 = scmp.eq.s32.totalorder %s11, 0
    %p130 = por %p128, %p129
    %p131 = scmp.ne.s32.totalorder %s120, %s123
    %p132 = scmp.eq.s32.totalorder %s16, 1
    %p133 = por %p131, %p132
    %p134 = scmp.ne.s32.totalorder %s123, %s124
    %p135 = scmp.eq.s32.totalorder %s16, 0
    %p136 = por %p134, %p135
    %p137 = scmp.ne.s32.totalorder %s123, %s124
    %p138 = scmp.eq.s32.totalorder %s17, 1
    %p139 = por %p137, %p138
    %p141 = scmp.ne.s32.totalorder %s124, %s140
    %p142 = scmp.eq.s32.totalorder %s17, 0
    %p143 = por %p141, %p142
    %p144 = scmp.le.s32.totalorder 1, %s11
    %p145 = scmp.lt.s32.totalorder %s11, 3
    %p146 = pnand %p144, %p145
    %p147 = pneg %p146
    // Predicated region
    $region9: #{critic_forward.5} parent=5 // pred_check
      _
    $region10: #{critic_forward.5} parent=5 // pred_check_branch
      %149 = sbr.rel (%p146) target = $region12
    $region11: #{critic_forward.5} parent=5 // pred_region
      %s150 = ssub.s32 %s11, 1
      // Predicated region
      $region13: #{critic_forward.5} parent=11 // pred_check
        %p151 = pneg %p58
      $region14: #{critic_forward.5} parent=11 // pred_check_branch
        %153 = sbr.rel (%p151) target = $region16
      $region15: #{critic_forward.5} parent=11 // pred_region
        _
      $region16: #{critic_forward.5} parent=11 // pred_fallthru
        _
    $region12: #{critic_forward.5} parent=5 // pred_fallthru
      _
    %p154 = scmp.lt.s32.totalorder %s11, 2
    // Predicated region
    $region17: #{critic_forward.5} parent=5 // pred_check
      %p155 = pneg %p154
    $region18: #{critic_forward.5} parent=5 // pred_check_branch
      %157 = sbr.rel (%p155) target = $region20
    $region19: #{critic_forward.5} parent=5 // pred_region
      // Predicated region
      $region21: #{critic_forward.5} parent=19 // pred_check
        %p158 = pneg %p31
      $region22: #{critic_forward.5} parent=19 // pred_check_branch
        %160 = sbr.rel (%p158) target = $region24
      $region23: #{critic_forward.5} parent=19 // pred_region
        %p161 = scmp.lt.s32.totalorder %s11, 1
        %s162 = scalar_select %p161, %s11, 1
        %s163 = smul.addr %s162, 51
        %s164 = smul.addr %s163, 4
        %s165 = scalar_lea.vmem %s0, %s164
      $region24: #{critic_forward.5} parent=19 // pred_fallthru
        _
    $region20: #{critic_forward.5} parent=5 // pred_fallthru
      _
    %p166 = scmp.le.s32.totalorder 1, %s11
    %p167 = scmp.lt.s32.totalorder %s11, 3
    %p168 = pnand %p166, %p167
    %p169 = pneg %p168
    // Predicated region
    $region25: #{critic_forward.5} parent=5 // pred_check
      _
    $region26: #{critic_forward.5} parent=5 // pred_check_branch
      %171 = sbr.rel (%p168) target = $region28
    $region27: #{critic_forward.5} parent=5 // pred_region
      %s172 = ssub.s32 %s11, 1
      %p173 = scmp.lt.s32.totalorder %s16, 1
      %s174 = scalar_select %p173, %s16, 1
      %s175 = smul.addr %s174, 51
      %s176 = smul.addr %s175, 4
      %s177 = scalar_lea.vmem %s0, %s176
      %p178 = pneg %p37
      %p179 = pneg %p34
      %p180 = pneg %p58
      %p181 = pneg %p55
      %p182 = pneg %p84
      %p183 = pneg %p81
      %p184 = scmp.lt.s32.totalorder %s16, 1
      %s185 = scalar_select %p184, %s16, 1
      %s186 = smul.addr %s185, 32
      %s187 = smul.addr %s186, 4
      %s188 = scalar_lea.vmem %s2, %s187
      %p189 = pneg %p110
      %p190 = pneg %p107
      %p191 = scmp.lt.s32.totalorder %s16, 1
      %s192 = scalar_select %p191, %s16, 1
      %s193 = smul.addr %s192, 8
      %s194 = scalar_lea.vmem %s3, %s193
      %p195 = pneg %p136
      %p196 = pneg %p133
      %p197 = scmp.lt.s32.totalorder %s16, 1
      %s198 = scalar_select %p197, %s16, 1
      %s199 = smul.addr %s198, 8
      %s200 = scalar_lea.vmem %s4, %s199
      %p201 = scmp.lt.s32.totalorder %s16, 1
      %s202 = scalar_select %p201, %s16, 1
      %s203 = smul.addr %s202, 51
      %s204 = smul.addr %s203, 4
      %s205 = scalar_lea.vmem %s0, %s204
      %p206 = scmp.lt.s32.totalorder %s16, 1
      %s207 = scalar_select %p206, %s16, 1
      %s208 = smul.addr %s207, 32
      %s209 = smul.addr %s208, 4
      %s210 = scalar_lea.vmem %s2, %s209
      %p211 = scmp.lt.s32.totalorder %s16, 1
      %s212 = scalar_select %p211, %s16, 1
      %s213 = smul.addr %s212, 8
      %s214 = scalar_lea.vmem %s3, %s213
      %p215 = scmp.lt.s32.totalorder %s16, 1
      %s216 = scalar_select %p215, %s16, 1
      %s217 = smul.addr %s216, 8
      %s218 = scalar_lea.vmem %s4, %s217
      %v220 = vld [vmem:[%s205] sm:$0xf]
      %v221 = vld [vmem:[%s205 + $0x4] sm:$0xf]
      %v222 = vld [vmem:[%s205 + $0x8] sm:$0x1]
      %v223 = vld [vmem:[%s205 + $0xc] sm:$0xf]
      %v224 = vld [vmem:[%s205 + $0x10] sm:$0xf]
      %v225 = vld [vmem:[%s205 + $0x14] sm:$0x1]
      %v226 = vld [vmem:[%s205 + $0x18] sm:$0xf]
      %v227 = vld [vmem:[%s205 + $0x1c] sm:$0xf]
      %v228 = vld [vmem:[%s205 + $0x20] sm:$0x1]
      %v229 = vld [vmem:[%s205 + $0x24] sm:$0xf]
      %v230 = vld [vmem:[%s205 + $0x28] sm:$0xf]
      %v231 = vld [vmem:[%s205 + $0x2c] sm:$0x1]
      %v232 = vld [vmem:[%s205 + $0x30] sm:$0xf]
      %v233 = vld [vmem:[%s205 + $0x34] sm:$0xf]
      %v234 = vld [vmem:[%s205 + $0x38] sm:$0x1]
      %v235 = vld [vmem:[%s205 + $0x3c] sm:$0xf]
      %v236 = vld [vmem:[%s205 + $0x40] sm:$0xf]
      %v237 = vld [vmem:[%s205 + $0x44] sm:$0x1]
      %v238 = vld [vmem:[%s205 + $0x48] sm:$0xf]
      %v239 = vld [vmem:[%s205 + $0x4c] sm:$0xf]
      %v240 = vld [vmem:[%s205 + $0x50] sm:$0x1]
      %v241 = vld [vmem:[%s205 + $0x54] sm:$0xf]
      %v242 = vld [vmem:[%s205 + $0x58] sm:$0xf]
      %v243 = vld [vmem:[%s205 + $0x5c] sm:$0x1]
      %v244 = vld [vmem:[%s205 + $0x60] sm:$0xf]
      %v245 = vld [vmem:[%s205 + $0x64] sm:$0xf]
      %v246 = vld [vmem:[%s205 + $0x68] sm:$0x1]
      %v247 = vld [vmem:[%s205 + $0x6c] sm:$0xf]
      %v248 = vld [vmem:[%s205 + $0x70] sm:$0xf]
      %v249 = vld [vmem:[%s205 + $0x74] sm:$0x1]
      %v250 = vld [vmem:[%s205 + $0x78] sm:$0xf]
      %v251 = vld [vmem:[%s205 + $0x7c] sm:$0xf]
      %v252 = vld [vmem:[%s205 + $0x80] sm:$0x1]
      %v253 = vld [vmem:[%s205 + $0x84] sm:$0xf]
      %v254 = vld [vmem:[%s205 + $0x88] sm:$0xf]
      %v255 = vld [vmem:[%s205 + $0x8c] sm:$0x1]
      %v256 = vld [vmem:[%s205 + $0x90] sm:$0xf]
      %v257 = vld [vmem:[%s205 + $0x94] sm:$0xf]
      %v258 = vld [vmem:[%s205 + $0x98] sm:$0x1]
      %v259 = vld [vmem:[%s205 + $0x9c] sm:$0xf]
      %v260 = vld [vmem:[%s205 + $0xa0] sm:$0xf]
      %v261 = vld [vmem:[%s205 + $0xa4] sm:$0x1]
      %v262 = vld [vmem:[%s205 + $0xa8] sm:$0xf]
      %v263 = vld [vmem:[%s205 + $0xac] sm:$0xf]
      %v264 = vld [vmem:[%s205 + $0xb0] sm:$0x1]
      %v265 = vld [vmem:[%s205 + $0xb4] sm:$0xf]
      %v266 = vld [vmem:[%s205 + $0xb8] sm:$0xf]
      %v267 = vld [vmem:[%s205 + $0xbc] sm:$0x1]
      %v268 = vld [vmem:[%s205 + $0xc0] sm:$0xf]
      %v269 = vld [vmem:[%s205 + $0xc4] sm:$0xf]
      %v270 = vld [vmem:[%s205 + $0xc8] sm:$0x1]
      %v271 = vld [vmem:[%s1] sm:$0xf]
      %v272 = vld [vmem:[%s1 + $0x4] sm:$0xf]
      %v273 = vld [vmem:[%s1 + $0x8] sm:$0xf]
      %v274 = vld [vmem:[%s1 + $0xc] sm:$0xf]
      %vm275 = vsmask.f32 3328
      %vm276 = vsmask.f32 7440
      %vm277 = vmor %vm275, %vm276
      %v279 = vshrl.u32 %v220, 16
      %v281 = vrot.slane %v279, 4
      %v282 = vshll.u32 %v220, 16
      %v284 = vrot.slane %v282, 5
      %v285 = vor.u32 %v281, %v284
      %v286 = vrot.slane %v285, 4
      %v288 = vshll.u32 %v221, 16
      %v290 = vrot.slane %v288, 5
      %v291 = vsel %vm277, %v286, %v290
      %v292 = vshrl.u32 %v221, 16
      %v294 = vrot.slane %v292, 4
      %v295 = vor.u32 %v294, %v290
      %v296 = vrot.slane %v295, 4
      %v298 = vshll.u32 %v222, 16
      %v300 = vrot.slane %v298, 5
      %v301 = vsel %vm277, %v296, %v300
      %v303 = vshrl.u32 %v223, 16
      %v305 = vrot.slane %v303, 4
      %v306 = vshll.u32 %v223, 16
      %v308 = vrot.slane %v306, 5
      %v309 = vor.u32 %v305, %v308
      %v310 = vrot.slane %v309, 4
      %v312 = vshll.u32 %v224, 16
      %v314 = vrot.slane %v312, 5
      %v315 = vsel %vm277, %v310, %v314
      %v316 = vshrl.u32 %v224, 16
      %v318 = vrot.slane %v316, 4
      %v319 = vor.u32 %v318, %v314
      %v320 = vrot.slane %v319, 4
      %v322 = vshll.u32 %v225, 16
      %v324 = vrot.slane %v322, 5
      %v325 = vsel %vm277, %v320, %v324
      %v327 = vshrl.u32 %v226, 16
      %v329 = vrot.slane %v327, 4
      %v330 = vshll.u32 %v226, 16
      %v332 = vrot.slane %v330, 5
      %v333 = vor.u32 %v329, %v332
      %v334 = vrot.slane %v333, 4
      %v336 = vshll.u32 %v227, 16
      %v338 = vrot.slane %v336, 5
      %v339 = vsel %vm277, %v334, %v338
      %v340 = vshrl.u32 %v227, 16
      %v342 = vrot.slane %v340, 4
      %v343 = vor.u32 %v342, %v338
      %v344 = vrot.slane %v343, 4
      %v346 = vshll.u32 %v228, 16
      %v348 = vrot.slane %v346, 5
      %v349 = vsel %vm277, %v344, %v348
      %v351 = vshrl.u32 %v229, 16
      %v353 = vrot.slane %v351, 4
      %v354 = vshll.u32 %v229, 16
      %v356 = vrot.slane %v354, 5
      %v357 = vor.u32 %v353, %v356
      %v358 = vrot.slane %v357, 4
      %v360 = vshll.u32 %v230, 16
      %v362 = vrot.slane %v360, 5
      %v363 = vsel %vm277, %v358, %v362
      %v364 = vshrl.u32 %v230, 16
      %v366 = vrot.slane %v364, 4
      %v367 = vor.u32 %v366, %v362
      %v368 = vrot.slane %v367, 4
      %v370 = vshll.u32 %v231, 16
      %v372 = vrot.slane %v370, 5
      %v373 = vsel %vm277, %v368, %v372
      %v375 = vshrl.u32 %v232, 16
      %v377 = vrot.slane %v375, 4
      %v378 = vshll.u32 %v232, 16
      %v380 = vrot.slane %v378, 5
      %v381 = vor.u32 %v377, %v380
      %v382 = vrot.slane %v381, 4
      %v384 = vshll.u32 %v233, 16
      %v386 = vrot.slane %v384, 5
      %v387 = vsel %vm277, %v382, %v386
      %v388 = vshrl.u32 %v233, 16
      %v390 = vrot.slane %v388, 4
      %v391 = vor.u32 %v390, %v386
      %v392 = vrot.slane %v391, 4
      %v394 = vshll.u32 %v234, 16
      %v396 = vrot.slane %v394, 5
      %v397 = vsel %vm277, %v392, %v396
      %v399 = vshrl.u32 %v235, 16
      %v401 = vrot.slane %v399, 4
      %v402 = vshll.u32 %v235, 16
      %v404 = vrot.slane %v402, 5
      %v405 = vor.u32 %v401, %v404
      %v406 = vrot.slane %v405, 4
      %v408 = vshll.u32 %v236, 16
      %v410 = vrot.slane %v408, 5
      %v411 = vsel %vm277, %v406, %v410
      %v412 = vshrl.u32 %v236, 16
      %v414 = vrot.slane %v412, 4
      %v415 = vor.u32 %v414, %v410
      %v416 = vrot.slane %v415, 4
      %v418 = vshll.u32 %v237, 16
      %v420 = vrot.slane %v418, 5
      %v421 = vsel %vm277, %v416, %v420
      %v423 = vshrl.u32 %v238, 16
      %v425 = vrot.slane %v423, 4
      %v426 = vshll.u32 %v238, 16
      %v428 = vrot.slane %v426, 5
      %v429 = vor.u32 %v425, %v428
      %v430 = vrot.slane %v429, 4
      %v432 = vshll.u32 %v239, 16
      %v434 = vrot.slane %v432, 5
      %v435 = vsel %vm277, %v430, %v434
      %v436 = vshrl.u32 %v239, 16
      %v438 = vrot.slane %v436, 4
      %v439 = vor.u32 %v438, %v434
      %v440 = vrot.slane %v439, 4
      %v442 = vshll.u32 %v240, 16
      %v444 = vrot.slane %v442, 5
      %v445 = vsel %vm277, %v440, %v444
      %v447 = vshrl.u32 %v241, 16
      %v449 = vrot.slane %v447, 4
      %v450 = vshll.u32 %v241, 16
      %v452 = vrot.slane %v450, 5
      %v453 = vor.u32 %v449, %v452
      %v454 = vrot.slane %v453, 4
      %v456 = vshll.u32 %v242, 16
      %v458 = vrot.slane %v456, 5
      %v459 = vsel %vm277, %v454, %v458
      %v460 = vshrl.u32 %v242, 16
      %v462 = vrot.slane %v460, 4
      %v463 = vor.u32 %v462, %v458
      %v464 = vrot.slane %v463, 4
      %v466 = vshll.u32 %v243, 16
      %v468 = vrot.slane %v466, 5
      %v469 = vsel %vm277, %v464, %v468
      %v471 = vshrl.u32 %v244, 16
      %v473 = vrot.slane %v471, 4
      %v474 = vshll.u32 %v244, 16
      %v476 = vrot.slane %v474, 5
      %v477 = vor.u32 %v473, %v476
      %v478 = vrot.slane %v477, 4
      %v480 = vshll.u32 %v245, 16
      %v482 = vrot.slane %v480, 5
      %v483 = vsel %vm277, %v478, %v482
      %v484 = vshrl.u32 %v245, 16
      %v486 = vrot.slane %v484, 4
      %v487 = vor.u32 %v486, %v482
      %v488 = vrot.slane %v487, 4
      %v490 = vshll.u32 %v246, 16
      %v492 = vrot.slane %v490, 5
      %v493 = vsel %vm277, %v488, %v492
      %v495 = vshrl.u32 %v247, 16
      %v497 = vrot.slane %v495, 4
      %v498 = vshll.u32 %v247, 16
      %v500 = vrot.slane %v498, 5
      %v501 = vor.u32 %v497, %v500
      %v502 = vrot.slane %v501, 4
      %v504 = vshll.u32 %v248, 16
      %v506 = vrot.slane %v504, 5
      %v507 = vsel %vm277, %v502, %v506
      %v508 = vshrl.u32 %v248, 16
      %v510 = vrot.slane %v508, 4
      %v511 = vor.u32 %v510, %v506
      %v512 = vrot.slane %v511, 4
      %v514 = vshll.u32 %v249, 16
      %v516 = vrot.slane %v514, 5
      %v517 = vsel %vm277, %v512, %v516
      %v519 = vshrl.u32 %v250, 16
      %v521 = vrot.slane %v519, 4
      %v522 = vshll.u32 %v250, 16
      %v524 = vrot.slane %v522, 5
      %v525 = vor.u32 %v521, %v524
      %v526 = vrot.slane %v525, 4
      %v528 = vshll.u32 %v251, 16
      %v530 = vrot.slane %v528, 5
      %v531 = vsel %vm277, %v526, %v530
      %v532 = vshrl.u32 %v251, 16
      %v534 = vrot.slane %v532, 4
      %v535 = vor.u32 %v534, %v530
      %v536 = vrot.slane %v535, 4
      %v538 = vshll.u32 %v252, 16
      %v540 = vrot.slane %v538, 5
      %v541 = vsel %vm277, %v536, %v540
      %v543 = vshrl.u32 %v253, 16
      %v545 = vrot.slane %v543, 4
      %v546 = vshll.u32 %v253, 16
      %v548 = vrot.slane %v546, 5
      %v549 = vor.u32 %v545, %v548
      %v550 = vrot.slane %v549, 4
      %v552 = vshll.u32 %v254, 16
      %v554 = vrot.slane %v552, 5
      %v555 = vsel %vm277, %v550, %v554
      %v556 = vshrl.u32 %v254, 16
      %v558 = vrot.slane %v556, 4
      %v559 = vor.u32 %v558, %v554
      %v560 = vrot.slane %v559, 4
      %v562 = vshll.u32 %v255, 16
      %v564 = vrot.slane %v562, 5
      %v565 = vsel %vm277, %v560, %v564
      %v567 = vshrl.u32 %v256, 16
      %v569 = vrot.slane %v567, 4
      %v570 = vshll.u32 %v256, 16
      %v572 = vrot.slane %v570, 5
      %v573 = vor.u32 %v569, %v572
      %v574 = vrot.slane %v573, 4
      %v576 = vshll.u32 %v257, 16
      %v578 = vrot.slane %v576, 5
      %v579 = vsel %vm277, %v574, %v578
      %v580 = vshrl.u32 %v257, 16
      %v582 = vrot.slane %v580, 4
      %v583 = vor.u32 %v582, %v578
      %v584 = vrot.slane %v583, 4
      %v586 = vshll.u32 %v258, 16
      %v588 = vrot.slane %v586, 5
      %v589 = vsel %vm277, %v584, %v588
      %v591 = vshrl.u32 %v259, 16
      %v593 = vrot.slane %v591, 4
      %v594 = vshll.u32 %v259, 16
      %v596 = vrot.slane %v594, 5
      %v597 = vor.u32 %v593, %v596
      %v598 = vrot.slane %v597, 4
      %v600 = vshll.u32 %v260, 16
      %v602 = vrot.slane %v600, 5
      %v603 = vsel %vm277, %v598, %v602
      %v604 = vshrl.u32 %v260, 16
      %v606 = vrot.slane %v604, 4
      %v607 = vor.u32 %v606, %v602
      %v608 = vrot.slane %v607, 4
      %v610 = vshll.u32 %v261, 16
      %v612 = vrot.slane %v610, 5
      %v613 = vsel %vm277, %v608, %v612
      %v615 = vshrl.u32 %v262, 16
      %v617 = vrot.slane %v615, 4
      %v618 = vshll.u32 %v262, 16
      %v620 = vrot.slane %v618, 5
      %v621 = vor.u32 %v617, %v620
      %v622 = vrot.slane %v621, 4
      %v624 = vshll.u32 %v263, 16
      %v626 = vrot.slane %v624, 5
      %v627 = vsel %vm277, %v622, %v626
      %v628 = vshrl.u32 %v263, 16
      %v630 = vrot.slane %v628, 4
      %v631 = vor.u32 %v630, %v626
      %v632 = vrot.slane %v631, 4
      %v634 = vshll.u32 %v264, 16
      %v636 = vrot.slane %v634, 5
      %v637 = vsel %vm277, %v632, %v636
      %v639 = vshrl.u32 %v265, 16
      %v641 = vrot.slane %v639, 4
      %v642 = vshll.u32 %v265, 16
      %v644 = vrot.slane %v642, 5
      %v645 = vor.u32 %v641, %v644
      %v646 = vrot.slane %v645, 4
      %v648 = vshll.u32 %v266, 16
      %v650 = vrot.slane %v648, 5
      %v651 = vsel %vm277, %v646, %v650
      %v652 = vshrl.u32 %v266, 16
      %v654 = vrot.slane %v652, 4
      %v655 = vor.u32 %v654, %v650
      %v656 = vrot.slane %v655, 4
      %v658 = vshll.u32 %v267, 16
      %v660 = vrot.slane %v658, 5
      %v661 = vsel %vm277, %v656, %v660
      %s662 = scalar_lea.vmem %s1, 16
      %v663 = vld [vmem:[%s662] sm:$0xf]
      %v664 = vld [vmem:[%s662 + $0x4] sm:$0xf]
      %v665 = vld [vmem:[%s662 + $0x8] sm:$0xf]
      %v666 = vld [vmem:[%s662 + $0xc] sm:$0xf]
      %v667 = vunpack.c.l.b16 %v291
      %v668 = vunpack.c.l.b16 %v301
      %v669 = vunpack.c.l.b16 %v315
      %v670 = vunpack.c.l.b16 %v325
      %v671 = vunpack.c.l.b16 %v339
      %v672 = vunpack.c.l.b16 %v349
      %v673 = vunpack.c.l.b16 %v363
      %v674 = vunpack.c.l.b16 %v373
      %v675 = vunpack.c.l.b16 %v387
      %v676 = vunpack.c.l.b16 %v397
      %v677 = vunpack.c.l.b16 %v411
      %v678 = vunpack.c.l.b16 %v421
      %v679 = vunpack.c.l.b16 %v435
      %v680 = vunpack.c.l.b16 %v445
      %v681 = vunpack.c.l.b16 %v459
      %v682 = vunpack.c.l.b16 %v469
      %v683 = vunpack.c.l.b16 %v483
      %v684 = vunpack.c.l.b16 %v493
      %v685 = vunpack.c.l.b16 %v507
      %v686 = vunpack.c.l.b16 %v517
      %v687 = vunpack.c.l.b16 %v531
      %v688 = vunpack.c.l.b16 %v541
      %v689 = vunpack.c.l.b16 %v555
      %v690 = vunpack.c.l.b16 %v565
      %v691 = vunpack.c.l.b16 %v579
      %v692 = vunpack.c.l.b16 %v589
      %v693 = vunpack.c.l.b16 %v603
      %v694 = vunpack.c.l.b16 %v613
      %v695 = vunpack.c.l.b16 %v627
      %v696 = vunpack.c.l.b16 %v637
      %v697 = vunpack.c.l.b16 %v651
      %v698 = vunpack.c.l.b16 %v661
      %v699 = vpack.c.b16 %v668, %v667
      %v700 = vpack.c.b16 %v670, %v669
      %v701 = vpack.c.b16 %v672, %v671
      %v702 = vpack.c.b16 %v674, %v673
      %v703 = vpack.c.b16 %v676, %v675
      %v704 = vpack.c.b16 %v678, %v677
      %v705 = vpack.c.b16 %v680, %v679
      %v706 = vpack.c.b16 %v682, %v681
      %v707 = vpack.c.b16 %v684, %v683
      %v708 = vpack.c.b16 %v686, %v685
      %v709 = vpack.c.b16 %v688, %v687
      %v710 = vpack.c.b16 %v690, %v689
      %v711 = vpack.c.b16 %v692, %v691
      %v712 = vpack.c.b16 %v694, %v693
      %v713 = vpack.c.b16 %v696, %v695
      %v714 = vpack.c.b16 %v698, %v697
      %v719 = vunpack.c.l.b16 %v663
      %v720 = vunpack.c.l.b16 %v664
      %v721 = vunpack.c.l.b16 %v665
      %v722 = vunpack.c.l.b16 %v666
      %v723 = vpack.c.b16 %v720, %v719
      %v724 = vpack.c.b16 %v722, %v721
      %vm727 = vcmask 261120
      %v729 = vsel %vm727, %v699, 0
      %v732 = vsel %vm727, %v700, 0
      %v735 = vsel %vm727, %v701, 0
      %v738 = vsel %vm727, %v702, 0
      %v741 = vsel %vm727, %v703, 0
      %v744 = vsel %vm727, %v704, 0
      %v747 = vsel %vm727, %v705, 0
      %v750 = vsel %vm727, %v706, 0
      %v753 = vsel %vm727, %v707, 0
      %v756 = vsel %vm727, %v708, 0
      %v759 = vsel %vm727, %v709, 0
      %v762 = vsel %vm727, %v710, 0
      %v765 = vsel %vm727, %v711, 0
      %v768 = vsel %vm727, %v712, 0
      %v771 = vsel %vm727, %v713, 0
      %v774 = vsel %vm727, %v714, 0
      %776 = vmatpush.bf16.msra.mxu0 0
      %777 = vmatpush.bf16.msra.mxu0 0
      %778 = vmatpush.bf16.msra.mxu0 0
      %779 = vmatpush.bf16.msra.mxu0 0
      %780 = vmatpush.bf16.msra.mxu0 0
      %781 = vmatpush.bf16.msra.mxu0 0
      %782 = vmatpush.bf16.msra.mxu0 %v724
      %783 = vmatpush.bf16.msra.mxu0 %v723
      %784 = vmatmul.bf16.gmra.mxu0 %v729
      %v785 = vpop.f32.mrf.mxu0
      %v786 = vadd.f32 0.0, %v785
      %v787 = vpop.f32.mrf.mxu0
      %v788 = vadd.f32 0.0, %v787
      %789 = vmatmul.bf16.gmra.mxu0 %v732
      %v790 = vpop.f32.mrf.mxu0
      %v791 = vadd.f32 0.0, %v790
      %v792 = vpop.f32.mrf.mxu0
      %v793 = vadd.f32 0.0, %v792
      %794 = vmatmul.bf16.gmra.mxu0 %v735
      %v795 = vpop.f32.mrf.mxu0
      %v796 = vadd.f32 0.0, %v795
      %v797 = vpop.f32.mrf.mxu0
      %v798 = vadd.f32 0.0, %v797
      %799 = vmatmul.bf16.gmra.mxu0 %v738
      %v800 = vpop.f32.mrf.mxu0
      %v801 = vadd.f32 0.0, %v800
      %v802 = vpop.f32.mrf.mxu0
      %v803 = vadd.f32 0.0, %v802
      %804 = vmatmul.bf16.gmra.mxu0 %v741
      %v805 = vpop.f32.mrf.mxu0
      %v806 = vadd.f32 0.0, %v805
      %v807 = vpop.f32.mrf.mxu0
      %v808 = vadd.f32 0.0, %v807
      %809 = vmatmul.bf16.gmra.mxu0 %v744
      %v810 = vpop.f32.mrf.mxu0
      %v811 = vadd.f32 0.0, %v810
      %v812 = vpop.f32.mrf.mxu0
      %v813 = vadd.f32 0.0, %v812
      %814 = vmatmul.bf16.gmra.mxu0 %v747
      %v815 = vpop.f32.mrf.mxu0
      %v816 = vadd.f32 0.0, %v815
      %v817 = vpop.f32.mrf.mxu0
      %v818 = vadd.f32 0.0, %v817
      %819 = vmatmul.bf16.gmra.mxu0 %v750
      %v820 = vpop.f32.mrf.mxu0
      %v821 = vadd.f32 0.0, %v820
      %v822 = vpop.f32.mrf.mxu0
      %v823 = vadd.f32 0.0, %v822
      %824 = vmatmul.bf16.gmra.mxu0 %v753
      %v825 = vpop.f32.mrf.mxu0
      %v826 = vadd.f32 0.0, %v825
      %v827 = vpop.f32.mrf.mxu0
      %v828 = vadd.f32 0.0, %v827
      %829 = vmatmul.bf16.gmra.mxu0 %v756
      %v830 = vpop.f32.mrf.mxu0
      %v831 = vadd.f32 0.0, %v830
      %v832 = vpop.f32.mrf.mxu0
      %v833 = vadd.f32 0.0, %v832
      %834 = vmatmul.bf16.gmra.mxu0 %v759
      %v835 = vpop.f32.mrf.mxu0
      %v836 = vadd.f32 0.0, %v835
      %v837 = vpop.f32.mrf.mxu0
      %v838 = vadd.f32 0.0, %v837
      %839 = vmatmul.bf16.gmra.mxu0 %v762
      %v840 = vpop.f32.mrf.mxu0
      %v841 = vadd.f32 0.0, %v840
      %v842 = vpop.f32.mrf.mxu0
      %v843 = vadd.f32 0.0, %v842
      %844 = vmatmul.bf16.gmra.mxu0 %v765
      %v845 = vpop.f32.mrf.mxu0
      %v846 = vadd.f32 0.0, %v845
      %v847 = vpop.f32.mrf.mxu0
      %v848 = vadd.f32 0.0, %v847
      %849 = vmatmul.bf16.gmra.mxu0 %v768
      %v850 = vpop.f32.mrf.mxu0
      %v851 = vadd.f32 0.0, %v850
      %v852 = vpop.f32.mrf.mxu0
      %v853 = vadd.f32 0.0, %v852
      %854 = vmatmul.bf16.gmra.mxu0 %v771
      %v855 = vpop.f32.mrf.mxu0
      %v856 = vadd.f32 0.0, %v855
      %v857 = vpop.f32.mrf.mxu0
      %v858 = vadd.f32 0.0, %v857
      %859 = vmatmul.bf16.gmra.mxu0 %v774
      %v860 = vpop.f32.mrf.mxu0
      %v861 = vadd.f32 0.0, %v860
      %v862 = vpop.f32.mrf.mxu0
      %v863 = vadd.f32 0.0, %v862
      %864 = vdwg.mxu0
      %v897 = vunpack.c.l.b16 %v220
      %v898 = vunpack.c.l.b16 %v221
      %v899 = vunpack.c.l.b16 %v223
      %v900 = vunpack.c.l.b16 %v224
      %v901 = vunpack.c.l.b16 %v226
      %v902 = vunpack.c.l.b16 %v227
      %v903 = vunpack.c.l.b16 %v229
      %v904 = vunpack.c.l.b16 %v230
      %v905 = vunpack.c.l.b16 %v232
      %v906 = vunpack.c.l.b16 %v233
      %v907 = vunpack.c.l.b16 %v235
      %v908 = vunpack.c.l.b16 %v236
      %v909 = vunpack.c.l.b16 %v238
      %v910 = vunpack.c.l.b16 %v239
      %v911 = vunpack.c.l.b16 %v241
      %v912 = vunpack.c.l.b16 %v242
      %v913 = vunpack.c.l.b16 %v244
      %v914 = vunpack.c.l.b16 %v245
      %v915 = vunpack.c.l.b16 %v247
      %v916 = vunpack.c.l.b16 %v248
      %v917 = vunpack.c.l.b16 %v250
      %v918 = vunpack.c.l.b16 %v251
      %v919 = vunpack.c.l.b16 %v253
      %v920 = vunpack.c.l.b16 %v254
      %v921 = vunpack.c.l.b16 %v256
      %v922 = vunpack.c.l.b16 %v257
      %v923 = vunpack.c.l.b16 %v259
      %v924 = vunpack.c.l.b16 %v260
      %v925 = vunpack.c.l.b16 %v262
      %v926 = vunpack.c.l.b16 %v263
      %v927 = vunpack.c.l.b16 %v265
      %v928 = vunpack.c.l.b16 %v266
      %v929 = vpack.c.b16 %v898, %v897
      %v930 = vpack.c.b16 %v900, %v899
      %v931 = vpack.c.b16 %v902, %v901
      %v932 = vpack.c.b16 %v904, %v903
      %v933 = vpack.c.b16 %v906, %v905
      %v934 = vpack.c.b16 %v908, %v907
      %v935 = vpack.c.b16 %v910, %v909
      %v936 = vpack.c.b16 %v912, %v911
      %v937 = vpack.c.b16 %v914, %v913
      %v938 = vpack.c.b16 %v916, %v915
      %v939 = vpack.c.b16 %v918, %v917
      %v940 = vpack.c.b16 %v920, %v919
      %v941 = vpack.c.b16 %v922, %v921
      %v942 = vpack.c.b16 %v924, %v923
      %v943 = vpack.c.b16 %v926, %v925
      %v944 = vpack.c.b16 %v928, %v927
      %v949 = vunpack.c.l.b16 %v271
      %v950 = vunpack.c.l.b16 %v272
      %v951 = vunpack.c.l.b16 %v273
      %v952 = vunpack.c.l.b16 %v274
      %v953 = vpack.c.b16 %v950, %v949
      %v954 = vpack.c.b16 %v952, %v951
      %v958 = vsel %vm727, %v929, 0
      %v961 = vsel %vm727, %v930, 0
      %v964 = vsel %vm727, %v931, 0
      %v967 = vsel %vm727, %v932, 0
      %v970 = vsel %vm727, %v933, 0
      %v973 = vsel %vm727, %v934, 0
      %v976 = vsel %vm727, %v935, 0
      %v979 = vsel %vm727, %v936, 0
      %v982 = vsel %vm727, %v937, 0
      %v985 = vsel %vm727, %v938, 0
      %v988 = vsel %vm727, %v939, 0
      %v991 = vsel %vm727, %v940, 0
      %v994 = vsel %vm727, %v941, 0
      %v997 = vsel %vm727, %v942, 0
      %v1000 = vsel %vm727, %v943, 0
      %v1003 = vsel %vm727, %v944, 0
      %1005 = vmatpush.bf16.msra.mxu0 0
      %1006 = vmatpush.bf16.msra.mxu0 0
      %1007 = vmatpush.bf16.msra.mxu0 0
      %1008 = vmatpush.bf16.msra.mxu0 0
      %1009 = vmatpush.bf16.msra.mxu0 0
      %1010 = vmatpush.bf16.msra.mxu0 0
      %1011 = vmatpush.bf16.msra.mxu0 %v954
      %1012 = vmatpush.bf16.msra.mxu0 %v953
      %1013 = vmatmul.bf16.gmra.mxu0 %v958
      %v1014 = vpop.f32.mrf.mxu0
      %v1015 = vadd.f32 %v786, %v1014
      %v1016 = vpop.f32.mrf.mxu0
      %v1017 = vadd.f32 %v788, %v1016
      %1018 = vmatmul.bf16.gmra.mxu0 %v961
      %v1019 = vpop.f32.mrf.mxu0
      %v1020 = vadd.f32 %v791, %v1019
      %v1021 = vpop.f32.mrf.mxu0
      %v1022 = vadd.f32 %v793, %v1021
      %1023 = vmatmul.bf16.gmra.mxu0 %v964
      %v1024 = vpop.f32.mrf.mxu0
      %v1025 = vadd.f32 %v796, %v1024
      %v1026 = vpop.f32.mrf.mxu0
      %v1027 = vadd.f32 %v798, %v1026
      %1028 = vmatmul.bf16.gmra.mxu0 %v967
      %v1029 = vpop.f32.mrf.mxu0
      %v1030 = vadd.f32 %v801, %v1029
      %v1031 = vpop.f32.mrf.mxu0
      %v1032 = vadd.f32 %v803, %v1031
      %1033 = vmatmul.bf16.gmra.mxu0 %v970
      %v1034 = vpop.f32.mrf.mxu0
      %v1035 = vadd.f32 %v806, %v1034
      %v1036 = vpop.f32.mrf.mxu0
      %v1037 = vadd.f32 %v808, %v1036
      %1038 = vmatmul.bf16.gmra.mxu0 %v973
      %v1039 = vpop.f32.mrf.mxu0
      %v1040 = vadd.f32 %v811, %v1039
      %v1041 = vpop.f32.mrf.mxu0
      %v1042 = vadd.f32 %v813, %v1041
      %1043 = vmatmul.bf16.gmra.mxu0 %v976
      %v1044 = vpop.f32.mrf.mxu0
      %v1045 = vadd.f32 %v816, %v1044
      %v1046 = vpop.f32.mrf.mxu0
      %v1047 = vadd.f32 %v818, %v1046
      %1048 = vmatmul.bf16.gmra.mxu0 %v979
      %v1049 = vpop.f32.mrf.mxu0
      %v1050 = vadd.f32 %v821, %v1049
      %v1051 = vpop.f32.mrf.mxu0
      %v1052 = vadd.f32 %v823, %v1051
      %1053 = vmatmul.bf16.gmra.mxu0 %v982
      %v1054 = vpop.f32.mrf.mxu0
      %v1055 = vadd.f32 %v826, %v1054
      %v1056 = vpop.f32.mrf.mxu0
      %v1057 = vadd.f32 %v828, %v1056
      %1058 = vmatmul.bf16.gmra.mxu0 %v985
      %v1059 = vpop.f32.mrf.mxu0
      %v1060 = vadd.f32 %v831, %v1059
      %v1061 = vpop.f32.mrf.mxu0
      %v1062 = vadd.f32 %v833, %v1061
      %1063 = vmatmul.bf16.gmra.mxu0 %v988
      %v1064 = vpop.f32.mrf.mxu0
      %v1065 = vadd.f32 %v836, %v1064
      %v1066 = vpop.f32.mrf.mxu0
      %v1067 = vadd.f32 %v838, %v1066
      %1068 = vmatmul.bf16.gmra.mxu0 %v991
      %v1069 = vpop.f32.mrf.mxu0
      %v1070 = vadd.f32 %v841, %v1069
      %v1071 = vpop.f32.mrf.mxu0
      %v1072 = vadd.f32 %v843, %v1071
      %1073 = vmatmul.bf16.gmra.mxu0 %v994
      %v1074 = vpop.f32.mrf.mxu0
      %v1075 = vadd.f32 %v846, %v1074
      %v1076 = vpop.f32.mrf.mxu0
      %v1077 = vadd.f32 %v848, %v1076
      %1078 = vmatmul.bf16.gmra.mxu0 %v997
      %v1079 = vpop.f32.mrf.mxu0
      %v1080 = vadd.f32 %v851, %v1079
      %v1081 = vpop.f32.mrf.mxu0
      %v1082 = vadd.f32 %v853, %v1081
      %1083 = vmatmul.bf16.gmra.mxu0 %v1000
      %v1084 = vpop.f32.mrf.mxu0
      %v1085 = vadd.f32 %v856, %v1084
      %v1086 = vpop.f32.mrf.mxu0
      %v1087 = vadd.f32 %v858, %v1086
      %1088 = vmatmul.bf16.gmra.mxu0 %v1003
      %v1089 = vpop.f32.mrf.mxu0
      %v1090 = vadd.f32 %v861, %v1089
      %v1091 = vpop.f32.mrf.mxu0
      %v1092 = vadd.f32 %v863, %v1091
      %1093 = vdwg.mxu0
      %s1094 = scalar_lea.vmem %s1, 32
      %v1095 = vld [vmem:[%s1094] sm:$0xf]
      %v1096 = vld [vmem:[%s1094 + $0x4] sm:$0xf]
      %v1097 = vld [vmem:[%s1094 + $0x8] sm:$0xf]
      %v1098 = vld [vmem:[%s1094 + $0xc] sm:$0xf]
      %v1101 = vunpack.c.l.b16 %v268
      %v1102 = vunpack.c.l.b16 %v269
      %v1103 = vpack.c.b16 %v1102, %v1101
      %v1108 = vunpack.c.l.b16 %v1095
      %v1109 = vunpack.c.l.b16 %v1096
      %v1110 = vunpack.c.l.b16 %v1097
      %v1111 = vunpack.c.l.b16 %v1098
      %v1112 = vpack.c.b16 %v1109, %v1108
      %v1113 = vpack.c.b16 %v1111, %v1110
      %v1117 = vsel %vm727, %v1103, 0
      %1119 = vmatpush.bf16.msra.mxu0 0
      %1120 = vmatpush.bf16.msra.mxu0 0
      %1121 = vmatpush.bf16.msra.mxu0 0
      %1122 = vmatpush.bf16.msra.mxu0 0
      %1123 = vmatpush.bf16.msra.mxu0 0
      %1124 = vmatpush.bf16.msra.mxu0 0
      %1125 = vmatpush.bf16.msra.mxu0 %v1113
      %1126 = vmatpush.bf16.msra.mxu0 %v1112
      %1127 = vmatmul.bf16.gmra.mxu0 %v961
      %v1128 = vpop.f32.mrf.mxu0
      %v1129 = vadd.f32 0.0, %v1128
      %v1130 = vpop.f32.mrf.mxu0
      %v1131 = vadd.f32 0.0, %v1130
      %1132 = vmatmul.bf16.gmra.mxu0 %v964
      %v1133 = vpop.f32.mrf.mxu0
      %v1134 = vadd.f32 0.0, %v1133
      %v1135 = vpop.f32.mrf.mxu0
      %v1136 = vadd.f32 0.0, %v1135
      %1137 = vmatmul.bf16.gmra.mxu0 %v967
      %v1138 = vpop.f32.mrf.mxu0
      %v1139 = vadd.f32 0.0, %v1138
      %v1140 = vpop.f32.mrf.mxu0
      %v1141 = vadd.f32 0.0, %v1140
      %1142 = vmatmul.bf16.gmra.mxu0 %v970
      %v1143 = vpop.f32.mrf.mxu0
      %v1144 = vadd.f32 0.0, %v1143
      %v1145 = vpop.f32.mrf.mxu0
      %v1146 = vadd.f32 0.0, %v1145
      %1147 = vmatmul.bf16.gmra.mxu0 %v973
      %v1148 = vpop.f32.mrf.mxu0
      %v1149 = vadd.f32 0.0, %v1148
      %v1150 = vpop.f32.mrf.mxu0
      %v1151 = vadd.f32 0.0, %v1150
      %1152 = vmatmul.bf16.gmra.mxu0 %v976
      %v1153 = vpop.f32.mrf.mxu0
      %v1154 = vadd.f32 0.0, %v1153
      %v1155 = vpop.f32.mrf.mxu0
      %v1156 = vadd.f32 0.0, %v1155
      %1157 = vmatmul.bf16.gmra.mxu0 %v979
      %v1158 = vpop.f32.mrf.mxu0
      %v1159 = vadd.f32 0.0, %v1158
      %v1160 = vpop.f32.mrf.mxu0
      %v1161 = vadd.f32 0.0, %v1160
      %1162 = vmatmul.bf16.gmra.mxu0 %v982
      %v1163 = vpop.f32.mrf.mxu0
      %v1164 = vadd.f32 0.0, %v1163
      %v1165 = vpop.f32.mrf.mxu0
      %v1166 = vadd.f32 0.0, %v1165
      %1167 = vmatmul.bf16.gmra.mxu0 %v985
      %v1168 = vpop.f32.mrf.mxu0
      %v1169 = vadd.f32 0.0, %v1168
      %v1170 = vpop.f32.mrf.mxu0
      %v1171 = vadd.f32 0.0, %v1170
      %1172 = vmatmul.bf16.gmra.mxu0 %v988
      %v1173 = vpop.f32.mrf.mxu0
      %v1174 = vadd.f32 0.0, %v1173
      %v1175 = vpop.f32.mrf.mxu0
      %v1176 = vadd.f32 0.0, %v1175
      %1177 = vmatmul.bf16.gmra.mxu0 %v991
      %v1178 = vpop.f32.mrf.mxu0
      %v1179 = vadd.f32 0.0, %v1178
      %v1180 = vpop.f32.mrf.mxu0
      %v1181 = vadd.f32 0.0, %v1180
      %1182 = vmatmul.bf16.gmra.mxu0 %v994
      %v1183 = vpop.f32.mrf.mxu0
      %v1184 = vadd.f32 0.0, %v1183
      %v1185 = vpop.f32.mrf.mxu0
      %v1186 = vadd.f32 0.0, %v1185
      %1187 = vmatmul.bf16.gmra.mxu0 %v997
      %v1188 = vpop.f32.mrf.mxu0
      %v1189 = vadd.f32 0.0, %v1188
      %v1190 = vpop.f32.mrf.mxu0
      %v1191 = vadd.f32 0.0, %v1190
      %1192 = vmatmul.bf16.gmra.mxu0 %v1000
      %v1193 = vpop.f32.mrf.mxu0
      %v1194 = vadd.f32 0.0, %v1193
      %v1195 = vpop.f32.mrf.mxu0
      %v1196 = vadd.f32 0.0, %v1195
      %1197 = vmatmul.bf16.gmra.mxu0 %v1003
      %v1198 = vpop.f32.mrf.mxu0
      %v1199 = vadd.f32 0.0, %v1198
      %v1200 = vpop.f32.mrf.mxu0
      %v1201 = vadd.f32 0.0, %v1200
      %1202 = vmatmul.bf16.gmra.mxu0 %v1117
      %v1203 = vpop.f32.mrf.mxu0
      %v1204 = vadd.f32 0.0, %v1203
      %v1205 = vpop.f32.mrf.mxu0
      %v1206 = vadd.f32 0.0, %v1205
      %1207 = vdwg.mxu0
      %v1208 = vadd.f32 %v1015, %v1129
      %v1209 = vadd.f32 %v1017, %v1131
      %v1210 = vadd.f32 %v1020, %v1134
      %v1211 = vadd.f32 %v1022, %v1136
      %v1212 = vadd.f32 %v1025, %v1139
      %v1213 = vadd.f32 %v1027, %v1141
      %v1214 = vadd.f32 %v1030, %v1144
      %v1215 = vadd.f32 %v1032, %v1146
      %v1216 = vadd.f32 %v1035, %v1149
      %v1217 = vadd.f32 %v1037, %v1151
      %v1218 = vadd.f32 %v1040, %v1154
      %v1219 = vadd.f32 %v1042, %v1156
      %v1220 = vadd.f32 %v1045, %v1159
      %v1221 = vadd.f32 %v1047, %v1161
      %v1222 = vadd.f32 %v1050, %v1164
      %v1223 = vadd.f32 %v1052, %v1166
      %v1224 = vadd.f32 %v1055, %v1169
      %v1225 = vadd.f32 %v1057, %v1171
      %v1226 = vadd.f32 %v1060, %v1174
      %v1227 = vadd.f32 %v1062, %v1176
      %v1228 = vadd.f32 %v1065, %v1179
      %v1229 = vadd.f32 %v1067, %v1181
      %v1230 = vadd.f32 %v1070, %v1184
      %v1231 = vadd.f32 %v1072, %v1186
      %v1232 = vadd.f32 %v1075, %v1189
      %v1233 = vadd.f32 %v1077, %v1191
      %v1234 = vadd.f32 %v1080, %v1194
      %v1235 = vadd.f32 %v1082, %v1196
      %v1236 = vadd.f32 %v1085, %v1199
      %v1237 = vadd.f32 %v1087, %v1201
      %v1238 = vadd.f32 %v1090, %v1204
      %v1239 = vadd.f32 %v1092, %v1206
      %v1241 = vshrl.u32 %v268, 16
      %v1243 = vrot.slane %v1241, 4
      %v1244 = vshll.u32 %v268, 16
      %v1246 = vrot.slane %v1244, 5
      %v1247 = vor.u32 %v1243, %v1246
      %v1248 = vrot.slane %v1247, 4
      %v1250 = vshll.u32 %v269, 16
      %v1252 = vrot.slane %v1250, 5
      %v1253 = vsel %vm277, %v1248, %v1252
      %v1254 = vshrl.u32 %v269, 16
      %v1256 = vrot.slane %v1254, 4
      %v1257 = vor.u32 %v1256, %v1252
      %v1258 = vrot.slane %v1257, 4
      %v1260 = vshll.u32 %v270, 16
      %v1262 = vrot.slane %v1260, 5
      %v1263 = vsel %vm277, %v1258, %v1262
      %s1264 = scalar_lea.vmem %s1, 48
      %v1265 = vld [vmem:[%s1264] sm:$0xf]
      %v1266 = vld [vmem:[%s1264 + $0x4] sm:$0xf]
      %v1267 = vld [vmem:[%s1264 + $0x8] sm:$0xf]
      %v1268 = vld [vmem:[%s1264 + $0xc] sm:$0xf]
      %v1269 = vunpack.c.l.b16 %v1253
      %v1270 = vunpack.c.l.b16 %v1263
      %v1271 = vpack.c.b16 %v1270, %v1269
      %v1276 = vunpack.c.l.b16 %v1265
      %v1277 = vunpack.c.l.b16 %v1266
      %v1278 = vunpack.c.l.b16 %v1267
      %v1279 = vunpack.c.l.b16 %v1268
      %v1280 = vpack.c.b16 %v1277, %v1276
      %v1281 = vpack.c.b16 %v1279, %v1278
      %v1285 = vsel %vm727, %v1271, 0
      %1287 = vmatpush.bf16.msra.mxu0 0
      %1288 = vmatpush.bf16.msra.mxu0 0
      %1289 = vmatpush.bf16.msra.mxu0 0
      %1290 = vmatpush.bf16.msra.mxu0 0
      %1291 = vmatpush.bf16.msra.mxu0 0
      %1292 = vmatpush.bf16.msra.mxu0 0
      %1293 = vmatpush.bf16.msra.mxu0 %v1281
      %1294 = vmatpush.bf16.msra.mxu0 %v1280
      %1295 = vmatmul.bf16.gmra.mxu0 %v732
      %v1296 = vpop.f32.mrf.mxu0
      %v1297 = vadd.f32 0.0, %v1296
      %v1298 = vpop.f32.mrf.mxu0
      %v1299 = vadd.f32 0.0, %v1298
      %1300 = vmatmul.bf16.gmra.mxu0 %v735
      %v1301 = vpop.f32.mrf.mxu0
      %v1302 = vadd.f32 0.0, %v1301
      %v1303 = vpop.f32.mrf.mxu0
      %v1304 = vadd.f32 0.0, %v1303
      %1305 = vmatmul.bf16.gmra.mxu0 %v738
      %v1306 = vpop.f32.mrf.mxu0
      %v1307 = vadd.f32 0.0, %v1306
      %v1308 = vpop.f32.mrf.mxu0
      %v1309 = vadd.f32 0.0, %v1308
      %1310 = vmatmul.bf16.gmra.mxu0 %v741
      %v1311 = vpop.f32.mrf.mxu0
      %v1312 = vadd.f32 0.0, %v1311
      %v1313 = vpop.f32.mrf.mxu0
      %v1314 = vadd.f32 0.0, %v1313
      %1315 = vmatmul.bf16.gmra.mxu0 %v744
      %v1316 = vpop.f32.mrf.mxu0
      %v1317 = vadd.f32 0.0, %v1316
      %v1318 = vpop.f32.mrf.mxu0
      %v1319 = vadd.f32 0.0, %v1318
      %1320 = vmatmul.bf16.gmra.mxu0 %v747
      %v1321 = vpop.f32.mrf.mxu0
      %v1322 = vadd.f32 0.0, %v1321
      %v1323 = vpop.f32.mrf.mxu0
      %v1324 = vadd.f32 0.0, %v1323
      %1325 = vmatmul.bf16.gmra.mxu0 %v750
      %v1326 = vpop.f32.mrf.mxu0
      %v1327 = vadd.f32 0.0, %v1326
      %v1328 = vpop.f32.mrf.mxu0
      %v1329 = vadd.f32 0.0, %v1328
      %1330 = vmatmul.bf16.gmra.mxu0 %v753
      %v1331 = vpop.f32.mrf.mxu0
      %v1332 = vadd.f32 0.0, %v1331
      %v1333 = vpop.f32.mrf.mxu0
      %v1334 = vadd.f32 0.0, %v1333
      %1335 = vmatmul.bf16.gmra.mxu0 %v756
      %v1336 = vpop.f32.mrf.mxu0
      %v1337 = vadd.f32 0.0, %v1336
      %v1338 = vpop.f32.mrf.mxu0
      %v1339 = vadd.f32 0.0, %v1338
      %1340 = vmatmul.bf16.gmra.mxu0 %v759
      %v1341 = vpop.f32.mrf.mxu0
      %v1342 = vadd.f32 0.0, %v1341
      %v1343 = vpop.f32.mrf.mxu0
      %v1344 = vadd.f32 0.0, %v1343
      %1345 = vmatmul.bf16.gmra.mxu0 %v762
      %v1346 = vpop.f32.mrf.mxu0
      %v1347 = vadd.f32 0.0, %v1346
      %v1348 = vpop.f32.mrf.mxu0
      %v1349 = vadd.f32 0.0, %v1348
      %1350 = vmatmul.bf16.gmra.mxu0 %v765
      %v1351 = vpop.f32.mrf.mxu0
      %v1352 = vadd.f32 0.0, %v1351
      %v1353 = vpop.f32.mrf.mxu0
      %v1354 = vadd.f32 0.0, %v1353
      %1355 = vmatmul.bf16.gmra.mxu0 %v768
      %v1356 = vpop.f32.mrf.mxu0
      %v1357 = vadd.f32 0.0, %v1356
      %v1358 = vpop.f32.mrf.mxu0
      %v1359 = vadd.f32 0.0, %v1358
      %1360 = vmatmul.bf16.gmra.mxu0 %v771
      %v1361 = vpop.f32.mrf.mxu0
      %v1362 = vadd.f32 0.0, %v1361
      %v1363 = vpop.f32.mrf.mxu0
      %v1364 = vadd.f32 0.0, %v1363
      %1365 = vmatmul.bf16.gmra.mxu0 %v774
      %v1366 = vpop.f32.mrf.mxu0
      %v1367 = vadd.f32 0.0, %v1366
      %v1368 = vpop.f32.mrf.mxu0
      %v1369 = vadd.f32 0.0, %v1368
      %1370 = vmatmul.bf16.gmra.mxu0 %v1285
      %v1371 = vpop.f32.mrf.mxu0
      %v1372 = vadd.f32 0.0, %v1371
      %v1373 = vpop.f32.mrf.mxu0
      %v1374 = vadd.f32 0.0, %v1373
      %1375 = vdwg.mxu0
      %v1376 = vadd.f32 %v1208, %v1297
      %v1377 = vadd.f32 %v1209, %v1299
      %v1378 = vadd.f32 %v1210, %v1302
      %v1379 = vadd.f32 %v1211, %v1304
      %v1380 = vadd.f32 %v1212, %v1307
      %v1381 = vadd.f32 %v1213, %v1309
      %v1382 = vadd.f32 %v1214, %v1312
      %v1383 = vadd.f32 %v1215, %v1314
      %v1384 = vadd.f32 %v1216, %v1317
      %v1385 = vadd.f32 %v1217, %v1319
      %v1386 = vadd.f32 %v1218, %v1322
      %v1387 = vadd.f32 %v1219, %v1324
      %v1388 = vadd.f32 %v1220, %v1327
      %v1389 = vadd.f32 %v1221, %v1329
      %v1390 = vadd.f32 %v1222, %v1332
      %v1391 = vadd.f32 %v1223, %v1334
      %v1392 = vadd.f32 %v1224, %v1337
      %v1393 = vadd.f32 %v1225, %v1339
      %v1394 = vadd.f32 %v1226, %v1342
      %v1395 = vadd.f32 %v1227, %v1344
      %v1396 = vadd.f32 %v1228, %v1347
      %v1397 = vadd.f32 %v1229, %v1349
      %v1398 = vadd.f32 %v1230, %v1352
      %v1399 = vadd.f32 %v1231, %v1354
      %v1400 = vadd.f32 %v1232, %v1357
      %v1401 = vadd.f32 %v1233, %v1359
      %v1402 = vadd.f32 %v1234, %v1362
      %v1403 = vadd.f32 %v1235, %v1364
      %v1404 = vadd.f32 %v1236, %v1367
      %v1405 = vadd.f32 %v1237, %v1369
      %v1406 = vadd.f32 %v1238, %v1372
      %v1407 = vadd.f32 %v1239, %v1374
      %v1408 = vpack.c.bf16 %v1376, %v1376
      %v1409 = vpack.c.bf16 %v1377, %v1377
      %v1410 = vpack.c.bf16 %v1378, %v1378
      %v1411 = vpack.c.bf16 %v1379, %v1379
      %v1412 = vpack.c.bf16 %v1380, %v1380
      %v1413 = vpack.c.bf16 %v1381, %v1381
      %v1414 = vpack.c.bf16 %v1382, %v1382
      %v1415 = vpack.c.bf16 %v1383, %v1383
      %v1416 = vpack.c.bf16 %v1384, %v1384
      %v1417 = vpack.c.bf16 %v1385, %v1385
      %v1418 = vpack.c.bf16 %v1386, %v1386
      %v1419 = vpack.c.bf16 %v1387, %v1387
      %v1420 = vpack.c.bf16 %v1388, %v1388
      %v1421 = vpack.c.bf16 %v1389, %v1389
      %v1422 = vpack.c.bf16 %v1390, %v1390
      %v1423 = vpack.c.bf16 %v1391, %v1391
      %v1424 = vpack.c.bf16 %v1392, %v1392
      %v1425 = vpack.c.bf16 %v1393, %v1393
      %v1426 = vpack.c.bf16 %v1394, %v1394
      %v1427 = vpack.c.bf16 %v1395, %v1395
      %v1428 = vpack.c.bf16 %v1396, %v1396
      %v1429 = vpack.c.bf16 %v1397, %v1397
      %v1430 = vpack.c.bf16 %v1398, %v1398
      %v1431 = vpack.c.bf16 %v1399, %v1399
      %v1432 = vpack.c.bf16 %v1400, %v1400
      %v1433 = vpack.c.bf16 %v1401, %v1401
      %v1434 = vpack.c.bf16 %v1402, %v1402
      %v1435 = vpack.c.bf16 %v1403, %v1403
      %v1436 = vpack.c.bf16 %v1404, %v1404
      %v1437 = vpack.c.bf16 %v1405, %v1405
      %v1438 = vpack.c.bf16 %v1406, %v1406
      %v1439 = vpack.c.bf16 %v1407, %v1407
      %1440 = vst [vmem:[%s210] sm:$0xf] %v1408
      %1441 = vst [vmem:[%s210 + $0x4] sm:$0xf] %v1409
      %1442 = vst [vmem:[%s210 + $0x8] sm:$0xf] %v1410
      %1443 = vst [vmem:[%s210 + $0xc] sm:$0xf] %v1411
      %1444 = vst [vmem:[%s210 + $0x10] sm:$0xf] %v1412
      %1445 = vst [vmem:[%s210 + $0x14] sm:$0xf] %v1413
      %1446 = vst [vmem:[%s210 + $0x18] sm:$0xf] %v1414
      %1447 = vst [vmem:[%s210 + $0x1c] sm:$0xf] %v1415
      %1448 = vst [vmem:[%s210 + $0x20] sm:$0xf] %v1416
      %1449 = vst [vmem:[%s210 + $0x24] sm:$0xf] %v1417
      %1450 = vst [vmem:[%s210 + $0x28] sm:$0xf] %v1418
      %1451 = vst [vmem:[%s210 + $0x2c] sm:$0xf] %v1419
      %1452 = vst [vmem:[%s210 + $0x30] sm:$0xf] %v1420
      %1453 = vst [vmem:[%s210 + $0x34] sm:$0xf] %v1421
      %1454 = vst [vmem:[%s210 + $0x38] sm:$0xf] %v1422
      %1455 = vst [vmem:[%s210 + $0x3c] sm:$0xf] %v1423
      %1456 = vst [vmem:[%s210 + $0x40] sm:$0xf] %v1424
      %1457 = vst [vmem:[%s210 + $0x44] sm:$0xf] %v1425
      %1458 = vst [vmem:[%s210 + $0x48] sm:$0xf] %v1426
      %1459 = vst [vmem:[%s210 + $0x4c] sm:$0xf] %v1427
      %1460 = vst [vmem:[%s210 + $0x50] sm:$0xf] %v1428
      %1461 = vst [vmem:[%s210 + $0x54] sm:$0xf] %v1429
      %1462 = vst [vmem:[%s210 + $0x58] sm:$0xf] %v1430
      %1463 = vst [vmem:[%s210 + $0x5c] sm:$0xf] %v1431
      %1464 = vst [vmem:[%s210 + $0x60] sm:$0xf] %v1432
      %1465 = vst [vmem:[%s210 + $0x64] sm:$0xf] %v1433
      %1466 = vst [vmem:[%s210 + $0x68] sm:$0xf] %v1434
      %1467 = vst [vmem:[%s210 + $0x6c] sm:$0xf] %v1435
      %1468 = vst [vmem:[%s210 + $0x70] sm:$0xf] %v1436
      %1469 = vst [vmem:[%s210 + $0x74] sm:$0xf] %v1437
      %1470 = vst [vmem:[%s210 + $0x78] sm:$0xf] %v1438
      %1471 = vst [vmem:[%s210 + $0x7c] sm:$0xf] %v1439
      %v1472 = vadd.f32 %v1376, %v1377
      %v1473 = vadd.f32 %v1472, %v1378
      %v1474 = vadd.f32 %v1473, %v1379
      %v1475 = vadd.f32 %v1474, %v1380
      %v1476 = vadd.f32 %v1475, %v1381
      %v1477 = vadd.f32 %v1476, %v1382
      %v1478 = vadd.f32 %v1477, %v1383
      %v1479 = vadd.f32 %v1478, %v1384
      %v1480 = vadd.f32 %v1479, %v1385
      %v1481 = vadd.f32 %v1480, %v1386
      %v1482 = vadd.f32 %v1481, %v1387
      %v1483 = vadd.f32 %v1482, %v1388
      %v1484 = vadd.f32 %v1483, %v1389
      %v1485 = vadd.f32 %v1484, %v1390
      %v1486 = vadd.f32 %v1485, %v1391
      %v1487 = vadd.f32 %v1486, %v1392
      %v1488 = vadd.f32 %v1487, %v1393
      %v1489 = vadd.f32 %v1488, %v1394
      %v1490 = vadd.f32 %v1489, %v1395
      %v1491 = vadd.f32 %v1490, %v1396
      %v1492 = vadd.f32 %v1491, %v1397
      %v1493 = vadd.f32 %v1492, %v1398
      %v1494 = vadd.f32 %v1493, %v1399
      %v1495 = vadd.f32 %v1494, %v1400
      %v1496 = vadd.f32 %v1495, %v1401
      %v1497 = vadd.f32 %v1496, %v1402
      %v1498 = vadd.f32 %v1497, %v1403
      %v1499 = vadd.f32 %v1498, %v1404
      %v1500 = vadd.f32 %v1499, %v1405
      %v1501 = vadd.f32 %v1500, %v1406
      %v1502 = vadd.f32 %v1501, %v1407
      %v1503 = vrot.slane %v1502, 4
      %v1504 = vadd.f32 %v1502, %v1503
      %v1505 = vrot.slane %v1504, 2
      %v1506 = vadd.f32 %v1504, %v1505
      %v1507 = vrot.slane %v1506, 1
      %v1508 = vadd.f32 %v1506, %v1507
      %v1509 = vmul.f32 %v1376, %v1376
      %v1510 = vmul.f32 %v1377, %v1377
      %v1511 = vmul.f32 %v1378, %v1378
      %v1512 = vmul.f32 %v1379, %v1379
      %v1513 = vmul.f32 %v1380, %v1380
      %v1514 = vmul.f32 %v1381, %v1381
      %v1515 = vmul.f32 %v1382, %v1382
      %v1516 = vmul.f32 %v1383, %v1383
      %v1517 = vmul.f32 %v1384, %v1384
      %v1518 = vmul.f32 %v1385, %v1385
      %v1519 = vmul.f32 %v1386, %v1386
      %v1520 = vmul.f32 %v1387, %v1387
      %v1521 = vmul.f32 %v1388, %v1388
      %v1522 = vmul.f32 %v1389, %v1389
      %v1523 = vmul.f32 %v1390, %v1390
      %v1524 = vmul.f32 %v1391, %v1391
      %v1525 = vmul.f32 %v1392, %v1392
      %v1526 = vmul.f32 %v1393, %v1393
      %v1527 = vmul.f32 %v1394, %v1394
      %v1528 = vmul.f32 %v1395, %v1395
      %v1529 = vmul.f32 %v1396, %v1396
      %v1530 = vmul.f32 %v1397, %v1397
      %v1531 = vmul.f32 %v1398, %v1398
      %v1532 = vmul.f32 %v1399, %v1399
      %v1533 = vmul.f32 %v1400, %v1400
      %v1534 = vmul.f32 %v1401, %v1401
      %v1535 = vmul.f32 %v1402, %v1402
      %v1536 = vmul.f32 %v1403, %v1403
      %v1537 = vmul.f32 %v1404, %v1404
      %v1538 = vmul.f32 %v1405, %v1405
      %v1539 = vmul.f32 %v1406, %v1406
      %v1540 = vmul.f32 %v1407, %v1407
      %v1541 = vadd.f32 %v1509, %v1510
      %v1542 = vadd.f32 %v1541, %v1511
      %v1543 = vadd.f32 %v1542, %v1512
      %v1544 = vadd.f32 %v1543, %v1513
      %v1545 = vadd.f32 %v1544, %v1514
      %v1546 = vadd.f32 %v1545, %v1515
      %v1547 = vadd.f32 %v1546, %v1516
      %v1548 = vadd.f32 %v1547, %v1517
      %v1549 = vadd.f32 %v1548, %v1518
      %v1550 = vadd.f32 %v1549, %v1519
      %v1551 = vadd.f32 %v1550, %v1520
      %v1552 = vadd.f32 %v1551, %v1521
      %v1553 = vadd.f32 %v1552, %v1522
      %v1554 = vadd.f32 %v1553, %v1523
      %v1555 = vadd.f32 %v1554, %v1524
      %v1556 = vadd.f32 %v1555, %v1525
      %v1557 = vadd.f32 %v1556, %v1526
      %v1558 = vadd.f32 %v1557, %v1527
      %v1559 = vadd.f32 %v1558, %v1528
      %v1560 = vadd.f32 %v1559, %v1529
      %v1561 = vadd.f32 %v1560, %v1530
      %v1562 = vadd.f32 %v1561, %v1531
      %v1563 = vadd.f32 %v1562, %v1532
      %v1564 = vadd.f32 %v1563, %v1533
      %v1565 = vadd.f32 %v1564, %v1534
      %v1566 = vadd.f32 %v1565, %v1535
      %v1567 = vadd.f32 %v1566, %v1536
      %v1568 = vadd.f32 %v1567, %v1537
      %v1569 = vadd.f32 %v1568, %v1538
      %v1570 = vadd.f32 %v1569, %v1539
      %v1571 = vadd.f32 %v1570, %v1540
      %v1572 = vrot.slane %v1571, 4
      %v1573 = vadd.f32 %v1571, %v1572
      %v1574 = vrot.slane %v1573, 2
      %v1575 = vadd.f32 %v1573, %v1574
      %v1576 = vrot.slane %v1575, 1
      %v1577 = vadd.f32 %v1575, %v1576
      %v1578 = vlaneseq
      %v1579 = vshrl.u32 %v1578, 7
      %vm1580 = vcmp.eq.s32.totalorder %v1579, 0
      %v1581 = vsel %vm1580, 1, 0
      %vm1582 = vcmp.eq.s32.totalorder %v1581, 1
      %v1583 = vsel %vm1582, %v1508, 0.0
      %1584 = vst [vmem:[%s214] sm:$0xff] %v1583
      %v1585 = vsel %vm1582, %v1577, 0.0
      %1586 = vst [vmem:[%s218] sm:$0xff] %v1585
      %p1587 = scmp.lt.s32.totalorder %s16, 1
      %s1588 = scalar_select %p1587, %s16, 1
      %s1589 = smul.addr %s1588, 32
      %s1590 = smul.addr %s1589, 4
      %s1591 = scalar_lea.vmem %s2, %s1590
      %p1592 = scmp.lt.s32.totalorder %s16, 1
      %s1593 = scalar_select %p1592, %s16, 1
      %s1594 = smul.addr %s1593, 8
      %s1595 = scalar_lea.vmem %s3, %s1594
      %p1596 = scmp.lt.s32.totalorder %s16, 1
      %s1597 = scalar_select %p1596, %s16, 1
      %s1598 = smul.addr %s1597, 8
      %s1599 = scalar_lea.vmem %s4, %s1598
      // Predicated region
      $region29: #{critic_forward.5} parent=27 // pred_check
        %p1600 = pneg %p81
      $region30: #{critic_forward.5} parent=27 // pred_check_branch
        %1602 = sbr.rel (%p1600) target = $region32
      $region31: #{critic_forward.5} parent=27 // pred_region
        _
      $region32: #{critic_forward.5} parent=27 // pred_fallthru
        _
      // Predicated region
      $region33: #{critic_forward.5} parent=27 // pred_check
        %p1603 = pneg %p107
      $region34: #{critic_forward.5} parent=27 // pred_check_branch
        %1605 = sbr.rel (%p1603) target = $region36
      $region35: #{critic_forward.5} parent=27 // pred_region
        _
      $region36: #{critic_forward.5} parent=27 // pred_fallthru
        _
      // Predicated region
      $region37: #{critic_forward.5} parent=27 // pred_check
        %p1606 = pneg %p133
      $region38: #{critic_forward.5} parent=27 // pred_check_branch
        %1608 = sbr.rel (%p1606) target = $region40
      $region39: #{critic_forward.5} parent=27 // pred_region
        _
      $region40: #{critic_forward.5} parent=27 // pred_fallthru
        _
    $region28: #{critic_forward.5} parent=5 // pred_fallthru
      _
    %p1609 = scmp.le.s32.totalorder 2, %s11
    // Predicated region
    $region41: #{critic_forward.5} parent=5 // pred_check
      %p1610 = pneg %p1609
    $region42: #{critic_forward.5} parent=5 // pred_check_branch
      %1612 = sbr.rel (%p1610) target = $region44
    $region43: #{critic_forward.5} parent=5 // pred_region
      %s1613 = ssub.s32 %s11, 2
      // Predicated region
      $region45: #{critic_forward.5} parent=43 // pred_check
        %p1614 = pneg %p87
      $region46: #{critic_forward.5} parent=43 // pred_check_branch
        %1616 = sbr.rel (%p1614) target = $region48
      $region47: #{critic_forward.5} parent=43 // pred_region
        %p1617 = scmp.lt.s32.totalorder %s17, 1
        %s1618 = scalar_select %p1617, %s17, 1
        %s1619 = smul.addr %s1618, 32
        %s1620 = smul.addr %s1619, 4
        %s1621 = scalar_lea.vmem %s2, %s1620
      $region48: #{critic_forward.5} parent=43 // pred_fallthru
        _
      // Predicated region
      $region49: #{critic_forward.5} parent=43 // pred_check
        %p1622 = pneg %p113
      $region50: #{critic_forward.5} parent=43 // pred_check_branch
        %1624 = sbr.rel (%p1622) target = $region52
      $region51: #{critic_forward.5} parent=43 // pred_region
        %p1625 = scmp.lt.s32.totalorder %s17, 1
        %s1626 = scalar_select %p1625, %s17, 1
        %s1627 = smul.addr %s1626, 8
        %s1628 = scalar_lea.vmem %s3, %s1627
      $region52: #{critic_forward.5} parent=43 // pred_fallthru
        _
      // Predicated region
      $region53: #{critic_forward.5} parent=43 // pred_check
        %p1629 = pneg %p139
      $region54: #{critic_forward.5} parent=43 // pred_check_branch
        %1631 = sbr.rel (%p1629) target = $region56
      $region55: #{critic_forward.5} parent=43 // pred_region
        %p1632 = scmp.lt.s32.totalorder %s17, 1
        %s1633 = scalar_select %p1632, %s17, 1
        %s1634 = smul.addr %s1633, 8
        %s1635 = scalar_lea.vmem %s4, %s1634
      $region56: #{critic_forward.5} parent=43 // pred_fallthru
        _
    $region44: #{critic_forward.5} parent=5 // pred_fallthru
      _
  $region6: #{critic_forward.5} parent=0 // loop_footer
    %s15 = sadd.s32 1, %s11
  $region7: #{critic_forward.5} parent=0 // loop_footer_branch
    %10 = sbr.rel target = $region3
  $region8: #{critic_forward.5} parent=0 // loop_exit
    _

// kernel: critic_forward.6
$region0: #{critic_forward.6}
  #allocation0 [shape = 'u32[]', space=smem, size = 0x4, offset = 0x4, fixed_abs, tag = 'smem constant byte address 0x4 - core index']
  #allocation1 [shape = 'u32[72,128]{1,0:T(1,128)}', space=vmem, size = 0x9000, scoped, tag = 'internal scratch']
  %s0 = inlined_call_operand.vmem [shape: bf16[2,9,9,64], index: 0, kind: input, shape index: {}]
  %s1 = inlined_call_operand.vmem [shape: bf16[4,64,128], index: 1, kind: input, shape index: {}]
  %s2 = inlined_call_operand.vmem [shape: bf16[2,64,128], index: 2, kind: output, shape index: {0}]
  %s3 = inlined_call_operand.vmem [shape: f32[16,128], index: 3, kind: output, shape index: {1}]
  %s4 = inlined_call_operand.vmem [shape: f32[16,128], index: 4, kind: output, shape index: {2}]
  %5 = xla_tuple %s2, %s3, %s4
  %s6 = sld [smem:[#allocation0]]
  $region57: #{critic_forward.6} parent=0
    _
  %s8 = ssub.s32 1, %s6
  %s9 = scalar_select 0, %s8, %s6
  loop: start=0, step=1, limit=4
  $region2: #{critic_forward.6} parent=0 // loop_pre_header
    _
  $region3: #{critic_forward.6} parent=0 // loop_header
    %s11 = sphi 0, %s15
    %p12 = scmp.ge.s32.totalorder %s11, 4
    %s21 = sphi 0, %s23
    %s24 = sphi 0, %s21
    %s25 = sphi 0, %s24
    %s41 = sphi 0, %s25
    %s45 = sphi 0, %s45
    %s47 = sphi 0, %s45
    %s48 = sphi 0, %s47
    %s62 = sphi 0, %s48
    %s68 = sphi 0, %s70
    %s71 = sphi 0, %s68
    %s72 = sphi 0, %s71
    %s88 = sphi 0, %s72
    %s94 = sphi 0, %s96
    %s97 = sphi 0, %s94
    %s98 = sphi 0, %s97
    %s114 = sphi 0, %s98
    %s120 = sphi 0, %s122
    %s123 = sphi 0, %s120
    %s124 = sphi 0, %s123
    %s140 = sphi 0, %s124
  $region4: #{critic_forward.6} parent=0 // loop_header_branch
    %14 = sbr.rel (%p12) target = $region8
  $region5: #{critic_forward.6} parent=0 // loop_body
    %s16 = ssub.s32 %s11, 1
    %s17 = ssub.s32 %s11, 2
    %s18 = sadd.s32 %s11, 1
    %s19 = ssub.s32 %s11, %s18
    %p20 = scmp.eq.s32.totalorder %s19, 0
    %s22 = sadd.s32 %s21, 1
    %s23 = scalar_select %p20, %s21, %s22
    %p26 = pneg %p20
    %p27 = scmp.eq.s32.totalorder %s11, 1
    %p28 = por %p26, %p27
    %p29 = scmp.ne.s32.totalorder %s21, %s24
    %p30 = scmp.eq.s32.totalorder %s11, 0
    %p31 = por %p29, %p30
    %p32 = scmp.ne.s32.totalorder %s21, %s24
    %p33 = scmp.eq.s32.totalorder %s16, 1
    %p34 = por %p32, %p33
    %p35 = scmp.ne.s32.totalorder %s24, %s25
    %p36 = scmp.eq.s32.totalorder %s16, 0
    %p37 = por %p35, %p36
    %p38 = scmp.ne.s32.totalorder %s24, %s25
    %p39 = scmp.eq.s32.totalorder %s17, 1
    %p40 = por %p38, %p39
    %p42 = scmp.ne.s32.totalorder %s25, %s41
    %p43 = scmp.eq.s32.totalorder %s17, 0
    %p44 = por %p42, %p43
    %s46 = sadd.s32 %s45, 1
    %p49 = scmp.eq.s32.totalorder %s11, 1
    %p50 = scmp.ne.s32.totalorder %s45, %s47
    %p51 = scmp.eq.s32.totalorder %s11, 0
    %p52 = por %p50, %p51
    %p53 = scmp.ne.s32.totalorder %s45, %s47
    %p54 = scmp.eq.s32.totalorder %s16, 1
    %p55 = por %p53, %p54
    %p56 = scmp.ne.s32.totalorder %s47, %s48
    %p57 = scmp.eq.s32.totalorder %s16, 0
    %p58 = por %p56, %p57
    %p59 = scmp.ne.s32.totalorder %s47, %s48
    %p60 = scmp.eq.s32.totalorder %s17, 1
    %p61 = por %p59, %p60
    %p63 = scmp.ne.s32.totalorder %s48, %s62
    %p64 = scmp.eq.s32.totalorder %s17, 0
    %p65 = por %p63, %p64
    %s66 = ssub.s32 %s11, %s18
    %p67 = scmp.eq.s32.totalorder %s66, 0
    %s69 = sadd.s32 %s68, 1
    %s70 = scalar_select %p67, %s68, %s69
    %p73 = pneg %p67
    %p74 = scmp.eq.s32.totalorder %s11, 1
    %p75 = por %p73, %p74
    %p76 = scmp.ne.s32.totalorder %s68, %s71
    %p77 = scmp.eq.s32.totalorder %s11, 0
    %p78 = por %p76, %p77
    %p79 = scmp.ne.s32.totalorder %s68, %s71
    %p80 = scmp.eq.s32.totalorder %s16, 1
    %p81 = por %p79, %p80
    %p82 = scmp.ne.s32.totalorder %s71, %s72
    %p83 = scmp.eq.s32.totalorder %s16, 0
    %p84 = por %p82, %p83
    %p85 = scmp.ne.s32.totalorder %s71, %s72
    %p86 = scmp.eq.s32.totalorder %s17, 1
    %p87 = por %p85, %p86
    %p89 = scmp.ne.s32.totalorder %s72, %s88
    %p90 = scmp.eq.s32.totalorder %s17, 0
    %p91 = por %p89, %p90
    %s92 = ssub.s32 %s11, %s18
    %p93 = scmp.eq.s32.totalorder %s92, 0
    %s95 = sadd.s32 %s94, 1
    %s96 = scalar_select %p93, %s94, %s95
    %p99 = pneg %p93
    %p100 = scmp.eq.s32.totalorder %s11, 1
    %p101 = por %p99, %p100
    %p102 = scmp.ne.s32.totalorder %s94, %s97
    %p103 = scmp.eq.s32.totalorder %s11, 0
    %p104 = por %p102, %p103
    %p105 = scmp.ne.s32.totalorder %s94, %s97
    %p106 = scmp.eq.s32.totalorder %s16, 1
    %p107 = por %p105, %p106
    %p108 = scmp.ne.s32.totalorder %s97, %s98
    %p109 = scmp.eq.s32.totalorder %s16, 0
    %p110 = por %p108, %p109
    %p111 = scmp.ne.s32.totalorder %s97, %s98
    %p112 = scmp.eq.s32.totalorder %s17, 1
    %p113 = por %p111, %p112
    %p115 = scmp.ne.s32.totalorder %s98, %s114
    %p116 = scmp.eq.s32.totalorder %s17, 0
    %p117 = por %p115, %p116
    %s118 = ssub.s32 %s11, %s18
    %p119 = scmp.eq.s32.totalorder %s118, 0
    %s121 = sadd.s32 %s120, 1
    %s122 = scalar_select %p119, %s120, %s121
    %p125 = pneg %p119
    %p126 = scmp.eq.s32.totalorder %s11, 1
    %p127 = por %p125, %p126
    %p128 = scmp.ne.s32.totalorder %s120, %s123
    %p129 = scmp.eq.s32.totalorder %s11, 0
    %p130 = por %p128, %p129
    %p131 = scmp.ne.s32.totalorder %s120, %s123
    %p132 = scmp.eq.s32.totalorder %s16, 1
    %p133 = por %p131, %p132
    %p134 = scmp.ne.s32.totalorder %s123, %s124
    %p135 = scmp.eq.s32.totalorder %s16, 0
    %p136 = por %p134, %p135
    %p137 = scmp.ne.s32.totalorder %s123, %s124
    %p138 = scmp.eq.s32.totalorder %s17, 1
    %p139 = por %p137, %p138
    %p141 = scmp.ne.s32.totalorder %s124, %s140
    %p142 = scmp.eq.s32.totalorder %s17, 0
    %p143 = por %p141, %p142
    %p144 = scmp.le.s32.totalorder 1, %s11
    %p145 = scmp.lt.s32.totalorder %s11, 3
    %p146 = pnand %p144, %p145
    %p147 = pneg %p146
    // Predicated region
    $region9: #{critic_forward.6} parent=5 // pred_check
      _
    $region10: #{critic_forward.6} parent=5 // pred_check_branch
      %149 = sbr.rel (%p146) target = $region12
    $region11: #{critic_forward.6} parent=5 // pred_region
      %s150 = ssub.s32 %s11, 1
      // Predicated region
      $region13: #{critic_forward.6} parent=11 // pred_check
        %p151 = pneg %p58
      $region14: #{critic_forward.6} parent=11 // pred_check_branch
        %153 = sbr.rel (%p151) target = $region16
      $region15: #{critic_forward.6} parent=11 // pred_region
        _
      $region16: #{critic_forward.6} parent=11 // pred_fallthru
        _
    $region12: #{critic_forward.6} parent=5 // pred_fallthru
      _
    %p154 = scmp.lt.s32.totalorder %s11, 2
    // Predicated region
    $region17: #{critic_forward.6} parent=5 // pred_check
      %p155 = pneg %p154
    $region18: #{critic_forward.6} parent=5 // pred_check_branch
      %157 = sbr.rel (%p155) target = $region20
    $region19: #{critic_forward.6} parent=5 // pred_region
      // Predicated region
      $region21: #{critic_forward.6} parent=19 // pred_check
        %p158 = pneg %p31
      $region22: #{critic_forward.6} parent=19 // pred_check_branch
        %160 = sbr.rel (%p158) target = $region24
      $region23: #{critic_forward.6} parent=19 // pred_region
        %p161 = scmp.lt.s32.totalorder %s11, 1
        %s162 = scalar_select %p161, %s11, 1
        %s163 = smul.addr %s162, 18
        %s164 = smul.addr %s163, 4
        %s165 = scalar_lea.vmem %s0, %s164
      $region24: #{critic_forward.6} parent=19 // pred_fallthru
        _
    $region20: #{critic_forward.6} parent=5 // pred_fallthru
      _
    %p166 = scmp.le.s32.totalorder 1, %s11
    %p167 = scmp.lt.s32.totalorder %s11, 3
    %p168 = pnand %p166, %p167
    %p169 = pneg %p168
    // Predicated region
    $region25: #{critic_forward.6} parent=5 // pred_check
      _
    $region26: #{critic_forward.6} parent=5 // pred_check_branch
      %171 = sbr.rel (%p168) target = $region28
    $region27: #{critic_forward.6} parent=5 // pred_region
      %s172 = ssub.s32 %s11, 1
      %p173 = scmp.lt.s32.totalorder %s16, 1
      %s174 = scalar_select %p173, %s16, 1
      %s175 = smul.addr %s174, 18
      %s176 = smul.addr %s175, 4
      %s177 = scalar_lea.vmem %s0, %s176
      %p178 = pneg %p37
      %p179 = pneg %p34
      %p180 = pneg %p58
      %p181 = pneg %p55
      %p182 = pneg %p84
      %p183 = pneg %p81
      %p184 = scmp.lt.s32.totalorder %s16, 1
      %s185 = scalar_select %p184, %s16, 1
      %s186 = smul.addr %s185, 8
      %s187 = smul.addr %s186, 4
      %s188 = scalar_lea.vmem %s2, %s187
      %p189 = pneg %p110
      %p190 = pneg %p107
      %p191 = scmp.lt.s32.totalorder %s16, 1
      %s192 = scalar_select %p191, %s16, 1
      %s193 = smul.addr %s192, 8
      %s194 = scalar_lea.vmem %s3, %s193
      %p195 = pneg %p136
      %p196 = pneg %p133
      %p197 = scmp.lt.s32.totalorder %s16, 1
      %s198 = scalar_select %p197, %s16, 1
      %s199 = smul.addr %s198, 8
      %s200 = scalar_lea.vmem %s4, %s199
      %p201 = scmp.lt.s32.totalorder %s16, 1
      %s202 = scalar_select %p201, %s16, 1
      %s203 = smul.addr %s202, 18
      %s204 = smul.addr %s203, 4
      %s205 = scalar_lea.vmem %s0, %s204
      %p206 = scmp.lt.s32.totalorder %s16, 1
      %s207 = scalar_select %p206, %s16, 1
      %s208 = smul.addr %s207, 8
      %s209 = smul.addr %s208, 4
      %s210 = scalar_lea.vmem %s2, %s209
      %p211 = scmp.lt.s32.totalorder %s16, 1
      %s212 = scalar_select %p211, %s16, 1
      %s213 = smul.addr %s212, 8
      %s214 = scalar_lea.vmem %s3, %s213
      %p215 = scmp.lt.s32.totalorder %s16, 1
      %s216 = scalar_select %p215, %s16, 1
      %s217 = smul.addr %s216, 8
      %s218 = scalar_lea.vmem %s4, %s217
      %v220 = vld [vmem:[%s205] sm:$0xf]
      %v221 = vld [vmem:[%s205 + $0x4] sm:$0x1]
      %v222 = vld [vmem:[%s205 + $0x8] sm:$0xf]
      %v223 = vld [vmem:[%s205 + $0xc] sm:$0x1]
      %v224 = vld [vmem:[%s205 + $0x10] sm:$0xf]
      %v225 = vld [vmem:[%s205 + $0x14] sm:$0x1]
      %v226 = vld [vmem:[%s205 + $0x18] sm:$0xf]
      %v227 = vld [vmem:[%s205 + $0x1c] sm:$0x1]
      %v228 = vld [vmem:[%s205 + $0x20] sm:$0xf]
      %v229 = vld [vmem:[%s205 + $0x24] sm:$0x1]
      %v230 = vld [vmem:[%s205 + $0x28] sm:$0xf]
      %v231 = vld [vmem:[%s205 + $0x2c] sm:$0x1]
      %v232 = vld [vmem:[%s205 + $0x30] sm:$0xf]
      %v233 = vld [vmem:[%s205 + $0x34] sm:$0x1]
      %v234 = vld [vmem:[%s205 + $0x38] sm:$0xf]
      %v235 = vld [vmem:[%s205 + $0x3c] sm:$0x1]
      %v236 = vld [vmem:[%s205 + $0x40] sm:$0xf]
      %v237 = vld [vmem:[%s205 + $0x44] sm:$0x1]
      %v238 = vld [vmem:[%s1] sm:$0xf]
      %v239 = vld [vmem:[%s1 + $0x4] sm:$0xf]
      %v240 = vld [vmem:[%s1 + $0x8] sm:$0xf]
      %v241 = vld [vmem:[%s1 + $0xc] sm:$0xf]
      %v242 = vld [vmem:[%s1 + $0x10] sm:$0xf]
      %v243 = vld [vmem:[%s1 + $0x14] sm:$0xf]
      %v244 = vld [vmem:[%s1 + $0x18] sm:$0xf]
      %v245 = vld [vmem:[%s1 + $0x1c] sm:$0xf]
      %vm246 = vsmask.f32 3328
      %vm247 = vsmask.f32 7440
      %vm248 = vmor %vm246, %vm247
      %v250 = vshrl.u32 %v220, 16
      %v252 = vrot.slane %v250, 4
      %v253 = vshll.u32 %v220, 16
      %v255 = vrot.slane %v253, 5
      %v256 = vor.u32 %v252, %v255
      %v257 = vrot.slane %v256, 4
      %v259 = vshll.u32 %v221, 16
      %v261 = vrot.slane %v259, 5
      %v262 = vsel %vm248, %v257, %v261
      %v264 = vshrl.u32 %v222, 16
      %v266 = vrot.slane %v264, 4
      %v267 = vshll.u32 %v222, 16
      %v269 = vrot.slane %v267, 5
      %v270 = vor.u32 %v266, %v269
      %v271 = vrot.slane %v270, 4
      %v273 = vshll.u32 %v223, 16
      %v275 = vrot.slane %v273, 5
      %v276 = vsel %vm248, %v271, %v275
      %v278 = vshrl.u32 %v224, 16
      %v280 = vrot.slane %v278, 4
      %v281 = vshll.u32 %v224, 16
      %v283 = vrot.slane %v281, 5
      %v284 = vor.u32 %v280, %v283
      %v285 = vrot.slane %v284, 4
      %v287 = vshll.u32 %v225, 16
      %v289 = vrot.slane %v287, 5
      %v290 = vsel %vm248, %v285, %v289
      %v292 = vshrl.u32 %v226, 16
      %v294 = vrot.slane %v292, 4
      %v295 = vshll.u32 %v226, 16
      %v297 = vrot.slane %v295, 5
      %v298 = vor.u32 %v294, %v297
      %v299 = vrot.slane %v298, 4
      %v301 = vshll.u32 %v227, 16
      %v303 = vrot.slane %v301, 5
      %v304 = vsel %vm248, %v299, %v303
      %v306 = vshrl.u32 %v228, 16
      %v308 = vrot.slane %v306, 4
      %v309 = vshll.u32 %v228, 16
      %v311 = vrot.slane %v309, 5
      %v312 = vor.u32 %v308, %v311
      %v313 = vrot.slane %v312, 4
      %v315 = vshll.u32 %v229, 16
      %v317 = vrot.slane %v315, 5
      %v318 = vsel %vm248, %v313, %v317
      %v320 = vshrl.u32 %v230, 16
      %v322 = vrot.slane %v320, 4
      %v323 = vshll.u32 %v230, 16
      %v325 = vrot.slane %v323, 5
      %v326 = vor.u32 %v322, %v325
      %v327 = vrot.slane %v326, 4
      %v329 = vshll.u32 %v231, 16
      %v331 = vrot.slane %v329, 5
      %v332 = vsel %vm248, %v327, %v331
      %v334 = vshrl.u32 %v232, 16
      %v336 = vrot.slane %v334, 4
      %v337 = vshll.u32 %v232, 16
      %v339 = vrot.slane %v337, 5
      %v340 = vor.u32 %v336, %v339
      %v341 = vrot.slane %v340, 4
      %v343 = vshll.u32 %v233, 16
      %v345 = vrot.slane %v343, 5
      %v346 = vsel %vm248, %v341, %v345
      %v348 = vshrl.u32 %v234, 16
      %v350 = vrot.slane %v348, 4
      %v351 = vshll.u32 %v234, 16
      %v353 = vrot.slane %v351, 5
      %v354 = vor.u32 %v350, %v353
      %v355 = vrot.slane %v354, 4
      %v357 = vshll.u32 %v235, 16
      %v359 = vrot.slane %v357, 5
      %v360 = vsel %vm248, %v355, %v359
      %s361 = scalar_lea.vmem %s1, 32
      %v362 = vld [vmem:[%s361] sm:$0xf]
      %v363 = vld [vmem:[%s361 + $0x4] sm:$0xf]
      %v364 = vld [vmem:[%s361 + $0x8] sm:$0xf]
      %v365 = vld [vmem:[%s361 + $0xc] sm:$0xf]
      %v366 = vld [vmem:[%s361 + $0x10] sm:$0xf]
      %v367 = vld [vmem:[%s361 + $0x14] sm:$0xf]
      %v368 = vld [vmem:[%s361 + $0x18] sm:$0xf]
      %v369 = vld [vmem:[%s361 + $0x1c] sm:$0xf]
      %v370 = vunpack.c.l.b16 %v262
      %v371 = vunpack.c.l.b16 %v276
      %v372 = vunpack.c.l.b16 %v290
      %v373 = vunpack.c.l.b16 %v304
      %v374 = vunpack.c.l.b16 %v318
      %v375 = vunpack.c.l.b16 %v332
      %v376 = vunpack.c.l.b16 %v346
      %v377 = vunpack.c.l.b16 %v360
      %v378 = vpack.c.b16 %v371, %v370
      %v379 = vpack.c.b16 %v373, %v372
      %v380 = vpack.c.b16 %v375, %v374
      %v381 = vpack.c.b16 %v377, %v376
      %v390 = vunpack.c.l.b16 %v362
      %v391 = vunpack.c.l.b16 %v363
      %v392 = vunpack.c.l.b16 %v364
      %v393 = vunpack.c.l.b16 %v365
      %v394 = vunpack.c.l.b16 %v366
      %v395 = vunpack.c.l.b16 %v367
      %v396 = vunpack.c.l.b16 %v368
      %v397 = vunpack.c.l.b16 %v369
      %v398 = vpack.c.b16 %v391, %v390
      %v399 = vpack.c.b16 %v393, %v392
      %v400 = vpack.c.b16 %v395, %v394
      %v401 = vpack.c.b16 %v397, %v396
      %vm406 = vcmask 523264
      %v408 = vsel %vm406, %v378, 0
      %v411 = vsel %vm406, %v379, 0
      %v414 = vsel %vm406, %v380, 0
      %v417 = vsel %vm406, %v381, 0
      %419 = vmatpush.bf16.msra.mxu0 0
      %420 = vmatpush.bf16.msra.mxu0 0
      %421 = vmatpush.bf16.msra.mxu0 0
      %422 = vmatpush.bf16.msra.mxu0 0
      %423 = vmatpush.bf16.msra.mxu0 %v401
      %424 = vmatpush.bf16.msra.mxu0 %v400
      %425 = vmatpush.bf16.msra.mxu0 %v399
      %426 = vmatpush.bf16.msra.mxu0 %v398
      %427 = vmatmul.bf16.gmra.mxu0 %v408
      %v428 = vpop.f32.mrf.mxu0
      %v429 = vadd.f32 0.0, %v428
      %v430 = vpop.f32.mrf.mxu0
      %v431 = vadd.f32 0.0, %v430
      %432 = vmatmul.bf16.gmra.mxu0 %v411
      %v433 = vpop.f32.mrf.mxu0
      %v434 = vadd.f32 0.0, %v433
      %v435 = vpop.f32.mrf.mxu0
      %v436 = vadd.f32 0.0, %v435
      %437 = vmatmul.bf16.gmra.mxu0 %v414
      %v438 = vpop.f32.mrf.mxu0
      %v439 = vadd.f32 0.0, %v438
      %v440 = vpop.f32.mrf.mxu0
      %v441 = vadd.f32 0.0, %v440
      %442 = vmatmul.bf16.gmra.mxu0 %v417
      %v443 = vpop.f32.mrf.mxu0
      %v444 = vadd.f32 0.0, %v443
      %v445 = vpop.f32.mrf.mxu0
      %v446 = vadd.f32 0.0, %v445
      %447 = vdwg.mxu0
      %v456 = vunpack.c.l.b16 %v220
      %v457 = vunpack.c.l.b16 %v222
      %v458 = vunpack.c.l.b16 %v224
      %v459 = vunpack.c.l.b16 %v226
      %v460 = vunpack.c.l.b16 %v228
      %v461 = vunpack.c.l.b16 %v230
      %v462 = vunpack.c.l.b16 %v232
      %v463 = vunpack.c.l.b16 %v234
      %v464 = vpack.c.b16 %v457, %v456
      %v465 = vpack.c.b16 %v459, %v458
      %v466 = vpack.c.b16 %v461, %v460
      %v467 = vpack.c.b16 %v463, %v462
      %v476 = vunpack.c.l.b16 %v238
      %v477 = vunpack.c.l.b16 %v239
      %v478 = vunpack.c.l.b16 %v240
      %v479 = vunpack.c.l.b16 %v241
      %v480 = vunpack.c.l.b16 %v242
      %v481 = vunpack.c.l.b16 %v243
      %v482 = vunpack.c.l.b16 %v244
      %v483 = vunpack.c.l.b16 %v245
      %v484 = vpack.c.b16 %v477, %v476
      %v485 = vpack.c.b16 %v479, %v478
      %v486 = vpack.c.b16 %v481, %v480
      %v487 = vpack.c.b16 %v483, %v482
      %v493 = vsel %vm406, %v464, 0
      %v496 = vsel %vm406, %v465, 0
      %v499 = vsel %vm406, %v466, 0
      %v502 = vsel %vm406, %v467, 0
      %504 = vmatpush.bf16.msra.mxu0 0
      %505 = vmatpush.bf16.msra.mxu0 0
      %506 = vmatpush.bf16.msra.mxu0 0
      %507 = vmatpush.bf16.msra.mxu0 0
      %508 = vmatpush.bf16.msra.mxu0 %v487
      %509 = vmatpush.bf16.msra.mxu0 %v486
      %510 = vmatpush.bf16.msra.mxu0 %v485
      %511 = vmatpush.bf16.msra.mxu0 %v484
      %512 = vmatmul.bf16.gmra.mxu0 %v493
      %v513 = vpop.f32.mrf.mxu0
      %v514 = vadd.f32 %v429, %v513
      %v515 = vpop.f32.mrf.mxu0
      %v516 = vadd.f32 %v431, %v515
      %517 = vmatmul.bf16.gmra.mxu0 %v496
      %v518 = vpop.f32.mrf.mxu0
      %v519 = vadd.f32 %v434, %v518
      %v520 = vpop.f32.mrf.mxu0
      %v521 = vadd.f32 %v436, %v520
      %522 = vmatmul.bf16.gmra.mxu0 %v499
      %v523 = vpop.f32.mrf.mxu0
      %v524 = vadd.f32 %v439, %v523
      %v525 = vpop.f32.mrf.mxu0
      %v526 = vadd.f32 %v441, %v525
      %527 = vmatmul.bf16.gmra.mxu0 %v502
      %v528 = vpop.f32.mrf.mxu0
      %v529 = vadd.f32 %v444, %v528
      %v530 = vpop.f32.mrf.mxu0
      %v531 = vadd.f32 %v446, %v530
      %532 = vdwg.mxu0
      %s533 = scalar_lea.vmem %s1, 64
      %v534 = vld [vmem:[%s533] sm:$0xf]
      %v535 = vld [vmem:[%s533 + $0x4] sm:$0xf]
      %v536 = vld [vmem:[%s533 + $0x8] sm:$0xf]
      %v537 = vld [vmem:[%s533 + $0xc] sm:$0xf]
      %v538 = vld [vmem:[%s533 + $0x10] sm:$0xf]
      %v539 = vld [vmem:[%s533 + $0x14] sm:$0xf]
      %v540 = vld [vmem:[%s533 + $0x18] sm:$0xf]
      %v541 = vld [vmem:[%s533 + $0x1c] sm:$0xf]
      %v543 = vunpack.c.l.b16 %v236
      %v544 = vpack.c.b16 %v458, %v457
      %v545 = vpack.c.b16 %v460, %v459
      %v546 = vpack.c.b16 %v462, %v461
      %v547 = vpack.c.b16 %v543, %v463
      %v556 = vunpack.c.l.b16 %v534
      %v557 = vunpack.c.l.b16 %v535
      %v558 = vunpack.c.l.b16 %v536
      %v559 = vunpack.c.l.b16 %v537
      %v560 = vunpack.c.l.b16 %v538
      %v561 = vunpack.c.l.b16 %v539
      %v562 = vunpack.c.l.b16 %v540
      %v563 = vunpack.c.l.b16 %v541
      %v564 = vpack.c.b16 %v557, %v556
      %v565 = vpack.c.b16 %v559, %v558
      %v566 = vpack.c.b16 %v561, %v560
      %v567 = vpack.c.b16 %v563, %v562
      %v573 = vsel %vm406, %v544, 0
      %v576 = vsel %vm406, %v545, 0
      %v579 = vsel %vm406, %v546, 0
      %v582 = vsel %vm406, %v547, 0
      %584 = vmatpush.bf16.msra.mxu0 0
      %585 = vmatpush.bf16.msra.mxu0 0
      %586 = vmatpush.bf16.msra.mxu0 0
      %587 = vmatpush.bf16.msra.mxu0 0
      %588 = vmatpush.bf16.msra.mxu0 %v567
      %589 = vmatpush.bf16.msra.mxu0 %v566
      %590 = vmatpush.bf16.msra.mxu0 %v565
      %591 = vmatpush.bf16.msra.mxu0 %v564
      %592 = vmatmul.bf16.gmra.mxu0 %v573
      %v593 = vpop.f32.mrf.mxu0
      %v594 = vadd.f32 0.0, %v593
      %v595 = vpop.f32.mrf.mxu0
      %v596 = vadd.f32 0.0, %v595
      %597 = vmatmul.bf16.gmra.mxu0 %v576
      %v598 = vpop.f32.mrf.mxu0
      %v599 = vadd.f32 0.0, %v598
      %v600 = vpop.f32.mrf.mxu0
      %v601 = vadd.f32 0.0, %v600
      %602 = vmatmul.bf16.gmra.mxu0 %v579
      %v603 = vpop.f32.mrf.mxu0
      %v604 = vadd.f32 0.0, %v603
      %v605 = vpop.f32.mrf.mxu0
      %v606 = vadd.f32 0.0, %v605
      %607 = vmatmul.bf16.gmra.mxu0 %v582
      %v608 = vpop.f32.mrf.mxu0
      %v609 = vadd.f32 0.0, %v608
      %v610 = vpop.f32.mrf.mxu0
      %v611 = vadd.f32 0.0, %v610
      %612 = vdwg.mxu0
      %v613 = vadd.f32 %v514, %v594
      %v614 = vadd.f32 %v516, %v596
      %v615 = vadd.f32 %v519, %v599
      %v616 = vadd.f32 %v521, %v601
      %v617 = vadd.f32 %v524, %v604
      %v618 = vadd.f32 %v526, %v606
      %v619 = vadd.f32 %v529, %v609
      %v620 = vadd.f32 %v531, %v611
      %v622 = vshrl.u32 %v236, 16
      %v624 = vrot.slane %v622, 4
      %v625 = vshll.u32 %v236, 16
      %v627 = vrot.slane %v625, 5
      %v628 = vor.u32 %v624, %v627
      %v629 = vrot.slane %v628, 4
      %v631 = vshll.u32 %v237, 16
      %v633 = vrot.slane %v631, 5
      %v634 = vsel %vm248, %v629, %v633
      %s635 = scalar_lea.vmem %s1, 96
      %v636 = vld [vmem:[%s635] sm:$0xf]
      %v637 = vld [vmem:[%s635 + $0x4] sm:$0xf]
      %v638 = vld [vmem:[%s635 + $0x8] sm:$0xf]
      %v639 = vld [vmem:[%s635 + $0xc] sm:$0xf]
      %v640 = vld [vmem:[%s635 + $0x10] sm:$0xf]
      %v641 = vld [vmem:[%s635 + $0x14] sm:$0xf]
      %v642 = vld [vmem:[%s635 + $0x18] sm:$0xf]
      %v643 = vld [vmem:[%s635 + $0x1c] sm:$0xf]
      %v644 = vunpack.c.l.b16 %v634
      %v645 = vpack.c.b16 %v372, %v371
      %v646 = vpack.c.b16 %v374, %v373
      %v647 = vpack.c.b16 %v376, %v375
      %v648 = vpack.c.b16 %v644, %v377
      %v657 = vunpack.c.l.b16 %v636
      %v658 = vunpack.c.l.b16 %v637
      %v659 = vunpack.c.l.b16 %v638
      %v660 = vunpack.c.l.b16 %v639
      %v661 = vunpack.c.l.b16 %v640
      %v662 = vunpack.c.l.b16 %v641
      %v663 = vunpack.c.l.b16 %v642
      %v664 = vunpack.c.l.b16 %v643
      %v665 = vpack.c.b16 %v658, %v657
      %v666 = vpack.c.b16 %v660, %v659
      %v667 = vpack.c.b16 %v662, %v661
      %v668 = vpack.c.b16 %v664, %v663
      %v674 = vsel %vm406, %v645, 0
      %v677 = vsel %vm406, %v646, 0
      %v680 = vsel %vm406, %v647, 0
      %v683 = vsel %vm406, %v648, 0
      %685 = vmatpush.bf16.msra.mxu0 0
      %686 = vmatpush.bf16.msra.mxu0 0
      %687 = vmatpush.bf16.msra.mxu0 0
      %688 = vmatpush.bf16.msra.mxu0 0
      %689 = vmatpush.bf16.msra.mxu0 %v668
      %690 = vmatpush.bf16.msra.mxu0 %v667
      %691 = vmatpush.bf16.msra.mxu0 %v666
      %692 = vmatpush.bf16.msra.mxu0 %v665
      %693 = vmatmul.bf16.gmra.mxu0 %v674
      %v694 = vpop.f32.mrf.mxu0
      %v695 = vadd.f32 0.0, %v694
      %v696 = vpop.f32.mrf.mxu0
      %v697 = vadd.f32 0.0, %v696
      %698 = vmatmul.bf16.gmra.mxu0 %v677
      %v699 = vpop.f32.mrf.mxu0
      %v700 = vadd.f32 0.0, %v699
      %v701 = vpop.f32.mrf.mxu0
      %v702 = vadd.f32 0.0, %v701
      %703 = vmatmul.bf16.gmra.mxu0 %v680
      %v704 = vpop.f32.mrf.mxu0
      %v705 = vadd.f32 0.0, %v704
      %v706 = vpop.f32.mrf.mxu0
      %v707 = vadd.f32 0.0, %v706
      %708 = vmatmul.bf16.gmra.mxu0 %v683
      %v709 = vpop.f32.mrf.mxu0
      %v710 = vadd.f32 0.0, %v709
      %v711 = vpop.f32.mrf.mxu0
      %v712 = vadd.f32 0.0, %v711
      %713 = vdwg.mxu0
      %v714 = vadd.f32 %v613, %v695
      %v715 = vadd.f32 %v614, %v697
      %v716 = vadd.f32 %v615, %v700
      %v717 = vadd.f32 %v616, %v702
      %v718 = vadd.f32 %v617, %v705
      %v719 = vadd.f32 %v618, %v707
      %v720 = vadd.f32 %v619, %v710
      %v721 = vadd.f32 %v620, %v712
      %v722 = vpack.c.bf16 %v714, %v714
      %v723 = vpack.c.bf16 %v715, %v715
      %v724 = vpack.c.bf16 %v716, %v716
      %v725 = vpack.c.bf16 %v717, %v717
      %v726 = vpack.c.bf16 %v718, %v718
      %v727 = vpack.c.bf16 %v719, %v719
      %v728 = vpack.c.bf16 %v720, %v720
      %v729 = vpack.c.bf16 %v721, %v721
      %730 = vst [vmem:[%s210] sm:$0xf] %v722
      %731 = vst [vmem:[%s210 + $0x4] sm:$0xf] %v723
      %732 = vst [vmem:[%s210 + $0x8] sm:$0xf] %v724
      %733 = vst [vmem:[%s210 + $0xc] sm:$0xf] %v725
      %734 = vst [vmem:[%s210 + $0x10] sm:$0xf] %v726
      %735 = vst [vmem:[%s210 + $0x14] sm:$0xf] %v727
      %736 = vst [vmem:[%s210 + $0x18] sm:$0xf] %v728
      %737 = vst [vmem:[%s210 + $0x1c] sm:$0xf] %v729
      %v738 = vadd.f32 %v714, %v715
      %v739 = vadd.f32 %v738, %v716
      %v740 = vadd.f32 %v739, %v717
      %v741 = vadd.f32 %v740, %v718
      %v742 = vadd.f32 %v741, %v719
      %v743 = vadd.f32 %v742, %v720
      %v744 = vadd.f32 %v743, %v721
      %v745 = vrot.slane %v744, 4
      %v746 = vadd.f32 %v744, %v745
      %v747 = vrot.slane %v746, 2
      %v748 = vadd.f32 %v746, %v747
      %v749 = vrot.slane %v748, 1
      %v750 = vadd.f32 %v748, %v749
      %v751 = vmul.f32 %v714, %v714
      %v752 = vmul.f32 %v715, %v715
      %v753 = vmul.f32 %v716, %v716
      %v754 = vmul.f32 %v717, %v717
      %v755 = vmul.f32 %v718, %v718
      %v756 = vmul.f32 %v719, %v719
      %v757 = vmul.f32 %v720, %v720
      %v758 = vmul.f32 %v721, %v721
      %v759 = vadd.f32 %v751, %v752
      %v760 = vadd.f32 %v759, %v753
      %v761 = vadd.f32 %v760, %v754
      %v762 = vadd.f32 %v761, %v755
      %v763 = vadd.f32 %v762, %v756
      %v764 = vadd.f32 %v763, %v757
      %v765 = vadd.f32 %v764, %v758
      %v766 = vrot.slane %v765, 4
      %v767 = vadd.f32 %v765, %v766
      %v768 = vrot.slane %v767, 2
      %v769 = vadd.f32 %v767, %v768
      %v770 = vrot.slane %v769, 1
      %v771 = vadd.f32 %v769, %v770
      %v772 = vlaneseq
      %v773 = vshrl.u32 %v772, 7
      %vm774 = vcmp.eq.s32.totalorder %v773, 0
      %v775 = vsel %vm774, 1, 0
      %vm776 = vcmp.eq.s32.totalorder %v775, 1
      %v777 = vsel %vm776, %v750, 0.0
      %778 = vst [vmem:[%s214] sm:$0xff] %v777
      %v779 = vsel %vm776, %v771, 0.0
      %780 = vst [vmem:[%s218] sm:$0xff] %v779
      %p781 = scmp.lt.s32.totalorder %s16, 1
      %s782 = scalar_select %p781, %s16, 1
      %s783 = smul.addr %s782, 8
      %s784 = smul.addr %s783, 4
      %s785 = scalar_lea.vmem %s2, %s784
      %p786 = scmp.lt.s32.totalorder %s16, 1
      %s787 = scalar_select %p786, %s16, 1
      %s788 = smul.addr %s787, 8
      %s789 = scalar_lea.vmem %s3, %s788
      %p790 = scmp.lt.s32.totalorder %s16, 1
      %s791 = scalar_select %p790, %s16, 1
      %s792 = smul.addr %s791, 8
      %s793 = scalar_lea.vmem %s4, %s792
      // Predicated region
      $region29: #{critic_forward.6} parent=27 // pred_check
        %p794 = pneg %p81
      $region30: #{critic_forward.6} parent=27 // pred_check_branch
        %796 = sbr.rel (%p794) target = $region32
      $region31: #{critic_forward.6} parent=27 // pred_region
        _
      $region32: #{critic_forward.6} parent=27 // pred_fallthru
        _
      // Predicated region
      $region33: #{critic_forward.6} parent=27 // pred_check
        %p797 = pneg %p107
      $region34: #{critic_forward.6} parent=27 // pred_check_branch
        %799 = sbr.rel (%p797) target = $region36
      $region35: #{critic_forward.6} parent=27 // pred_region
        _
      $region36: #{critic_forward.6} parent=27 // pred_fallthru
        _
      // Predicated region
      $region37: #{critic_forward.6} parent=27 // pred_check
        %p800 = pneg %p133
      $region38: #{critic_forward.6} parent=27 // pred_check_branch
        %802 = sbr.rel (%p800) target = $region40
      $region39: #{critic_forward.6} parent=27 // pred_region
        _
      $region40: #{critic_forward.6} parent=27 // pred_fallthru
        _
    $region28: #{critic_forward.6} parent=5 // pred_fallthru
      _
    %p803 = scmp.le.s32.totalorder 2, %s11
    // Predicated region
    $region41: #{critic_forward.6} parent=5 // pred_check
      %p804 = pneg %p803
    $region42: #{critic_forward.6} parent=5 // pred_check_branch
      %806 = sbr.rel (%p804) target = $region44
    $region43: #{critic_forward.6} parent=5 // pred_region
      %s807 = ssub.s32 %s11, 2
      // Predicated region
      $region45: #{critic_forward.6} parent=43 // pred_check
        %p808 = pneg %p87
      $region46: #{critic_forward.6} parent=43 // pred_check_branch
        %810 = sbr.rel (%p808) target = $region48
      $region47: #{critic_forward.6} parent=43 // pred_region
        %p811 = scmp.lt.s32.totalorder %s17, 1
        %s812 = scalar_select %p811, %s17, 1
        %s813 = smul.addr %s812, 8
        %s814 = smul.addr %s813, 4
        %s815 = scalar_lea.vmem %s2, %s814
      $region48: #{critic_forward.6} parent=43 // pred_fallthru
        _
      // Predicated region
      $region49: #{critic_forward.6} parent=43 // pred_check
        %p816 = pneg %p113
      $region50: #{critic_forward.6} parent=43 // pred_check_branch
        %818 = sbr.rel (%p816) target = $region52
      $region51: #{critic_forward.6} parent=43 // pred_region
        %p819 = scmp.lt.s32.totalorder %s17, 1
        %s820 = scalar_select %p819, %s17, 1
        %s821 = smul.addr %s820, 8
        %s822 = scalar_lea.vmem %s3, %s821
      $region52: #{critic_forward.6} parent=43 // pred_fallthru
        _
      // Predicated region
      $region53: #{critic_forward.6} parent=43 // pred_check
        %p823 = pneg %p139
      $region54: #{critic_forward.6} parent=43 // pred_check_branch
        %825 = sbr.rel (%p823) target = $region56
      $region55: #{critic_forward.6} parent=43 // pred_region
        %p826 = scmp.lt.s32.totalorder %s17, 1
        %s827 = scalar_select %p826, %s17, 1
        %s828 = smul.addr %s827, 8
        %s829 = scalar_lea.vmem %s4, %s828
      $region56: #{critic_forward.6} parent=43 // pred_fallthru
        _
    $region44: #{critic_forward.6} parent=5 // pred_fallthru
      _
  $region6: #{critic_forward.6} parent=0 // loop_footer
    %s15 = sadd.s32 1, %s11
  $region7: #{critic_forward.6} parent=0 // loop_footer_branch
    %10 = sbr.rel target = $region3
  $region8: #{critic_forward.6} parent=0 // loop_exit
    _

// kernel: critic_forward.7
$region0: #{critic_forward.7}
  #allocation0 [shape = 'u32[]', space=smem, size = 0x4, offset = 0x4, fixed_abs, tag = 'smem constant byte address 0x4 - core index']
  #allocation1 [shape = 'u32[72,128]{1,0:T(1,128)}', space=vmem, size = 0x9000, scoped, tag = 'internal scratch']
  #allocation2 [shape = 'f32[32,128]{1,0:T(8,128)}', space=vmem, size = 0x4000, scoped, tag = 'scratch operand']
  %s0 = inlined_call_operand.vmem [shape: bf16[32,512], index: 0, kind: input, shape index: {}]
  %s1 = inlined_call_operand.vmem [shape: bf16[512,128], index: 1, kind: input, shape index: {}]
  %s2 = inlined_call_operand.vmem [shape: bf16[32,128], index: 2, kind: output, shape index: {0}]
  %s3 = inlined_call_operand.vmem [shape: f32[8,128], index: 3, kind: output, shape index: {1}]
  %s4 = inlined_call_operand.vmem [shape: f32[8,128], index: 4, kind: output, shape index: {2}]
  %5 = xla_tuple %s2, %s3, %s4
  %s6 = sld [smem:[#allocation0]]
  $region42: #{critic_forward.7} parent=0
    _
  %s8 = ssub.s32 1, %s6
  %s9 = scalar_select 0, %s8, %s6
  // Predicated region
  $region2: #{critic_forward.7} parent=0 // pred_check
    _
  $region3: #{critic_forward.7} parent=0 // pred_check_branch
    %11 = sbr.rel (0) target = $region5
  $region4: #{critic_forward.7} parent=0 // pred_region
    _
  $region5: #{critic_forward.7} parent=0 // pred_fallthru
    _
  // Predicated region
  $region6: #{critic_forward.7} parent=0 // pred_check
    _
  $region7: #{critic_forward.7} parent=0 // pred_check_branch
    %13 = sbr.rel (0) target = $region9
  $region8: #{critic_forward.7} parent=0 // pred_region
    _
  $region9: #{critic_forward.7} parent=0 // pred_fallthru
    _
  %p14 = scmp.eq.s32.totalorder 0, 0
  // Predicated region
  $region10: #{critic_forward.7} parent=0 // pred_check
    %p15 = pneg %p14
  $region11: #{critic_forward.7} parent=0 // pred_check_branch
    %17 = sbr.rel (%p15) target = $region13
  $region12: #{critic_forward.7} parent=0 // pred_region
    %18 = vst [vmem:[#allocation2] sm:$0xff] 0.0
    %19 = vst [vmem:[#allocation2 + $0x8] sm:$0xff] 0.0
    %20 = vst [vmem:[#allocation2 + $0x10] sm:$0xff] 0.0
    %21 = vst [vmem:[#allocation2 + $0x18] sm:$0xff] 0.0
  $region13: #{critic_forward.7} parent=0 // pred_fallthru
    _
  %v22 = vld [vmem:[#allocation2] sm:$0xff]
  %v23 = vld [vmem:[#allocation2 + $0x8] sm:$0xff]
  %v24 = vld [vmem:[#allocation2 + $0x10] sm:$0xff]
  %v25 = vld [vmem:[#allocation2 + $0x18] sm:$0xff]
  %v26 = vld [vmem:[%s0] sm:$0xff]
  %v27 = vld [vmem:[%s0 + $0x8] sm:$0xff]
  %v28 = vld [vmem:[%s0 + $0x10] sm:$0xff]
  %v29 = vld [vmem:[%s0 + $0x18] sm:$0xff]
  %v30 = vld [vmem:[%s0 + $0x20] sm:$0xff]
  %v31 = vld [vmem:[%s0 + $0x28] sm:$0xff]
  %v32 = vld [vmem:[%s0 + $0x30] sm:$0xff]
  %v33 = vld [vmem:[%s0 + $0x38] sm:$0xff]
  %v34 = vld [vmem:[%s1] sm:$0xf]
  %v35 = vld [vmem:[%s1 + $0x4] sm:$0xf]
  %v36 = vld [vmem:[%s1 + $0x8] sm:$0xf]
  %v37 = vld [vmem:[%s1 + $0xc] sm:$0xf]
  %v38 = vld [vmem:[%s1 + $0x10] sm:$0xf]
  %v39 = vld [vmem:[%s1 + $0x14] sm:$0xf]
  %v40 = vld [vmem:[%s1 + $0x18] sm:$0xf]
  %v41 = vld [vmem:[%s1 + $0x1c] sm:$0xf]
  %v42 = vld [vmem:[%s1 + $0x20] sm:$0xf]
  %v43 = vld [vmem:[%s1 + $0x24] sm:$0xf]
  %v44 = vld [vmem:[%s1 + $0x28] sm:$0xf]
  %v45 = vld [vmem:[%s1 + $0x2c] sm:$0xf]
  %v46 = vld [vmem:[%s1 + $0x30] sm:$0xf]
  %v47 = vld [vmem:[%s1 + $0x34] sm:$0xf]
  %v48 = vld [vmem:[%s1 + $0x38] sm:$0xf]
  %v49 = vld [vmem:[%s1 + $0x3c] sm:$0xf]
  %v50 = vld [vmem:[%s1 + $0x40] sm:$0xf]
  %v51 = vld [vmem:[%s1 + $0x44] sm:$0xf]
  %v52 = vld [vmem:[%s1 + $0x48] sm:$0xf]
  %v53 = vld [vmem:[%s1 + $0x4c] sm:$0xf]
  %v54 = vld [vmem:[%s1 + $0x50] sm:$0xf]
  %v55 = vld [vmem:[%s1 + $0x54] sm:$0xf]
  %v56 = vld [vmem:[%s1 + $0x58] sm:$0xf]
  %v57 = vld [vmem:[%s1 + $0x5c] sm:$0xf]
  %v58 = vld [vmem:[%s1 + $0x60] sm:$0xf]
  %v59 = vld [vmem:[%s1 + $0x64] sm:$0xf]
  %v60 = vld [vmem:[%s1 + $0x68] sm:$0xf]
  %v61 = vld [vmem:[%s1 + $0x6c] sm:$0xf]
  %v62 = vld [vmem:[%s1 + $0x70] sm:$0xf]
  %v63 = vld [vmem:[%s1 + $0x74] sm:$0xf]
  %v64 = vld [vmem:[%s1 + $0x78] sm:$0xf]
  %v65 = vld [vmem:[%s1 + $0x7c] sm:$0xf]
  %v66 = vld [vmem:[%s1 + $0x80] sm:$0xf]
  %v67 = vld [vmem:[%s1 + $0x84] sm:$0xf]
  %v68 = vld [vmem:[%s1 + $0x88] sm:$0xf]
  %v69 = vld [vmem:[%s1 + $0x8c] sm:$0xf]
  %v70 = vld [vmem:[%s1 + $0x90] sm:$0xf]
  %v71 = vld [vmem:[%s1 + $0x94] sm:$0xf]
  %v72 = vld [vmem:[%s1 + $0x98] sm:$0xf]
  %v73 = vld [vmem:[%s1 + $0x9c] sm:$0xf]
  %v74 = vld [vmem:[%s1 + $0xa0] sm:$0xf]
  %v75 = vld [vmem:[%s1 + $0xa4] sm:$0xf]
  %v76 = vld [vmem:[%s1 + $0xa8] sm:$0xf]
  %v77 = vld [vmem:[%s1 + $0xac] sm:$0xf]
  %v78 = vld [vmem:[%s1 + $0xb0] sm:$0xf]
  %v79 = vld [vmem:[%s1 + $0xb4] sm:$0xf]
  %v80 = vld [vmem:[%s1 + $0xb8] sm:$0xf]
  %v81 = vld [vmem:[%s1 + $0xbc] sm:$0xf]
  %v82 = vld [vmem:[%s1 + $0xc0] sm:$0xf]
  %v83 = vld [vmem:[%s1 + $0xc4] sm:$0xf]
  %v84 = vld [vmem:[%s1 + $0xc8] sm:$0xf]
  %v85 = vld [vmem:[%s1 + $0xcc] sm:$0xf]
  %v86 = vld [vmem:[%s1 + $0xd0] sm:$0xf]
  %v87 = vld [vmem:[%s1 + $0xd4] sm:$0xf]
  %v88 = vld [vmem:[%s1 + $0xd8] sm:$0xf]
  %v89 = vld [vmem:[%s1 + $0xdc] sm:$0xf]
  %v90 = vld [vmem:[%s1 + $0xe0] sm:$0xf]
  %v91 = vld [vmem:[%s1 + $0xe4] sm:$0xf]
  %v92 = vld [vmem:[%s1 + $0xe8] sm:$0xf]
  %v93 = vld [vmem:[%s1 + $0xec] sm:$0xf]
  %v94 = vld [vmem:[%s1 + $0xf0] sm:$0xf]
  %v95 = vld [vmem:[%s1 + $0xf4] sm:$0xf]
  %v96 = vld [vmem:[%s1 + $0xf8] sm:$0xf]
  %v97 = vld [vmem:[%s1 + $0xfc] sm:$0xf]
  %v106 = vunpack.c.l.b16 %v26
  %v107 = vunpack.c.h.b16 %v26
  %v108 = vunpack.c.l.b16 %v27
  %v109 = vunpack.c.h.b16 %v27
  %v110 = vunpack.c.l.b16 %v28
  %v111 = vunpack.c.h.b16 %v28
  %v112 = vunpack.c.l.b16 %v29
  %v113 = vunpack.c.h.b16 %v29
  %v114 = vunpack.c.l.b16 %v30
  %v115 = vunpack.c.h.b16 %v30
  %v116 = vunpack.c.l.b16 %v31
  %v117 = vunpack.c.h.b16 %v31
  %v118 = vunpack.c.l.b16 %v32
  %v119 = vunpack.c.h.b16 %v32
  %v120 = vunpack.c.l.b16 %v33
  %v121 = vunpack.c.h.b16 %v33
  %v122 = vpack.c.b16 %v110, %v106
  %v123 = vpack.c.b16 %v111, %v107
  %v124 = vpack.c.b16 %v112, %v108
  %v125 = vpack.c.b16 %v113, %v109
  %v126 = vpack.c.b16 %v118, %v114
  %v127 = vpack.c.b16 %v119, %v115
  %v128 = vpack.c.b16 %v120, %v116
  %v129 = vpack.c.b16 %v121, %v117
  %v202 = vunpack.c.l.b16 %v34
  %v203 = vunpack.c.l.b16 %v35
  %v204 = vunpack.c.l.b16 %v36
  %v205 = vunpack.c.l.b16 %v37
  %v206 = vunpack.c.l.b16 %v38
  %v207 = vunpack.c.l.b16 %v39
  %v208 = vunpack.c.l.b16 %v40
  %v209 = vunpack.c.l.b16 %v41
  %v210 = vunpack.c.l.b16 %v42
  %v211 = vunpack.c.l.b16 %v43
  %v212 = vunpack.c.l.b16 %v44
  %v213 = vunpack.c.l.b16 %v45
  %v214 = vunpack.c.l.b16 %v46
  %v215 = vunpack.c.l.b16 %v47
  %v216 = vunpack.c.l.b16 %v48
  %v217 = vunpack.c.l.b16 %v49
  %v218 = vunpack.c.l.b16 %v50
  %v219 = vunpack.c.l.b16 %v51
  %v220 = vunpack.c.l.b16 %v52
  %v221 = vunpack.c.l.b16 %v53
  %v222 = vunpack.c.l.b16 %v54
  %v223 = vunpack.c.l.b16 %v55
  %v224 = vunpack.c.l.b16 %v56
  %v225 = vunpack.c.l.b16 %v57
  %v226 = vunpack.c.l.b16 %v58
  %v227 = vunpack.c.l.b16 %v59
  %v228 = vunpack.c.l.b16 %v60
  %v229 = vunpack.c.l.b16 %v61
  %v230 = vunpack.c.l.b16 %v62
  %v231 = vunpack.c.l.b16 %v63
  %v232 = vunpack.c.l.b16 %v64
  %v233 = vunpack.c.l.b16 %v65
  %v234 = vunpack.c.l.b16 %v66
  %v235 = vunpack.c.l.b16 %v67
  %v236 = vunpack.c.l.b16 %v68
  %v237 = vunpack.c.l.b16 %v69
  %v238 = vunpack.c.l.b16 %v70
  %v239 = vunpack.c.l.b16 %v71
  %v240 = vunpack.c.l.b16 %v72
  %v241 = vunpack.c.l.b16 %v73
  %v242 = vunpack.c.l.b16 %v74
  %v243 = vunpack.c.l.b16 %v75
  %v244 = vunpack.c.l.b16 %v76
  %v245 = vunpack.c.l.b16 %v77
  %v246 = vunpack.c.l.b16 %v78
  %v247 = vunpack.c.l.b16 %v79
  %v248 = vunpack.c.l.b16 %v80
  %v249 = vunpack.c.l.b16 %v81
  %v250 = vunpack.c.l.b16 %v82
  %v251 = vunpack.c.l.b16 %v83
  %v252 = vunpack.c.l.b16 %v84
  %v253 = vunpack.c.l.b16 %v85
  %v254 = vunpack.c.l.b16 %v86
  %v255 = vunpack.c.l.b16 %v87
  %v256 = vunpack.c.l.b16 %v88
  %v257 = vunpack.c.l.b16 %v89
  %v258 = vunpack.c.l.b16 %v90
  %v259 = vunpack.c.l.b16 %v91
  %v260 = vunpack.c.l.b16 %v92
  %v261 = vunpack.c.l.b16 %v93
  %v262 = vunpack.c.l.b16 %v94
  %v263 = vunpack.c.l.b16 %v95
  %v264 = vunpack.c.l.b16 %v96
  %v265 = vunpack.c.l.b16 %v97
  %v266 = vpack.c.b16 %v203, %v202
  %v267 = vpack.c.b16 %v205, %v204
  %v268 = vpack.c.b16 %v207, %v206
  %v269 = vpack.c.b16 %v209, %v208
  %v270 = vpack.c.b16 %v211, %v210
  %v271 = vpack.c.b16 %v213, %v212
  %v272 = vpack.c.b16 %v215, %v214
  %v273 = vpack.c.b16 %v217, %v216
  %v274 = vpack.c.b16 %v219, %v218
  %v275 = vpack.c.b16 %v221, %v220
  %v276 = vpack.c.b16 %v223, %v222
  %v277 = vpack.c.b16 %v225, %v224
  %v278 = vpack.c.b16 %v227, %v226
  %v279 = vpack.c.b16 %v229, %v228
  %v280 = vpack.c.b16 %v231, %v230
  %v281 = vpack.c.b16 %v233, %v232
  %v282 = vpack.c.b16 %v235, %v234
  %v283 = vpack.c.b16 %v237, %v236
  %v284 = vpack.c.b16 %v239, %v238
  %v285 = vpack.c.b16 %v241, %v240
  %v286 = vpack.c.b16 %v243, %v242
  %v287 = vpack.c.b16 %v245, %v244
  %v288 = vpack.c.b16 %v247, %v246
  %v289 = vpack.c.b16 %v249, %v248
  %v290 = vpack.c.b16 %v251, %v250
  %v291 = vpack.c.b16 %v253, %v252
  %v292 = vpack.c.b16 %v255, %v254
  %v293 = vpack.c.b16 %v257, %v256
  %v294 = vpack.c.b16 %v259, %v258
  %v295 = vpack.c.b16 %v261, %v260
  %v296 = vpack.c.b16 %v263, %v262
  %v297 = vpack.c.b16 %v265, %v264
  %330 = vmatpush.bf16.msra.mxu0 %v273
  %331 = vmatpush.bf16.msra.mxu0 %v272
  %332 = vmatpush.bf16.msra.mxu0 %v271
  %333 = vmatpush.bf16.msra.mxu0 %v270
  %334 = vmatpush.bf16.msra.mxu0 %v269
  %335 = vmatpush.bf16.msra.mxu0 %v268
  %336 = vmatpush.bf16.msra.mxu0 %v267
  %337 = vmatpush.bf16.msra.mxu0 %v266
  %338 = vmatmul.bf16.gmra.mxu0 %v122
  %v339 = vpop.f32.mrf.mxu0
  %v340 = vadd.f32 0.0, %v339
  %v341 = vpop.f32.mrf.mxu0
  %v342 = vadd.f32 0.0, %v341
  %343 = vmatmul.bf16.gmra.mxu0 %v126
  %v344 = vpop.f32.mrf.mxu0
  %v345 = vadd.f32 0.0, %v344
  %v346 = vpop.f32.mrf.mxu0
  %v347 = vadd.f32 0.0, %v346
  %348 = vdwg.mxu0
  %349 = vmatpush.bf16.msra.mxu0 %v281
  %350 = vmatpush.bf16.msra.mxu0 %v280
  %351 = vmatpush.bf16.msra.mxu0 %v279
  %352 = vmatpush.bf16.msra.mxu0 %v278
  %353 = vmatpush.bf16.msra.mxu0 %v277
  %354 = vmatpush.bf16.msra.mxu0 %v276
  %355 = vmatpush.bf16.msra.mxu0 %v275
  %356 = vmatpush.bf16.msra.mxu0 %v274
  %357 = vmatmul.bf16.gmra.mxu0 %v123
  %v358 = vpop.f32.mrf.mxu0
  %v359 = vadd.f32 %v340, %v358
  %v360 = vpop.f32.mrf.mxu0
  %v361 = vadd.f32 %v342, %v360
  %362 = vmatmul.bf16.gmra.mxu0 %v127
  %v363 = vpop.f32.mrf.mxu0
  %v364 = vadd.f32 %v345, %v363
  %v365 = vpop.f32.mrf.mxu0
  %v366 = vadd.f32 %v347, %v365
  %367 = vdwg.mxu0
  %368 = vmatpush.bf16.msra.mxu0 %v289
  %369 = vmatpush.bf16.msra.mxu0 %v288
  %370 = vmatpush.bf16.msra.mxu0 %v287
  %371 = vmatpush.bf16.msra.mxu0 %v286
  %372 = vmatpush.bf16.msra.mxu0 %v285
  %373 = vmatpush.bf16.msra.mxu0 %v284
  %374 = vmatpush.bf16.msra.mxu0 %v283
  %375 = vmatpush.bf16.msra.mxu0 %v282
  %376 = vmatmul.bf16.gmra.mxu0 %v124
  %v377 = vpop.f32.mrf.mxu0
  %v378 = vadd.f32 %v359, %v377
  %v379 = vpop.f32.mrf.mxu0
  %v380 = vadd.f32 %v361, %v379
  %381 = vmatmul.bf16.gmra.mxu0 %v128
  %v382 = vpop.f32.mrf.mxu0
  %v383 = vadd.f32 %v364, %v382
  %v384 = vpop.f32.mrf.mxu0
  %v385 = vadd.f32 %v366, %v384
  %386 = vdwg.mxu0
  %387 = vmatpush.bf16.msra.mxu0 %v297
  %388 = vmatpush.bf16.msra.mxu0 %v296
  %389 = vmatpush.bf16.msra.mxu0 %v295
  %390 = vmatpush.bf16.msra.mxu0 %v294
  %391 = vmatpush.bf16.msra.mxu0 %v293
  %392 = vmatpush.bf16.msra.mxu0 %v292
  %393 = vmatpush.bf16.msra.mxu0 %v291
  %394 = vmatpush.bf16.msra.mxu0 %v290
  %395 = vmatmul.bf16.gmra.mxu0 %v125
  %v396 = vpop.f32.mrf.mxu0
  %v397 = vadd.f32 %v378, %v396
  %v398 = vpop.f32.mrf.mxu0
  %v399 = vadd.f32 %v380, %v398
  %400 = vmatmul.bf16.gmra.mxu0 %v129
  %v401 = vpop.f32.mrf.mxu0
  %v402 = vadd.f32 %v383, %v401
  %v403 = vpop.f32.mrf.mxu0
  %v404 = vadd.f32 %v385, %v403
  %405 = vdwg.mxu0
  %v406 = vadd.f32 %v22, %v397
  %v407 = vadd.f32 %v23, %v399
  %v408 = vadd.f32 %v24, %v402
  %v409 = vadd.f32 %v25, %v404
  %410 = vst [vmem:[#allocation2] sm:$0xff] %v406
  %411 = vst [vmem:[#allocation2 + $0x8] sm:$0xff] %v407
  %412 = vst [vmem:[#allocation2 + $0x10] sm:$0xff] %v408
  %413 = vst [vmem:[#allocation2 + $0x18] sm:$0xff] %v409
  // Predicated region
  $region14: #{critic_forward.7} parent=0 // pred_check
    %p414 = pneg %p14
  $region15: #{critic_forward.7} parent=0 // pred_check_branch
    %416 = sbr.rel (%p414) target = $region17
  $region16: #{critic_forward.7} parent=0 // pred_region
    %v417 = vld [vmem:[#allocation2] sm:$0xff]
    %v418 = vld [vmem:[#allocation2 + $0x8] sm:$0xff]
    %v419 = vld [vmem:[#allocation2 + $0x10] sm:$0xff]
    %v420 = vld [vmem:[#allocation2 + $0x18] sm:$0xff]
    %v421 = vpack.c.bf16 %v417, %v417
    %v422 = vpack.c.bf16 %v418, %v418
    %v423 = vpack.c.bf16 %v419, %v419
    %v424 = vpack.c.bf16 %v420, %v420
    %425 = vst [vmem:[%s2] sm:$0xf] %v421
    %426 = vst [vmem:[%s2 + $0x4] sm:$0xf] %v422
    %427 = vst [vmem:[%s2 + $0x8] sm:$0xf] %v423
    %428 = vst [vmem:[%s2 + $0xc] sm:$0xf] %v424
    %v429 = vlaneseq
    %v430 = vshrl.u32 %v429, 7
    %v431 = vadd.s32 %v430, 8
    %v432 = vadd.s32 %v430, 16
    %v433 = vadd.s32 %v430, 24
    %s434 = smul.u32 0, 32
    %v435 = vstv %s434
    %v436 = vadd.s32 %v430, %v435
    %v437 = vadd.s32 %v431, %v435
    %v438 = vadd.s32 %v432, %v435
    %v439 = vadd.s32 %v433, %v435
    %vm440 = vcmp.lt.s32.totalorder %v436, 32
    %vm441 = vcmp.lt.s32.totalorder %v437, 32
    %vm442 = vcmp.lt.s32.totalorder %v438, 32
    %vm443 = vcmp.lt.s32.totalorder %v439, 32
    %v444 = vsel %vm440, 1, 0
    %v445 = vsel %vm441, 1, 0
    %v446 = vsel %vm442, 1, 0
    %v447 = vsel %vm443, 1, 0
    %vm448 = vcmp.eq.s32.totalorder %v444, 1
    %vm449 = vcmp.eq.s32.totalorder %v445, 1
    %vm450 = vcmp.eq.s32.totalorder %v446, 1
    %vm451 = vcmp.eq.s32.totalorder %v447, 1
    %v452 = vsel %vm448, %v417, 0.0
    %v453 = vsel %vm449, %v418, 0.0
    %v454 = vsel %vm450, %v419, 0.0
    %v455 = vsel %vm451, %v420, 0.0
    %v456 = vadd.f32 %v452, %v453
    %v457 = vadd.f32 %v456, %v454
    %v458 = vadd.f32 %v457, %v455
    %v459 = vrot.slane %v458, 4
    %v460 = vadd.f32 %v458, %v459
    %v461 = vrot.slane %v460, 2
    %v462 = vadd.f32 %v460, %v461
    %v463 = vrot.slane %v462, 1
    %v464 = vadd.f32 %v462, %v463
    %v465 = vmul.f32 %v452, %v452
    %v466 = vmul.f32 %v453, %v453
    %v467 = vmul.f32 %v454, %v454
    %v468 = vmul.f32 %v455, %v455
    %v469 = vadd.f32 %v465, %v466
    %v470 = vadd.f32 %v469, %v467
    %v471 = vadd.f32 %v470, %v468
    %v472 = vrot.slane %v471, 4
    %v473 = vadd.f32 %v471, %v472
    %v474 = vrot.slane %v473, 2
    %v475 = vadd.f32 %v473, %v474
    %v476 = vrot.slane %v475, 1
    %v477 = vadd.f32 %v475, %v476
    %vm478 = vcmp.eq.s32.totalorder %v430, 0
    %v479 = vsel %vm478, 1, 0
    %vm480 = vcmp.eq.s32.totalorder %v479, 1
    %v481 = vsel %vm480, %v464, 0.0
    %482 = vst [vmem:[%s3] sm:$0xff] %v481
    %v483 = vsel %vm480, %v477, 0.0
    %484 = vst [vmem:[%s4] sm:$0xff] %v483
  $region17: #{critic_forward.7} parent=0 // pred_fallthru
    _
  // Predicated region
  $region18: #{critic_forward.7} parent=0 // pred_check
    _
  $region19: #{critic_forward.7} parent=0 // pred_check_branch
    %486 = sbr.rel (0) target = $region21
  $region20: #{critic_forward.7} parent=0 // pred_region
    _
  $region21: #{critic_forward.7} parent=0 // pred_fallthru
    _
  // Predicated region
  $region22: #{critic_forward.7} parent=0 // pred_check
    _
  $region23: #{critic_forward.7} parent=0 // pred_check_branch
    %488 = sbr.rel (0) target = $region25
  $region24: #{critic_forward.7} parent=0 // pred_region
    _
  $region25: #{critic_forward.7} parent=0 // pred_fallthru
    _
  // Predicated region
  $region26: #{critic_forward.7} parent=0 // pred_check
    _
  $region27: #{critic_forward.7} parent=0 // pred_check_branch
    %490 = sbr.rel (0) target = $region29
  $region28: #{critic_forward.7} parent=0 // pred_region
    _
  $region29: #{critic_forward.7} parent=0 // pred_fallthru
    _
  // Predicated region
  $region30: #{critic_forward.7} parent=0 // pred_check
    _
  $region31: #{critic_forward.7} parent=0 // pred_check_branch
    %492 = sbr.rel (0) target = $region33
  $region32: #{critic_forward.7} parent=0 // pred_region
    _
  $region33: #{critic_forward.7} parent=0 // pred_fallthru
    _
  // Predicated region
  $region34: #{critic_forward.7} parent=0 // pred_check
    _
  $region35: #{critic_forward.7} parent=0 // pred_check_branch
    %494 = sbr.rel (0) target = $region37
  $region36: #{critic_forward.7} parent=0 // pred_region
    _
  $region37: #{critic_forward.7} parent=0 // pred_fallthru
    _
  // Predicated region
  $region38: #{critic_forward.7} parent=0 // pred_check
    _
  $region39: #{critic_forward.7} parent=0 // pred_check_branch
    %496 = sbr.rel (0) target = $region41
  $region40: #{critic_forward.7} parent=0 // pred_region
    _
  $region41: #{critic_forward.7} parent=0 // pred_fallthru
    _

</llo_original>
